<compile_context>
chip_gen: v5e
topology: v5e:2x2
jax: 0.10.0
libtpu: 0.0.40
codegen_flags: <defaults>
</compile_context>

<pallas_src>
import functools

import jax
import jax.numpy as jnp
from jax.experimental import pallas as pl
from jax.experimental.pallas import tpu as pltpu

HIGH = jax.lax.Precision.HIGHEST   # used only by the pure-JAX reference
LN_EPS = 1e-5


# ----------------------------------------------------------------------------
# In-kernel math helpers (traced inside Pallas kernels only, f32).
# ----------------------------------------------------------------------------
def _erf(x):
    # Abramowitz & Stegun 7.1.26 rational approximation, |error| <= 1.5e-7.
    a1, a2, a3, a4, a5 = 0.254829592, -0.284496736, 1.421413741, -1.453152027, 1.061405429
    p = 0.3275911
    sgn = jnp.where(x >= 0.0, 1.0, -1.0)
    ax = jnp.abs(x)
    t = 1.0 / (1.0 + p * ax)
    poly = ((((a5 * t + a4) * t + a3) * t + a2) * t + a1) * t
    return sgn * (1.0 - poly * jnp.exp(-ax * ax))


def _gelu_exact(x):
    return 0.5 * x * (1.0 + _erf(x * 0.7071067811865476))


def _layernorm(x, g, b):
    mu = jnp.mean(x, axis=-1, keepdims=True)
    var = jnp.mean(jnp.square(x - mu), axis=-1, keepdims=True)
    return (x - mu) * jax.lax.rsqrt(var + LN_EPS) * g + b


# ----------------------------------------------------------------------------
# Pallas kernels.
# ----------------------------------------------------------------------------
def _embed_kernel(p_ref, w_ref, b_ref, o_ref):
    # Single-step patch-embedding matmul, output lane-padded to 128.
    y = jnp.dot(p_ref[...].astype(jnp.bfloat16), w_ref[...],
                preferred_element_type=jnp.float32)
    o_ref[...] = y + b_ref[...]


def _encoder_stack_kernel(x_ref, ln1g_ref, ln1b_ref, wqkv_ref, bqkv_ref,
                          wo_ref, bo_ref, ln2g_ref, ln2b_ref,
                          w1_ref, b1_ref, w2_ref, b2_ref, o_ref,
                          *, n_heads, n_valid_b, b_pad):
    """One (token_tile, depth) grid step of the fully-fused encoder stack."""
    d = pl.program_id(1)
    rows, e = x_ref.shape                 # rows = token_tile * b_pad
    tt = rows // b_pad
    hd = e // n_heads

    # Depth carry: the output block stays VMEM-resident across the whole
    # depth ("arbitrary") axis; seed it from the input at the first block.
    @pl.when(d == 0)
    def _():
        o_ref[...] = x_ref[...]

    xf = o_ref[...]                                     # (rows, e) f32

    wqkv = wqkv_ref[0]                                  # (3, e, e)  bf16
    bqkv = bqkv_ref[0]                                  # (3, 1, e)  f32

    # ---- LN1 + QKV projection (bf16 in / f32 accumulate) --------------------
    n1 = _layernorm(xf, ln1g_ref[0], ln1b_ref[0])
    n1b = n1.astype(jnp.bfloat16)
    # Attention scale is pre-folded into Wq / bq at pack time.
    q = (jnp.dot(n1b, wqkv[0], preferred_element_type=jnp.float32)
         + bqkv[0]).reshape(tt, b_pad, e)
    k = (jnp.dot(n1b, wqkv[1], preferred_element_type=jnp.float32)
         + bqkv[1]).reshape(tt, b_pad, e)
    v = (jnp.dot(n1b, wqkv[2], preferred_element_type=jnp.float32)
         + bqkv[2]).reshape(tt, b_pad, e)
    kb = k.astype(jnp.bfloat16)                         # hoisted out of head loop

    # ---- multi-head attention ------------------------------------------------
    # PyTorch MHA quirk (batch_first=False): attention batch = tokens,
    # attention sequence = image batch.  Padded image columns are masked out
    # of the softmax keys; padded token rows are garbage and dropped later.
    kcol = jax.lax.broadcasted_iota(jnp.int32, (1, 1, b_pad), 2)
    key_bias = jnp.where(kcol < n_valid_b, 0.0, -1e30)            # (1, 1, b_pad)
    lane = jax.lax.broadcasted_iota(jnp.int32, (1, 1, e), 2)
    hmasks = [jnp.where((lane >= h * hd) & (lane < (h + 1) * hd), 1.0, 0.0)
              for h in range(n_heads)]                  # hoisted, reused for q & v

    att = jnp.zeros((tt, b_pad, e), jnp.float32)
    for h in range(n_heads):                            # statically unrolled
        qh = (q * hmasks[h]).astype(jnp.bfloat16)
        s = jnp.einsum("tbd,tcd->tbc", qh, kb,
                       preferred_element_type=jnp.float32) + key_bias
        s = s - jnp.max(s, axis=-1, keepdims=True)
        p = jnp.exp(s)
        p = p / jnp.sum(p, axis=-1, keepdims=True)      # exact (no approx recip)
        vh = (v * hmasks[h]).astype(jnp.bfloat16)
        att = att + jnp.einsum("tbc,tcd->tbd", p.astype(jnp.bfloat16), vh,
                               preferred_element_type=jnp.float32)

    # ---- out-projection + residual ------------------------------------------
    h2 = xf + jnp.dot(att.reshape(rows, e).astype(jnp.bfloat16), wo_ref[0],
                      preferred_element_type=jnp.float32) + bo_ref[0]

    # ---- LN2 -> MLP (exact-erf GELU) -> residual ------------------------------
    # TODO(synk): attention dropout (p=0.1) and MLP dropout are identity (eval).
    n2 = _layernorm(h2, ln2g_ref[0], ln2b_ref[0])
    m = jnp.dot(n2.astype(jnp.bfloat16), w1_ref[0],
                preferred_element_type=jnp.float32) + b1_ref[0]
    m = _gelu_exact(m)
    h3 = h2 + jnp.dot(m.astype(jnp.bfloat16), w2_ref[0],
                      preferred_element_type=jnp.float32) + b2_ref[0]

    o_ref[...] = h3.astype(o_ref.dtype)


def _classhead_kernel(x_ref, g_ref, b_ref, w_ref, bias_ref, o_ref):
    x = x_ref[...].astype(jnp.float32)           # (B, T, E)
    pooled = jnp.mean(x, axis=1)                 # mean over tokens -> (B, E)
    hh = _layernorm(pooled, g_ref[...], b_ref[...])
    y = jnp.dot(hh.astype(jnp.bfloat16), w_ref[...],
                preferred_element_type=jnp.float32)
    o_ref[...] = (y + bias_ref[...]).astype(o_ref.dtype)


# ----------------------------------------------------------------------------
# pallas_call wrappers.
# ----------------------------------------------------------------------------
_VMEM = pl.BlockSpec(memory_space=pltpu.MemorySpace.VMEM)


def _depth_weight_spec(arr):
    """(depth, ...) stacked weight -> one depth slice streamed per depth step."""
    nd = arr.ndim
    return pl.BlockSpec((1,) + tuple(arr.shape[1:]),
                        lambda i, d, _nd=nd: (d,) + (0,) * (_nd - 1))


def pallas_embed(patches, w_bf16, b):
    rows = patches.shape[0]
    npad = w_bf16.shape[1]
    return pl.pallas_call(
        _embed_kernel,
        out_shape=jax.ShapeDtypeStruct((rows, npad), jnp.float32),
        in_specs=[_VMEM, _VMEM, _VMEM],
        out_specs=_VMEM,
    )(patches, w_bf16, b)


def pallas_encoder_stack(h_flat, pk, *, n_heads, n_valid_b, b_pad, token_tile):
    rows_total, e = h_flat.shape
    depth = pk["wqkv"].shape[0]
    t_pad = rows_total // b_pad
    assert t_pad % token_tile == 0 and token_tile % 8 == 0
    n_tiles = t_pad // token_tile
    rows_tile = token_tile * b_pad

    weights = (pk["ln1_g"], pk["ln1_b"], pk["wqkv"], pk["bqkv"],
               pk["wo"], pk["bo"], pk["ln2_g"], pk["ln2_b"],
               pk["w1"], pk["b1"], pk["w2"], pk["b2"])

    kern = functools.partial(_encoder_stack_kernel, n_heads=n_heads,
                             n_valid_b=n_valid_b, b_pad=b_pad)

    act_spec = pl.BlockSpec((rows_tile, e), lambda i, d: (i, 0))
    return pl.pallas_call(
        kern,
        out_shape=jax.ShapeDtypeStruct((rows_total, e), jnp.float32),
        grid=(n_tiles, depth),                 # token tiles outer, depth inner
        in_specs=[act_spec] + [_depth_weight_spec(w) for w in weights],
        out_specs=act_spec,                    # same block across depth -> carry
        compiler_params=pltpu.CompilerParams(
            dimension_semantics=("parallel", "arbitrary")),
    )(h_flat, *weights)


def pallas_classhead(x_bte, g, b, w_bf16, bias):
    bsz = x_bte.shape[0]
    npad = w_bf16.shape[1]
    return pl.pallas_call(
        _classhead_kernel,
        out_shape=jax.ShapeDtypeStruct((bsz, npad), jnp.float32),
        in_specs=[_VMEM] * 5,
        out_specs=_VMEM,
    )(x_bte, g, b, w_bf16, bias)


# ----------------------------------------------------------------------------
# One-time parameter packing (stacking, bf16 casts, lane padding, scale fold).
# ----------------------------------------------------------------------------
def pack_params(params, *, n_heads):
    E = params["conv_w"].shape[0]
    c, p, _ = params["conv_w"].shape[1:]
    cpp = c * p * p
    hd = E // n_heads
    scale = 1.0 / float(hd) ** 0.5
    n_classes = params["cls_w"].shape[1]
    ncls_pad = ((n_classes + 127) // 128) * 128
    emb_pad = 128                                   # lane-dense embedding output

    w_patch = params["conv_w"].reshape(E, cpp).T    # (cpp, E)
    w_patch = jnp.pad(w_patch, ((0, 0), (0, emb_pad - E))).astype(jnp.bfloat16)
    conv_b = jnp.pad(params["conv_b"], (0, emb_pad - E)).reshape(1, emb_pad)

    blocks = params["blocks"]

    def stack(key, fn=lambda a: a):
        return jnp.stack([fn(blk[key]) for blk in blocks], axis=0)

    return dict(
        w_patch=w_patch, conv_b=conv_b,
        cls_token=params["cls_token"], positions=params["positions"],
        ln1_g=stack("ln1_g", lambda a: a.reshape(1, E)),
        ln1_b=stack("ln1_b", lambda a: a.reshape(1, E)),
        # Attention scale folded into Wq / bq (zero in-kernel cost).
        wqkv=jnp.stack([jnp.stack([blk["wq"] * scale, blk["wk"], blk["wv"]], 0)
                        for blk in blocks], 0).astype(jnp.bfloat16),
        bqkv=jnp.stack([jnp.stack([blk["bq"] * scale, blk["bk"], blk["bv"]], 0)
                        for blk in blocks], 0)[:, :, None, :],
        wo=stack("wo").astype(jnp.bfloat16),
        bo=stack("bo", lambda a: a.reshape(1, E)),
        ln2_g=stack("ln2_g", lambda a: a.reshape(1, E)),
        ln2_b=stack("ln2_b", lambda a: a.reshape(1, E)),
        w1=stack("w1").astype(jnp.bfloat16),
        b1=stack("b1", lambda a: a.reshape(1, -1)),
        w2=stack("w2").astype(jnp.bfloat16),
        b2=stack("b2", lambda a: a.reshape(1, E)),
        cls_ln_g=params["cls_ln_g"].reshape(1, E),
        cls_ln_b=params["cls_ln_b"].reshape(1, E),
        cls_w=jnp.pad(params["cls_w"],
                      ((0, 0), (0, ncls_pad - n_classes))).astype(jnp.bfloat16),
        cls_b=jnp.pad(params["cls_b"], (0, ncls_pad - n_classes)).reshape(1, ncls_pad),
    )


# ----------------------------------------------------------------------------
# ViT forward (Pallas kernels for all heavy math; tiny reshapes/pads in JAX).
# ----------------------------------------------------------------------------
def vit_forward(x_nchw, pk, *, patch_size, n_heads, n_classes, token_tile=16):
    B, C, H, W = x_nchw.shape
    P = patch_size
    E = pk["ln1_g"].shape[-1]
    gh, gw = H // P, W // P
    N = gh * gw
    T = N + 1

    B_pad = ((B + 7) // 8) * 8                      # sublane multiple
    T_pad = ((T + token_tile - 1) // token_tile) * token_tile

    # --- Embedding: stride-P conv == patch-extract + one matmul (token-major)
    patches = (x_nchw.reshape(B, C, gh, P, gw, P)
               .transpose(2, 4, 0, 1, 3, 5)          # (gh, gw, B, C, P, P)
               .reshape(N * B, C * P * P))
    emb = pallas_embed(patches, pk["w_patch"], pk["conv_b"])[:, :E]
    emb = emb.reshape(N, B, E)                       # token-major (N, B, E)

    cls = jnp.broadcast_to(pk["cls_token"].reshape(1, 1, E), (1, B, E))
    h = jnp.concatenate([cls, emb], axis=0) + pk["positions"][:, None, :]
    h = jnp.pad(h, ((0, T_pad - T), (0, B_pad - B), (0, 0)))   # (T_pad, B_pad, E)
    h_flat = h.reshape(T_pad * B_pad, E)             # rows ordered (token, image)

    # --- Transformer encoder: ONE fused Pallas kernel over (token_tile, depth)
    out_flat = pallas_encoder_stack(h_flat, pk, n_heads=n_heads, n_valid_b=B,
                                    b_pad=B_pad, token_tile=token_tile)

    # --- Class head (mean over tokens -> LN -> Linear), lane-padded output ----
    h_out = out_flat.reshape(T_pad, B_pad, E)[:T, :B].transpose(1, 0, 2)  # (B,T,E)
    logits = pallas_classhead(h_out, pk["cls_ln_g"], pk["cls_ln_b"],
                              pk["cls_w"], pk["cls_b"])
    return logits[:, :n_classes]


# ----------------------------------------------------------------------------
# Pure-JAX reference (f32 / HIGHEST precision) for a sanity check.
# ----------------------------------------------------------------------------
def reference_forward(x_nchw, params, *, patch_size, n_heads):
    B, C, H, W = x_nchw.shape
    P = patch_size
    E = params["conv_w"].shape[0]
    gh, gw = H // P, W // P
    N = gh * gw
    T = N + 1
    hd = E // n_heads
    scale = 1.0 / float(hd) ** 0.5

    def ln(x, g, b):
        mu = x.mean(-1, keepdims=True)
        var = ((x - mu) ** 2).mean(-1, keepdims=True)
        return (x - mu) / jnp.sqrt(var + LN_EPS) * g + b

    patches = (x_nchw.reshape(B, C, gh, P, gw, P)
               .transpose(0, 2, 4, 1, 3, 5)
               .reshape(B * N, C * P * P))
    w_patch = params["conv_w"].reshape(E, C * P * P).T
    emb = (jnp.dot(patches, w_patch, precision=HIGH) + params["conv_b"]).reshape(B, N, E)
    cls = jnp.broadcast_to(params["cls_token"], (B, 1, E))
    h = jnp.concatenate([cls, emb], axis=1) + params["positions"][None]

    for blk in params["blocks"]:
        hf = h.reshape(B * T, E)
        n1 = ln(hf, blk["ln1_g"], blk["ln1_b"])
        q = jnp.dot(n1, blk["wq"], precision=HIGH) + blk["bq"]
        k = jnp.dot(n1, blk["wk"], precision=HIGH) + blk["bk"]
        v = jnp.dot(n1, blk["wv"], precision=HIGH) + blk["bv"]

        def heads(a):
            return (a.reshape(B, T, n_heads, hd).transpose(1, 2, 0, 3)
                    .reshape(T * n_heads, B, hd))
        qh, kh, vh = heads(q), heads(k), heads(v)
        s = jnp.einsum("nld,nmd->nlm", qh * scale, kh, precision=HIGH)
        p = jax.nn.softmax(s, axis=-1)
        att = jnp.einsum("nlm,nmd->nld", p, vh, precision=HIGH)
        att = (att.reshape(T, n_heads, B, hd).transpose(2, 0, 1, 3)
               .reshape(B * T, E))
        h2 = hf + jnp.dot(att, blk["wo"], precision=HIGH) + blk["bo"]
        n2 = ln(h2, blk["ln2_g"], blk["ln2_b"])
        m = jnp.dot(n2, blk["w1"], precision=HIGH) + blk["b1"]
        m = 0.5 * m * (1.0 + jax.lax.erf(m / jnp.sqrt(2.0)))        # exact GELU
        h = (h2 + jnp.dot(m, blk["w2"], precision=HIGH) + blk["b2"]).reshape(B, T, E)

    pooled = h.mean(axis=1)
    hh = ln(pooled, params["cls_ln_g"], params["cls_ln_b"])
    return jnp.dot(hh, params["cls_w"], precision=HIGH) + params["cls_b"]


# ----------------------------------------------------------------------------
# Deterministic synthetic parameters (shapes follow the PyTorch __init__).
# ----------------------------------------------------------------------------
def init_params(key, *, C, P, E, depth, mlp_exp, n_classes, n_tokens):
    keys = iter(jax.random.split(key, 64))

    def nrm(shape, scale):
        return scale * jax.random.normal(next(keys), shape, dtype=jnp.float32)

    params = dict(
        conv_w=nrm((E, C, P, P), 0.1),          # nn.Conv2d(C, E, P, stride=P)
        conv_b=nrm((E,), 0.02),
        cls_token=nrm((1, 1, E), 0.5),
        positions=nrm((n_tokens, E), 0.5),
        blocks=[],
        cls_ln_g=1.0 + nrm((E,), 0.1),
        cls_ln_b=nrm((E,), 0.02),
        cls_w=nrm((E, n_classes), 0.1),
        cls_b=nrm((n_classes,), 0.02),
    )
    for _ in range(depth):
        params["blocks"].append(dict(
            ln1_g=1.0 + nrm((E,), 0.1), ln1_b=nrm((E,), 0.02),
            wq=nrm((E, E), 0.1), bq=nrm((E,), 0.02),
            wk=nrm((E, E), 0.1), bk=nrm((E,), 0.02),
            wv=nrm((E, E), 0.1), bv=nrm((E,), 0.02),
            wo=nrm((E, E), 0.1), bo=nrm((E,), 0.02),
            ln2_g=1.0 + nrm((E,), 0.1), ln2_b=nrm((E,), 0.02),
            w1=nrm((E, mlp_exp * E), 0.1), b1=nrm((mlp_exp * E,), 0.02),
            w2=nrm((mlp_exp * E, E), 0.1), b2=nrm((E,), 0.02),
        ))
    return params


if __name__ == "__main__":
    # Small but shape-consistent config: My_ViT(in_channels=3, patch_size=4,
    # emb_dim=32, n_heads=4, img_size=16, depth=2, MLP_Expansion=4, n_classes=10)
    B, C, IMG, P = 2, 3, 16, 4
    E, N_HEADS, DEPTH, MLP_EXP, N_CLASSES = 32, 4, 2, 4, 10
    T = (IMG // P) ** 2 + 1

    root = jax.random.PRNGKey(0)
    kx, kp = jax.random.split(root)
    x = jax.random.normal(kx, (B, C, IMG, IMG), dtype=jnp.float32)
    params = init_params(kp, C=C, P=P, E=E, depth=DEPTH, mlp_exp=MLP_EXP,
                         n_classes=N_CLASSES, n_tokens=T)

    # One-time weight packing (stacking / bf16 casts / lane padding).
    packed = pack_params(params, n_heads=N_HEADS)

    fwd = jax.jit(functools.partial(vit_forward, patch_size=P, n_heads=N_HEADS,
                                    n_classes=N_CLASSES, token_tile=16))
    out = jax.block_until_ready(fwd(x, packed))
    assert out.shape == (B, N_CLASSES), out.shape

    ref = reference_forward(x, params, patch_size=P, n_heads=N_HEADS)
    # bf16 matmul inputs (f32 accumulation) vs f32/HIGHEST reference.
    err = float(jnp.max(jnp.abs(out - ref)))
    assert err < 5e-2, f"Pallas/JAX mismatch: max abs err = {err}"

    print("KERNEL_OK")
</pallas_src>

<mosaic_0001>
module attributes {stable_mosaic.version = 11 : i64} {
  func.func @_embed_kernel(%arg0: memref<32x48xf32, #tpu.memory_space<vmem>>, %arg1: memref<48x128xbf16, #tpu.memory_space<vmem>>, %arg2: memref<1x128xf32, #tpu.memory_space<vmem>>, %arg3: memref<32x128xf32, #tpu.memory_space<vmem>>) attributes {dimension_semantics = [], scalar_prefetch = 0 : i64, scratch_operands = 0 : i64, tpu.core_type = #tpu.core_type<tc>} {
    %c0 = arith.constant 0 : index
    %c0_0 = arith.constant 0 : index
    %0 = vector.load %arg0[%c0, %c0_0] : memref<32x48xf32, #tpu.memory_space<vmem>>, vector<32x48xf32>
    %1 = arith.truncf %0 : vector<32x48xf32> to vector<32x48xbf16>
    %c0_1 = arith.constant 0 : index
    %c0_2 = arith.constant 0 : index
    %2 = vector.load %arg1[%c0_1, %c0_2] : memref<48x128xbf16, #tpu.memory_space<vmem>>, vector<48x128xbf16>
    %cst = arith.constant dense<0.000000e+00> : vector<32x128xf32>
    %3 = tpu.matmul %1, %2, %cst {dimension_numbers = #tpu.dot_dimension_numbers<[1], [0], [0], [1], [0, 0, 1, 1], [], []>} : vector<32x48xbf16>, vector<48x128xbf16>, vector<32x128xf32> -> vector<32x128xf32>
    %c0_3 = arith.constant 0 : index
    %c0_4 = arith.constant 0 : index
    %4 = vector.load %arg2[%c0_3, %c0_4] : memref<1x128xf32, #tpu.memory_space<vmem>>, vector<1x128xf32>
    %5 = vector.broadcast %4 : vector<1x128xf32> to vector<32x128xf32>
    %6 = arith.addf %3, %5 : vector<32x128xf32>
    %c0_5 = arith.constant 0 : index
    %c0_6 = arith.constant 0 : index
    %7 = vector.load %arg3[%c0_5, %c0_6] : memref<32x128xf32, #tpu.memory_space<vmem>>, vector<32x128xf32>
    tpu.vector_store %arg3[%c0_5, %c0_6], %6 {strides = array<i32>} : memref<32x128xf32, #tpu.memory_space<vmem>>, vector<32x128xf32>,
    return
  }
}

module attributes {stable_mosaic.version = 11 : i64} {
  func.func @_classhead_kernel(%arg0: memref<2x17x32xf32, #tpu.memory_space<vmem>>, %arg1: memref<1x32xf32, #tpu.memory_space<vmem>>, %arg2: memref<1x32xf32, #tpu.memory_space<vmem>>, %arg3: memref<32x128xbf16, #tpu.memory_space<vmem>>, %arg4: memref<1x128xf32, #tpu.memory_space<vmem>>, %arg5: memref<2x128xf32, #tpu.memory_space<vmem>>) attributes {dimension_semantics = [], scalar_prefetch = 0 : i64, scratch_operands = 0 : i64, tpu.core_type = #tpu.core_type<tc>} {
    %c0 = arith.constant 0 : index
    %c0_0 = arith.constant 0 : index
    %c0_1 = arith.constant 0 : index
    %0 = vector.load %arg0[%c0, %c0_0, %c0_1] : memref<2x17x32xf32, #tpu.memory_space<vmem>>, vector<2x17x32xf32>
    %cst = arith.constant dense<0.000000e+00> : vector<2x32xf32>
    %1 = vector.multi_reduction <add>, %0, %cst [1] : vector<2x17x32xf32> to vector<2x32xf32>
    %cst_2 = arith.constant 1.700000e+01 : f32
    %2 = vector.broadcast %cst_2 : f32 to vector<2x32xf32>
    %3 = arith.divf %1, %2 : vector<2x32xf32>
    %c0_3 = arith.constant 0 : index
    %c0_4 = arith.constant 0 : index
    %4 = vector.load %arg1[%c0_3, %c0_4] : memref<1x32xf32, #tpu.memory_space<vmem>>, vector<1x32xf32>
    %c0_5 = arith.constant 0 : index
    %c0_6 = arith.constant 0 : index
    %5 = vector.load %arg2[%c0_5, %c0_6] : memref<1x32xf32, #tpu.memory_space<vmem>>, vector<1x32xf32>
    %cst_7 = arith.constant dense<0.000000e+00> : vector<2xf32>
    %6 = vector.multi_reduction <add>, %3, %cst_7 [1] : vector<2x32xf32> to vector<2xf32>
    %7 = vector.shape_cast %6 : vector<2xf32> to vector<2x1xf32>
    %cst_8 = arith.constant 3.200000e+01 : f32
    %8 = vector.broadcast %cst_8 : f32 to vector<2x1xf32>
    %9 = arith.divf %7, %8 : vector<2x1xf32>
    %10 = vector.broadcast %9 : vector<2x1xf32> to vector<2x32xf32>
    %11 = arith.subf %3, %10 : vector<2x32xf32>
    %12 = arith.mulf %11, %11 : vector<2x32xf32>
    %cst_9 = arith.constant dense<0.000000e+00> : vector<2xf32>
    %13 = vector.multi_reduction <add>, %12, %cst_9 [1] : vector<2x32xf32> to vector<2xf32>
    %14 = vector.shape_cast %13 : vector<2xf32> to vector<2x1xf32>
    %cst_10 = arith.constant 3.200000e+01 : f32
    %15 = vector.broadcast %cst_10 : f32 to vector<2x1xf32>
    %16 = arith.divf %14, %15 : vector<2x1xf32>
    %17 = vector.broadcast %9 : vector<2x1xf32> to vector<2x32xf32>
    %18 = arith.subf %3, %17 : vector<2x32xf32>
    %cst_11 = arith.constant 9.99999974E-6 : f32
    %19 = vector.broadcast %cst_11 : f32 to vector<2x1xf32>
    %20 = arith.addf %16, %19 : vector<2x1xf32>
    %21 = math.rsqrt %20 : vector<2x1xf32>
    %22 = vector.broadcast %21 : vector<2x1xf32> to vector<2x32xf32>
    %23 = arith.mulf %18, %22 : vector<2x32xf32>
    %24 = vector.broadcast %4 : vector<1x32xf32> to vector<2x32xf32>
    %25 = arith.mulf %23, %24 : vector<2x32xf32>
    %26 = vector.broadcast %5 : vector<1x32xf32> to vector<2x32xf32>
    %27 = arith.addf %25, %26 : vector<2x32xf32>
    %28 = arith.truncf %27 : vector<2x32xf32> to vector<2x32xbf16>
    %c0_12 = arith.constant 0 : index
    %c0_13 = arith.constant 0 : index
    %29 = vector.load %arg3[%c0_12, %c0_13] : memref<32x128xbf16, #tpu.memory_space<vmem>>, vector<32x128xbf16>
    %cst_14 = arith.constant dense<0.000000e+00> : vector<2x128xf32>
    %30 = tpu.matmul %28, %29, %cst_14 {dimension_numbers = #tpu.dot_dimension_numbers<[1], [0], [0], [1], [0, 0, 1, 1], [], []>} : vector<2x32xbf16>, vector<32x128xbf16>, vector<2x128xf32> -> vector<2x128xf32>
    %c0_15 = arith.constant 0 : index
    %c0_16 = arith.constant 0 : index
    %31 = vector.load %arg4[%c0_15, %c0_16] : memref<1x128xf32, #tpu.memory_space<vmem>>, vector<1x128xf32>
    %32 = vector.broadcast %31 : vector<1x128xf32> to vector<2x128xf32>
    %33 = arith.addf %30, %32 : vector<2x128xf32>
    %c0_17 = arith.constant 0 : index
    %c0_18 = arith.constant 0 : index
    %34 = vector.load %arg5[%c0_17, %c0_18] : memref<2x128xf32, #tpu.memory_space<vmem>>, vector<2x128xf32>
    tpu.vector_store %arg5[%c0_17, %c0_18], %33 {strides = array<i32>} : memref<2x128xf32, #tpu.memory_space<vmem>>, vector<2x128xf32>,
    return
  }
}

module attributes {stable_mosaic.version = 11 : i64} {
  func.func @_encoder_stack_kernel(%arg0: i32, %arg1: i32, %arg2: memref<128x32xf32, #tpu.memory_space<vmem>>, %arg3: memref<1x1x32xf32, #tpu.memory_space<vmem>>, %arg4: memref<1x1x32xf32, #tpu.memory_space<vmem>>, %arg5: memref<1x3x32x32xbf16, #tpu.memory_space<vmem>>, %arg6: memref<1x3x1x32xf32, #tpu.memory_space<vmem>>, %arg7: memref<1x32x32xbf16, #tpu.memory_space<vmem>>, %arg8: memref<1x1x32xf32, #tpu.memory_space<vmem>>, %arg9: memref<1x1x32xf32, #tpu.memory_space<vmem>>, %arg10: memref<1x1x32xf32, #tpu.memory_space<vmem>>, %arg11: memref<1x32x128xbf16, #tpu.memory_space<vmem>>, %arg12: memref<1x1x128xf32, #tpu.memory_space<vmem>>, %arg13: memref<1x128x32xbf16, #tpu.memory_space<vmem>>, %arg14: memref<1x1x32xf32, #tpu.memory_space<vmem>>, %arg15: memref<128x32xf32, #tpu.memory_space<vmem>>) attributes {dimension_semantics = [#tpu.dimension_semantics<parallel>, #tpu.dimension_semantics<arbitrary>], iteration_bounds = array<i64: 2, 2>, scalar_prefetch = 0 : i64, scratch_operands = 0 : i64, tpu.core_type = #tpu.core_type<tc>, window_params = [{transform_indices = @transform_0, window_bounds = array<i64: 128, 32>}, {transform_indices = @transform_1, window_bounds = array<i64: 1, 1, 32>}, {transform_indices = @transform_2, window_bounds = array<i64: 1, 1, 32>}, {transform_indices = @transform_3, window_bounds = array<i64: 1, 3, 32, 32>}, {transform_indices = @transform_4, window_bounds = array<i64: 1, 3, 1, 32>}, {transform_indices = @transform_5, window_bounds = array<i64: 1, 32, 32>}, {transform_indices = @transform_6, window_bounds = array<i64: 1, 1, 32>}, {transform_indices = @transform_7, window_bounds = array<i64: 1, 1, 32>}, {transform_indices = @transform_8, window_bounds = array<i64: 1, 1, 32>}, {transform_indices = @transform_9, window_bounds = array<i64: 1, 32, 128>}, {transform_indices = @transform_10, window_bounds = array<i64: 1, 1, 128>}, {transform_indices = @transform_11, window_bounds = array<i64: 1, 128, 32>}, {transform_indices = @transform_12, window_bounds = array<i64: 1, 1, 32>}, {transform_indices = @transform_13, window_bounds = array<i64: 128, 32>}]} {
    %c0_i32 = arith.constant 0 : i32
    %0 = arith.cmpi eq, %arg1, %c0_i32 : i32
    %1 = arith.extui %0 : i1 to i32
    %c0_i32_0 = arith.constant 0 : i32
    %2 = arith.cmpi ne, %1, %c0_i32_0 : i32
    scf.if %2 {
      %c0_104 = arith.constant 0 : index
      %c0_105 = arith.constant 0 : index
      %279 = vector.load %arg2[%c0_104, %c0_105] : memref<128x32xf32, #tpu.memory_space<vmem>>, vector<128x32xf32>
      %c0_106 = arith.constant 0 : index
      %c0_107 = arith.constant 0 : index
      %280 = vector.load %arg15[%c0_106, %c0_107] : memref<128x32xf32, #tpu.memory_space<vmem>>, vector<128x32xf32>
      tpu.vector_store %arg15[%c0_106, %c0_107], %279 {strides = array<i32>} : memref<128x32xf32, #tpu.memory_space<vmem>>, vector<128x32xf32>,
    } else {
    }
    %c0 = arith.constant 0 : index
    %c0_1 = arith.constant 0 : index
    %3 = vector.load %arg15[%c0, %c0_1] : memref<128x32xf32, #tpu.memory_space<vmem>>, vector<128x32xf32>
    %c0_2 = arith.constant 0 : index
    %c0_3 = arith.constant 0 : index
    %c0_4 = arith.constant 0 : index
    %c0_5 = arith.constant 0 : index
    %4 = vector.load %arg5[%c0_2, %c0_3, %c0_4, %c0_5] : memref<1x3x32x32xbf16, #tpu.memory_space<vmem>>, vector<1x3x32x32xbf16>
    %5 = vector.shape_cast %4 : vector<1x3x32x32xbf16> to vector<3x32x32xbf16>
    %c0_6 = arith.constant 0 : index
    %c0_7 = arith.constant 0 : index
    %c0_8 = arith.constant 0 : index
    %c0_9 = arith.constant 0 : index
    %6 = vector.load %arg6[%c0_6, %c0_7, %c0_8, %c0_9] : memref<1x3x1x32xf32, #tpu.memory_space<vmem>>, vector<1x3x1x32xf32>
    %7 = vector.shape_cast %6 : vector<1x3x1x32xf32> to vector<3x1x32xf32>
    %c0_10 = arith.constant 0 : index
    %c0_11 = arith.constant 0 : index
    %c0_12 = arith.constant 0 : index
    %8 = vector.load %arg3[%c0_10, %c0_11, %c0_12] : memref<1x1x32xf32, #tpu.memory_space<vmem>>, vector<1x1x32xf32>
    %9 = vector.shape_cast %8 : vector<1x1x32xf32> to vector<1x32xf32>
    %c0_13 = arith.constant 0 : index
    %c0_14 = arith.constant 0 : index
    %c0_15 = arith.constant 0 : index
    %10 = vector.load %arg4[%c0_13, %c0_14, %c0_15] : memref<1x1x32xf32, #tpu.memory_space<vmem>>, vector<1x1x32xf32>
    %11 = vector.shape_cast %10 : vector<1x1x32xf32> to vector<1x32xf32>
    %cst = arith.constant dense<0.000000e+00> : vector<128xf32>
    %12 = vector.multi_reduction <add>, %3, %cst [1] : vector<128x32xf32> to vector<128xf32>
    %13 = vector.shape_cast %12 : vector<128xf32> to vector<128x1xf32>
    %cst_16 = arith.constant 3.200000e+01 : f32
    %14 = vector.broadcast %cst_16 : f32 to vector<128x1xf32>
    %15 = arith.divf %13, %14 : vector<128x1xf32>
    %16 = vector.broadcast %15 : vector<128x1xf32> to vector<128x32xf32>
    %17 = arith.subf %3, %16 : vector<128x32xf32>
    %18 = arith.mulf %17, %17 : vector<128x32xf32>
    %cst_17 = arith.constant dense<0.000000e+00> : vector<128xf32>
    %19 = vector.multi_reduction <add>, %18, %cst_17 [1] : vector<128x32xf32> to vector<128xf32>
    %20 = vector.shape_cast %19 : vector<128xf32> to vector<128x1xf32>
    %cst_18 = arith.constant 3.200000e+01 : f32
    %21 = vector.broadcast %cst_18 : f32 to vector<128x1xf32>
    %22 = arith.divf %20, %21 : vector<128x1xf32>
    %23 = vector.broadcast %15 : vector<128x1xf32> to vector<128x32xf32>
    %24 = arith.subf %3, %23 : vector<128x32xf32>
    %cst_19 = arith.constant 9.99999974E-6 : f32
    %25 = vector.broadcast %cst_19 : f32 to vector<128x1xf32>
    %26 = arith.addf %22, %25 : vector<128x1xf32>
    %27 = math.rsqrt %26 : vector<128x1xf32>
    %28 = vector.broadcast %27 : vector<128x1xf32> to vector<128x32xf32>
    %29 = arith.mulf %24, %28 : vector<128x32xf32>
    %30 = vector.broadcast %9 : vector<1x32xf32> to vector<128x32xf32>
    %31 = arith.mulf %29, %30 : vector<128x32xf32>
    %32 = vector.broadcast %11 : vector<1x32xf32> to vector<128x32xf32>
    %33 = arith.addf %31, %32 : vector<128x32xf32>
    %34 = arith.truncf %33 : vector<128x32xf32> to vector<128x32xbf16>
    %35 = vector.extract_strided_slice %5 {offsets = [0, 0, 0], sizes = [1, 32, 32], strides = [1, 1, 1]} : vector<3x32x32xbf16> to vector<1x32x32xbf16>
    %36 = vector.shape_cast %35 : vector<1x32x32xbf16> to vector<32x32xbf16>
    %cst_20 = arith.constant dense<0.000000e+00> : vector<128x32xf32>
    %37 = tpu.matmul %34, %36, %cst_20 {dimension_numbers = #tpu.dot_dimension_numbers<[1], [0], [0], [1], [0, 0, 1, 1], [], []>} : vector<128x32xbf16>, vector<32x32xbf16>, vector<128x32xf32> -> vector<128x32xf32>
    %38 = vector.extract_strided_slice %7 {offsets = [0, 0, 0], sizes = [1, 1, 32], strides = [1, 1, 1]} : vector<3x1x32xf32> to vector<1x1x32xf32>
    %39 = vector.shape_cast %38 : vector<1x1x32xf32> to vector<1x32xf32>
    %40 = vector.broadcast %39 : vector<1x32xf32> to vector<128x32xf32>
    %41 = arith.addf %37, %40 : vector<128x32xf32>
    %42 = vector.shape_cast %41 : vector<128x32xf32> to vector<16x8x32xf32>
    %43 = vector.extract_strided_slice %5 {offsets = [1, 0, 0], sizes = [1, 32, 32], strides = [1, 1, 1]} : vector<3x32x32xbf16> to vector<1x32x32xbf16>
    %44 = vector.shape_cast %43 : vector<1x32x32xbf16> to vector<32x32xbf16>
    %cst_21 = arith.constant dense<0.000000e+00> : vector<128x32xf32>
    %45 = tpu.matmul %34, %44, %cst_21 {dimension_numbers = #tpu.dot_dimension_numbers<[1], [0], [0], [1], [0, 0, 1, 1], [], []>} : vector<128x32xbf16>, vector<32x32xbf16>, vector<128x32xf32> -> vector<128x32xf32>
    %46 = vector.extract_strided_slice %7 {offsets = [1, 0, 0], sizes = [1, 1, 32], strides = [1, 1, 1]} : vector<3x1x32xf32> to vector<1x1x32xf32>
    %47 = vector.shape_cast %46 : vector<1x1x32xf32> to vector<1x32xf32>
    %48 = vector.broadcast %47 : vector<1x32xf32> to vector<128x32xf32>
    %49 = arith.addf %45, %48 : vector<128x32xf32>
    %50 = vector.shape_cast %49 : vector<128x32xf32> to vector<16x8x32xf32>
    %51 = vector.extract_strided_slice %5 {offsets = [2, 0, 0], sizes = [1, 32, 32], strides = [1, 1, 1]} : vector<3x32x32xbf16> to vector<1x32x32xbf16>
    %52 = vector.shape_cast %51 : vector<1x32x32xbf16> to vector<32x32xbf16>
    %cst_22 = arith.constant dense<0.000000e+00> : vector<128x32xf32>
    %53 = tpu.matmul %34, %52, %cst_22 {dimension_numbers = #tpu.dot_dimension_numbers<[1], [0], [0], [1], [0, 0, 1, 1], [], []>} : vector<128x32xbf16>, vector<32x32xbf16>, vector<128x32xf32> -> vector<128x32xf32>
    %54 = vector.extract_strided_slice %7 {offsets = [2, 0, 0], sizes = [1, 1, 32], strides = [1, 1, 1]} : vector<3x1x32xf32> to vector<1x1x32xf32>
    %55 = vector.shape_cast %54 : vector<1x1x32xf32> to vector<1x32xf32>
    %56 = vector.broadcast %55 : vector<1x32xf32> to vector<128x32xf32>
    %57 = arith.addf %53, %56 : vector<128x32xf32>
    %58 = vector.shape_cast %57 : vector<128x32xf32> to vector<16x8x32xf32>
    %59 = arith.truncf %50 : vector<16x8x32xf32> to vector<16x8x32xbf16>
    %60 = tpu.iota {dimensions = array<i32: 2>} : vector<1x1x8xi32>
    %c2_i32 = arith.constant 2 : i32
    %61 = vector.broadcast %c2_i32 : i32 to vector<1x1x8xi32>
    %62 = arith.cmpi slt, %60, %61 : vector<1x1x8xi32>
    %cst_23 = arith.constant 0.000000e+00 : f32
    %cst_24 = arith.constant -1.000000e+30 : f32
    %63 = vector.broadcast %cst_23 : f32 to vector<1x1x8xf32>
    %64 = vector.broadcast %cst_24 : f32 to vector<1x1x8xf32>
    %65 = arith.select %62, %63, %64 : vector<1x1x8xi1>, vector<1x1x8xf32>
    %66 = tpu.iota {dimensions = array<i32: 2>} : vector<1x1x32xi32>
    %c0_i32_25 = arith.constant 0 : i32
    %67 = vector.broadcast %c0_i32_25 : i32 to vector<1x1x32xi32>
    %68 = arith.cmpi sge, %66, %67 : vector<1x1x32xi32>
    %c8_i32 = arith.constant 8 : i32
    %69 = vector.broadcast %c8_i32 : i32 to vector<1x1x32xi32>
    %70 = arith.cmpi slt, %66, %69 : vector<1x1x32xi32>
    %71 = arith.andi %68, %70 : vector<1x1x32xi1>
    %cst_26 = arith.constant 1.000000e+00 : f32
    %cst_27 = arith.constant 0.000000e+00 : f32
    %72 = vector.broadcast %cst_26 : f32 to vector<1x1x32xf32>
    %73 = vector.broadcast %cst_27 : f32 to vector<1x1x32xf32>
    %74 = arith.select %71, %72, %73 : vector<1x1x32xi1>, vector<1x1x32xf32>
    %c8_i32_28 = arith.constant 8 : i32
    %75 = vector.broadcast %c8_i32_28 : i32 to vector<1x1x32xi32>
    %76 = arith.cmpi sge, %66, %75 : vector<1x1x32xi32>
    %c16_i32 = arith.constant 16 : i32
    %77 = vector.broadcast %c16_i32 : i32 to vector<1x1x32xi32>
    %78 = arith.cmpi slt, %66, %77 : vector<1x1x32xi32>
    %79 = arith.andi %76, %78 : vector<1x1x32xi1>
    %cst_29 = arith.constant 1.000000e+00 : f32
    %cst_30 = arith.constant 0.000000e+00 : f32
    %80 = vector.broadcast %cst_29 : f32 to vector<1x1x32xf32>
    %81 = vector.broadcast %cst_30 : f32 to vector<1x1x32xf32>
    %82 = arith.select %79, %80, %81 : vector<1x1x32xi1>, vector<1x1x32xf32>
    %c16_i32_31 = arith.constant 16 : i32
    %83 = vector.broadcast %c16_i32_31 : i32 to vector<1x1x32xi32>
    %84 = arith.cmpi sge, %66, %83 : vector<1x1x32xi32>
    %c24_i32 = arith.constant 24 : i32
    %85 = vector.broadcast %c24_i32 : i32 to vector<1x1x32xi32>
    %86 = arith.cmpi slt, %66, %85 : vector<1x1x32xi32>
    %87 = arith.andi %84, %86 : vector<1x1x32xi1>
    %cst_32 = arith.constant 1.000000e+00 : f32
    %cst_33 = arith.constant 0.000000e+00 : f32
    %88 = vector.broadcast %cst_32 : f32 to vector<1x1x32xf32>
    %89 = vector.broadcast %cst_33 : f32 to vector<1x1x32xf32>
    %90 = arith.select %87, %88, %89 : vector<1x1x32xi1>, vector<1x1x32xf32>
    %c24_i32_34 = arith.constant 24 : i32
    %91 = vector.broadcast %c24_i32_34 : i32 to vector<1x1x32xi32>
    %92 = arith.cmpi sge, %66, %91 : vector<1x1x32xi32>
    %c32_i32 = arith.constant 32 : i32
    %93 = vector.broadcast %c32_i32 : i32 to vector<1x1x32xi32>
    %94 = arith.cmpi slt, %66, %93 : vector<1x1x32xi32>
    %95 = arith.andi %92, %94 : vector<1x1x32xi1>
    %cst_35 = arith.constant 1.000000e+00 : f32
    %cst_36 = arith.constant 0.000000e+00 : f32
    %96 = vector.broadcast %cst_35 : f32 to vector<1x1x32xf32>
    %97 = vector.broadcast %cst_36 : f32 to vector<1x1x32xf32>
    %98 = arith.select %95, %96, %97 : vector<1x1x32xi1>, vector<1x1x32xf32>
    %cst_37 = arith.constant 0.000000e+00 : f32
    %99 = vector.broadcast %cst_37 : f32 to vector<16x8x32xf32>
    %100 = vector.broadcast %74 : vector<1x1x32xf32> to vector<16x8x32xf32>
    %101 = arith.mulf %42, %100 : vector<16x8x32xf32>
    %102 = arith.truncf %101 : vector<16x8x32xf32> to vector<16x8x32xbf16>
    "tpu.trace_start"() <{level = 10 : i32, message = "tbd,tcd->tbc"}> : () -> ()
    %cst_38 = arith.constant dense<0.000000e+00> : vector<16x8x8xf32>
    %103 = tpu.matmul %102, %59, %cst_38 {dimension_numbers = #tpu.dot_dimension_numbers<[2], [2], [1], [1], [0, 0, 0, 1, 1, 1], [0], [0]>} : vector<16x8x32xbf16>, vector<16x8x32xbf16>, vector<16x8x8xf32> -> vector<16x8x8xf32>
    "tpu.trace_stop"() : () -> ()
    %104 = vector.broadcast %65 : vector<1x1x8xf32> to vector<16x8x8xf32>
    %105 = arith.addf %103, %104 : vector<16x8x8xf32>
    %cst_39 = arith.constant dense<0xFF800000> : vector<16x8xf32>
    %106 = vector.multi_reduction <maximumf>, %105, %cst_39 [2] : vector<16x8x8xf32> to vector<16x8xf32>
    %107 = vector.shape_cast %106 : vector<16x8xf32> to vector<16x8x1xf32>
    %108 = vector.broadcast %107 : vector<16x8x1xf32> to vector<16x8x8xf32>
    %109 = arith.subf %105, %108 : vector<16x8x8xf32>
    %110 = math.exp %109 : vector<16x8x8xf32>
    %cst_40 = arith.constant dense<0.000000e+00> : vector<16x8xf32>
    %111 = vector.multi_reduction <add>, %110, %cst_40 [2] : vector<16x8x8xf32> to vector<16x8xf32>
    %112 = vector.shape_cast %111 : vector<16x8xf32> to vector<16x8x1xf32>
    %113 = vector.broadcast %112 : vector<16x8x1xf32> to vector<16x8x8xf32>
    %114 = arith.divf %110, %113 : vector<16x8x8xf32>
    %115 = vector.broadcast %74 : vector<1x1x32xf32> to vector<16x8x32xf32>
    %116 = arith.mulf %58, %115 : vector<16x8x32xf32>
    %117 = arith.truncf %116 : vector<16x8x32xf32> to vector<16x8x32xbf16>
    %118 = arith.truncf %114 : vector<16x8x8xf32> to vector<16x8x8xbf16>
    "tpu.trace_start"() <{level = 10 : i32, message = "tbc,tcd->tbd"}> : () -> ()
    %cst_41 = arith.constant dense<0.000000e+00> : vector<16x8x32xf32>
    %119 = tpu.matmul %118, %117, %cst_41 {dimension_numbers = #tpu.dot_dimension_numbers<[2], [1], [1], [2], [0, 0, 0, 1, 1, 2], [0], [0]>} : vector<16x8x8xbf16>, vector<16x8x32xbf16>, vector<16x8x32xf32> -> vector<16x8x32xf32>
    "tpu.trace_stop"() : () -> ()
    %120 = arith.addf %99, %119 : vector<16x8x32xf32>
    %121 = vector.broadcast %82 : vector<1x1x32xf32> to vector<16x8x32xf32>
    %122 = arith.mulf %42, %121 : vector<16x8x32xf32>
    %123 = arith.truncf %122 : vector<16x8x32xf32> to vector<16x8x32xbf16>
    "tpu.trace_start"() <{level = 10 : i32, message = "tbd,tcd->tbc"}> : () -> ()
    %cst_42 = arith.constant dense<0.000000e+00> : vector<16x8x8xf32>
    %124 = tpu.matmul %123, %59, %cst_42 {dimension_numbers = #tpu.dot_dimension_numbers<[2], [2], [1], [1], [0, 0, 0, 1, 1, 1], [0], [0]>} : vector<16x8x32xbf16>, vector<16x8x32xbf16>, vector<16x8x8xf32> -> vector<16x8x8xf32>
    "tpu.trace_stop"() : () -> ()
    %125 = vector.broadcast %65 : vector<1x1x8xf32> to vector<16x8x8xf32>
    %126 = arith.addf %124, %125 : vector<16x8x8xf32>
    %cst_43 = arith.constant dense<0xFF800000> : vector<16x8xf32>
    %127 = vector.multi_reduction <maximumf>, %126, %cst_43 [2] : vector<16x8x8xf32> to vector<16x8xf32>
    %128 = vector.shape_cast %127 : vector<16x8xf32> to vector<16x8x1xf32>
    %129 = vector.broadcast %128 : vector<16x8x1xf32> to vector<16x8x8xf32>
    %130 = arith.subf %126, %129 : vector<16x8x8xf32>
    %131 = math.exp %130 : vector<16x8x8xf32>
    %cst_44 = arith.constant dense<0.000000e+00> : vector<16x8xf32>
    %132 = vector.multi_reduction <add>, %131, %cst_44 [2] : vector<16x8x8xf32> to vector<16x8xf32>
    %133 = vector.shape_cast %132 : vector<16x8xf32> to vector<16x8x1xf32>
    %134 = vector.broadcast %133 : vector<16x8x1xf32> to vector<16x8x8xf32>
    %135 = arith.divf %131, %134 : vector<16x8x8xf32>
    %136 = vector.broadcast %82 : vector<1x1x32xf32> to vector<16x8x32xf32>
    %137 = arith.mulf %58, %136 : vector<16x8x32xf32>
    %138 = arith.truncf %137 : vector<16x8x32xf32> to vector<16x8x32xbf16>
    %139 = arith.truncf %135 : vector<16x8x8xf32> to vector<16x8x8xbf16>
    "tpu.trace_start"() <{level = 10 : i32, message = "tbc,tcd->tbd"}> : () -> ()
    %cst_45 = arith.constant dense<0.000000e+00> : vector<16x8x32xf32>
    %140 = tpu.matmul %139, %138, %cst_45 {dimension_numbers = #tpu.dot_dimension_numbers<[2], [1], [1], [2], [0, 0, 0, 1, 1, 2], [0], [0]>} : vector<16x8x8xbf16>, vector<16x8x32xbf16>, vector<16x8x32xf32> -> vector<16x8x32xf32>
    "tpu.trace_stop"() : () -> ()
    %141 = arith.addf %120, %140 : vector<16x8x32xf32>
    %142 = vector.broadcast %90 : vector<1x1x32xf32> to vector<16x8x32xf32>
    %143 = arith.mulf %42, %142 : vector<16x8x32xf32>
    %144 = arith.truncf %143 : vector<16x8x32xf32> to vector<16x8x32xbf16>
    "tpu.trace_start"() <{level = 10 : i32, message = "tbd,tcd->tbc"}> : () -> ()
    %cst_46 = arith.constant dense<0.000000e+00> : vector<16x8x8xf32>
    %145 = tpu.matmul %144, %59, %cst_46 {dimension_numbers = #tpu.dot_dimension_numbers<[2], [2], [1], [1], [0, 0, 0, 1, 1, 1], [0], [0]>} : vector<16x8x32xbf16>, vector<16x8x32xbf16>, vector<16x8x8xf32> -> vector<16x8x8xf32>
    "tpu.trace_stop"() : () -> ()
    %146 = vector.broadcast %65 : vector<1x1x8xf32> to vector<16x8x8xf32>
    %147 = arith.addf %145, %146 : vector<16x8x8xf32>
    %cst_47 = arith.constant dense<0xFF800000> : vector<16x8xf32>
    %148 = vector.multi_reduction <maximumf>, %147, %cst_47 [2] : vector<16x8x8xf32> to vector<16x8xf32>
    %149 = vector.shape_cast %148 : vector<16x8xf32> to vector<16x8x1xf32>
    %150 = vector.broadcast %149 : vector<16x8x1xf32> to vector<16x8x8xf32>
    %151 = arith.subf %147, %150 : vector<16x8x8xf32>
    %152 = math.exp %151 : vector<16x8x8xf32>
    %cst_48 = arith.constant dense<0.000000e+00> : vector<16x8xf32>
    %153 = vector.multi_reduction <add>, %152, %cst_48 [2] : vector<16x8x8xf32> to vector<16x8xf32>
    %154 = vector.shape_cast %153 : vector<16x8xf32> to vector<16x8x1xf32>
    %155 = vector.broadcast %154 : vector<16x8x1xf32> to vector<16x8x8xf32>
    %156 = arith.divf %152, %155 : vector<16x8x8xf32>
    %157 = vector.broadcast %90 : vector<1x1x32xf32> to vector<16x8x32xf32>
    %158 = arith.mulf %58, %157 : vector<16x8x32xf32>
    %159 = arith.truncf %158 : vector<16x8x32xf32> to vector<16x8x32xbf16>
    %160 = arith.truncf %156 : vector<16x8x8xf32> to vector<16x8x8xbf16>
    "tpu.trace_start"() <{level = 10 : i32, message = "tbc,tcd->tbd"}> : () -> ()
    %cst_49 = arith.constant dense<0.000000e+00> : vector<16x8x32xf32>
    %161 = tpu.matmul %160, %159, %cst_49 {dimension_numbers = #tpu.dot_dimension_numbers<[2], [1], [1], [2], [0, 0, 0, 1, 1, 2], [0], [0]>} : vector<16x8x8xbf16>, vector<16x8x32xbf16>, vector<16x8x32xf32> -> vector<16x8x32xf32>
    "tpu.trace_stop"() : () -> ()
    %162 = arith.addf %141, %161 : vector<16x8x32xf32>
    %163 = vector.broadcast %98 : vector<1x1x32xf32> to vector<16x8x32xf32>
    %164 = arith.mulf %42, %163 : vector<16x8x32xf32>
    %165 = arith.truncf %164 : vector<16x8x32xf32> to vector<16x8x32xbf16>
    "tpu.trace_start"() <{level = 10 : i32, message = "tbd,tcd->tbc"}> : () -> ()
    %cst_50 = arith.constant dense<0.000000e+00> : vector<16x8x8xf32>
    %166 = tpu.matmul %165, %59, %cst_50 {dimension_numbers = #tpu.dot_dimension_numbers<[2], [2], [1], [1], [0, 0, 0, 1, 1, 1], [0], [0]>} : vector<16x8x32xbf16>, vector<16x8x32xbf16>, vector<16x8x8xf32> -> vector<16x8x8xf32>
    "tpu.trace_stop"() : () -> ()
    %167 = vector.broadcast %65 : vector<1x1x8xf32> to vector<16x8x8xf32>
    %168 = arith.addf %166, %167 : vector<16x8x8xf32>
    %cst_51 = arith.constant dense<0xFF800000> : vector<16x8xf32>
    %169 = vector.multi_reduction <maximumf>, %168, %cst_51 [2] : vector<16x8x8xf32> to vector<16x8xf32>
    %170 = vector.shape_cast %169 : vector<16x8xf32> to vector<16x8x1xf32>
    %171 = vector.broadcast %170 : vector<16x8x1xf32> to vector<16x8x8xf32>
    %172 = arith.subf %168, %171 : vector<16x8x8xf32>
    %173 = math.exp %172 : vector<16x8x8xf32>
    %cst_52 = arith.constant dense<0.000000e+00> : vector<16x8xf32>
    %174 = vector.multi_reduction <add>, %173, %cst_52 [2] : vector<16x8x8xf32> to vector<16x8xf32>
    %175 = vector.shape_cast %174 : vector<16x8xf32> to vector<16x8x1xf32>
    %176 = vector.broadcast %175 : vector<16x8x1xf32> to vector<16x8x8xf32>
    %177 = arith.divf %173, %176 : vector<16x8x8xf32>
    %178 = vector.broadcast %98 : vector<1x1x32xf32> to vector<16x8x32xf32>
    %179 = arith.mulf %58, %178 : vector<16x8x32xf32>
    %180 = arith.truncf %179 : vector<16x8x32xf32> to vector<16x8x32xbf16>
    %181 = arith.truncf %177 : vector<16x8x8xf32> to vector<16x8x8xbf16>
    "tpu.trace_start"() <{level = 10 : i32, message = "tbc,tcd->tbd"}> : () -> ()
    %cst_53 = arith.constant dense<0.000000e+00> : vector<16x8x32xf32>
    %182 = tpu.matmul %181, %180, %cst_53 {dimension_numbers = #tpu.dot_dimension_numbers<[2], [1], [1], [2], [0, 0, 0, 1, 1, 2], [0], [0]>} : vector<16x8x8xbf16>, vector<16x8x32xbf16>, vector<16x8x32xf32> -> vector<16x8x32xf32>
    "tpu.trace_stop"() : () -> ()
    %183 = arith.addf %162, %182 : vector<16x8x32xf32>
    %184 = vector.shape_cast %183 : vector<16x8x32xf32> to vector<128x32xf32>
    %185 = arith.truncf %184 : vector<128x32xf32> to vector<128x32xbf16>
    %c0_54 = arith.constant 0 : index
    %c0_55 = arith.constant 0 : index
    %c0_56 = arith.constant 0 : index
    %186 = vector.load %arg7[%c0_54, %c0_55, %c0_56] : memref<1x32x32xbf16, #tpu.memory_space<vmem>>, vector<1x32x32xbf16>
    %187 = vector.shape_cast %186 : vector<1x32x32xbf16> to vector<32x32xbf16>
    %cst_57 = arith.constant dense<0.000000e+00> : vector<128x32xf32>
    %188 = tpu.matmul %185, %187, %cst_57 {dimension_numbers = #tpu.dot_dimension_numbers<[1], [0], [0], [1], [0, 0, 1, 1], [], []>} : vector<128x32xbf16>, vector<32x32xbf16>, vector<128x32xf32> -> vector<128x32xf32>
    %189 = arith.addf %3, %188 : vector<128x32xf32>
    %c0_58 = arith.constant 0 : index
    %c0_59 = arith.constant 0 : index
    %c0_60 = arith.constant 0 : index
    %190 = vector.load %arg8[%c0_58, %c0_59, %c0_60] : memref<1x1x32xf32, #tpu.memory_space<vmem>>, vector<1x1x32xf32>
    %191 = vector.shape_cast %190 : vector<1x1x32xf32> to vector<1x32xf32>
    %192 = vector.broadcast %191 : vector<1x32xf32> to vector<128x32xf32>
    %193 = arith.addf %189, %192 : vector<128x32xf32>
    %c0_61 = arith.constant 0 : index
    %c0_62 = arith.constant 0 : index
    %c0_63 = arith.constant 0 : index
    %194 = vector.load %arg9[%c0_61, %c0_62, %c0_63] : memref<1x1x32xf32, #tpu.memory_space<vmem>>, vector<1x1x32xf32>
    %195 = vector.shape_cast %194 : vector<1x1x32xf32> to vector<1x32xf32>
    %c0_64 = arith.constant 0 : index
    %c0_65 = arith.constant 0 : index
    %c0_66 = arith.constant 0 : index
    %196 = vector.load %arg10[%c0_64, %c0_65, %c0_66] : memref<1x1x32xf32, #tpu.memory_space<vmem>>, vector<1x1x32xf32>
    %197 = vector.shape_cast %196 : vector<1x1x32xf32> to vector<1x32xf32>
    %cst_67 = arith.constant dense<0.000000e+00> : vector<128xf32>
    %198 = vector.multi_reduction <add>, %193, %cst_67 [1] : vector<128x32xf32> to vector<128xf32>
    %199 = vector.shape_cast %198 : vector<128xf32> to vector<128x1xf32>
    %cst_68 = arith.constant 3.200000e+01 : f32
    %200 = vector.broadcast %cst_68 : f32 to vector<128x1xf32>
    %201 = arith.divf %199, %200 : vector<128x1xf32>
    %202 = vector.broadcast %201 : vector<128x1xf32> to vector<128x32xf32>
    %203 = arith.subf %193, %202 : vector<128x32xf32>
    %204 = arith.mulf %203, %203 : vector<128x32xf32>
    %cst_69 = arith.constant dense<0.000000e+00> : vector<128xf32>
    %205 = vector.multi_reduction <add>, %204, %cst_69 [1] : vector<128x32xf32> to vector<128xf32>
    %206 = vector.shape_cast %205 : vector<128xf32> to vector<128x1xf32>
    %cst_70 = arith.constant 3.200000e+01 : f32
    %207 = vector.broadcast %cst_70 : f32 to vector<128x1xf32>
    %208 = arith.divf %206, %207 : vector<128x1xf32>
    %209 = vector.broadcast %201 : vector<128x1xf32> to vector<128x32xf32>
    %210 = arith.subf %193, %209 : vector<128x32xf32>
    %cst_71 = arith.constant 9.99999974E-6 : f32
    %211 = vector.broadcast %cst_71 : f32 to vector<128x1xf32>
    %212 = arith.addf %208, %211 : vector<128x1xf32>
    %213 = math.rsqrt %212 : vector<128x1xf32>
    %214 = vector.broadcast %213 : vector<128x1xf32> to vector<128x32xf32>
    %215 = arith.mulf %210, %214 : vector<128x32xf32>
    %216 = vector.broadcast %195 : vector<1x32xf32> to vector<128x32xf32>
    %217 = arith.mulf %215, %216 : vector<128x32xf32>
    %218 = vector.broadcast %197 : vector<1x32xf32> to vector<128x32xf32>
    %219 = arith.addf %217, %218 : vector<128x32xf32>
    %220 = arith.truncf %219 : vector<128x32xf32> to vector<128x32xbf16>
    %c0_72 = arith.constant 0 : index
    %c0_73 = arith.constant 0 : index
    %c0_74 = arith.constant 0 : index
    %221 = vector.load %arg11[%c0_72, %c0_73, %c0_74] : memref<1x32x128xbf16, #tpu.memory_space<vmem>>, vector<1x32x128xbf16>
    %222 = vector.shape_cast %221 : vector<1x32x128xbf16> to vector<32x128xbf16>
    %cst_75 = arith.constant dense<0.000000e+00> : vector<128x128xf32>
    %223 = tpu.matmul %220, %222, %cst_75 {dimension_numbers = #tpu.dot_dimension_numbers<[1], [0], [0], [1], [0, 0, 1, 1], [], []>} : vector<128x32xbf16>, vector<32x128xbf16>, vector<128x128xf32> -> vector<128x128xf32>
    %c0_76 = arith.constant 0 : index
    %c0_77 = arith.constant 0 : index
    %c0_78 = arith.constant 0 : index
    %224 = vector.load %arg12[%c0_76, %c0_77, %c0_78] : memref<1x1x128xf32, #tpu.memory_space<vmem>>, vector<1x1x128xf32>
    %225 = vector.shape_cast %224 : vector<1x1x128xf32> to vector<1x128xf32>
    %226 = vector.broadcast %225 : vector<1x128xf32> to vector<128x128xf32>
    %227 = arith.addf %223, %226 : vector<128x128xf32>
    %cst_79 = arith.constant 5.000000e-01 : f32
    %228 = vector.broadcast %cst_79 : f32 to vector<128x128xf32>
    %229 = arith.mulf %228, %227 : vector<128x128xf32>
    %cst_80 = arith.constant 0.707106769 : f32
    %230 = vector.broadcast %cst_80 : f32 to vector<128x128xf32>
    %231 = arith.mulf %227, %230 : vector<128x128xf32>
    %cst_81 = arith.constant 0.000000e+00 : f32
    %232 = vector.broadcast %cst_81 : f32 to vector<128x128xf32>
    %233 = arith.cmpf oge, %231, %232 : vector<128x128xf32>
    %cst_82 = arith.constant 1.000000e+00 : f32
    %cst_83 = arith.constant -1.000000e+00 : f32
    %234 = vector.broadcast %cst_82 : f32 to vector<128x128xf32>
    %235 = vector.broadcast %cst_83 : f32 to vector<128x128xf32>
    %236 = arith.select %233, %234, %235 : vector<128x128xi1>, vector<128x128xf32>
    %237 = math.absf %231 : vector<128x128xf32>
    %cst_84 = arith.constant 0.327591091 : f32
    %238 = vector.broadcast %cst_84 : f32 to vector<128x128xf32>
    %239 = arith.mulf %238, %237 : vector<128x128xf32>
    %cst_85 = arith.constant 1.000000e+00 : f32
    %240 = vector.broadcast %cst_85 : f32 to vector<128x128xf32>
    %241 = arith.addf %240, %239 : vector<128x128xf32>
    %cst_86 = arith.constant 1.000000e+00 : f32
    %242 = vector.broadcast %cst_86 : f32 to vector<128x128xf32>
    %243 = arith.divf %242, %241 : vector<128x128xf32>
    %cst_87 = arith.constant 1.06140542 : f32
    %244 = vector.broadcast %cst_87 : f32 to vector<128x128xf32>
    %245 = arith.mulf %244, %243 : vector<128x128xf32>
    %cst_88 = arith.constant -1.45315206 : f32
    %246 = vector.broadcast %cst_88 : f32 to vector<128x128xf32>
    %247 = arith.addf %245, %246 : vector<128x128xf32>
    %248 = arith.mulf %247, %243 : vector<128x128xf32>
    %cst_89 = arith.constant 1.42141378 : f32
    %249 = vector.broadcast %cst_89 : f32 to vector<128x128xf32>
    %250 = arith.addf %248, %249 : vector<128x128xf32>
    %251 = arith.mulf %250, %243 : vector<128x128xf32>
    %cst_90 = arith.constant -0.284496725 : f32
    %252 = vector.broadcast %cst_90 : f32 to vector<128x128xf32>
    %253 = arith.addf %251, %252 : vector<128x128xf32>
    %254 = arith.mulf %253, %243 : vector<128x128xf32>
    %cst_91 = arith.constant 0.254829586 : f32
    %255 = vector.broadcast %cst_91 : f32 to vector<128x128xf32>
    %256 = arith.addf %254, %255 : vector<128x128xf32>
    %257 = arith.mulf %256, %243 : vector<128x128xf32>
    %cst_92 = arith.constant 0.000000e+00 : f32
    %258 = vector.broadcast %cst_92 : f32 to vector<128x128xf32>
    %259 = arith.subf %258, %237 : vector<128x128xf32>
    %260 = arith.mulf %259, %237 : vector<128x128xf32>
    %261 = math.exp %260 : vector<128x128xf32>
    %262 = arith.mulf %257, %261 : vector<128x128xf32>
    %cst_93 = arith.constant 1.000000e+00 : f32
    %263 = vector.broadcast %cst_93 : f32 to vector<128x128xf32>
    %264 = arith.subf %263, %262 : vector<128x128xf32>
    %265 = arith.mulf %236, %264 : vector<128x128xf32>
    %cst_94 = arith.constant 1.000000e+00 : f32
    %266 = vector.broadcast %cst_94 : f32 to vector<128x128xf32>
    %267 = arith.addf %266, %265 : vector<128x128xf32>
    %268 = arith.mulf %229, %267 : vector<128x128xf32>
    %269 = arith.truncf %268 : vector<128x128xf32> to vector<128x128xbf16>
    %c0_95 = arith.constant 0 : index
    %c0_96 = arith.constant 0 : index
    %c0_97 = arith.constant 0 : index
    %270 = vector.load %arg13[%c0_95, %c0_96, %c0_97] : memref<1x128x32xbf16, #tpu.memory_space<vmem>>, vector<1x128x32xbf16>
    %271 = vector.shape_cast %270 : vector<1x128x32xbf16> to vector<128x32xbf16>
    %cst_98 = arith.constant dense<0.000000e+00> : vector<128x32xf32>
    %272 = tpu.matmul %269, %271, %cst_98 {dimension_numbers = #tpu.dot_dimension_numbers<[1], [0], [0], [1], [0, 0, 1, 1], [], []>} : vector<128x128xbf16>, vector<128x32xbf16>, vector<128x32xf32> -> vector<128x32xf32>
    %273 = arith.addf %193, %272 : vector<128x32xf32>
    %c0_99 = arith.constant 0 : index
    %c0_100 = arith.constant 0 : index
    %c0_101 = arith.constant 0 : index
    %274 = vector.load %arg14[%c0_99, %c0_100, %c0_101] : memref<1x1x32xf32, #tpu.memory_space<vmem>>, vector<1x1x32xf32>
    %275 = vector.shape_cast %274 : vector<1x1x32xf32> to vector<1x32xf32>
    %276 = vector.broadcast %275 : vector<1x32xf32> to vector<128x32xf32>
    %277 = arith.addf %273, %276 : vector<128x32xf32>
    %c0_102 = arith.constant 0 : index
    %c0_103 = arith.constant 0 : index
    %278 = vector.load %arg15[%c0_102, %c0_103] : memref<128x32xf32, #tpu.memory_space<vmem>>, vector<128x32xf32>
    tpu.vector_store %arg15[%c0_102, %c0_103], %277 {strides = array<i32>} : memref<128x32xf32, #tpu.memory_space<vmem>>, vector<128x32xf32>,
    return
  }
  func.func @transform_0(%arg0: i32, %arg1: i32) -> (i32, i32) {
    %c0_i32 = arith.constant 0 : i32
    %c0_i32_0 = arith.constant 0 : i32
    return %arg0, %c0_i32 : i32, i32
  }
  func.func @transform_1(%arg0: i32, %arg1: i32) -> (i32, i32, i32) {
    %c0_i32 = arith.constant 0 : i32
    %c0_i32_0 = arith.constant 0 : i32
    %c0_i32_1 = arith.constant 0 : i32
    return %arg1, %c0_i32, %c0_i32_0 : i32, i32, i32
  }
  func.func @transform_2(%arg0: i32, %arg1: i32) -> (i32, i32, i32) {
    %c0_i32 = arith.constant 0 : i32
    %c0_i32_0 = arith.constant 0 : i32
    %c0_i32_1 = arith.constant 0 : i32
    return %arg1, %c0_i32, %c0_i32_0 : i32, i32, i32
  }
  func.func @transform_3(%arg0: i32, %arg1: i32) -> (i32, i32, i32, i32) {
    %c0_i32 = arith.constant 0 : i32
    %c0_i32_0 = arith.constant 0 : i32
    %c0_i32_1 = arith.constant 0 : i32
    %c0_i32_2 = arith.constant 0 : i32
    return %arg1, %c0_i32, %c0_i32_0, %c0_i32_1 : i32, i32, i32, i32
  }
  func.func @transform_4(%arg0: i32, %arg1: i32) -> (i32, i32, i32, i32) {
    %c0_i32 = arith.constant 0 : i32
    %c0_i32_0 = arith.constant 0 : i32
    %c0_i32_1 = arith.constant 0 : i32
    %c0_i32_2 = arith.constant 0 : i32
    return %arg1, %c0_i32, %c0_i32_0, %c0_i32_1 : i32, i32, i32, i32
  }
  func.func @transform_5(%arg0: i32, %arg1: i32) -> (i32, i32, i32) {
    %c0_i32 = arith.constant 0 : i32
    %c0_i32_0 = arith.constant 0 : i32
    %c0_i32_1 = arith.constant 0 : i32
    return %arg1, %c0_i32, %c0_i32_0 : i32, i32, i32
  }
  func.func @transform_6(%arg0: i32, %arg1: i32) -> (i32, i32, i32) {
    %c0_i32 = arith.constant 0 : i32
    %c0_i32_0 = arith.constant 0 : i32
    %c0_i32_1 = arith.constant 0 : i32
    return %arg1, %c0_i32, %c0_i32_0 : i32, i32, i32
  }
  func.func @transform_7(%arg0: i32, %arg1: i32) -> (i32, i32, i32) {
    %c0_i32 = arith.constant 0 : i32
    %c0_i32_0 = arith.constant 0 : i32
    %c0_i32_1 = arith.constant 0 : i32
    return %arg1, %c0_i32, %c0_i32_0 : i32, i32, i32
  }
  func.func @transform_8(%arg0: i32, %arg1: i32) -> (i32, i32, i32) {
    %c0_i32 = arith.constant 0 : i32
    %c0_i32_0 = arith.constant 0 : i32
    %c0_i32_1 = arith.constant 0 : i32
    return %arg1, %c0_i32, %c0_i32_0 : i32, i32, i32
  }
  func.func @transform_9(%arg0: i32, %arg1: i32) -> (i32, i32, i32) {
    %c0_i32 = arith.constant 0 : i32
    %c0_i32_0 = arith.constant 0 : i32
    %c0_i32_1 = arith.constant 0 : i32
    return %arg1, %c0_i32, %c0_i32_0 : i32, i32, i32
  }
  func.func @transform_10(%arg0: i32, %arg1: i32) -> (i32, i32, i32) {
    %c0_i32 = arith.constant 0 : i32
    %c0_i32_0 = arith.constant 0 : i32
    %c0_i32_1 = arith.constant 0 : i32
    return %arg1, %c0_i32, %c0_i32_0 : i32, i32, i32
  }
  func.func @transform_11(%arg0: i32, %arg1: i32) -> (i32, i32, i32) {
    %c0_i32 = arith.constant 0 : i32
    %c0_i32_0 = arith.constant 0 : i32
    %c0_i32_1 = arith.constant 0 : i32
    return %arg1, %c0_i32, %c0_i32_0 : i32, i32, i32
  }
  func.func @transform_12(%arg0: i32, %arg1: i32) -> (i32, i32, i32) {
    %c0_i32 = arith.constant 0 : i32
    %c0_i32_0 = arith.constant 0 : i32
    %c0_i32_1 = arith.constant 0 : i32
    return %arg1, %c0_i32, %c0_i32_0 : i32, i32, i32
  }
  func.func @transform_13(%arg0: i32, %arg1: i32) -> (i32, i32) {
    %c0_i32 = arith.constant 0 : i32
    %c0_i32_0 = arith.constant 0 : i32
    return %arg0, %c0_i32 : i32, i32
  }
}

</mosaic_0001>

<llo_original>
// kernel: vit_forward.3
$region0: #{vit_forward.3}
  #allocation0 [shape = 'u32[]', space=smem, size = 0x4, offset = 0x4, fixed_abs, tag = 'smem constant byte address 0x4 - core index']
  #allocation1 [shape = 'u32[72,128]{1,0:T(1,128)}', space=vmem, size = 0x9000, scoped, tag = 'internal scratch']
  %s0 = inlined_call_operand.vmem [shape: f32[32,48], index: 0, kind: input, shape index: {}]
  %s1 = inlined_call_operand.vmem [shape: bf16[48,128], index: 1, kind: input, shape index: {}]
  %s2 = inlined_call_operand.vmem [shape: f32[1,128], index: 2, kind: input, shape index: {}]
  %s3 = inlined_call_operand.vmem [shape: f32[32,128], index: 3, kind: output, shape index: {}]
  %s4 = sld [smem:[#allocation0]]
  $region22: #{vit_forward.3} parent=0
    _
  %s6 = ssub.s32 1, %s4
  %s7 = scalar_select 0, %s6, %s4
  // Predicated region
  $region2: #{vit_forward.3} parent=0 // pred_check
    _
  $region3: #{vit_forward.3} parent=0 // pred_check_branch
    %9 = sbr.rel (0) target = $region5
  $region4: #{vit_forward.3} parent=0 // pred_region
    _
  $region5: #{vit_forward.3} parent=0 // pred_fallthru
    _
  // Predicated region
  $region6: #{vit_forward.3} parent=0 // pred_check
    _
  $region7: #{vit_forward.3} parent=0 // pred_check_branch
    %11 = sbr.rel (0) target = $region9
  $region8: #{vit_forward.3} parent=0 // pred_region
    _
  $region9: #{vit_forward.3} parent=0 // pred_fallthru
    _
  // Predicated region
  $region10: #{vit_forward.3} parent=0 // pred_check
    _
  $region11: #{vit_forward.3} parent=0 // pred_check_branch
    %13 = sbr.rel (0) target = $region13
  $region12: #{vit_forward.3} parent=0 // pred_region
    _
  $region13: #{vit_forward.3} parent=0 // pred_fallthru
    _
  %v15 = vld [vmem:[%s0] sm:$0xff]
  %v16 = vld [vmem:[%s0 + $0x8] sm:$0xff]
  %v17 = vld [vmem:[%s0 + $0x10] sm:$0xff]
  %v18 = vld [vmem:[%s0 + $0x18] sm:$0xff]
  %v19 = vpack.c.bf16 %v16, %v15
  %v20 = vpack.c.bf16 %v18, %v17
  %v21 = vld [vmem:[%s1] sm:$0xf]
  %v22 = vld [vmem:[%s1 + $0x4] sm:$0xf]
  %v23 = vld [vmem:[%s1 + $0x8] sm:$0xf]
  %v24 = vld [vmem:[%s1 + $0xc] sm:$0xf]
  %v25 = vld [vmem:[%s1 + $0x10] sm:$0xf]
  %v26 = vld [vmem:[%s1 + $0x14] sm:$0xf]
  %v27 = vld [vmem:[%s2] sm:$0x1]
  %v29 = vperm.slane %v27, 0
  %v37 = vunpack.c.l.b16 %v21
  %v38 = vunpack.c.l.b16 %v22
  %v39 = vunpack.c.l.b16 %v23
  %v40 = vunpack.c.l.b16 %v24
  %v41 = vunpack.c.l.b16 %v25
  %v42 = vunpack.c.l.b16 %v26
  %v43 = vpack.c.b16 %v38, %v37
  %v44 = vpack.c.b16 %v40, %v39
  %v45 = vpack.c.b16 %v42, %v41
  %vm49 = vcmask 392192
  %v51 = vsel %vm49, %v19, 0
  %v54 = vsel %vm49, %v20, 0
  %56 = vmatpush.bf16.msra.mxu0 0
  %57 = vmatpush.bf16.msra.mxu0 0
  %58 = vmatpush.bf16.msra.mxu0 0
  %59 = vmatpush.bf16.msra.mxu0 0
  %60 = vmatpush.bf16.msra.mxu0 0
  %61 = vmatpush.bf16.msra.mxu0 %v45
  %62 = vmatpush.bf16.msra.mxu0 %v44
  %63 = vmatpush.bf16.msra.mxu0 %v43
  %64 = vmatmul.bf16.gmra.mxu0 %v51
  %v65 = vpop.f32.mrf.mxu0
  %v66 = vadd.f32 %v29, %v65
  %v67 = vpop.f32.mrf.mxu0
  %v68 = vadd.f32 %v29, %v67
  %69 = vmatmul.bf16.gmra.mxu0 %v54
  %v70 = vpop.f32.mrf.mxu0
  %v71 = vadd.f32 %v29, %v70
  %v72 = vpop.f32.mrf.mxu0
  %v73 = vadd.f32 %v29, %v72
  %74 = vdwg.mxu0
  %75 = vst [vmem:[%s3] sm:$0xff] %v66
  %76 = vst [vmem:[%s3 + $0x8] sm:$0xff] %v68
  %77 = vst [vmem:[%s3 + $0x10] sm:$0xff] %v71
  %78 = vst [vmem:[%s3 + $0x18] sm:$0xff] %v73
  // Predicated region
  $region14: #{vit_forward.3} parent=0 // pred_check
    _
  $region15: #{vit_forward.3} parent=0 // pred_check_branch
    %80 = sbr.rel (0) target = $region17
  $region16: #{vit_forward.3} parent=0 // pred_region
    _
  $region17: #{vit_forward.3} parent=0 // pred_fallthru
    _
  // Predicated region
  $region18: #{vit_forward.3} parent=0 // pred_check
    _
  $region19: #{vit_forward.3} parent=0 // pred_check_branch
    %82 = sbr.rel (0) target = $region21
  $region20: #{vit_forward.3} parent=0 // pred_region
    _
  $region21: #{vit_forward.3} parent=0 // pred_fallthru
    _

// kernel: vit_forward.5
$region0: #{vit_forward.5}
  #allocation0 [shape = 'u32[]', space=smem, size = 0x4, offset = 0x4, fixed_abs, tag = 'smem constant byte address 0x4 - core index']
  #allocation1 [shape = 'u32[72,128]{1,0:T(1,128)}', space=vmem, size = 0x9000, scoped, tag = 'internal scratch']
  %s0 = inlined_call_operand.vmem [shape: f32[2,17,32], index: 0, kind: input, shape index: {}]
  %s1 = inlined_call_operand.vmem [shape: f32[1,32], index: 1, kind: input, shape index: {}]
  %s2 = inlined_call_operand.vmem [shape: f32[1,32], index: 2, kind: input, shape index: {}]
  %s3 = inlined_call_operand.vmem [shape: bf16[32,128], index: 3, kind: input, shape index: {}]
  %s4 = inlined_call_operand.vmem [shape: f32[1,128], index: 4, kind: input, shape index: {}]
  %s5 = inlined_call_operand.hbm [shape: f32[2,128], index: 5, kind: output, shape index: {}]
  %s6 = sld [smem:[#allocation0]]
  $region30: #{vit_forward.5} parent=0
    _
  %s8 = ssub.s32 1, %s6
  %s9 = scalar_select 0, %s8, %s6
  $region1: #{vit_forward.5} parent=0
    #allocation2 [shape = 'u8[1024]{0}', space=vmem, size = 0x400, scoped, tag = 'output window, operand 0, single buffered']
    #allocation3 [shape = 's32[1]{0}', space=sflag, size = 0x4, scoped, tag = 'scoped memory for vit_forward.5']
    %10 = vsyncpa [#allocation3], 0
    // Predicated region
    $region2: #{vit_forward.5} parent=1 // pred_check
      _
    $region3: #{vit_forward.5} parent=1 // pred_check_branch
      %12 = sbr.rel (0) target = $region5
    $region4: #{vit_forward.5} parent=1 // pred_region
      _
    $region5: #{vit_forward.5} parent=1 // pred_fallthru
      _
    // Predicated region
    $region6: #{vit_forward.5} parent=1 // pred_check
      _
    $region7: #{vit_forward.5} parent=1 // pred_check_branch
      %14 = sbr.rel (0) target = $region9
    $region8: #{vit_forward.5} parent=1 // pred_region
      _
    $region9: #{vit_forward.5} parent=1 // pred_fallthru
      _
    // Predicated region
    $region10: #{vit_forward.5} parent=1 // pred_check
      _
    $region11: #{vit_forward.5} parent=1 // pred_check_branch
      %16 = sbr.rel (0) target = $region13
    $region12: #{vit_forward.5} parent=1 // pred_region
      _
    $region13: #{vit_forward.5} parent=1 // pred_fallthru
      _
    // Predicated region
    $region14: #{vit_forward.5} parent=1 // pred_check
      _
    $region15: #{vit_forward.5} parent=1 // pred_check_branch
      %18 = sbr.rel (0) target = $region17
    $region16: #{vit_forward.5} parent=1 // pred_region
      _
    $region17: #{vit_forward.5} parent=1 // pred_fallthru
      _
    // Predicated region
    $region18: #{vit_forward.5} parent=1 // pred_check
      _
    $region19: #{vit_forward.5} parent=1 // pred_check_branch
      %20 = sbr.rel (0) target = $region21
    $region20: #{vit_forward.5} parent=1 // pred_region
      _
    $region21: #{vit_forward.5} parent=1 // pred_fallthru
      _
    %v22 = vld [vmem:[%s0] sm:$0xff]
    %v23 = vld [vmem:[%s0 + $0x8] sm:$0xff]
    %v24 = vld [vmem:[%s0 + $0x10] sm:$0x1]
    %v25 = vld [vmem:[%s0 + $0x18] sm:$0xff]
    %v26 = vld [vmem:[%s0 + $0x20] sm:$0xff]
    %v27 = vld [vmem:[%s0 + $0x28] sm:$0x1]
    %vm28 = vcmask 261120
    %v29 = vsel %vm28, %v22, 0.0
    %v30 = vsel %vm28, %v23, 0.0
    %v31 = vadd.f32 %v29, %v30
    %vm32 = vcmask 253952
    %v33 = vsel %vm32, %v24, 0.0
    %v34 = vadd.f32 %v31, %v33
    %v35 = vrot.slane %v34, 4
    %v36 = vadd.f32 %v34, %v35
    %v37 = vrot.slane %v36, 2
    %v38 = vadd.f32 %v36, %v37
    %v39 = vrot.slane %v38, 1
    %v40 = vadd.f32 %v38, %v39
    %v41 = vsel %vm28, %v25, 0.0
    %v42 = vsel %vm28, %v26, 0.0
    %v43 = vadd.f32 %v41, %v42
    %v44 = vsel %vm32, %v27, 0.0
    %v45 = vadd.f32 %v43, %v44
    %v46 = vrot.slane %v45, 4
    %v47 = vadd.f32 %v45, %v46
    %v48 = vrot.slane %v47, 2
    %v49 = vadd.f32 %v47, %v48
    %v50 = vrot.slane %v49, 1
    %v51 = vadd.f32 %v49, %v50
    %v52 = vrcp.pop 17.0
    %v53 = vmul.f32 17.0, %v52
    %v54 = vsub.f32 1.0, %v53
    %v55 = vmul.f32 %v52, %v54
    %v56 = vadd.f32 %v52, %v55
    %vm57 = vweird.f32 %v52
    %v58 = vsel %vm57, %v52, %v56
    %v59 = vmul.f32 %v40, %v58
    %v60 = vmul.f32 %v51, %v58
    %v61 = vld [vmem:[%s1] sm:$0x1]
    %v62 = vld [vmem:[%s2] sm:$0x1]
    %vm65 = vcmask 1041409
    %v66 = vsel %vm65, %v60, %v59
    %vm68 = vcmask 254976
    %v69 = vsel %vm68, %v66, 0.0
    %70 = vadd.xlane.f32.xlu0 %v69
    %v71 = vpop.xlane.xlu0 %70
    %v72 = vrcp.pop 32.0
    %v73 = vmul.f32 32.0, %v72
    %v74 = vsub.f32 1.0, %v73
    %v75 = vmul.f32 %v72, %v74
    %v76 = vadd.f32 %v72, %v75
    %vm77 = vweird.f32 %v72
    %v78 = vsel %vm77, %v72, %v76
    %v79 = vmul.f32 %v71, %v78
    %v81 = vrot.slane %v79, 1
    %v84 = vsub.f32 %v59, %v79
    %v85 = vsub.f32 %v60, %v81
    %v86 = vmul.f32 %v84, %v84
    %v87 = vmul.f32 %v85, %v85
    %v90 = vrot.slane %v87, 7
    %v91 = vsel %vm65, %v90, %v86
    %v93 = vsel %vm68, %v91, 0.0
    %94 = vadd.xlane.f32.xlu0 %v93
    %v95 = vpop.xlane.xlu0 %94
    %v96 = vmul.f32 %v95, %v78
    %v97 = vadd.f32 %v96, 1e-05
    %v98 = vrsqrt.pop %v97
    %v99 = vmul.f32 %v98, %v97
    %v100 = vmul.f32 %v99, %v98
    %v101 = vmul.f32 0.5, %v100
    %v102 = vsub.f32 1.5, %v101
    %v103 = vmul.f32 %v98, %v102
    %vm104 = vweird.f32 %v97
    %vm105 = vweird.f32 %v98
    %vm106 = vmor %vm104, %vm105
    %v107 = vsel %vm106, %v98, %v103
    %v109 = vrot.slane %v107, 1
    %v112 = vmul.f32 %v84, %v107
    %v113 = vmul.f32 %v85, %v109
    %v115 = vperm.slane %v61, 0
    %v117 = vmul.f32 %v112, %v115
    %v118 = vmul.f32 %v113, %v115
    %v120 = vperm.slane %v62, 0
    %v122 = vadd.f32 %v117, %v120
    %v123 = vadd.f32 %v118, %v120
    %v124 = vpack.c.bf16 %v122, %v122
    %v125 = vpack.c.bf16 %v123, %v123
    %v126 = vld [vmem:[%s3] sm:$0xf]
    %v127 = vld [vmem:[%s3 + $0x4] sm:$0xf]
    %v128 = vld [vmem:[%s3 + $0x8] sm:$0xf]
    %v129 = vld [vmem:[%s3 + $0xc] sm:$0xf]
    %v130 = vld [vmem:[%s4] sm:$0x1]
    %v132 = vperm.slane %v130, 0
    %v136 = vunpack.c.l.b16 %v124
    %v137 = vunpack.c.l.b16 %v125
    %v138 = vrot.slane %v137, 7
    %v139 = vsel %vm65, %v138, %v136
    %v140 = vpack.c.b16 %v139, %v139
    %v145 = vunpack.c.l.b16 %v126
    %v146 = vunpack.c.l.b16 %v127
    %v147 = vunpack.c.l.b16 %v128
    %v148 = vunpack.c.l.b16 %v129
    %v149 = vpack.c.b16 %v146, %v145
    %v150 = vpack.c.b16 %v148, %v147
    %v154 = vsel %vm28, %v140, 0
    %156 = vmatpush.bf16.msra.mxu0 0
    %157 = vmatpush.bf16.msra.mxu0 0
    %158 = vmatpush.bf16.msra.mxu0 0
    %159 = vmatpush.bf16.msra.mxu0 0
    %160 = vmatpush.bf16.msra.mxu0 0
    %161 = vmatpush.bf16.msra.mxu0 0
    %162 = vmatpush.bf16.msra.mxu0 %v150
    %163 = vmatpush.bf16.msra.mxu0 %v149
    %164 = vmatmul.bf16.gmra.mxu0 %v154
    %v165 = vpop.f32.mrf.mxu0
    %v166 = vadd.f32 %v132, %v165
    %v167 = vpop.f32.mrf.mxu0
    %168 = vdwg.mxu0
    %169 = vst [vmem:[#allocation2] sm:$0x3] %v166
    // Predicated region
    $region22: #{vit_forward.5} parent=1 // pred_check
      _
    $region23: #{vit_forward.5} parent=1 // pred_check_branch
      %171 = sbr.rel (0) target = $region25
    $region24: #{vit_forward.5} parent=1 // pred_region
      %173 = vsyncadd [#allocation3], 0
      %s175 = sshll.u32 [#allocation2], 4
      %s176 = int_to_ptr.vmem [resolvable:$true] %s175
      %s177 = sshll.u32 %s5, 4
      %s178 = int_to_ptr.hbm [resolvable:$true] %s177
      %180 = dma.vmem_to_hbm [thread:$0]  %s176, 32, %s178, [#allocation3]
    $region25: #{vit_forward.5} parent=1 // pred_fallthru
      _
    // Predicated region
    $region26: #{vit_forward.5} parent=1 // pred_check
      _
    $region27: #{vit_forward.5} parent=1 // pred_check_branch
      %182 = sbr.rel (0) target = $region29
    $region28: #{vit_forward.5} parent=1 // pred_region
      %184 = dma.done [#allocation3], 32
    $region29: #{vit_forward.5} parent=1 // pred_fallthru
      _
    %185 = vsyncpa [#allocation3], 1

// kernel: vit_forward.4
$region0: #{vit_forward.4}
  #allocation0 [shape = 'u32[]', space=smem, size = 0x4, offset = 0x4, fixed_abs, tag = 'smem constant byte address 0x4 - core index']
  #allocation1 [shape = 'u32[72,128]{1,0:T(1,128)}', space=vmem, size = 0x9000, scoped, tag = 'internal scratch']
  %s0 = inlined_call_operand.vmem [shape: f32[256,32], index: 0, kind: input, shape index: {}]
  %s1 = inlined_call_operand.vmem [shape: f32[2,1,32], index: 1, kind: input, shape index: {}]
  %s2 = inlined_call_operand.vmem [shape: f32[2,1,32], index: 2, kind: input, shape index: {}]
  %s3 = inlined_call_operand.vmem [shape: bf16[2,3,32,32], index: 3, kind: input, shape index: {}]
  %s4 = inlined_call_operand.vmem [shape: f32[2,3,1,32], index: 4, kind: input, shape index: {}]
  %s5 = inlined_call_operand.vmem [shape: bf16[2,32,32], index: 5, kind: input, shape index: {}]
  %s6 = inlined_call_operand.vmem [shape: f32[2,1,32], index: 6, kind: input, shape index: {}]
  %s7 = inlined_call_operand.vmem [shape: f32[2,1,32], index: 7, kind: input, shape index: {}]
  %s8 = inlined_call_operand.vmem [shape: f32[2,1,32], index: 8, kind: input, shape index: {}]
  %s9 = inlined_call_operand.vmem [shape: bf16[2,32,128], index: 9, kind: input, shape index: {}]
  %s10 = inlined_call_operand.vmem [shape: f32[2,1,128], index: 10, kind: input, shape index: {}]
  %s11 = inlined_call_operand.vmem [shape: bf16[2,128,32], index: 11, kind: input, shape index: {}]
  %s12 = inlined_call_operand.vmem [shape: f32[2,1,32], index: 12, kind: input, shape index: {}]
  %s13 = inlined_call_operand.vmem [shape: f32[256,32], index: 13, kind: output, shape index: {}]
  %s14 = sld [smem:[#allocation0]]
  $region89: #{vit_forward.4} parent=0
    _
  %s16 = ssub.s32 1, %s14
  %s17 = scalar_select 0, %s16, %s14
  loop: start=0, step=1, limit=6
  $region2: #{vit_forward.4} parent=0 // loop_pre_header
    _
  $region3: #{vit_forward.4} parent=0 // loop_header
    %s19 = sphi 0, %s23
    %p20 = scmp.ge.s32.totalorder %s19, 6
    %s26 = sphi 0, %s38
    %s27 = sphi 0, %s34
    %s28 = sphi 0, %s26
    %s29 = sphi 0, %s27
    %s30 = sphi 0, %s28
    %s31 = sphi 0, %s29
    %s41 = sphi 0, %s43
    %s44 = sphi 0, %s41
    %s45 = sphi 0, %s44
    %s61 = sphi 0, %s45
    %s67 = sphi 0, %s69
    %s70 = sphi 0, %s67
    %s71 = sphi 0, %s70
    %s87 = sphi 0, %s71
    %s93 = sphi 0, %s95
    %s96 = sphi 0, %s93
    %s97 = sphi 0, %s96
    %s113 = sphi 0, %s97
    %s119 = sphi 0, %s121
    %s122 = sphi 0, %s119
    %s123 = sphi 0, %s122
    %s139 = sphi 0, %s123
    %s145 = sphi 0, %s147
    %s148 = sphi 0, %s145
    %s149 = sphi 0, %s148
    %s165 = sphi 0, %s149
    %s171 = sphi 0, %s173
    %s174 = sphi 0, %s171
    %s175 = sphi 0, %s174
    %s191 = sphi 0, %s175
    %s197 = sphi 0, %s199
    %s200 = sphi 0, %s197
    %s201 = sphi 0, %s200
    %s217 = sphi 0, %s201
    %s223 = sphi 0, %s225
    %s226 = sphi 0, %s223
    %s227 = sphi 0, %s226
    %s243 = sphi 0, %s227
    %s249 = sphi 0, %s251
    %s252 = sphi 0, %s249
    %s253 = sphi 0, %s252
    %s269 = sphi 0, %s253
    %s275 = sphi 0, %s277
    %s278 = sphi 0, %s275
    %s279 = sphi 0, %s278
    %s295 = sphi 0, %s279
    %s301 = sphi 0, %s303
    %s304 = sphi 0, %s301
    %s305 = sphi 0, %s304
    %s321 = sphi 0, %s305
    %s327 = sphi 0, %s329
    %s330 = sphi 0, %s327
    %s331 = sphi 0, %s330
    %s347 = sphi 0, %s331
    %s353 = sphi 0, %s355
    %s356 = sphi 0, %s353
    %s357 = sphi 0, %s356
    %s373 = sphi 0, %s357
    %s379 = sphi 0, %s381
    %s382 = sphi 0, %s379
    %s383 = sphi 0, %s382
    %s399 = sphi 0, %s383
  $region4: #{vit_forward.4} parent=0 // loop_header_branch
    %22 = sbr.rel (%p20) target = $region8
  $region5: #{vit_forward.4} parent=0 // loop_body
    %s24 = ssub.s32 %s19, 1
    %s25 = ssub.s32 %s19, 2
    %s32 = sadd.s32 1, %s27
    %p33 = scmp.ge.s32.totalorder %s32, 2
    %s34 = scalar_select %p33, 0, %s32
    %s35 = sadd.s32 1, %s26
    %s36 = scalar_select %p33, %s35, %s26
    %p37 = scmp.ge.s32.totalorder %s36, 2
    %s38 = scalar_select %p37, 0, %s36
    %s39 = ssub.s32 %s26, %s38
    %p40 = scmp.eq.s32.totalorder %s39, 0
    %s42 = sadd.s32 %s41, 1
    %s43 = scalar_select %p40, %s41, %s42
    %p46 = pneg %p40
    %p47 = scmp.eq.s32.totalorder %s19, 3
    %p48 = por %p46, %p47
    %p49 = scmp.ne.s32.totalorder %s41, %s44
    %p50 = scmp.eq.s32.totalorder %s19, 0
    %p51 = por %p49, %p50
    %p52 = scmp.ne.s32.totalorder %s41, %s44
    %p53 = scmp.eq.s32.totalorder %s24, 3
    %p54 = por %p52, %p53
    %p55 = scmp.ne.s32.totalorder %s44, %s45
    %p56 = scmp.eq.s32.totalorder %s24, 0
    %p57 = por %p55, %p56
    %p58 = scmp.ne.s32.totalorder %s44, %s45
    %p59 = scmp.eq.s32.totalorder %s25, 3
    %p60 = por %p58, %p59
    %p62 = scmp.ne.s32.totalorder %s45, %s61
    %p63 = scmp.eq.s32.totalorder %s25, 0
    %p64 = por %p62, %p63
    %s65 = ssub.s32 %s27, %s34
    %p66 = scmp.eq.s32.totalorder %s65, 0
    %s68 = sadd.s32 %s67, 1
    %s69 = scalar_select %p66, %s67, %s68
    %p72 = pneg %p66
    %p73 = scmp.eq.s32.totalorder %s19, 3
    %p74 = por %p72, %p73
    %p75 = scmp.ne.s32.totalorder %s67, %s70
    %p76 = scmp.eq.s32.totalorder %s19, 0
    %p77 = por %p75, %p76
    %p78 = scmp.ne.s32.totalorder %s67, %s70
    %p79 = scmp.eq.s32.totalorder %s24, 3
    %p80 = por %p78, %p79
    %p81 = scmp.ne.s32.totalorder %s70, %s71
    %p82 = scmp.eq.s32.totalorder %s24, 0
    %p83 = por %p81, %p82
    %p84 = scmp.ne.s32.totalorder %s70, %s71
    %p85 = scmp.eq.s32.totalorder %s25, 3
    %p86 = por %p84, %p85
    %p88 = scmp.ne.s32.totalorder %s71, %s87
    %p89 = scmp.eq.s32.totalorder %s25, 0
    %p90 = por %p88, %p89
    %s91 = ssub.s32 %s27, %s34
    %p92 = scmp.eq.s32.totalorder %s91, 0
    %s94 = sadd.s32 %s93, 1
    %s95 = scalar_select %p92, %s93, %s94
    %p98 = pneg %p92
    %p99 = scmp.eq.s32.totalorder %s19, 3
    %p100 = por %p98, %p99
    %p101 = scmp.ne.s32.totalorder %s93, %s96
    %p102 = scmp.eq.s32.totalorder %s19, 0
    %p103 = por %p101, %p102
    %p104 = scmp.ne.s32.totalorder %s93, %s96
    %p105 = scmp.eq.s32.totalorder %s24, 3
    %p106 = por %p104, %p105
    %p107 = scmp.ne.s32.totalorder %s96, %s97
    %p108 = scmp.eq.s32.totalorder %s24, 0
    %p109 = por %p107, %p108
    %p110 = scmp.ne.s32.totalorder %s96, %s97
    %p111 = scmp.eq.s32.totalorder %s25, 3
    %p112 = por %p110, %p111
    %p114 = scmp.ne.s32.totalorder %s97, %s113
    %p115 = scmp.eq.s32.totalorder %s25, 0
    %p116 = por %p114, %p115
    %s117 = ssub.s32 %s27, %s34
    %p118 = scmp.eq.s32.totalorder %s117, 0
    %s120 = sadd.s32 %s119, 1
    %s121 = scalar_select %p118, %s119, %s120
    %p124 = pneg %p118
    %p125 = scmp.eq.s32.totalorder %s19, 3
    %p126 = por %p124, %p125
    %p127 = scmp.ne.s32.totalorder %s119, %s122
    %p128 = scmp.eq.s32.totalorder %s19, 0
    %p129 = por %p127, %p128
    %p130 = scmp.ne.s32.totalorder %s119, %s122
    %p131 = scmp.eq.s32.totalorder %s24, 3
    %p132 = por %p130, %p131
    %p133 = scmp.ne.s32.totalorder %s122, %s123
    %p134 = scmp.eq.s32.totalorder %s24, 0
    %p135 = por %p133, %p134
    %p136 = scmp.ne.s32.totalorder %s122, %s123
    %p137 = scmp.eq.s32.totalorder %s25, 3
    %p138 = por %p136, %p137
    %p140 = scmp.ne.s32.totalorder %s123, %s139
    %p141 = scmp.eq.s32.totalorder %s25, 0
    %p142 = por %p140, %p141
    %s143 = ssub.s32 %s27, %s34
    %p144 = scmp.eq.s32.totalorder %s143, 0
    %s146 = sadd.s32 %s145, 1
    %s147 = scalar_select %p144, %s145, %s146
    %p150 = pneg %p144
    %p151 = scmp.eq.s32.totalorder %s19, 3
    %p152 = por %p150, %p151
    %p153 = scmp.ne.s32.totalorder %s145, %s148
    %p154 = scmp.eq.s32.totalorder %s19, 0
    %p155 = por %p153, %p154
    %p156 = scmp.ne.s32.totalorder %s145, %s148
    %p157 = scmp.eq.s32.totalorder %s24, 3
    %p158 = por %p156, %p157
    %p159 = scmp.ne.s32.totalorder %s148, %s149
    %p160 = scmp.eq.s32.totalorder %s24, 0
    %p161 = por %p159, %p160
    %p162 = scmp.ne.s32.totalorder %s148, %s149
    %p163 = scmp.eq.s32.totalorder %s25, 3
    %p164 = por %p162, %p163
    %p166 = scmp.ne.s32.totalorder %s149, %s165
    %p167 = scmp.eq.s32.totalorder %s25, 0
    %p168 = por %p166, %p167
    %s169 = ssub.s32 %s27, %s34
    %p170 = scmp.eq.s32.totalorder %s169, 0
    %s172 = sadd.s32 %s171, 1
    %s173 = scalar_select %p170, %s171, %s172
    %p176 = pneg %p170
    %p177 = scmp.eq.s32.totalorder %s19, 3
    %p178 = por %p176, %p177
    %p179 = scmp.ne.s32.totalorder %s171, %s174
    %p180 = scmp.eq.s32.totalorder %s19, 0
    %p181 = por %p179, %p180
    %p182 = scmp.ne.s32.totalorder %s171, %s174
    %p183 = scmp.eq.s32.totalorder %s24, 3
    %p184 = por %p182, %p183
    %p185 = scmp.ne.s32.totalorder %s174, %s175
    %p186 = scmp.eq.s32.totalorder %s24, 0
    %p187 = por %p185, %p186
    %p188 = scmp.ne.s32.totalorder %s174, %s175
    %p189 = scmp.eq.s32.totalorder %s25, 3
    %p190 = por %p188, %p189
    %p192 = scmp.ne.s32.totalorder %s175, %s191
    %p193 = scmp.eq.s32.totalorder %s25, 0
    %p194 = por %p192, %p193
    %s195 = ssub.s32 %s27, %s34
    %p196 = scmp.eq.s32.totalorder %s195, 0
    %s198 = sadd.s32 %s197, 1
    %s199 = scalar_select %p196, %s197, %s198
    %p202 = pneg %p196
    %p203 = scmp.eq.s32.totalorder %s19, 3
    %p204 = por %p202, %p203
    %p205 = scmp.ne.s32.totalorder %s197, %s200
    %p206 = scmp.eq.s32.totalorder %s19, 0
    %p207 = por %p205, %p206
    %p208 = scmp.ne.s32.totalorder %s197, %s200
    %p209 = scmp.eq.s32.totalorder %s24, 3
    %p210 = por %p208, %p209
    %p211 = scmp.ne.s32.totalorder %s200, %s201
    %p212 = scmp.eq.s32.totalorder %s24, 0
    %p213 = por %p211, %p212
    %p214 = scmp.ne.s32.totalorder %s200, %s201
    %p215 = scmp.eq.s32.totalorder %s25, 3
    %p216 = por %p214, %p215
    %p218 = scmp.ne.s32.totalorder %s201, %s217
    %p219 = scmp.eq.s32.totalorder %s25, 0
    %p220 = por %p218, %p219
    %s221 = ssub.s32 %s27, %s34
    %p222 = scmp.eq.s32.totalorder %s221, 0
    %s224 = sadd.s32 %s223, 1
    %s225 = scalar_select %p222, %s223, %s224
    %p228 = pneg %p222
    %p229 = scmp.eq.s32.totalorder %s19, 3
    %p230 = por %p228, %p229
    %p231 = scmp.ne.s32.totalorder %s223, %s226
    %p232 = scmp.eq.s32.totalorder %s19, 0
    %p233 = por %p231, %p232
    %p234 = scmp.ne.s32.totalorder %s223, %s226
    %p235 = scmp.eq.s32.totalorder %s24, 3
    %p236 = por %p234, %p235
    %p237 = scmp.ne.s32.totalorder %s226, %s227
    %p238 = scmp.eq.s32.totalorder %s24, 0
    %p239 = por %p237, %p238
    %p240 = scmp.ne.s32.totalorder %s226, %s227
    %p241 = scmp.eq.s32.totalorder %s25, 3
    %p242 = por %p240, %p241
    %p244 = scmp.ne.s32.totalorder %s227, %s243
    %p245 = scmp.eq.s32.totalorder %s25, 0
    %p246 = por %p244, %p245
    %s247 = ssub.s32 %s27, %s34
    %p248 = scmp.eq.s32.totalorder %s247, 0
    %s250 = sadd.s32 %s249, 1
    %s251 = scalar_select %p248, %s249, %s250
    %p254 = pneg %p248
    %p255 = scmp.eq.s32.totalorder %s19, 3
    %p256 = por %p254, %p255
    %p257 = scmp.ne.s32.totalorder %s249, %s252
    %p258 = scmp.eq.s32.totalorder %s19, 0
    %p259 = por %p257, %p258
    %p260 = scmp.ne.s32.totalorder %s249, %s252
    %p261 = scmp.eq.s32.totalorder %s24, 3
    %p262 = por %p260, %p261
    %p263 = scmp.ne.s32.totalorder %s252, %s253
    %p264 = scmp.eq.s32.totalorder %s24, 0
    %p265 = por %p263, %p264
    %p266 = scmp.ne.s32.totalorder %s252, %s253
    %p267 = scmp.eq.s32.totalorder %s25, 3
    %p268 = por %p266, %p267
    %p270 = scmp.ne.s32.totalorder %s253, %s269
    %p271 = scmp.eq.s32.totalorder %s25, 0
    %p272 = por %p270, %p271
    %s273 = ssub.s32 %s27, %s34
    %p274 = scmp.eq.s32.totalorder %s273, 0
    %s276 = sadd.s32 %s275, 1
    %s277 = scalar_select %p274, %s275, %s276
    %p280 = pneg %p274
    %p281 = scmp.eq.s32.totalorder %s19, 3
    %p282 = por %p280, %p281
    %p283 = scmp.ne.s32.totalorder %s275, %s278
    %p284 = scmp.eq.s32.totalorder %s19, 0
    %p285 = por %p283, %p284
    %p286 = scmp.ne.s32.totalorder %s275, %s278
    %p287 = scmp.eq.s32.totalorder %s24, 3
    %p288 = por %p286, %p287
    %p289 = scmp.ne.s32.totalorder %s278, %s279
    %p290 = scmp.eq.s32.totalorder %s24, 0
    %p291 = por %p289, %p290
    %p292 = scmp.ne.s32.totalorder %s278, %s279
    %p293 = scmp.eq.s32.totalorder %s25, 3
    %p294 = por %p292, %p293
    %p296 = scmp.ne.s32.totalorder %s279, %s295
    %p297 = scmp.eq.s32.totalorder %s25, 0
    %p298 = por %p296, %p297
    %s299 = ssub.s32 %s27, %s34
    %p300 = scmp.eq.s32.totalorder %s299, 0
    %s302 = sadd.s32 %s301, 1
    %s303 = scalar_select %p300, %s301, %s302
    %p306 = pneg %p300
    %p307 = scmp.eq.s32.totalorder %s19, 3
    %p308 = por %p306, %p307
    %p309 = scmp.ne.s32.totalorder %s301, %s304
    %p310 = scmp.eq.s32.totalorder %s19, 0
    %p311 = por %p309, %p310
    %p312 = scmp.ne.s32.totalorder %s301, %s304
    %p313 = scmp.eq.s32.totalorder %s24, 3
    %p314 = por %p312, %p313
    %p315 = scmp.ne.s32.totalorder %s304, %s305
    %p316 = scmp.eq.s32.totalorder %s24, 0
    %p317 = por %p315, %p316
    %p318 = scmp.ne.s32.totalorder %s304, %s305
    %p319 = scmp.eq.s32.totalorder %s25, 3
    %p320 = por %p318, %p319
    %p322 = scmp.ne.s32.totalorder %s305, %s321
    %p323 = scmp.eq.s32.totalorder %s25, 0
    %p324 = por %p322, %p323
    %s325 = ssub.s32 %s27, %s34
    %p326 = scmp.eq.s32.totalorder %s325, 0
    %s328 = sadd.s32 %s327, 1
    %s329 = scalar_select %p326, %s327, %s328
    %p332 = pneg %p326
    %p333 = scmp.eq.s32.totalorder %s19, 3
    %p334 = por %p332, %p333
    %p335 = scmp.ne.s32.totalorder %s327, %s330
    %p336 = scmp.eq.s32.totalorder %s19, 0
    %p337 = por %p335, %p336
    %p338 = scmp.ne.s32.totalorder %s327, %s330
    %p339 = scmp.eq.s32.totalorder %s24, 3
    %p340 = por %p338, %p339
    %p341 = scmp.ne.s32.totalorder %s330, %s331
    %p342 = scmp.eq.s32.totalorder %s24, 0
    %p343 = por %p341, %p342
    %p344 = scmp.ne.s32.totalorder %s330, %s331
    %p345 = scmp.eq.s32.totalorder %s25, 3
    %p346 = por %p344, %p345
    %p348 = scmp.ne.s32.totalorder %s331, %s347
    %p349 = scmp.eq.s32.totalorder %s25, 0
    %p350 = por %p348, %p349
    %s351 = ssub.s32 %s27, %s34
    %p352 = scmp.eq.s32.totalorder %s351, 0
    %s354 = sadd.s32 %s353, 1
    %s355 = scalar_select %p352, %s353, %s354
    %p358 = pneg %p352
    %p359 = scmp.eq.s32.totalorder %s19, 3
    %p360 = por %p358, %p359
    %p361 = scmp.ne.s32.totalorder %s353, %s356
    %p362 = scmp.eq.s32.totalorder %s19, 0
    %p363 = por %p361, %p362
    %p364 = scmp.ne.s32.totalorder %s353, %s356
    %p365 = scmp.eq.s32.totalorder %s24, 3
    %p366 = por %p364, %p365
    %p367 = scmp.ne.s32.totalorder %s356, %s357
    %p368 = scmp.eq.s32.totalorder %s24, 0
    %p369 = por %p367, %p368
    %p370 = scmp.ne.s32.totalorder %s356, %s357
    %p371 = scmp.eq.s32.totalorder %s25, 3
    %p372 = por %p370, %p371
    %p374 = scmp.ne.s32.totalorder %s357, %s373
    %p375 = scmp.eq.s32.totalorder %s25, 0
    %p376 = por %p374, %p375
    %s377 = ssub.s32 %s26, %s38
    %p378 = scmp.eq.s32.totalorder %s377, 0
    %s380 = sadd.s32 %s379, 1
    %s381 = scalar_select %p378, %s379, %s380
    %p384 = pneg %p378
    %p385 = scmp.eq.s32.totalorder %s19, 3
    %p386 = por %p384, %p385
    %p387 = scmp.ne.s32.totalorder %s379, %s382
    %p388 = scmp.eq.s32.totalorder %s19, 0
    %p389 = por %p387, %p388
    %p390 = scmp.ne.s32.totalorder %s379, %s382
    %p391 = scmp.eq.s32.totalorder %s24, 3
    %p392 = por %p390, %p391
    %p393 = scmp.ne.s32.totalorder %s382, %s383
    %p394 = scmp.eq.s32.totalorder %s24, 0
    %p395 = por %p393, %p394
    %p396 = scmp.ne.s32.totalorder %s382, %s383
    %p397 = scmp.eq.s32.totalorder %s25, 3
    %p398 = por %p396, %p397
    %p400 = scmp.ne.s32.totalorder %s383, %s399
    %p401 = scmp.eq.s32.totalorder %s25, 0
    %p402 = por %p400, %p401
    %p403 = scmp.le.s32.totalorder 1, %s19
    %p404 = scmp.lt.s32.totalorder %s19, 5
    %p405 = pnand %p403, %p404
    %p406 = pneg %p405
    // Predicated region
    $region9: #{vit_forward.4} parent=5 // pred_check
      _
    $region10: #{vit_forward.4} parent=5 // pred_check_branch
      %408 = sbr.rel (%p405) target = $region12
    $region11: #{vit_forward.4} parent=5 // pred_region
      %s409 = ssub.s32 %s19, 1
    $region12: #{vit_forward.4} parent=5 // pred_fallthru
      _
    %p410 = scmp.lt.s32.totalorder %s19, 4
    // Predicated region
    $region13: #{vit_forward.4} parent=5 // pred_check
      %p411 = pneg %p410
    $region14: #{vit_forward.4} parent=5 // pred_check_branch
      %413 = sbr.rel (%p411) target = $region16
    $region15: #{vit_forward.4} parent=5 // pred_region
      // Predicated region
      $region17: #{vit_forward.4} parent=15 // pred_check
        %p414 = pneg %p51
      $region18: #{vit_forward.4} parent=15 // pred_check_branch
        %416 = sbr.rel (%p414) target = $region20
      $region19: #{vit_forward.4} parent=15 // pred_region
        %s417 = smul.u32 16, %s26
        %p418 = scmp.lt.s32.totalorder %s417, 31
        %s419 = scalar_select %p418, %s417, 31
        %s420 = smul.addr %s419, 8
        %s421 = scalar_lea.vmem %s0, %s420
        %s422 = smul.u32 16, %s26
      $region20: #{vit_forward.4} parent=15 // pred_fallthru
        _
      // Predicated region
      $region21: #{vit_forward.4} parent=15 // pred_check
        %p423 = pneg %p77
      $region22: #{vit_forward.4} parent=15 // pred_check_branch
        %425 = sbr.rel (%p423) target = $region24
      $region23: #{vit_forward.4} parent=15 // pred_region
        %p426 = scmp.lt.s32.totalorder %s27, 1
        %s427 = scalar_select %p426, %s27, 1
        %s428 = scalar_lea.vmem %s1, %s427
      $region24: #{vit_forward.4} parent=15 // pred_fallthru
        _
      // Predicated region
      $region25: #{vit_forward.4} parent=15 // pred_check
        %p429 = pneg %p103
      $region26: #{vit_forward.4} parent=15 // pred_check_branch
        %431 = sbr.rel (%p429) target = $region28
      $region27: #{vit_forward.4} parent=15 // pred_region
        %p432 = scmp.lt.s32.totalorder %s27, 1
        %s433 = scalar_select %p432, %s27, 1
        %s434 = scalar_lea.vmem %s2, %s433
      $region28: #{vit_forward.4} parent=15 // pred_fallthru
        _
      // Predicated region
      $region29: #{vit_forward.4} parent=15 // pred_check
        %p435 = pneg %p129
      $region30: #{vit_forward.4} parent=15 // pred_check_branch
        %437 = sbr.rel (%p435) target = $region32
      $region31: #{vit_forward.4} parent=15 // pred_region
        %p438 = scmp.lt.s32.totalorder %s27, 1
        %s439 = scalar_select %p438, %s27, 1
        %s440 = smul.addr %s439, 12
        %s441 = smul.addr %s440, 4
        %s442 = scalar_lea.vmem %s3, %s441
      $region32: #{vit_forward.4} parent=15 // pred_fallthru
        _
      // Predicated region
      $region33: #{vit_forward.4} parent=15 // pred_check
        %p443 = pneg %p155
      $region34: #{vit_forward.4} parent=15 // pred_check_branch
        %445 = sbr.rel (%p443) target = $region36
      $region35: #{vit_forward.4} parent=15 // pred_region
        %p446 = scmp.lt.s32.totalorder %s27, 1
        %s447 = scalar_select %p446, %s27, 1
        %s448 = smul.addr %s447, 3
        %s449 = scalar_lea.vmem %s4, %s448
      $region36: #{vit_forward.4} parent=15 // pred_fallthru
        _
      // Predicated region
      $region37: #{vit_forward.4} parent=15 // pred_check
        %p450 = pneg %p181
      $region38: #{vit_forward.4} parent=15 // pred_check_branch
        %452 = sbr.rel (%p450) target = $region40
      $region39: #{vit_forward.4} parent=15 // pred_region
        %p453 = scmp.lt.s32.totalorder %s27, 1
        %s454 = scalar_select %p453, %s27, 1
        %s455 = smul.addr %s454, 4
        %s456 = smul.addr %s455, 4
        %s457 = scalar_lea.vmem %s5, %s456
      $region40: #{vit_forward.4} parent=15 // pred_fallthru
        _
      // Predicated region
      $region41: #{vit_forward.4} parent=15 // pred_check
        %p458 = pneg %p207
      $region42: #{vit_forward.4} parent=15 // pred_check_branch
        %460 = sbr.rel (%p458) target = $region44
      $region43: #{vit_forward.4} parent=15 // pred_region
        %p461 = scmp.lt.s32.totalorder %s27, 1
        %s462 = scalar_select %p461, %s27, 1
        %s463 = scalar_lea.vmem %s6, %s462
      $region44: #{vit_forward.4} parent=15 // pred_fallthru
        _
      // Predicated region
      $region45: #{vit_forward.4} parent=15 // pred_check
        %p464 = pneg %p233
      $region46: #{vit_forward.4} parent=15 // pred_check_branch
        %466 = sbr.rel (%p464) target = $region48
      $region47: #{vit_forward.4} parent=15 // pred_region
        %p467 = scmp.lt.s32.totalorder %s27, 1
        %s468 = scalar_select %p467, %s27, 1
        %s469 = scalar_lea.vmem %s7, %s468
      $region48: #{vit_forward.4} parent=15 // pred_fallthru
        _
      // Predicated region
      $region49: #{vit_forward.4} parent=15 // pred_check
        %p470 = pneg %p259
      $region50: #{vit_forward.4} parent=15 // pred_check_branch
        %472 = sbr.rel (%p470) target = $region52
      $region51: #{vit_forward.4} parent=15 // pred_region
        %p473 = scmp.lt.s32.totalorder %s27, 1
        %s474 = scalar_select %p473, %s27, 1
        %s475 = scalar_lea.vmem %s8, %s474
      $region52: #{vit_forward.4} parent=15 // pred_fallthru
        _
      // Predicated region
      $region53: #{vit_forward.4} parent=15 // pred_check
        %p476 = pneg %p285
      $region54: #{vit_forward.4} parent=15 // pred_check_branch
        %478 = sbr.rel (%p476) target = $region56
      $region55: #{vit_forward.4} parent=15 // pred_region
        %p479 = scmp.lt.s32.totalorder %s27, 1
        %s480 = scalar_select %p479, %s27, 1
        %s481 = smul.addr %s480, 4
        %s482 = smul.addr %s481, 4
        %s483 = scalar_lea.vmem %s9, %s482
      $region56: #{vit_forward.4} parent=15 // pred_fallthru
        _
      // Predicated region
      $region57: #{vit_forward.4} parent=15 // pred_check
        %p484 = pneg %p311
      $region58: #{vit_forward.4} parent=15 // pred_check_branch
        %486 = sbr.rel (%p484) target = $region60
      $region59: #{vit_forward.4} parent=15 // pred_region
        %p487 = scmp.lt.s32.totalorder %s27, 1
        %s488 = scalar_select %p487, %s27, 1
        %s489 = scalar_lea.vmem %s10, %s488
      $region60: #{vit_forward.4} parent=15 // pred_fallthru
        _
      // Predicated region
      $region61: #{vit_forward.4} parent=15 // pred_check
        %p490 = pneg %p337
      $region62: #{vit_forward.4} parent=15 // pred_check_branch
        %492 = sbr.rel (%p490) target = $region64
      $region63: #{vit_forward.4} parent=15 // pred_region
        %p493 = scmp.lt.s32.totalorder %s27, 1
        %s494 = scalar_select %p493, %s27, 1
        %s495 = smul.addr %s494, 16
        %s496 = smul.addr %s495, 4
        %s497 = scalar_lea.vmem %s11, %s496
      $region64: #{vit_forward.4} parent=15 // pred_fallthru
        _
      // Predicated region
      $region65: #{vit_forward.4} parent=15 // pred_check
        %p498 = pneg %p363
      $region66: #{vit_forward.4} parent=15 // pred_check_branch
        %500 = sbr.rel (%p498) target = $region68
      $region67: #{vit_forward.4} parent=15 // pred_region
        %p501 = scmp.lt.s32.totalorder %s27, 1
        %s502 = scalar_select %p501, %s27, 1
        %s503 = scalar_lea.vmem %s12, %s502
      $region68: #{vit_forward.4} parent=15 // pred_fallthru
        _
    $region16: #{vit_forward.4} parent=5 // pred_fallthru
      _
    %p504 = scmp.le.s32.totalorder 1, %s19
    %p505 = scmp.lt.s32.totalorder %s19, 5
    %p506 = pnand %p504, %p505
    %p507 = pneg %p506
    // Predicated region
    $region69: #{vit_forward.4} parent=5 // pred_check
      _
    $region70: #{vit_forward.4} parent=5 // pred_check_branch
      %509 = sbr.rel (%p506) target = $region72
    $region71: #{vit_forward.4} parent=5 // pred_region
      %s510 = ssub.s32 %s19, 1
      %s511 = smul.u32 16, %s28
      %p512 = scmp.lt.s32.totalorder %s511, 31
      %s513 = scalar_select %p512, %s511, 31
      %s514 = smul.addr %s513, 8
      %s515 = scalar_lea.vmem %s0, %s514
      %p516 = pneg %p57
      %p517 = pneg %p54
      %p518 = scmp.lt.s32.totalorder %s29, 1
      %s519 = scalar_select %p518, %s29, 1
      %s520 = scalar_lea.vmem %s1, %s519
      %p521 = pneg %p83
      %p522 = pneg %p80
      %p523 = scmp.lt.s32.totalorder %s29, 1
      %s524 = scalar_select %p523, %s29, 1
      %s525 = scalar_lea.vmem %s2, %s524
      %p526 = pneg %p109
      %p527 = pneg %p106
      %p528 = scmp.lt.s32.totalorder %s29, 1
      %s529 = scalar_select %p528, %s29, 1
      %s530 = smul.addr %s529, 12
      %s531 = smul.addr %s530, 4
      %s532 = scalar_lea.vmem %s3, %s531
      %p533 = pneg %p135
      %p534 = pneg %p132
      %p535 = scmp.lt.s32.totalorder %s29, 1
      %s536 = scalar_select %p535, %s29, 1
      %s537 = smul.addr %s536, 3
      %s538 = scalar_lea.vmem %s4, %s537
      %p539 = pneg %p161
      %p540 = pneg %p158
      %p541 = scmp.lt.s32.totalorder %s29, 1
      %s542 = scalar_select %p541, %s29, 1
      %s543 = smul.addr %s542, 4
      %s544 = smul.addr %s543, 4
      %s545 = scalar_lea.vmem %s5, %s544
      %p546 = pneg %p187
      %p547 = pneg %p184
      %p548 = scmp.lt.s32.totalorder %s29, 1
      %s549 = scalar_select %p548, %s29, 1
      %s550 = scalar_lea.vmem %s6, %s549
      %p551 = pneg %p213
      %p552 = pneg %p210
      %p553 = scmp.lt.s32.totalorder %s29, 1
      %s554 = scalar_select %p553, %s29, 1
      %s555 = scalar_lea.vmem %s7, %s554
      %p556 = pneg %p239
      %p557 = pneg %p236
      %p558 = scmp.lt.s32.totalorder %s29, 1
      %s559 = scalar_select %p558, %s29, 1
      %s560 = scalar_lea.vmem %s8, %s559
      %p561 = pneg %p265
      %p562 = pneg %p262
      %p563 = scmp.lt.s32.totalorder %s29, 1
      %s564 = scalar_select %p563, %s29, 1
      %s565 = smul.addr %s564, 4
      %s566 = smul.addr %s565, 4
      %s567 = scalar_lea.vmem %s9, %s566
      %p568 = pneg %p291
      %p569 = pneg %p288
      %p570 = scmp.lt.s32.totalorder %s29, 1
      %s571 = scalar_select %p570, %s29, 1
      %s572 = scalar_lea.vmem %s10, %s571
      %p573 = pneg %p317
      %p574 = pneg %p314
      %p575 = scmp.lt.s32.totalorder %s29, 1
      %s576 = scalar_select %p575, %s29, 1
      %s577 = smul.addr %s576, 16
      %s578 = smul.addr %s577, 4
      %s579 = scalar_lea.vmem %s11, %s578
      %p580 = pneg %p343
      %p581 = pneg %p340
      %p582 = scmp.lt.s32.totalorder %s29, 1
      %s583 = scalar_select %p582, %s29, 1
      %s584 = scalar_lea.vmem %s12, %s583
      %p585 = pneg %p369
      %p586 = pneg %p366
      %p587 = pneg %p395
      %p588 = pneg %p392
      %s589 = smul.u32 16, %s28
      %p590 = scmp.lt.s32.totalorder %s589, 31
      %s591 = scalar_select %p590, %s589, 31
      %s592 = smul.addr %s591, 8
      %s593 = scalar_lea.vmem %s13, %s592
      %s594 = smul.u32 16, %s28
      %p595 = scmp.lt.s32.totalorder %s594, 31
      %s596 = scalar_select %p595, %s594, 31
      %s597 = smul.addr %s596, 8
      %s598 = scalar_lea.vmem %s0, %s597
      %s599 = smul.u32 16, %s28
      %p600 = scmp.lt.s32.totalorder %s29, 1
      %s601 = scalar_select %p600, %s29, 1
      %s602 = scalar_lea.vmem %s1, %s601
      %p603 = scmp.lt.s32.totalorder %s29, 1
      %s604 = scalar_select %p603, %s29, 1
      %s605 = scalar_lea.vmem %s2, %s604
      %p606 = scmp.lt.s32.totalorder %s29, 1
      %s607 = scalar_select %p606, %s29, 1
      %s608 = smul.addr %s607, 12
      %s609 = smul.addr %s608, 4
      %s610 = scalar_lea.vmem %s3, %s609
      %p611 = scmp.lt.s32.totalorder %s29, 1
      %s612 = scalar_select %p611, %s29, 1
      %s613 = smul.addr %s612, 3
      %s614 = scalar_lea.vmem %s4, %s613
      %p615 = scmp.lt.s32.totalorder %s29, 1
      %s616 = scalar_select %p615, %s29, 1
      %s617 = smul.addr %s616, 4
      %s618 = smul.addr %s617, 4
      %s619 = scalar_lea.vmem %s5, %s618
      %p620 = scmp.lt.s32.totalorder %s29, 1
      %s621 = scalar_select %p620, %s29, 1
      %s622 = scalar_lea.vmem %s6, %s621
      %p623 = scmp.lt.s32.totalorder %s29, 1
      %s624 = scalar_select %p623, %s29, 1
      %s625 = scalar_lea.vmem %s7, %s624
      %p626 = scmp.lt.s32.totalorder %s29, 1
      %s627 = scalar_select %p626, %s29, 1
      %s628 = scalar_lea.vmem %s8, %s627
      %p629 = scmp.lt.s32.totalorder %s29, 1
      %s630 = scalar_select %p629, %s29, 1
      %s631 = smul.addr %s630, 4
      %s632 = smul.addr %s631, 4
      %s633 = scalar_lea.vmem %s9, %s632
      %p634 = scmp.lt.s32.totalorder %s29, 1
      %s635 = scalar_select %p634, %s29, 1
      %s636 = scalar_lea.vmem %s10, %s635
      %p637 = scmp.lt.s32.totalorder %s29, 1
      %s638 = scalar_select %p637, %s29, 1
      %s639 = smul.addr %s638, 16
      %s640 = smul.addr %s639, 4
      %s641 = scalar_lea.vmem %s11, %s640
      %p642 = scmp.lt.s32.totalorder %s29, 1
      %s643 = scalar_select %p642, %s29, 1
      %s644 = scalar_lea.vmem %s12, %s643
      %s645 = smul.u32 16, %s28
      %p646 = scmp.lt.s32.totalorder %s645, 31
      %s647 = scalar_select %p646, %s645, 31
      %s648 = smul.addr %s647, 8
      %s649 = scalar_lea.vmem %s13, %s648
      %s650 = smul.u32 16, %s28
      %p652 = scmp.eq.s32.totalorder %s29, 0
      // Predicated region
      $region73: #{vit_forward.4} parent=71 // pred_check
        %p653 = pneg %p652
      $region74: #{vit_forward.4} parent=71 // pred_check_branch
        %655 = sbr.rel (%p653) target = $region76
      $region75: #{vit_forward.4} parent=71 // pred_region
        %v656 = vld [vmem:[%s598] sm:$0xff]
        %v657 = vld [vmem:[%s598 + $0x8] sm:$0xff]
        %v658 = vld [vmem:[%s598 + $0x10] sm:$0xff]
        %v659 = vld [vmem:[%s598 + $0x18] sm:$0xff]
        %v660 = vld [vmem:[%s598 + $0x20] sm:$0xff]
        %v661 = vld [vmem:[%s598 + $0x28] sm:$0xff]
        %v662 = vld [vmem:[%s598 + $0x30] sm:$0xff]
        %v663 = vld [vmem:[%s598 + $0x38] sm:$0xff]
        %v664 = vld [vmem:[%s598 + $0x40] sm:$0xff]
        %v665 = vld [vmem:[%s598 + $0x48] sm:$0xff]
        %v666 = vld [vmem:[%s598 + $0x50] sm:$0xff]
        %v667 = vld [vmem:[%s598 + $0x58] sm:$0xff]
        %v668 = vld [vmem:[%s598 + $0x60] sm:$0xff]
        %v669 = vld [vmem:[%s598 + $0x68] sm:$0xff]
        %v670 = vld [vmem:[%s598 + $0x70] sm:$0xff]
        %v671 = vld [vmem:[%s598 + $0x78] sm:$0xff]
        %vm672 = vcmask 261120
        %673 = vst.msk [vmem:[%s649] sm:$0xff] %vm672, %v656
        %674 = vst.msk [vmem:[%s649 + $0x8] sm:$0xff] %vm672, %v657
        %675 = vst.msk [vmem:[%s649 + $0x10] sm:$0xff] %vm672, %v658
        %676 = vst.msk [vmem:[%s649 + $0x18] sm:$0xff] %vm672, %v659
        %677 = vst.msk [vmem:[%s649 + $0x20] sm:$0xff] %vm672, %v660
        %678 = vst.msk [vmem:[%s649 + $0x28] sm:$0xff] %vm672, %v661
        %679 = vst.msk [vmem:[%s649 + $0x30] sm:$0xff] %vm672, %v662
        %680 = vst.msk [vmem:[%s649 + $0x38] sm:$0xff] %vm672, %v663
        %681 = vst.msk [vmem:[%s649 + $0x40] sm:$0xff] %vm672, %v664
        %682 = vst.msk [vmem:[%s649 + $0x48] sm:$0xff] %vm672, %v665
        %683 = vst.msk [vmem:[%s649 + $0x50] sm:$0xff] %vm672, %v666
        %684 = vst.msk [vmem:[%s649 + $0x58] sm:$0xff] %vm672, %v667
        %685 = vst.msk [vmem:[%s649 + $0x60] sm:$0xff] %vm672, %v668
        %686 = vst.msk [vmem:[%s649 + $0x68] sm:$0xff] %vm672, %v669
        %687 = vst.msk [vmem:[%s649 + $0x70] sm:$0xff] %vm672, %v670
        %688 = vst.msk [vmem:[%s649 + $0x78] sm:$0xff] %vm672, %v671
      $region76: #{vit_forward.4} parent=71 // pred_fallthru
        _
      %v689 = vld [vmem:[%s649] sm:$0xff]
      %v690 = vld [vmem:[%s649 + $0x8] sm:$0xff]
      %v691 = vld [vmem:[%s649 + $0x10] sm:$0xff]
      %v692 = vld [vmem:[%s649 + $0x18] sm:$0xff]
      %v693 = vld [vmem:[%s649 + $0x20] sm:$0xff]
      %v694 = vld [vmem:[%s649 + $0x28] sm:$0xff]
      %v695 = vld [vmem:[%s649 + $0x30] sm:$0xff]
      %v696 = vld [vmem:[%s649 + $0x38] sm:$0xff]
      %v697 = vld [vmem:[%s649 + $0x40] sm:$0xff]
      %v698 = vld [vmem:[%s649 + $0x48] sm:$0xff]
      %v699 = vld [vmem:[%s649 + $0x50] sm:$0xff]
      %v700 = vld [vmem:[%s649 + $0x58] sm:$0xff]
      %v701 = vld [vmem:[%s649 + $0x60] sm:$0xff]
      %v702 = vld [vmem:[%s649 + $0x68] sm:$0xff]
      %v703 = vld [vmem:[%s649 + $0x70] sm:$0xff]
      %v704 = vld [vmem:[%s649 + $0x78] sm:$0xff]
      %v705 = vld [vmem:[%s610] sm:$0xf]
      %v706 = vld [vmem:[%s610 + $0x4] sm:$0xf]
      %v707 = vld [vmem:[%s610 + $0x8] sm:$0xf]
      %v708 = vld [vmem:[%s610 + $0xc] sm:$0xf]
      %v709 = vld [vmem:[%s610 + $0x10] sm:$0xf]
      %v710 = vld [vmem:[%s610 + $0x14] sm:$0xf]
      %v711 = vld [vmem:[%s610 + $0x18] sm:$0xf]
      %v712 = vld [vmem:[%s610 + $0x1c] sm:$0xf]
      %v713 = vld [vmem:[%s610 + $0x20] sm:$0xf]
      %v714 = vld [vmem:[%s610 + $0x24] sm:$0xf]
      %v715 = vld [vmem:[%s610 + $0x28] sm:$0xf]
      %v716 = vld [vmem:[%s610 + $0x2c] sm:$0xf]
      %v717 = vld [vmem:[%s614] sm:$0x1]
      %v718 = vld [vmem:[%s614 + $0x1] sm:$0x1]
      %v719 = vld [vmem:[%s614 + $0x2] sm:$0x1]
      %v720 = vld [vmem:[%s602] sm:$0x1]
      %v721 = vld [vmem:[%s605] sm:$0x1]
      %vm722 = vcmask 261120
      %v723 = vsel %vm722, %v689, 0.0
      %724 = vadd.xlane.f32.xlu0 %v723
      %v725 = vpop.xlane.xlu0 %724
      %v726 = vsel %vm722, %v690, 0.0
      %727 = vadd.xlane.f32.xlu0 %v726
      %v728 = vpop.xlane.xlu0 %727
      %v729 = vsel %vm722, %v691, 0.0
      %730 = vadd.xlane.f32.xlu0 %v729
      %v731 = vpop.xlane.xlu0 %730
      %v732 = vsel %vm722, %v692, 0.0
      %733 = vadd.xlane.f32.xlu0 %v732
      %v734 = vpop.xlane.xlu0 %733
      %v735 = vsel %vm722, %v693, 0.0
      %736 = vadd.xlane.f32.xlu0 %v735
      %v737 = vpop.xlane.xlu0 %736
      %v738 = vsel %vm722, %v694, 0.0
      %739 = vadd.xlane.f32.xlu0 %v738
      %v740 = vpop.xlane.xlu0 %739
      %v741 = vsel %vm722, %v695, 0.0
      %742 = vadd.xlane.f32.xlu0 %v741
      %v743 = vpop.xlane.xlu0 %742
      %v744 = vsel %vm722, %v696, 0.0
      %745 = vadd.xlane.f32.xlu0 %v744
      %v746 = vpop.xlane.xlu0 %745
      %v747 = vsel %vm722, %v697, 0.0
      %748 = vadd.xlane.f32.xlu0 %v747
      %v749 = vpop.xlane.xlu0 %748
      %v750 = vsel %vm722, %v698, 0.0
      %751 = vadd.xlane.f32.xlu0 %v750
      %v752 = vpop.xlane.xlu0 %751
      %v753 = vsel %vm722, %v699, 0.0
      %754 = vadd.xlane.f32.xlu0 %v753
      %v755 = vpop.xlane.xlu0 %754
      %v756 = vsel %vm722, %v700, 0.0
      %757 = vadd.xlane.f32.xlu0 %v756
      %v758 = vpop.xlane.xlu0 %757
      %v759 = vsel %vm722, %v701, 0.0
      %760 = vadd.xlane.f32.xlu0 %v759
      %v761 = vpop.xlane.xlu0 %760
      %v762 = vsel %vm722, %v702, 0.0
      %763 = vadd.xlane.f32.xlu0 %v762
      %v764 = vpop.xlane.xlu0 %763
      %v765 = vsel %vm722, %v703, 0.0
      %766 = vadd.xlane.f32.xlu0 %v765
      %v767 = vpop.xlane.xlu0 %766
      %v768 = vsel %vm722, %v704, 0.0
      %769 = vadd.xlane.f32.xlu0 %v768
      %v770 = vpop.xlane.xlu0 %769
      %v771 = vrcp.pop 32.0
      %v772 = vmul.f32 32.0, %v771
      %v773 = vsub.f32 1.0, %v772
      %v774 = vmul.f32 %v771, %v773
      %v775 = vadd.f32 %v771, %v774
      %vm776 = vweird.f32 %v771
      %v777 = vsel %vm776, %v771, %v775
      %v778 = vmul.f32 %v725, %v777
      %v779 = vmul.f32 %v728, %v777
      %v780 = vmul.f32 %v731, %v777
      %v781 = vmul.f32 %v734, %v777
      %v782 = vmul.f32 %v737, %v777
      %v783 = vmul.f32 %v740, %v777
      %v784 = vmul.f32 %v743, %v777
      %v785 = vmul.f32 %v746, %v777
      %v786 = vmul.f32 %v749, %v777
      %v787 = vmul.f32 %v752, %v777
      %v788 = vmul.f32 %v755, %v777
      %v789 = vmul.f32 %v758, %v777
      %v790 = vmul.f32 %v761, %v777
      %v791 = vmul.f32 %v764, %v777
      %v792 = vmul.f32 %v767, %v777
      %v793 = vmul.f32 %v770, %v777
      %v794 = vsub.f32 %v689, %v778
      %v795 = vsub.f32 %v690, %v779
      %v796 = vsub.f32 %v691, %v780
      %v797 = vsub.f32 %v692, %v781
      %v798 = vsub.f32 %v693, %v782
      %v799 = vsub.f32 %v694, %v783
      %v800 = vsub.f32 %v695, %v784
      %v801 = vsub.f32 %v696, %v785
      %v802 = vsub.f32 %v697, %v786
      %v803 = vsub.f32 %v698, %v787
      %v804 = vsub.f32 %v699, %v788
      %v805 = vsub.f32 %v700, %v789
      %v806 = vsub.f32 %v701, %v790
      %v807 = vsub.f32 %v702, %v791
      %v808 = vsub.f32 %v703, %v792
      %v809 = vsub.f32 %v704, %v793
      %v810 = vmul.f32 %v794, %v794
      %v811 = vmul.f32 %v795, %v795
      %v812 = vmul.f32 %v796, %v796
      %v813 = vmul.f32 %v797, %v797
      %v814 = vmul.f32 %v798, %v798
      %v815 = vmul.f32 %v799, %v799
      %v816 = vmul.f32 %v800, %v800
      %v817 = vmul.f32 %v801, %v801
      %v818 = vmul.f32 %v802, %v802
      %v819 = vmul.f32 %v803, %v803
      %v820 = vmul.f32 %v804, %v804
      %v821 = vmul.f32 %v805, %v805
      %v822 = vmul.f32 %v806, %v806
      %v823 = vmul.f32 %v807, %v807
      %v824 = vmul.f32 %v808, %v808
      %v825 = vmul.f32 %v809, %v809
      %v826 = vsel %vm722, %v810, 0.0
      %827 = vadd.xlane.f32.xlu0 %v826
      %v828 = vpop.xlane.xlu0 %827
      %v829 = vsel %vm722, %v811, 0.0
      %830 = vadd.xlane.f32.xlu0 %v829
      %v831 = vpop.xlane.xlu0 %830
      %v832 = vsel %vm722, %v812, 0.0
      %833 = vadd.xlane.f32.xlu0 %v832
      %v834 = vpop.xlane.xlu0 %833
      %v835 = vsel %vm722, %v813, 0.0
      %836 = vadd.xlane.f32.xlu0 %v835
      %v837 = vpop.xlane.xlu0 %836
      %v838 = vsel %vm722, %v814, 0.0
      %839 = vadd.xlane.f32.xlu0 %v838
      %v840 = vpop.xlane.xlu0 %839
      %v841 = vsel %vm722, %v815, 0.0
      %842 = vadd.xlane.f32.xlu0 %v841
      %v843 = vpop.xlane.xlu0 %842
      %v844 = vsel %vm722, %v816, 0.0
      %845 = vadd.xlane.f32.xlu0 %v844
      %v846 = vpop.xlane.xlu0 %845
      %v847 = vsel %vm722, %v817, 0.0
      %848 = vadd.xlane.f32.xlu0 %v847
      %v849 = vpop.xlane.xlu0 %848
      %v850 = vsel %vm722, %v818, 0.0
      %851 = vadd.xlane.f32.xlu0 %v850
      %v852 = vpop.xlane.xlu0 %851
      %v853 = vsel %vm722, %v819, 0.0
      %854 = vadd.xlane.f32.xlu0 %v853
      %v855 = vpop.xlane.xlu0 %854
      %v856 = vsel %vm722, %v820, 0.0
      %857 = vadd.xlane.f32.xlu0 %v856
      %v858 = vpop.xlane.xlu0 %857
      %v859 = vsel %vm722, %v821, 0.0
      %860 = vadd.xlane.f32.xlu0 %v859
      %v861 = vpop.xlane.xlu0 %860
      %v862 = vsel %vm722, %v822, 0.0
      %863 = vadd.xlane.f32.xlu0 %v862
      %v864 = vpop.xlane.xlu0 %863
      %v865 = vsel %vm722, %v823, 0.0
      %866 = vadd.xlane.f32.xlu0 %v865
      %v867 = vpop.xlane.xlu0 %866
      %v868 = vsel %vm722, %v824, 0.0
      %869 = vadd.xlane.f32.xlu0 %v868
      %v870 = vpop.xlane.xlu0 %869
      %v871 = vsel %vm722, %v825, 0.0
      %872 = vadd.xlane.f32.xlu0 %v871
      %v873 = vpop.xlane.xlu0 %872
      %v874 = vmul.f32 %v828, %v777
      %v875 = vmul.f32 %v831, %v777
      %v876 = vmul.f32 %v834, %v777
      %v877 = vmul.f32 %v837, %v777
      %v878 = vmul.f32 %v840, %v777
      %v879 = vmul.f32 %v843, %v777
      %v880 = vmul.f32 %v846, %v777
      %v881 = vmul.f32 %v849, %v777
      %v882 = vmul.f32 %v852, %v777
      %v883 = vmul.f32 %v855, %v777
      %v884 = vmul.f32 %v858, %v777
      %v885 = vmul.f32 %v861, %v777
      %v886 = vmul.f32 %v864, %v777
      %v887 = vmul.f32 %v867, %v777
      %v888 = vmul.f32 %v870, %v777
      %v889 = vmul.f32 %v873, %v777
      %v890 = vadd.f32 %v874, 1e-05
      %v891 = vadd.f32 %v875, 1e-05
      %v892 = vadd.f32 %v876, 1e-05
      %v893 = vadd.f32 %v877, 1e-05
      %v894 = vadd.f32 %v878, 1e-05
      %v895 = vadd.f32 %v879, 1e-05
      %v896 = vadd.f32 %v880, 1e-05
      %v897 = vadd.f32 %v881, 1e-05
      %v898 = vadd.f32 %v882, 1e-05
      %v899 = vadd.f32 %v883, 1e-05
      %v900 = vadd.f32 %v884, 1e-05
      %v901 = vadd.f32 %v885, 1e-05
      %v902 = vadd.f32 %v886, 1e-05
      %v903 = vadd.f32 %v887, 1e-05
      %v904 = vadd.f32 %v888, 1e-05
      %v905 = vadd.f32 %v889, 1e-05
      %v906 = vrsqrt.pop %v890
      %v907 = vmul.f32 %v906, %v890
      %v908 = vmul.f32 %v907, %v906
      %v909 = vmul.f32 0.5, %v908
      %v910 = vsub.f32 1.5, %v909
      %v911 = vmul.f32 %v906, %v910
      %vm912 = vweird.f32 %v890
      %vm913 = vweird.f32 %v906
      %vm914 = vmor %vm912, %vm913
      %v915 = vsel %vm914, %v906, %v911
      %v916 = vrsqrt.pop %v891
      %v917 = vmul.f32 %v916, %v891
      %v918 = vmul.f32 %v917, %v916
      %v919 = vmul.f32 0.5, %v918
      %v920 = vsub.f32 1.5, %v919
      %v921 = vmul.f32 %v916, %v920
      %vm922 = vweird.f32 %v891
      %vm923 = vweird.f32 %v916
      %vm924 = vmor %vm922, %vm923
      %v925 = vsel %vm924, %v916, %v921
      %v926 = vrsqrt.pop %v892
      %v927 = vmul.f32 %v926, %v892
      %v928 = vmul.f32 %v927, %v926
      %v929 = vmul.f32 0.5, %v928
      %v930 = vsub.f32 1.5, %v929
      %v931 = vmul.f32 %v926, %v930
      %vm932 = vweird.f32 %v892
      %vm933 = vweird.f32 %v926
      %vm934 = vmor %vm932, %vm933
      %v935 = vsel %vm934, %v926, %v931
      %v936 = vrsqrt.pop %v893
      %v937 = vmul.f32 %v936, %v893
      %v938 = vmul.f32 %v937, %v936
      %v939 = vmul.f32 0.5, %v938
      %v940 = vsub.f32 1.5, %v939
      %v941 = vmul.f32 %v936, %v940
      %vm942 = vweird.f32 %v893
      %vm943 = vweird.f32 %v936
      %vm944 = vmor %vm942, %vm943
      %v945 = vsel %vm944, %v936, %v941
      %v946 = vrsqrt.pop %v894
      %v947 = vmul.f32 %v946, %v894
      %v948 = vmul.f32 %v947, %v946
      %v949 = vmul.f32 0.5, %v948
      %v950 = vsub.f32 1.5, %v949
      %v951 = vmul.f32 %v946, %v950
      %vm952 = vweird.f32 %v894
      %vm953 = vweird.f32 %v946
      %vm954 = vmor %vm952, %vm953
      %v955 = vsel %vm954, %v946, %v951
      %v956 = vrsqrt.pop %v895
      %v957 = vmul.f32 %v956, %v895
      %v958 = vmul.f32 %v957, %v956
      %v959 = vmul.f32 0.5, %v958
      %v960 = vsub.f32 1.5, %v959
      %v961 = vmul.f32 %v956, %v960
      %vm962 = vweird.f32 %v895
      %vm963 = vweird.f32 %v956
      %vm964 = vmor %vm962, %vm963
      %v965 = vsel %vm964, %v956, %v961
      %v966 = vrsqrt.pop %v896
      %v967 = vmul.f32 %v966, %v896
      %v968 = vmul.f32 %v967, %v966
      %v969 = vmul.f32 0.5, %v968
      %v970 = vsub.f32 1.5, %v969
      %v971 = vmul.f32 %v966, %v970
      %vm972 = vweird.f32 %v896
      %vm973 = vweird.f32 %v966
      %vm974 = vmor %vm972, %vm973
      %v975 = vsel %vm974, %v966, %v971
      %v976 = vrsqrt.pop %v897
      %v977 = vmul.f32 %v976, %v897
      %v978 = vmul.f32 %v977, %v976
      %v979 = vmul.f32 0.5, %v978
      %v980 = vsub.f32 1.5, %v979
      %v981 = vmul.f32 %v976, %v980
      %vm982 = vweird.f32 %v897
      %vm983 = vweird.f32 %v976
      %vm984 = vmor %vm982, %vm983
      %v985 = vsel %vm984, %v976, %v981
      %v986 = vrsqrt.pop %v898
      %v987 = vmul.f32 %v986, %v898
      %v988 = vmul.f32 %v987, %v986
      %v989 = vmul.f32 0.5, %v988
      %v990 = vsub.f32 1.5, %v989
      %v991 = vmul.f32 %v986, %v990
      %vm992 = vweird.f32 %v898
      %vm993 = vweird.f32 %v986
      %vm994 = vmor %vm992, %vm993
      %v995 = vsel %vm994, %v986, %v991
      %v996 = vrsqrt.pop %v899
      %v997 = vmul.f32 %v996, %v899
      %v998 = vmul.f32 %v997, %v996
      %v999 = vmul.f32 0.5, %v998
      %v1000 = vsub.f32 1.5, %v999
      %v1001 = vmul.f32 %v996, %v1000
      %vm1002 = vweird.f32 %v899
      %vm1003 = vweird.f32 %v996
      %vm1004 = vmor %vm1002, %vm1003
      %v1005 = vsel %vm1004, %v996, %v1001
      %v1006 = vrsqrt.pop %v900
      %v1007 = vmul.f32 %v1006, %v900
      %v1008 = vmul.f32 %v1007, %v1006
      %v1009 = vmul.f32 0.5, %v1008
      %v1010 = vsub.f32 1.5, %v1009
      %v1011 = vmul.f32 %v1006, %v1010
      %vm1012 = vweird.f32 %v900
      %vm1013 = vweird.f32 %v1006
      %vm1014 = vmor %vm1012, %vm1013
      %v1015 = vsel %vm1014, %v1006, %v1011
      %v1016 = vrsqrt.pop %v901
      %v1017 = vmul.f32 %v1016, %v901
      %v1018 = vmul.f32 %v1017, %v1016
      %v1019 = vmul.f32 0.5, %v1018
      %v1020 = vsub.f32 1.5, %v1019
      %v1021 = vmul.f32 %v1016, %v1020
      %vm1022 = vweird.f32 %v901
      %vm1023 = vweird.f32 %v1016
      %vm1024 = vmor %vm1022, %vm1023
      %v1025 = vsel %vm1024, %v1016, %v1021
      %v1026 = vrsqrt.pop %v902
      %v1027 = vmul.f32 %v1026, %v902
      %v1028 = vmul.f32 %v1027, %v1026
      %v1029 = vmul.f32 0.5, %v1028
      %v1030 = vsub.f32 1.5, %v1029
      %v1031 = vmul.f32 %v1026, %v1030
      %vm1032 = vweird.f32 %v902
      %vm1033 = vweird.f32 %v1026
      %vm1034 = vmor %vm1032, %vm1033
      %v1035 = vsel %vm1034, %v1026, %v1031
      %v1036 = vrsqrt.pop %v903
      %v1037 = vmul.f32 %v1036, %v903
      %v1038 = vmul.f32 %v1037, %v1036
      %v1039 = vmul.f32 0.5, %v1038
      %v1040 = vsub.f32 1.5, %v1039
      %v1041 = vmul.f32 %v1036, %v1040
      %vm1042 = vweird.f32 %v903
      %vm1043 = vweird.f32 %v1036
      %vm1044 = vmor %vm1042, %vm1043
      %v1045 = vsel %vm1044, %v1036, %v1041
      %v1046 = vrsqrt.pop %v904
      %v1047 = vmul.f32 %v1046, %v904
      %v1048 = vmul.f32 %v1047, %v1046
      %v1049 = vmul.f32 0.5, %v1048
      %v1050 = vsub.f32 1.5, %v1049
      %v1051 = vmul.f32 %v1046, %v1050
      %vm1052 = vweird.f32 %v904
      %vm1053 = vweird.f32 %v1046
      %vm1054 = vmor %vm1052, %vm1053
      %v1055 = vsel %vm1054, %v1046, %v1051
      %v1056 = vrsqrt.pop %v905
      %v1057 = vmul.f32 %v1056, %v905
      %v1058 = vmul.f32 %v1057, %v1056
      %v1059 = vmul.f32 0.5, %v1058
      %v1060 = vsub.f32 1.5, %v1059
      %v1061 = vmul.f32 %v1056, %v1060
      %vm1062 = vweird.f32 %v905
      %vm1063 = vweird.f32 %v1056
      %vm1064 = vmor %vm1062, %vm1063
      %v1065 = vsel %vm1064, %v1056, %v1061
      %v1066 = vmul.f32 %v794, %v915
      %v1067 = vmul.f32 %v795, %v925
      %v1068 = vmul.f32 %v796, %v935
      %v1069 = vmul.f32 %v797, %v945
      %v1070 = vmul.f32 %v798, %v955
      %v1071 = vmul.f32 %v799, %v965
      %v1072 = vmul.f32 %v800, %v975
      %v1073 = vmul.f32 %v801, %v985
      %v1074 = vmul.f32 %v802, %v995
      %v1075 = vmul.f32 %v803, %v1005
      %v1076 = vmul.f32 %v804, %v1015
      %v1077 = vmul.f32 %v805, %v1025
      %v1078 = vmul.f32 %v806, %v1035
      %v1079 = vmul.f32 %v807, %v1045
      %v1080 = vmul.f32 %v808, %v1055
      %v1081 = vmul.f32 %v809, %v1065
      %v1083 = vperm.slane %v720, 0
      %v1085 = vmul.f32 %v1066, %v1083
      %v1086 = vmul.f32 %v1067, %v1083
      %v1087 = vmul.f32 %v1068, %v1083
      %v1088 = vmul.f32 %v1069, %v1083
      %v1089 = vmul.f32 %v1070, %v1083
      %v1090 = vmul.f32 %v1071, %v1083
      %v1091 = vmul.f32 %v1072, %v1083
      %v1092 = vmul.f32 %v1073, %v1083
      %v1093 = vmul.f32 %v1074, %v1083
      %v1094 = vmul.f32 %v1075, %v1083
      %v1095 = vmul.f32 %v1076, %v1083
      %v1096 = vmul.f32 %v1077, %v1083
      %v1097 = vmul.f32 %v1078, %v1083
      %v1098 = vmul.f32 %v1079, %v1083
      %v1099 = vmul.f32 %v1080, %v1083
      %v1100 = vmul.f32 %v1081, %v1083
      %v1102 = vperm.slane %v721, 0
      %v1104 = vadd.f32 %v1085, %v1102
      %v1105 = vadd.f32 %v1086, %v1102
      %v1106 = vadd.f32 %v1087, %v1102
      %v1107 = vadd.f32 %v1088, %v1102
      %v1108 = vadd.f32 %v1089, %v1102
      %v1109 = vadd.f32 %v1090, %v1102
      %v1110 = vadd.f32 %v1091, %v1102
      %v1111 = vadd.f32 %v1092, %v1102
      %v1112 = vadd.f32 %v1093, %v1102
      %v1113 = vadd.f32 %v1094, %v1102
      %v1114 = vadd.f32 %v1095, %v1102
      %v1115 = vadd.f32 %v1096, %v1102
      %v1116 = vadd.f32 %v1097, %v1102
      %v1117 = vadd.f32 %v1098, %v1102
      %v1118 = vadd.f32 %v1099, %v1102
      %v1119 = vadd.f32 %v1100, %v1102
      %v1120 = vpack.c.bf16 %v1105, %v1104
      %v1121 = vpack.c.bf16 %v1107, %v1106
      %v1122 = vpack.c.bf16 %v1109, %v1108
      %v1123 = vpack.c.bf16 %v1111, %v1110
      %v1124 = vpack.c.bf16 %v1113, %v1112
      %v1125 = vpack.c.bf16 %v1115, %v1114
      %v1126 = vpack.c.bf16 %v1117, %v1116
      %v1127 = vpack.c.bf16 %v1119, %v1118
      %v1129 = vperm.slane %v717, 0
      %v1135 = vunpack.c.l.b16 %v705
      %v1136 = vunpack.c.l.b16 %v706
      %v1137 = vunpack.c.l.b16 %v707
      %v1138 = vunpack.c.l.b16 %v708
      %v1139 = vpack.c.b16 %v1136, %v1135
      %v1140 = vpack.c.b16 %v1138, %v1137
      %v1144 = vsel %vm722, %v1120, 0
      %v1147 = vsel %vm722, %v1121, 0
      %v1150 = vsel %vm722, %v1122, 0
      %v1153 = vsel %vm722, %v1123, 0
      %v1156 = vsel %vm722, %v1124, 0
      %v1159 = vsel %vm722, %v1125, 0
      %v1162 = vsel %vm722, %v1126, 0
      %v1165 = vsel %vm722, %v1127, 0
      %1167 = vmatpush.bf16.msra.mxu0 0
      %1168 = vmatpush.bf16.msra.mxu0 0
      %1169 = vmatpush.bf16.msra.mxu0 0
      %1170 = vmatpush.bf16.msra.mxu0 0
      %1171 = vmatpush.bf16.msra.mxu0 0
      %1172 = vmatpush.bf16.msra.mxu0 0
      %1173 = vmatpush.bf16.msra.mxu0 %v1140
      %1174 = vmatpush.bf16.msra.mxu0 %v1139
      %1175 = vmatmul.bf16.gmra.mxu0 %v1144
      %v1176 = vpop.f32.mrf.mxu0
      %v1177 = vadd.f32 %v1129, %v1176
      %v1178 = vpop.f32.mrf.mxu0
      %v1179 = vadd.f32 %v1129, %v1178
      %1180 = vmatmul.bf16.gmra.mxu0 %v1147
      %v1181 = vpop.f32.mrf.mxu0
      %v1182 = vadd.f32 %v1129, %v1181
      %v1183 = vpop.f32.mrf.mxu0
      %v1184 = vadd.f32 %v1129, %v1183
      %1185 = vmatmul.bf16.gmra.mxu0 %v1150
      %v1186 = vpop.f32.mrf.mxu0
      %v1187 = vadd.f32 %v1129, %v1186
      %v1188 = vpop.f32.mrf.mxu0
      %v1189 = vadd.f32 %v1129, %v1188
      %1190 = vmatmul.bf16.gmra.mxu0 %v1153
      %v1191 = vpop.f32.mrf.mxu0
      %v1192 = vadd.f32 %v1129, %v1191
      %v1193 = vpop.f32.mrf.mxu0
      %v1194 = vadd.f32 %v1129, %v1193
      %1195 = vmatmul.bf16.gmra.mxu0 %v1156
      %v1196 = vpop.f32.mrf.mxu0
      %v1197 = vadd.f32 %v1129, %v1196
      %v1198 = vpop.f32.mrf.mxu0
      %v1199 = vadd.f32 %v1129, %v1198
      %1200 = vmatmul.bf16.gmra.mxu0 %v1159
      %v1201 = vpop.f32.mrf.mxu0
      %v1202 = vadd.f32 %v1129, %v1201
      %v1203 = vpop.f32.mrf.mxu0
      %v1204 = vadd.f32 %v1129, %v1203
      %1205 = vmatmul.bf16.gmra.mxu0 %v1162
      %v1206 = vpop.f32.mrf.mxu0
      %v1207 = vadd.f32 %v1129, %v1206
      %v1208 = vpop.f32.mrf.mxu0
      %v1209 = vadd.f32 %v1129, %v1208
      %1210 = vmatmul.bf16.gmra.mxu0 %v1165
      %v1211 = vpop.f32.mrf.mxu0
      %v1212 = vadd.f32 %v1129, %v1211
      %v1213 = vpop.f32.mrf.mxu0
      %v1214 = vadd.f32 %v1129, %v1213
      %1215 = vdwg.mxu0
      %v1217 = vperm.slane %v718, 0
      %v1223 = vunpack.c.l.b16 %v709
      %v1224 = vunpack.c.l.b16 %v710
      %v1225 = vunpack.c.l.b16 %v711
      %v1226 = vunpack.c.l.b16 %v712
      %v1227 = vpack.c.b16 %v1224, %v1223
      %v1228 = vpack.c.b16 %v1226, %v1225
      %1231 = vmatpush.bf16.msra.mxu0 0
      %1232 = vmatpush.bf16.msra.mxu0 0
      %1233 = vmatpush.bf16.msra.mxu0 0
      %1234 = vmatpush.bf16.msra.mxu0 0
      %1235 = vmatpush.bf16.msra.mxu0 0
      %1236 = vmatpush.bf16.msra.mxu0 0
      %1237 = vmatpush.bf16.msra.mxu0 %v1228
      %1238 = vmatpush.bf16.msra.mxu0 %v1227
      %1239 = vmatmul.bf16.gmra.mxu0 %v1144
      %v1240 = vpop.f32.mrf.mxu0
      %v1241 = vadd.f32 %v1217, %v1240
      %v1242 = vpop.f32.mrf.mxu0
      %v1243 = vadd.f32 %v1217, %v1242
      %1244 = vmatmul.bf16.gmra.mxu0 %v1147
      %v1245 = vpop.f32.mrf.mxu0
      %v1246 = vadd.f32 %v1217, %v1245
      %v1247 = vpop.f32.mrf.mxu0
      %v1248 = vadd.f32 %v1217, %v1247
      %1249 = vmatmul.bf16.gmra.mxu0 %v1150
      %v1250 = vpop.f32.mrf.mxu0
      %v1251 = vadd.f32 %v1217, %v1250
      %v1252 = vpop.f32.mrf.mxu0
      %v1253 = vadd.f32 %v1217, %v1252
      %1254 = vmatmul.bf16.gmra.mxu0 %v1153
      %v1255 = vpop.f32.mrf.mxu0
      %v1256 = vadd.f32 %v1217, %v1255
      %v1257 = vpop.f32.mrf.mxu0
      %v1258 = vadd.f32 %v1217, %v1257
      %1259 = vmatmul.bf16.gmra.mxu0 %v1156
      %v1260 = vpop.f32.mrf.mxu0
      %v1261 = vadd.f32 %v1217, %v1260
      %v1262 = vpop.f32.mrf.mxu0
      %v1263 = vadd.f32 %v1217, %v1262
      %1264 = vmatmul.bf16.gmra.mxu0 %v1159
      %v1265 = vpop.f32.mrf.mxu0
      %v1266 = vadd.f32 %v1217, %v1265
      %v1267 = vpop.f32.mrf.mxu0
      %v1268 = vadd.f32 %v1217, %v1267
      %1269 = vmatmul.bf16.gmra.mxu0 %v1162
      %v1270 = vpop.f32.mrf.mxu0
      %v1271 = vadd.f32 %v1217, %v1270
      %v1272 = vpop.f32.mrf.mxu0
      %v1273 = vadd.f32 %v1217, %v1272
      %1274 = vmatmul.bf16.gmra.mxu0 %v1165
      %v1275 = vpop.f32.mrf.mxu0
      %v1276 = vadd.f32 %v1217, %v1275
      %v1277 = vpop.f32.mrf.mxu0
      %v1278 = vadd.f32 %v1217, %v1277
      %1279 = vdwg.mxu0
      %v1281 = vperm.slane %v719, 0
      %v1287 = vunpack.c.l.b16 %v713
      %v1288 = vunpack.c.l.b16 %v714
      %v1289 = vunpack.c.l.b16 %v715
      %v1290 = vunpack.c.l.b16 %v716
      %v1291 = vpack.c.b16 %v1288, %v1287
      %v1292 = vpack.c.b16 %v1290, %v1289
      %1295 = vmatpush.bf16.msra.mxu0 0
      %1296 = vmatpush.bf16.msra.mxu0 0
      %1297 = vmatpush.bf16.msra.mxu0 0
      %1298 = vmatpush.bf16.msra.mxu0 0
      %1299 = vmatpush.bf16.msra.mxu0 0
      %1300 = vmatpush.bf16.msra.mxu0 0
      %1301 = vmatpush.bf16.msra.mxu0 %v1292
      %1302 = vmatpush.bf16.msra.mxu0 %v1291
      %1303 = vmatmul.bf16.gmra.mxu0 %v1144
      %v1304 = vpop.f32.mrf.mxu0
      %v1305 = vadd.f32 %v1281, %v1304
      %v1306 = vpop.f32.mrf.mxu0
      %v1307 = vadd.f32 %v1281, %v1306
      %1308 = vmatmul.bf16.gmra.mxu0 %v1147
      %v1309 = vpop.f32.mrf.mxu0
      %v1310 = vadd.f32 %v1281, %v1309
      %v1311 = vpop.f32.mrf.mxu0
      %v1312 = vadd.f32 %v1281, %v1311
      %1313 = vmatmul.bf16.gmra.mxu0 %v1150
      %v1314 = vpop.f32.mrf.mxu0
      %v1315 = vadd.f32 %v1281, %v1314
      %v1316 = vpop.f32.mrf.mxu0
      %v1317 = vadd.f32 %v1281, %v1316
      %1318 = vmatmul.bf16.gmra.mxu0 %v1153
      %v1319 = vpop.f32.mrf.mxu0
      %v1320 = vadd.f32 %v1281, %v1319
      %v1321 = vpop.f32.mrf.mxu0
      %v1322 = vadd.f32 %v1281, %v1321
      %1323 = vmatmul.bf16.gmra.mxu0 %v1156
      %v1324 = vpop.f32.mrf.mxu0
      %v1325 = vadd.f32 %v1281, %v1324
      %v1326 = vpop.f32.mrf.mxu0
      %v1327 = vadd.f32 %v1281, %v1326
      %1328 = vmatmul.bf16.gmra.mxu0 %v1159
      %v1329 = vpop.f32.mrf.mxu0
      %v1330 = vadd.f32 %v1281, %v1329
      %v1331 = vpop.f32.mrf.mxu0
      %v1332 = vadd.f32 %v1281, %v1331
      %1333 = vmatmul.bf16.gmra.mxu0 %v1162
      %v1334 = vpop.f32.mrf.mxu0
      %v1335 = vadd.f32 %v1281, %v1334
      %v1336 = vpop.f32.mrf.mxu0
      %v1337 = vadd.f32 %v1281, %v1336
      %1338 = vmatmul.bf16.gmra.mxu0 %v1165
      %v1339 = vpop.f32.mrf.mxu0
      %v1340 = vadd.f32 %v1281, %v1339
      %v1341 = vpop.f32.mrf.mxu0
      %v1342 = vadd.f32 %v1281, %v1341
      %1343 = vdwg.mxu0
      %v1344 = vpack.c.bf16 %v1241, %v1241
      %v1345 = vpack.c.bf16 %v1243, %v1243
      %v1346 = vpack.c.bf16 %v1246, %v1246
      %v1347 = vpack.c.bf16 %v1248, %v1248
      %v1348 = vpack.c.bf16 %v1251, %v1251
      %v1349 = vpack.c.bf16 %v1253, %v1253
      %v1350 = vpack.c.bf16 %v1256, %v1256
      %v1351 = vpack.c.bf16 %v1258, %v1258
      %v1352 = vpack.c.bf16 %v1261, %v1261
      %v1353 = vpack.c.bf16 %v1263, %v1263
      %v1354 = vpack.c.bf16 %v1266, %v1266
      %v1355 = vpack.c.bf16 %v1268, %v1268
      %v1356 = vpack.c.bf16 %v1271, %v1271
      %v1357 = vpack.c.bf16 %v1273, %v1273
      %v1358 = vpack.c.bf16 %v1276, %v1276
      %v1359 = vpack.c.bf16 %v1278, %v1278
      %v1360 = vlaneseq
      %v1361 = vand.u32 %v1360, 127
      %vm1362 = vcmp.lt.s32.totalorder %v1361, 2
      %v1363 = vsel %vm1362, 0.0, -1e+30
      %vm1364 = vcmp.ge.s32.totalorder %v1361, 0
      %vm1365 = vcmp.lt.s32.totalorder %v1361, 8
      %vm1366 = vmand %vm1364, %vm1365
      %v1367 = vsel %vm1366, 1.0, 0.0
      %vm1368 = vcmp.ge.s32.totalorder %v1361, 8
      %vm1369 = vcmp.lt.s32.totalorder %v1361, 16
      %vm1370 = vmand %vm1368, %vm1369
      %v1371 = vsel %vm1370, 1.0, 0.0
      %vm1372 = vcmp.ge.s32.totalorder %v1361, 16
      %vm1373 = vcmp.lt.s32.totalorder %v1361, 24
      %vm1374 = vmand %vm1372, %vm1373
      %v1375 = vsel %vm1374, 1.0, 0.0
      %vm1376 = vcmp.ge.s32.totalorder %v1361, 24
      %vm1377 = vcmp.lt.s32.totalorder %v1361, 32
      %vm1378 = vmand %vm1376, %vm1377
      %v1379 = vsel %vm1378, 1.0, 0.0
      %v1380 = vmul.f32 %v1177, %v1367
      %v1381 = vmul.f32 %v1179, %v1367
      %v1382 = vmul.f32 %v1182, %v1367
      %v1383 = vmul.f32 %v1184, %v1367
      %v1384 = vmul.f32 %v1187, %v1367
      %v1385 = vmul.f32 %v1189, %v1367
      %v1386 = vmul.f32 %v1192, %v1367
      %v1387 = vmul.f32 %v1194, %v1367
      %v1388 = vmul.f32 %v1197, %v1367
      %v1389 = vmul.f32 %v1199, %v1367
      %v1390 = vmul.f32 %v1202, %v1367
      %v1391 = vmul.f32 %v1204, %v1367
      %v1392 = vmul.f32 %v1207, %v1367
      %v1393 = vmul.f32 %v1209, %v1367
      %v1394 = vmul.f32 %v1212, %v1367
      %v1395 = vmul.f32 %v1214, %v1367
      %v1396 = vpack.c.bf16 %v1380, %v1380
      %v1397 = vpack.c.bf16 %v1381, %v1381
      %v1398 = vpack.c.bf16 %v1382, %v1382
      %v1399 = vpack.c.bf16 %v1383, %v1383
      %v1400 = vpack.c.bf16 %v1384, %v1384
      %v1401 = vpack.c.bf16 %v1385, %v1385
      %v1402 = vpack.c.bf16 %v1386, %v1386
      %v1403 = vpack.c.bf16 %v1387, %v1387
      %v1404 = vpack.c.bf16 %v1388, %v1388
      %v1405 = vpack.c.bf16 %v1389, %v1389
      %v1406 = vpack.c.bf16 %v1390, %v1390
      %v1407 = vpack.c.bf16 %v1391, %v1391
      %v1408 = vpack.c.bf16 %v1392, %v1392
      %v1409 = vpack.c.bf16 %v1393, %v1393
      %v1410 = vpack.c.bf16 %v1394, %v1394
      %v1411 = vpack.c.bf16 %v1395, %v1395
      %v1413 = vsel %vm722, %v1396, 0
      %v1416 = vsel %vm722, %v1344, 0
      %1418 = vmatpush.bf16.xpose.msra.mxu0 0
      %1419 = vmatpush.bf16.xpose.msra.mxu0 0
      %1420 = vmatpush.bf16.xpose.msra.mxu0 0
      %1421 = vmatpush.bf16.xpose.msra.mxu0 0
      %1422 = vmatpush.bf16.xpose.msra.mxu0 0
      %1423 = vmatpush.bf16.xpose.msra.mxu0 0
      %1424 = vmatpush.bf16.xpose.msra.mxu0 0
      %1425 = vmatpush.bf16.xpose.msra.mxu0 %v1416
      %1426 = vmatmul.bf16.gmra.mxu0 %v1413
      %v1427 = vpop.f32.mrf.mxu0
      %v1428 = vadd.f32 %v1363, %v1427
      %v1429 = vpop.f32.mrf.mxu0
      %1430 = vdwg.mxu0
      %v1432 = vsel %vm722, %v1397, 0
      %v1435 = vsel %vm722, %v1345, 0
      %1437 = vmatpush.bf16.xpose.msra.mxu0 0
      %1438 = vmatpush.bf16.xpose.msra.mxu0 0
      %1439 = vmatpush.bf16.xpose.msra.mxu0 0
      %1440 = vmatpush.bf16.xpose.msra.mxu0 0
      %1441 = vmatpush.bf16.xpose.msra.mxu0 0
      %1442 = vmatpush.bf16.xpose.msra.mxu0 0
      %1443 = vmatpush.bf16.xpose.msra.mxu0 0
      %1444 = vmatpush.bf16.xpose.msra.mxu0 %v1435
      %1445 = vmatmul.bf16.gmra.mxu0 %v1432
      %v1446 = vpop.f32.mrf.mxu0
      %v1447 = vadd.f32 %v1363, %v1446
      %v1448 = vpop.f32.mrf.mxu0
      %1449 = vdwg.mxu0
      %v1451 = vsel %vm722, %v1398, 0
      %v1454 = vsel %vm722, %v1346, 0
      %1456 = vmatpush.bf16.xpose.msra.mxu0 0
      %1457 = vmatpush.bf16.xpose.msra.mxu0 0
      %1458 = vmatpush.bf16.xpose.msra.mxu0 0
      %1459 = vmatpush.bf16.xpose.msra.mxu0 0
      %1460 = vmatpush.bf16.xpose.msra.mxu0 0
      %1461 = vmatpush.bf16.xpose.msra.mxu0 0
      %1462 = vmatpush.bf16.xpose.msra.mxu0 0
      %1463 = vmatpush.bf16.xpose.msra.mxu0 %v1454
      %1464 = vmatmul.bf16.gmra.mxu0 %v1451
      %v1465 = vpop.f32.mrf.mxu0
      %v1466 = vadd.f32 %v1363, %v1465
      %v1467 = vpop.f32.mrf.mxu0
      %1468 = vdwg.mxu0
      %v1470 = vsel %vm722, %v1399, 0
      %v1473 = vsel %vm722, %v1347, 0
      %1475 = vmatpush.bf16.xpose.msra.mxu0 0
      %1476 = vmatpush.bf16.xpose.msra.mxu0 0
      %1477 = vmatpush.bf16.xpose.msra.mxu0 0
      %1478 = vmatpush.bf16.xpose.msra.mxu0 0
      %1479 = vmatpush.bf16.xpose.msra.mxu0 0
      %1480 = vmatpush.bf16.xpose.msra.mxu0 0
      %1481 = vmatpush.bf16.xpose.msra.mxu0 0
      %1482 = vmatpush.bf16.xpose.msra.mxu0 %v1473
      %1483 = vmatmul.bf16.gmra.mxu0 %v1470
      %v1484 = vpop.f32.mrf.mxu0
      %v1485 = vadd.f32 %v1363, %v1484
      %v1486 = vpop.f32.mrf.mxu0
      %1487 = vdwg.mxu0
      %v1489 = vsel %vm722, %v1400, 0
      %v1492 = vsel %vm722, %v1348, 0
      %1494 = vmatpush.bf16.xpose.msra.mxu0 0
      %1495 = vmatpush.bf16.xpose.msra.mxu0 0
      %1496 = vmatpush.bf16.xpose.msra.mxu0 0
      %1497 = vmatpush.bf16.xpose.msra.mxu0 0
      %1498 = vmatpush.bf16.xpose.msra.mxu0 0
      %1499 = vmatpush.bf16.xpose.msra.mxu0 0
      %1500 = vmatpush.bf16.xpose.msra.mxu0 0
      %1501 = vmatpush.bf16.xpose.msra.mxu0 %v1492
      %1502 = vmatmul.bf16.gmra.mxu0 %v1489
      %v1503 = vpop.f32.mrf.mxu0
      %v1504 = vadd.f32 %v1363, %v1503
      %v1505 = vpop.f32.mrf.mxu0
      %1506 = vdwg.mxu0
      %v1508 = vsel %vm722, %v1401, 0
      %v1511 = vsel %vm722, %v1349, 0
      %1513 = vmatpush.bf16.xpose.msra.mxu0 0
      %1514 = vmatpush.bf16.xpose.msra.mxu0 0
      %1515 = vmatpush.bf16.xpose.msra.mxu0 0
      %1516 = vmatpush.bf16.xpose.msra.mxu0 0
      %1517 = vmatpush.bf16.xpose.msra.mxu0 0
      %1518 = vmatpush.bf16.xpose.msra.mxu0 0
      %1519 = vmatpush.bf16.xpose.msra.mxu0 0
      %1520 = vmatpush.bf16.xpose.msra.mxu0 %v1511
      %1521 = vmatmul.bf16.gmra.mxu0 %v1508
      %v1522 = vpop.f32.mrf.mxu0
      %v1523 = vadd.f32 %v1363, %v1522
      %v1524 = vpop.f32.mrf.mxu0
      %1525 = vdwg.mxu0
      %v1527 = vsel %vm722, %v1402, 0
      %v1530 = vsel %vm722, %v1350, 0
      %1532 = vmatpush.bf16.xpose.msra.mxu0 0
      %1533 = vmatpush.bf16.xpose.msra.mxu0 0
      %1534 = vmatpush.bf16.xpose.msra.mxu0 0
      %1535 = vmatpush.bf16.xpose.msra.mxu0 0
      %1536 = vmatpush.bf16.xpose.msra.mxu0 0
      %1537 = vmatpush.bf16.xpose.msra.mxu0 0
      %1538 = vmatpush.bf16.xpose.msra.mxu0 0
      %1539 = vmatpush.bf16.xpose.msra.mxu0 %v1530
      %1540 = vmatmul.bf16.gmra.mxu0 %v1527
      %v1541 = vpop.f32.mrf.mxu0
      %v1542 = vadd.f32 %v1363, %v1541
      %v1543 = vpop.f32.mrf.mxu0
      %1544 = vdwg.mxu0
      %v1546 = vsel %vm722, %v1403, 0
      %v1549 = vsel %vm722, %v1351, 0
      %1551 = vmatpush.bf16.xpose.msra.mxu0 0
      %1552 = vmatpush.bf16.xpose.msra.mxu0 0
      %1553 = vmatpush.bf16.xpose.msra.mxu0 0
      %1554 = vmatpush.bf16.xpose.msra.mxu0 0
      %1555 = vmatpush.bf16.xpose.msra.mxu0 0
      %1556 = vmatpush.bf16.xpose.msra.mxu0 0
      %1557 = vmatpush.bf16.xpose.msra.mxu0 0
      %1558 = vmatpush.bf16.xpose.msra.mxu0 %v1549
      %1559 = vmatmul.bf16.gmra.mxu0 %v1546
      %v1560 = vpop.f32.mrf.mxu0
      %v1561 = vadd.f32 %v1363, %v1560
      %v1562 = vpop.f32.mrf.mxu0
      %1563 = vdwg.mxu0
      %v1565 = vsel %vm722, %v1404, 0
      %v1568 = vsel %vm722, %v1352, 0
      %1570 = vmatpush.bf16.xpose.msra.mxu0 0
      %1571 = vmatpush.bf16.xpose.msra.mxu0 0
      %1572 = vmatpush.bf16.xpose.msra.mxu0 0
      %1573 = vmatpush.bf16.xpose.msra.mxu0 0
      %1574 = vmatpush.bf16.xpose.msra.mxu0 0
      %1575 = vmatpush.bf16.xpose.msra.mxu0 0
      %1576 = vmatpush.bf16.xpose.msra.mxu0 0
      %1577 = vmatpush.bf16.xpose.msra.mxu0 %v1568
      %1578 = vmatmul.bf16.gmra.mxu0 %v1565
      %v1579 = vpop.f32.mrf.mxu0
      %v1580 = vadd.f32 %v1363, %v1579
      %v1581 = vpop.f32.mrf.mxu0
      %1582 = vdwg.mxu0
      %v1584 = vsel %vm722, %v1405, 0
      %v1587 = vsel %vm722, %v1353, 0
      %1589 = vmatpush.bf16.xpose.msra.mxu0 0
      %1590 = vmatpush.bf16.xpose.msra.mxu0 0
      %1591 = vmatpush.bf16.xpose.msra.mxu0 0
      %1592 = vmatpush.bf16.xpose.msra.mxu0 0
      %1593 = vmatpush.bf16.xpose.msra.mxu0 0
      %1594 = vmatpush.bf16.xpose.msra.mxu0 0
      %1595 = vmatpush.bf16.xpose.msra.mxu0 0
      %1596 = vmatpush.bf16.xpose.msra.mxu0 %v1587
      %1597 = vmatmul.bf16.gmra.mxu0 %v1584
      %v1598 = vpop.f32.mrf.mxu0
      %v1599 = vadd.f32 %v1363, %v1598
      %v1600 = vpop.f32.mrf.mxu0
      %1601 = vdwg.mxu0
      %v1603 = vsel %vm722, %v1406, 0
      %v1606 = vsel %vm722, %v1354, 0
      %1608 = vmatpush.bf16.xpose.msra.mxu0 0
      %1609 = vmatpush.bf16.xpose.msra.mxu0 0
      %1610 = vmatpush.bf16.xpose.msra.mxu0 0
      %1611 = vmatpush.bf16.xpose.msra.mxu0 0
      %1612 = vmatpush.bf16.xpose.msra.mxu0 0
      %1613 = vmatpush.bf16.xpose.msra.mxu0 0
      %1614 = vmatpush.bf16.xpose.msra.mxu0 0
      %1615 = vmatpush.bf16.xpose.msra.mxu0 %v1606
      %1616 = vmatmul.bf16.gmra.mxu0 %v1603
      %v1617 = vpop.f32.mrf.mxu0
      %v1618 = vadd.f32 %v1363, %v1617
      %v1619 = vpop.f32.mrf.mxu0
      %1620 = vdwg.mxu0
      %v1622 = vsel %vm722, %v1407, 0
      %v1625 = vsel %vm722, %v1355, 0
      %1627 = vmatpush.bf16.xpose.msra.mxu0 0
      %1628 = vmatpush.bf16.xpose.msra.mxu0 0
      %1629 = vmatpush.bf16.xpose.msra.mxu0 0
      %1630 = vmatpush.bf16.xpose.msra.mxu0 0
      %1631 = vmatpush.bf16.xpose.msra.mxu0 0
      %1632 = vmatpush.bf16.xpose.msra.mxu0 0
      %1633 = vmatpush.bf16.xpose.msra.mxu0 0
      %1634 = vmatpush.bf16.xpose.msra.mxu0 %v1625
      %1635 = vmatmul.bf16.gmra.mxu0 %v1622
      %v1636 = vpop.f32.mrf.mxu0
      %v1637 = vadd.f32 %v1363, %v1636
      %v1638 = vpop.f32.mrf.mxu0
      %1639 = vdwg.mxu0
      %v1641 = vsel %vm722, %v1408, 0
      %v1644 = vsel %vm722, %v1356, 0
      %1646 = vmatpush.bf16.xpose.msra.mxu0 0
      %1647 = vmatpush.bf16.xpose.msra.mxu0 0
      %1648 = vmatpush.bf16.xpose.msra.mxu0 0
      %1649 = vmatpush.bf16.xpose.msra.mxu0 0
      %1650 = vmatpush.bf16.xpose.msra.mxu0 0
      %1651 = vmatpush.bf16.xpose.msra.mxu0 0
      %1652 = vmatpush.bf16.xpose.msra.mxu0 0
      %1653 = vmatpush.bf16.xpose.msra.mxu0 %v1644
      %1654 = vmatmul.bf16.gmra.mxu0 %v1641
      %v1655 = vpop.f32.mrf.mxu0
      %v1656 = vadd.f32 %v1363, %v1655
      %v1657 = vpop.f32.mrf.mxu0
      %1658 = vdwg.mxu0
      %v1660 = vsel %vm722, %v1409, 0
      %v1663 = vsel %vm722, %v1357, 0
      %1665 = vmatpush.bf16.xpose.msra.mxu0 0
      %1666 = vmatpush.bf16.xpose.msra.mxu0 0
      %1667 = vmatpush.bf16.xpose.msra.mxu0 0
      %1668 = vmatpush.bf16.xpose.msra.mxu0 0
      %1669 = vmatpush.bf16.xpose.msra.mxu0 0
      %1670 = vmatpush.bf16.xpose.msra.mxu0 0
      %1671 = vmatpush.bf16.xpose.msra.mxu0 0
      %1672 = vmatpush.bf16.xpose.msra.mxu0 %v1663
      %1673 = vmatmul.bf16.gmra.mxu0 %v1660
      %v1674 = vpop.f32.mrf.mxu0
      %v1675 = vadd.f32 %v1363, %v1674
      %v1676 = vpop.f32.mrf.mxu0
      %1677 = vdwg.mxu0
      %v1679 = vsel %vm722, %v1410, 0
      %v1682 = vsel %vm722, %v1358, 0
      %1684 = vmatpush.bf16.xpose.msra.mxu0 0
      %1685 = vmatpush.bf16.xpose.msra.mxu0 0
      %1686 = vmatpush.bf16.xpose.msra.mxu0 0
      %1687 = vmatpush.bf16.xpose.msra.mxu0 0
      %1688 = vmatpush.bf16.xpose.msra.mxu0 0
      %1689 = vmatpush.bf16.xpose.msra.mxu0 0
      %1690 = vmatpush.bf16.xpose.msra.mxu0 0
      %1691 = vmatpush.bf16.xpose.msra.mxu0 %v1682
      %1692 = vmatmul.bf16.gmra.mxu0 %v1679
      %v1693 = vpop.f32.mrf.mxu0
      %v1694 = vadd.f32 %v1363, %v1693
      %v1695 = vpop.f32.mrf.mxu0
      %1696 = vdwg.mxu0
      %v1698 = vsel %vm722, %v1411, 0
      %v1701 = vsel %vm722, %v1359, 0
      %1703 = vmatpush.bf16.xpose.msra.mxu0 0
      %1704 = vmatpush.bf16.xpose.msra.mxu0 0
      %1705 = vmatpush.bf16.xpose.msra.mxu0 0
      %1706 = vmatpush.bf16.xpose.msra.mxu0 0
      %1707 = vmatpush.bf16.xpose.msra.mxu0 0
      %1708 = vmatpush.bf16.xpose.msra.mxu0 0
      %1709 = vmatpush.bf16.xpose.msra.mxu0 0
      %1710 = vmatpush.bf16.xpose.msra.mxu0 %v1701
      %1711 = vmatmul.bf16.gmra.mxu0 %v1698
      %v1712 = vpop.f32.mrf.mxu0
      %v1713 = vadd.f32 %v1363, %v1712
      %v1714 = vpop.f32.mrf.mxu0
      %1715 = vdwg.mxu0
      %vm1716 = vcmask 64512
      %v1717 = vsel %vm1716, %v1428, -inf
      %1718 = vmax.xlane.f32.xlu0 %v1717
      %v1719 = vpop.xlane.xlu0 %1718
      %v1720 = vsel %vm1716, %v1447, -inf
      %1721 = vmax.xlane.f32.xlu0 %v1720
      %v1722 = vpop.xlane.xlu0 %1721
      %v1723 = vsel %vm1716, %v1466, -inf
      %1724 = vmax.xlane.f32.xlu0 %v1723
      %v1725 = vpop.xlane.xlu0 %1724
      %v1726 = vsel %vm1716, %v1485, -inf
      %1727 = vmax.xlane.f32.xlu0 %v1726
      %v1728 = vpop.xlane.xlu0 %1727
      %v1729 = vsel %vm1716, %v1504, -inf
      %1730 = vmax.xlane.f32.xlu0 %v1729
      %v1731 = vpop.xlane.xlu0 %1730
      %v1732 = vsel %vm1716, %v1523, -inf
      %1733 = vmax.xlane.f32.xlu0 %v1732
      %v1734 = vpop.xlane.xlu0 %1733
      %v1735 = vsel %vm1716, %v1542, -inf
      %1736 = vmax.xlane.f32.xlu0 %v1735
      %v1737 = vpop.xlane.xlu0 %1736
      %v1738 = vsel %vm1716, %v1561, -inf
      %1739 = vmax.xlane.f32.xlu0 %v1738
      %v1740 = vpop.xlane.xlu0 %1739
      %v1741 = vsel %vm1716, %v1580, -inf
      %1742 = vmax.xlane.f32.xlu0 %v1741
      %v1743 = vpop.xlane.xlu0 %1742
      %v1744 = vsel %vm1716, %v1599, -inf
      %1745 = vmax.xlane.f32.xlu0 %v1744
      %v1746 = vpop.xlane.xlu0 %1745
      %v1747 = vsel %vm1716, %v1618, -inf
      %1748 = vmax.xlane.f32.xlu0 %v1747
      %v1749 = vpop.xlane.xlu0 %1748
      %v1750 = vsel %vm1716, %v1637, -inf
      %1751 = vmax.xlane.f32.xlu0 %v1750
      %v1752 = vpop.xlane.xlu0 %1751
      %v1753 = vsel %vm1716, %v1656, -inf
      %1754 = vmax.xlane.f32.xlu0 %v1753
      %v1755 = vpop.xlane.xlu0 %1754
      %v1756 = vsel %vm1716, %v1675, -inf
      %1757 = vmax.xlane.f32.xlu0 %v1756
      %v1758 = vpop.xlane.xlu0 %1757
      %v1759 = vsel %vm1716, %v1694, -inf
      %1760 = vmax.xlane.f32.xlu0 %v1759
      %v1761 = vpop.xlane.xlu0 %1760
      %v1762 = vsel %vm1716, %v1713, -inf
      %1763 = vmax.xlane.f32.xlu0 %v1762
      %v1764 = vpop.xlane.xlu0 %1763
      %v1765 = vsub.f32 %v1428, %v1719
      %v1766 = vsub.f32 %v1447, %v1722
      %v1767 = vsub.f32 %v1466, %v1725
      %v1768 = vsub.f32 %v1485, %v1728
      %v1769 = vsub.f32 %v1504, %v1731
      %v1770 = vsub.f32 %v1523, %v1734
      %v1771 = vsub.f32 %v1542, %v1737
      %v1772 = vsub.f32 %v1561, %v1740
      %v1773 = vsub.f32 %v1580, %v1743
      %v1774 = vsub.f32 %v1599, %v1746
      %v1775 = vsub.f32 %v1618, %v1749
      %v1776 = vsub.f32 %v1637, %v1752
      %v1777 = vsub.f32 %v1656, %v1755
      %v1778 = vsub.f32 %v1675, %v1758
      %v1779 = vsub.f32 %v1694, %v1761
      %v1780 = vsub.f32 %v1713, %v1764
      %v1781 = vmul.f32 %v1765, 1.442695
      %v1782 = vpow.pop %v1781
      %v1783 = vmul.f32 %v1766, 1.442695
      %v1784 = vpow.pop %v1783
      %v1785 = vmul.f32 %v1767, 1.442695
      %v1786 = vpow.pop %v1785
      %v1787 = vmul.f32 %v1768, 1.442695
      %v1788 = vpow.pop %v1787
      %v1789 = vmul.f32 %v1769, 1.442695
      %v1790 = vpow.pop %v1789
      %v1791 = vmul.f32 %v1770, 1.442695
      %v1792 = vpow.pop %v1791
      %v1793 = vmul.f32 %v1771, 1.442695
      %v1794 = vpow.pop %v1793
      %v1795 = vmul.f32 %v1772, 1.442695
      %v1796 = vpow.pop %v1795
      %v1797 = vmul.f32 %v1773, 1.442695
      %v1798 = vpow.pop %v1797
      %v1799 = vmul.f32 %v1774, 1.442695
      %v1800 = vpow.pop %v1799
      %v1801 = vmul.f32 %v1775, 1.442695
      %v1802 = vpow.pop %v1801
      %v1803 = vmul.f32 %v1776, 1.442695
      %v1804 = vpow.pop %v1803
      %v1805 = vmul.f32 %v1777, 1.442695
      %v1806 = vpow.pop %v1805
      %v1807 = vmul.f32 %v1778, 1.442695
      %v1808 = vpow.pop %v1807
      %v1809 = vmul.f32 %v1779, 1.442695
      %v1810 = vpow.pop %v1809
      %v1811 = vmul.f32 %v1780, 1.442695
      %v1812 = vpow.pop %v1811
      %v1813 = vsel %vm1716, %v1782, 0.0
      %1814 = vadd.xlane.f32.xlu0 %v1813
      %v1815 = vpop.xlane.xlu0 %1814
      %v1816 = vsel %vm1716, %v1784, 0.0
      %1817 = vadd.xlane.f32.xlu0 %v1816
      %v1818 = vpop.xlane.xlu0 %1817
      %v1819 = vsel %vm1716, %v1786, 0.0
      %1820 = vadd.xlane.f32.xlu0 %v1819
      %v1821 = vpop.xlane.xlu0 %1820
      %v1822 = vsel %vm1716, %v1788, 0.0
      %1823 = vadd.xlane.f32.xlu0 %v1822
      %v1824 = vpop.xlane.xlu0 %1823
      %v1825 = vsel %vm1716, %v1790, 0.0
      %1826 = vadd.xlane.f32.xlu0 %v1825
      %v1827 = vpop.xlane.xlu0 %1826
      %v1828 = vsel %vm1716, %v1792, 0.0
      %1829 = vadd.xlane.f32.xlu0 %v1828
      %v1830 = vpop.xlane.xlu0 %1829
      %v1831 = vsel %vm1716, %v1794, 0.0
      %1832 = vadd.xlane.f32.xlu0 %v1831
      %v1833 = vpop.xlane.xlu0 %1832
      %v1834 = vsel %vm1716, %v1796, 0.0
      %1835 = vadd.xlane.f32.xlu0 %v1834
      %v1836 = vpop.xlane.xlu0 %1835
      %v1837 = vsel %vm1716, %v1798, 0.0
      %1838 = vadd.xlane.f32.xlu0 %v1837
      %v1839 = vpop.xlane.xlu0 %1838
      %v1840 = vsel %vm1716, %v1800, 0.0
      %1841 = vadd.xlane.f32.xlu0 %v1840
      %v1842 = vpop.xlane.xlu0 %1841
      %v1843 = vsel %vm1716, %v1802, 0.0
      %1844 = vadd.xlane.f32.xlu0 %v1843
      %v1845 = vpop.xlane.xlu0 %1844
      %v1846 = vsel %vm1716, %v1804, 0.0
      %1847 = vadd.xlane.f32.xlu0 %v1846
      %v1848 = vpop.xlane.xlu0 %1847
      %v1849 = vsel %vm1716, %v1806, 0.0
      %1850 = vadd.xlane.f32.xlu0 %v1849
      %v1851 = vpop.xlane.xlu0 %1850
      %v1852 = vsel %vm1716, %v1808, 0.0
      %1853 = vadd.xlane.f32.xlu0 %v1852
      %v1854 = vpop.xlane.xlu0 %1853
      %v1855 = vsel %vm1716, %v1810, 0.0
      %1856 = vadd.xlane.f32.xlu0 %v1855
      %v1857 = vpop.xlane.xlu0 %1856
      %v1858 = vsel %vm1716, %v1812, 0.0
      %1859 = vadd.xlane.f32.xlu0 %v1858
      %v1860 = vpop.xlane.xlu0 %1859
      %v1861 = vrcp.pop %v1815
      %v1862 = vmul.f32 %v1815, %v1861
      %v1863 = vsub.f32 1.0, %v1862
      %v1864 = vmul.f32 %v1861, %v1863
      %v1865 = vadd.f32 %v1861, %v1864
      %vm1866 = vweird.f32 %v1815
      %vm1867 = vweird.f32 %v1861
      %vm1868 = vmor %vm1866, %vm1867
      %v1869 = vsel %vm1868, %v1861, %v1865
      %v1870 = vand.u32 2147483647, %v1815
      %vm1871 = vcmp.eq.f32.partialorder %v1870, 8.507059e+37
      %v1872 = vand.u32 %v1815, 2147483648
      %v1873 = vor.u32 1.1754944e-38, %v1872
      %v1874 = vsel %vm1871, %v1873, %v1869
      %v1875 = vmul.f32 %v1782, %v1874
      %v1876 = vrcp.pop %v1818
      %v1877 = vmul.f32 %v1818, %v1876
      %v1878 = vsub.f32 1.0, %v1877
      %v1879 = vmul.f32 %v1876, %v1878
      %v1880 = vadd.f32 %v1876, %v1879
      %vm1881 = vweird.f32 %v1818
      %vm1882 = vweird.f32 %v1876
      %vm1883 = vmor %vm1881, %vm1882
      %v1884 = vsel %vm1883, %v1876, %v1880
      %v1885 = vand.u32 2147483647, %v1818
      %vm1886 = vcmp.eq.f32.partialorder %v1885, 8.507059e+37
      %v1887 = vand.u32 %v1818, 2147483648
      %v1888 = vor.u32 1.1754944e-38, %v1887
      %v1889 = vsel %vm1886, %v1888, %v1884
      %v1890 = vmul.f32 %v1784, %v1889
      %v1891 = vrcp.pop %v1821
      %v1892 = vmul.f32 %v1821, %v1891
      %v1893 = vsub.f32 1.0, %v1892
      %v1894 = vmul.f32 %v1891, %v1893
      %v1895 = vadd.f32 %v1891, %v1894
      %vm1896 = vweird.f32 %v1821
      %vm1897 = vweird.f32 %v1891
      %vm1898 = vmor %vm1896, %vm1897
      %v1899 = vsel %vm1898, %v1891, %v1895
      %v1900 = vand.u32 2147483647, %v1821
      %vm1901 = vcmp.eq.f32.partialorder %v1900, 8.507059e+37
      %v1902 = vand.u32 %v1821, 2147483648
      %v1903 = vor.u32 1.1754944e-38, %v1902
      %v1904 = vsel %vm1901, %v1903, %v1899
      %v1905 = vmul.f32 %v1786, %v1904
      %v1906 = vrcp.pop %v1824
      %v1907 = vmul.f32 %v1824, %v1906
      %v1908 = vsub.f32 1.0, %v1907
      %v1909 = vmul.f32 %v1906, %v1908
      %v1910 = vadd.f32 %v1906, %v1909
      %vm1911 = vweird.f32 %v1824
      %vm1912 = vweird.f32 %v1906
      %vm1913 = vmor %vm1911, %vm1912
      %v1914 = vsel %vm1913, %v1906, %v1910
      %v1915 = vand.u32 2147483647, %v1824
      %vm1916 = vcmp.eq.f32.partialorder %v1915, 8.507059e+37
      %v1917 = vand.u32 %v1824, 2147483648
      %v1918 = vor.u32 1.1754944e-38, %v1917
      %v1919 = vsel %vm1916, %v1918, %v1914
      %v1920 = vmul.f32 %v1788, %v1919
      %v1921 = vrcp.pop %v1827
      %v1922 = vmul.f32 %v1827, %v1921
      %v1923 = vsub.f32 1.0, %v1922
      %v1924 = vmul.f32 %v1921, %v1923
      %v1925 = vadd.f32 %v1921, %v1924
      %vm1926 = vweird.f32 %v1827
      %vm1927 = vweird.f32 %v1921
      %vm1928 = vmor %vm1926, %vm1927
      %v1929 = vsel %vm1928, %v1921, %v1925
      %v1930 = vand.u32 2147483647, %v1827
      %vm1931 = vcmp.eq.f32.partialorder %v1930, 8.507059e+37
      %v1932 = vand.u32 %v1827, 2147483648
      %v1933 = vor.u32 1.1754944e-38, %v1932
      %v1934 = vsel %vm1931, %v1933, %v1929
      %v1935 = vmul.f32 %v1790, %v1934
      %v1936 = vrcp.pop %v1830
      %v1937 = vmul.f32 %v1830, %v1936
      %v1938 = vsub.f32 1.0, %v1937
      %v1939 = vmul.f32 %v1936, %v1938
      %v1940 = vadd.f32 %v1936, %v1939
      %vm1941 = vweird.f32 %v1830
      %vm1942 = vweird.f32 %v1936
      %vm1943 = vmor %vm1941, %vm1942
      %v1944 = vsel %vm1943, %v1936, %v1940
      %v1945 = vand.u32 2147483647, %v1830
      %vm1946 = vcmp.eq.f32.partialorder %v1945, 8.507059e+37
      %v1947 = vand.u32 %v1830, 2147483648
      %v1948 = vor.u32 1.1754944e-38, %v1947
      %v1949 = vsel %vm1946, %v1948, %v1944
      %v1950 = vmul.f32 %v1792, %v1949
      %v1951 = vrcp.pop %v1833
      %v1952 = vmul.f32 %v1833, %v1951
      %v1953 = vsub.f32 1.0, %v1952
      %v1954 = vmul.f32 %v1951, %v1953
      %v1955 = vadd.f32 %v1951, %v1954
      %vm1956 = vweird.f32 %v1833
      %vm1957 = vweird.f32 %v1951
      %vm1958 = vmor %vm1956, %vm1957
      %v1959 = vsel %vm1958, %v1951, %v1955
      %v1960 = vand.u32 2147483647, %v1833
      %vm1961 = vcmp.eq.f32.partialorder %v1960, 8.507059e+37
      %v1962 = vand.u32 %v1833, 2147483648
      %v1963 = vor.u32 1.1754944e-38, %v1962
      %v1964 = vsel %vm1961, %v1963, %v1959
      %v1965 = vmul.f32 %v1794, %v1964
      %v1966 = vrcp.pop %v1836
      %v1967 = vmul.f32 %v1836, %v1966
      %v1968 = vsub.f32 1.0, %v1967
      %v1969 = vmul.f32 %v1966, %v1968
      %v1970 = vadd.f32 %v1966, %v1969
      %vm1971 = vweird.f32 %v1836
      %vm1972 = vweird.f32 %v1966
      %vm1973 = vmor %vm1971, %vm1972
      %v1974 = vsel %vm1973, %v1966, %v1970
      %v1975 = vand.u32 2147483647, %v1836
      %vm1976 = vcmp.eq.f32.partialorder %v1975, 8.507059e+37
      %v1977 = vand.u32 %v1836, 2147483648
      %v1978 = vor.u32 1.1754944e-38, %v1977
      %v1979 = vsel %vm1976, %v1978, %v1974
      %v1980 = vmul.f32 %v1796, %v1979
      %v1981 = vrcp.pop %v1839
      %v1982 = vmul.f32 %v1839, %v1981
      %v1983 = vsub.f32 1.0, %v1982
      %v1984 = vmul.f32 %v1981, %v1983
      %v1985 = vadd.f32 %v1981, %v1984
      %vm1986 = vweird.f32 %v1839
      %vm1987 = vweird.f32 %v1981
      %vm1988 = vmor %vm1986, %vm1987
      %v1989 = vsel %vm1988, %v1981, %v1985
      %v1990 = vand.u32 2147483647, %v1839
      %vm1991 = vcmp.eq.f32.partialorder %v1990, 8.507059e+37
      %v1992 = vand.u32 %v1839, 2147483648
      %v1993 = vor.u32 1.1754944e-38, %v1992
      %v1994 = vsel %vm1991, %v1993, %v1989
      %v1995 = vmul.f32 %v1798, %v1994
      %v1996 = vrcp.pop %v1842
      %v1997 = vmul.f32 %v1842, %v1996
      %v1998 = vsub.f32 1.0, %v1997
      %v1999 = vmul.f32 %v1996, %v1998
      %v2000 = vadd.f32 %v1996, %v1999
      %vm2001 = vweird.f32 %v1842
      %vm2002 = vweird.f32 %v1996
      %vm2003 = vmor %vm2001, %vm2002
      %v2004 = vsel %vm2003, %v1996, %v2000
      %v2005 = vand.u32 2147483647, %v1842
      %vm2006 = vcmp.eq.f32.partialorder %v2005, 8.507059e+37
      %v2007 = vand.u32 %v1842, 2147483648
      %v2008 = vor.u32 1.1754944e-38, %v2007
      %v2009 = vsel %vm2006, %v2008, %v2004
      %v2010 = vmul.f32 %v1800, %v2009
      %v2011 = vrcp.pop %v1845
      %v2012 = vmul.f32 %v1845, %v2011
      %v2013 = vsub.f32 1.0, %v2012
      %v2014 = vmul.f32 %v2011, %v2013
      %v2015 = vadd.f32 %v2011, %v2014
      %vm2016 = vweird.f32 %v1845
      %vm2017 = vweird.f32 %v2011
      %vm2018 = vmor %vm2016, %vm2017
      %v2019 = vsel %vm2018, %v2011, %v2015
      %v2020 = vand.u32 2147483647, %v1845
      %vm2021 = vcmp.eq.f32.partialorder %v2020, 8.507059e+37
      %v2022 = vand.u32 %v1845, 2147483648
      %v2023 = vor.u32 1.1754944e-38, %v2022
      %v2024 = vsel %vm2021, %v2023, %v2019
      %v2025 = vmul.f32 %v1802, %v2024
      %v2026 = vrcp.pop %v1848
      %v2027 = vmul.f32 %v1848, %v2026
      %v2028 = vsub.f32 1.0, %v2027
      %v2029 = vmul.f32 %v2026, %v2028
      %v2030 = vadd.f32 %v2026, %v2029
      %vm2031 = vweird.f32 %v1848
      %vm2032 = vweird.f32 %v2026
      %vm2033 = vmor %vm2031, %vm2032
      %v2034 = vsel %vm2033, %v2026, %v2030
      %v2035 = vand.u32 2147483647, %v1848
      %vm2036 = vcmp.eq.f32.partialorder %v2035, 8.507059e+37
      %v2037 = vand.u32 %v1848, 2147483648
      %v2038 = vor.u32 1.1754944e-38, %v2037
      %v2039 = vsel %vm2036, %v2038, %v2034
      %v2040 = vmul.f32 %v1804, %v2039
      %v2041 = vrcp.pop %v1851
      %v2042 = vmul.f32 %v1851, %v2041
      %v2043 = vsub.f32 1.0, %v2042
      %v2044 = vmul.f32 %v2041, %v2043
      %v2045 = vadd.f32 %v2041, %v2044
      %vm2046 = vweird.f32 %v1851
      %vm2047 = vweird.f32 %v2041
      %vm2048 = vmor %vm2046, %vm2047
      %v2049 = vsel %vm2048, %v2041, %v2045
      %v2050 = vand.u32 2147483647, %v1851
      %vm2051 = vcmp.eq.f32.partialorder %v2050, 8.507059e+37
      %v2052 = vand.u32 %v1851, 2147483648
      %v2053 = vor.u32 1.1754944e-38, %v2052
      %v2054 = vsel %vm2051, %v2053, %v2049
      %v2055 = vmul.f32 %v1806, %v2054
      %v2056 = vrcp.pop %v1854
      %v2057 = vmul.f32 %v1854, %v2056
      %v2058 = vsub.f32 1.0, %v2057
      %v2059 = vmul.f32 %v2056, %v2058
      %v2060 = vadd.f32 %v2056, %v2059
      %vm2061 = vweird.f32 %v1854
      %vm2062 = vweird.f32 %v2056
      %vm2063 = vmor %vm2061, %vm2062
      %v2064 = vsel %vm2063, %v2056, %v2060
      %v2065 = vand.u32 2147483647, %v1854
      %vm2066 = vcmp.eq.f32.partialorder %v2065, 8.507059e+37
      %v2067 = vand.u32 %v1854, 2147483648
      %v2068 = vor.u32 1.1754944e-38, %v2067
      %v2069 = vsel %vm2066, %v2068, %v2064
      %v2070 = vmul.f32 %v1808, %v2069
      %v2071 = vrcp.pop %v1857
      %v2072 = vmul.f32 %v1857, %v2071
      %v2073 = vsub.f32 1.0, %v2072
      %v2074 = vmul.f32 %v2071, %v2073
      %v2075 = vadd.f32 %v2071, %v2074
      %vm2076 = vweird.f32 %v1857
      %vm2077 = vweird.f32 %v2071
      %vm2078 = vmor %vm2076, %vm2077
      %v2079 = vsel %vm2078, %v2071, %v2075
      %v2080 = vand.u32 2147483647, %v1857
      %vm2081 = vcmp.eq.f32.partialorder %v2080, 8.507059e+37
      %v2082 = vand.u32 %v1857, 2147483648
      %v2083 = vor.u32 1.1754944e-38, %v2082
      %v2084 = vsel %vm2081, %v2083, %v2079
      %v2085 = vmul.f32 %v1810, %v2084
      %v2086 = vrcp.pop %v1860
      %v2087 = vmul.f32 %v1860, %v2086
      %v2088 = vsub.f32 1.0, %v2087
      %v2089 = vmul.f32 %v2086, %v2088
      %v2090 = vadd.f32 %v2086, %v2089
      %vm2091 = vweird.f32 %v1860
      %vm2092 = vweird.f32 %v2086
      %vm2093 = vmor %vm2091, %vm2092
      %v2094 = vsel %vm2093, %v2086, %v2090
      %v2095 = vand.u32 2147483647, %v1860
      %vm2096 = vcmp.eq.f32.partialorder %v2095, 8.507059e+37
      %v2097 = vand.u32 %v1860, 2147483648
      %v2098 = vor.u32 1.1754944e-38, %v2097
      %v2099 = vsel %vm2096, %v2098, %v2094
      %v2100 = vmul.f32 %v1812, %v2099
      %v2101 = vmul.f32 %v1305, %v1367
      %v2102 = vmul.f32 %v1307, %v1367
      %v2103 = vmul.f32 %v1310, %v1367
      %v2104 = vmul.f32 %v1312, %v1367
      %v2105 = vmul.f32 %v1315, %v1367
      %v2106 = vmul.f32 %v1317, %v1367
      %v2107 = vmul.f32 %v1320, %v1367
      %v2108 = vmul.f32 %v1322, %v1367
      %v2109 = vmul.f32 %v1325, %v1367
      %v2110 = vmul.f32 %v1327, %v1367
      %v2111 = vmul.f32 %v1330, %v1367
      %v2112 = vmul.f32 %v1332, %v1367
      %v2113 = vmul.f32 %v1335, %v1367
      %v2114 = vmul.f32 %v1337, %v1367
      %v2115 = vmul.f32 %v1340, %v1367
      %v2116 = vmul.f32 %v1342, %v1367
      %v2117 = vpack.c.bf16 %v2101, %v2101
      %v2118 = vpack.c.bf16 %v2102, %v2102
      %v2119 = vpack.c.bf16 %v2103, %v2103
      %v2120 = vpack.c.bf16 %v2104, %v2104
      %v2121 = vpack.c.bf16 %v2105, %v2105
      %v2122 = vpack.c.bf16 %v2106, %v2106
      %v2123 = vpack.c.bf16 %v2107, %v2107
      %v2124 = vpack.c.bf16 %v2108, %v2108
      %v2125 = vpack.c.bf16 %v2109, %v2109
      %v2126 = vpack.c.bf16 %v2110, %v2110
      %v2127 = vpack.c.bf16 %v2111, %v2111
      %v2128 = vpack.c.bf16 %v2112, %v2112
      %v2129 = vpack.c.bf16 %v2113, %v2113
      %v2130 = vpack.c.bf16 %v2114, %v2114
      %v2131 = vpack.c.bf16 %v2115, %v2115
      %v2132 = vpack.c.bf16 %v2116, %v2116
      %v2133 = vpack.c.bf16 %v1875, %v1875
      %v2134 = vpack.c.bf16 %v1890, %v1890
      %v2135 = vpack.c.bf16 %v1905, %v1905
      %v2136 = vpack.c.bf16 %v1920, %v1920
      %v2137 = vpack.c.bf16 %v1935, %v1935
      %v2138 = vpack.c.bf16 %v1950, %v1950
      %v2139 = vpack.c.bf16 %v1965, %v1965
      %v2140 = vpack.c.bf16 %v1980, %v1980
      %v2141 = vpack.c.bf16 %v1995, %v1995
      %v2142 = vpack.c.bf16 %v2010, %v2010
      %v2143 = vpack.c.bf16 %v2025, %v2025
      %v2144 = vpack.c.bf16 %v2040, %v2040
      %v2145 = vpack.c.bf16 %v2055, %v2055
      %v2146 = vpack.c.bf16 %v2070, %v2070
      %v2147 = vpack.c.bf16 %v2085, %v2085
      %v2148 = vpack.c.bf16 %v2100, %v2100
      %v2149 = vmul.f32 %v1177, %v1371
      %v2150 = vmul.f32 %v1179, %v1371
      %v2151 = vmul.f32 %v1182, %v1371
      %v2152 = vmul.f32 %v1184, %v1371
      %v2153 = vmul.f32 %v1187, %v1371
      %v2154 = vmul.f32 %v1189, %v1371
      %v2155 = vmul.f32 %v1192, %v1371
      %v2156 = vmul.f32 %v1194, %v1371
      %v2157 = vmul.f32 %v1197, %v1371
      %v2158 = vmul.f32 %v1199, %v1371
      %v2159 = vmul.f32 %v1202, %v1371
      %v2160 = vmul.f32 %v1204, %v1371
      %v2161 = vmul.f32 %v1207, %v1371
      %v2162 = vmul.f32 %v1209, %v1371
      %v2163 = vmul.f32 %v1212, %v1371
      %v2164 = vmul.f32 %v1214, %v1371
      %v2165 = vpack.c.bf16 %v2149, %v2149
      %v2166 = vpack.c.bf16 %v2150, %v2150
      %v2167 = vpack.c.bf16 %v2151, %v2151
      %v2168 = vpack.c.bf16 %v2152, %v2152
      %v2169 = vpack.c.bf16 %v2153, %v2153
      %v2170 = vpack.c.bf16 %v2154, %v2154
      %v2171 = vpack.c.bf16 %v2155, %v2155
      %v2172 = vpack.c.bf16 %v2156, %v2156
      %v2173 = vpack.c.bf16 %v2157, %v2157
      %v2174 = vpack.c.bf16 %v2158, %v2158
      %v2175 = vpack.c.bf16 %v2159, %v2159
      %v2176 = vpack.c.bf16 %v2160, %v2160
      %v2177 = vpack.c.bf16 %v2161, %v2161
      %v2178 = vpack.c.bf16 %v2162, %v2162
      %v2179 = vpack.c.bf16 %v2163, %v2163
      %v2180 = vpack.c.bf16 %v2164, %v2164
      %v2182 = vsel %vm722, %v2165, 0
      %2184 = vmatpush.bf16.xpose.msra.mxu0 0
      %2185 = vmatpush.bf16.xpose.msra.mxu0 0
      %2186 = vmatpush.bf16.xpose.msra.mxu0 0
      %2187 = vmatpush.bf16.xpose.msra.mxu0 0
      %2188 = vmatpush.bf16.xpose.msra.mxu0 0
      %2189 = vmatpush.bf16.xpose.msra.mxu0 0
      %2190 = vmatpush.bf16.xpose.msra.mxu0 0
      %2191 = vmatpush.bf16.xpose.msra.mxu0 %v1416
      %2192 = vmatmul.bf16.gmra.mxu0 %v2182
      %v2193 = vpop.f32.mrf.mxu0
      %v2194 = vadd.f32 %v1363, %v2193
      %v2195 = vpop.f32.mrf.mxu0
      %2196 = vdwg.mxu0
      %v2198 = vsel %vm722, %v2166, 0
      %2200 = vmatpush.bf16.xpose.msra.mxu0 0
      %2201 = vmatpush.bf16.xpose.msra.mxu0 0
      %2202 = vmatpush.bf16.xpose.msra.mxu0 0
      %2203 = vmatpush.bf16.xpose.msra.mxu0 0
      %2204 = vmatpush.bf16.xpose.msra.mxu0 0
      %2205 = vmatpush.bf16.xpose.msra.mxu0 0
      %2206 = vmatpush.bf16.xpose.msra.mxu0 0
      %2207 = vmatpush.bf16.xpose.msra.mxu0 %v1435
      %2208 = vmatmul.bf16.gmra.mxu0 %v2198
      %v2209 = vpop.f32.mrf.mxu0
      %v2210 = vadd.f32 %v1363, %v2209
      %v2211 = vpop.f32.mrf.mxu0
      %2212 = vdwg.mxu0
      %v2214 = vsel %vm722, %v2167, 0
      %2216 = vmatpush.bf16.xpose.msra.mxu0 0
      %2217 = vmatpush.bf16.xpose.msra.mxu0 0
      %2218 = vmatpush.bf16.xpose.msra.mxu0 0
      %2219 = vmatpush.bf16.xpose.msra.mxu0 0
      %2220 = vmatpush.bf16.xpose.msra.mxu0 0
      %2221 = vmatpush.bf16.xpose.msra.mxu0 0
      %2222 = vmatpush.bf16.xpose.msra.mxu0 0
      %2223 = vmatpush.bf16.xpose.msra.mxu0 %v1454
      %2224 = vmatmul.bf16.gmra.mxu0 %v2214
      %v2225 = vpop.f32.mrf.mxu0
      %v2226 = vadd.f32 %v1363, %v2225
      %v2227 = vpop.f32.mrf.mxu0
      %2228 = vdwg.mxu0
      %v2230 = vsel %vm722, %v2168, 0
      %2232 = vmatpush.bf16.xpose.msra.mxu0 0
      %2233 = vmatpush.bf16.xpose.msra.mxu0 0
      %2234 = vmatpush.bf16.xpose.msra.mxu0 0
      %2235 = vmatpush.bf16.xpose.msra.mxu0 0
      %2236 = vmatpush.bf16.xpose.msra.mxu0 0
      %2237 = vmatpush.bf16.xpose.msra.mxu0 0
      %2238 = vmatpush.bf16.xpose.msra.mxu0 0
      %2239 = vmatpush.bf16.xpose.msra.mxu0 %v1473
      %2240 = vmatmul.bf16.gmra.mxu0 %v2230
      %v2241 = vpop.f32.mrf.mxu0
      %v2242 = vadd.f32 %v1363, %v2241
      %v2243 = vpop.f32.mrf.mxu0
      %2244 = vdwg.mxu0
      %v2246 = vsel %vm722, %v2169, 0
      %2248 = vmatpush.bf16.xpose.msra.mxu0 0
      %2249 = vmatpush.bf16.xpose.msra.mxu0 0
      %2250 = vmatpush.bf16.xpose.msra.mxu0 0
      %2251 = vmatpush.bf16.xpose.msra.mxu0 0
      %2252 = vmatpush.bf16.xpose.msra.mxu0 0
      %2253 = vmatpush.bf16.xpose.msra.mxu0 0
      %2254 = vmatpush.bf16.xpose.msra.mxu0 0
      %2255 = vmatpush.bf16.xpose.msra.mxu0 %v1492
      %2256 = vmatmul.bf16.gmra.mxu0 %v2246
      %v2257 = vpop.f32.mrf.mxu0
      %v2258 = vadd.f32 %v1363, %v2257
      %v2259 = vpop.f32.mrf.mxu0
      %2260 = vdwg.mxu0
      %v2262 = vsel %vm722, %v2170, 0
      %2264 = vmatpush.bf16.xpose.msra.mxu0 0
      %2265 = vmatpush.bf16.xpose.msra.mxu0 0
      %2266 = vmatpush.bf16.xpose.msra.mxu0 0
      %2267 = vmatpush.bf16.xpose.msra.mxu0 0
      %2268 = vmatpush.bf16.xpose.msra.mxu0 0
      %2269 = vmatpush.bf16.xpose.msra.mxu0 0
      %2270 = vmatpush.bf16.xpose.msra.mxu0 0
      %2271 = vmatpush.bf16.xpose.msra.mxu0 %v1511
      %2272 = vmatmul.bf16.gmra.mxu0 %v2262
      %v2273 = vpop.f32.mrf.mxu0
      %v2274 = vadd.f32 %v1363, %v2273
      %v2275 = vpop.f32.mrf.mxu0
      %2276 = vdwg.mxu0
      %v2278 = vsel %vm722, %v2171, 0
      %2280 = vmatpush.bf16.xpose.msra.mxu0 0
      %2281 = vmatpush.bf16.xpose.msra.mxu0 0
      %2282 = vmatpush.bf16.xpose.msra.mxu0 0
      %2283 = vmatpush.bf16.xpose.msra.mxu0 0
      %2284 = vmatpush.bf16.xpose.msra.mxu0 0
      %2285 = vmatpush.bf16.xpose.msra.mxu0 0
      %2286 = vmatpush.bf16.xpose.msra.mxu0 0
      %2287 = vmatpush.bf16.xpose.msra.mxu0 %v1530
      %2288 = vmatmul.bf16.gmra.mxu0 %v2278
      %v2289 = vpop.f32.mrf.mxu0
      %v2290 = vadd.f32 %v1363, %v2289
      %v2291 = vpop.f32.mrf.mxu0
      %2292 = vdwg.mxu0
      %v2294 = vsel %vm722, %v2172, 0
      %2296 = vmatpush.bf16.xpose.msra.mxu0 0
      %2297 = vmatpush.bf16.xpose.msra.mxu0 0
      %2298 = vmatpush.bf16.xpose.msra.mxu0 0
      %2299 = vmatpush.bf16.xpose.msra.mxu0 0
      %2300 = vmatpush.bf16.xpose.msra.mxu0 0
      %2301 = vmatpush.bf16.xpose.msra.mxu0 0
      %2302 = vmatpush.bf16.xpose.msra.mxu0 0
      %2303 = vmatpush.bf16.xpose.msra.mxu0 %v1549
      %2304 = vmatmul.bf16.gmra.mxu0 %v2294
      %v2305 = vpop.f32.mrf.mxu0
      %v2306 = vadd.f32 %v1363, %v2305
      %v2307 = vpop.f32.mrf.mxu0
      %2308 = vdwg.mxu0
      %v2310 = vsel %vm722, %v2173, 0
      %2312 = vmatpush.bf16.xpose.msra.mxu0 0
      %2313 = vmatpush.bf16.xpose.msra.mxu0 0
      %2314 = vmatpush.bf16.xpose.msra.mxu0 0
      %2315 = vmatpush.bf16.xpose.msra.mxu0 0
      %2316 = vmatpush.bf16.xpose.msra.mxu0 0
      %2317 = vmatpush.bf16.xpose.msra.mxu0 0
      %2318 = vmatpush.bf16.xpose.msra.mxu0 0
      %2319 = vmatpush.bf16.xpose.msra.mxu0 %v1568
      %2320 = vmatmul.bf16.gmra.mxu0 %v2310
      %v2321 = vpop.f32.mrf.mxu0
      %v2322 = vadd.f32 %v1363, %v2321
      %v2323 = vpop.f32.mrf.mxu0
      %2324 = vdwg.mxu0
      %v2326 = vsel %vm722, %v2174, 0
      %2328 = vmatpush.bf16.xpose.msra.mxu0 0
      %2329 = vmatpush.bf16.xpose.msra.mxu0 0
      %2330 = vmatpush.bf16.xpose.msra.mxu0 0
      %2331 = vmatpush.bf16.xpose.msra.mxu0 0
      %2332 = vmatpush.bf16.xpose.msra.mxu0 0
      %2333 = vmatpush.bf16.xpose.msra.mxu0 0
      %2334 = vmatpush.bf16.xpose.msra.mxu0 0
      %2335 = vmatpush.bf16.xpose.msra.mxu0 %v1587
      %2336 = vmatmul.bf16.gmra.mxu0 %v2326
      %v2337 = vpop.f32.mrf.mxu0
      %v2338 = vadd.f32 %v1363, %v2337
      %v2339 = vpop.f32.mrf.mxu0
      %2340 = vdwg.mxu0
      %v2342 = vsel %vm722, %v2175, 0
      %2344 = vmatpush.bf16.xpose.msra.mxu0 0
      %2345 = vmatpush.bf16.xpose.msra.mxu0 0
      %2346 = vmatpush.bf16.xpose.msra.mxu0 0
      %2347 = vmatpush.bf16.xpose.msra.mxu0 0
      %2348 = vmatpush.bf16.xpose.msra.mxu0 0
      %2349 = vmatpush.bf16.xpose.msra.mxu0 0
      %2350 = vmatpush.bf16.xpose.msra.mxu0 0
      %2351 = vmatpush.bf16.xpose.msra.mxu0 %v1606
      %2352 = vmatmul.bf16.gmra.mxu0 %v2342
      %v2353 = vpop.f32.mrf.mxu0
      %v2354 = vadd.f32 %v1363, %v2353
      %v2355 = vpop.f32.mrf.mxu0
      %2356 = vdwg.mxu0
      %v2358 = vsel %vm722, %v2176, 0
      %2360 = vmatpush.bf16.xpose.msra.mxu0 0
      %2361 = vmatpush.bf16.xpose.msra.mxu0 0
      %2362 = vmatpush.bf16.xpose.msra.mxu0 0
      %2363 = vmatpush.bf16.xpose.msra.mxu0 0
      %2364 = vmatpush.bf16.xpose.msra.mxu0 0
      %2365 = vmatpush.bf16.xpose.msra.mxu0 0
      %2366 = vmatpush.bf16.xpose.msra.mxu0 0
      %2367 = vmatpush.bf16.xpose.msra.mxu0 %v1625
      %2368 = vmatmul.bf16.gmra.mxu0 %v2358
      %v2369 = vpop.f32.mrf.mxu0
      %v2370 = vadd.f32 %v1363, %v2369
      %v2371 = vpop.f32.mrf.mxu0
      %2372 = vdwg.mxu0
      %v2374 = vsel %vm722, %v2177, 0
      %2376 = vmatpush.bf16.xpose.msra.mxu0 0
      %2377 = vmatpush.bf16.xpose.msra.mxu0 0
      %2378 = vmatpush.bf16.xpose.msra.mxu0 0
      %2379 = vmatpush.bf16.xpose.msra.mxu0 0
      %2380 = vmatpush.bf16.xpose.msra.mxu0 0
      %2381 = vmatpush.bf16.xpose.msra.mxu0 0
      %2382 = vmatpush.bf16.xpose.msra.mxu0 0
      %2383 = vmatpush.bf16.xpose.msra.mxu0 %v1644
      %2384 = vmatmul.bf16.gmra.mxu0 %v2374
      %v2385 = vpop.f32.mrf.mxu0
      %v2386 = vadd.f32 %v1363, %v2385
      %v2387 = vpop.f32.mrf.mxu0
      %2388 = vdwg.mxu0
      %v2390 = vsel %vm722, %v2178, 0
      %2392 = vmatpush.bf16.xpose.msra.mxu0 0
      %2393 = vmatpush.bf16.xpose.msra.mxu0 0
      %2394 = vmatpush.bf16.xpose.msra.mxu0 0
      %2395 = vmatpush.bf16.xpose.msra.mxu0 0
      %2396 = vmatpush.bf16.xpose.msra.mxu0 0
      %2397 = vmatpush.bf16.xpose.msra.mxu0 0
      %2398 = vmatpush.bf16.xpose.msra.mxu0 0
      %2399 = vmatpush.bf16.xpose.msra.mxu0 %v1663
      %2400 = vmatmul.bf16.gmra.mxu0 %v2390
      %v2401 = vpop.f32.mrf.mxu0
      %v2402 = vadd.f32 %v1363, %v2401
      %v2403 = vpop.f32.mrf.mxu0
      %2404 = vdwg.mxu0
      %v2406 = vsel %vm722, %v2179, 0
      %2408 = vmatpush.bf16.xpose.msra.mxu0 0
      %2409 = vmatpush.bf16.xpose.msra.mxu0 0
      %2410 = vmatpush.bf16.xpose.msra.mxu0 0
      %2411 = vmatpush.bf16.xpose.msra.mxu0 0
      %2412 = vmatpush.bf16.xpose.msra.mxu0 0
      %2413 = vmatpush.bf16.xpose.msra.mxu0 0
      %2414 = vmatpush.bf16.xpose.msra.mxu0 0
      %2415 = vmatpush.bf16.xpose.msra.mxu0 %v1682
      %2416 = vmatmul.bf16.gmra.mxu0 %v2406
      %v2417 = vpop.f32.mrf.mxu0
      %v2418 = vadd.f32 %v1363, %v2417
      %v2419 = vpop.f32.mrf.mxu0
      %2420 = vdwg.mxu0
      %v2422 = vsel %vm722, %v2180, 0
      %2424 = vmatpush.bf16.xpose.msra.mxu0 0
      %2425 = vmatpush.bf16.xpose.msra.mxu0 0
      %2426 = vmatpush.bf16.xpose.msra.mxu0 0
      %2427 = vmatpush.bf16.xpose.msra.mxu0 0
      %2428 = vmatpush.bf16.xpose.msra.mxu0 0
      %2429 = vmatpush.bf16.xpose.msra.mxu0 0
      %2430 = vmatpush.bf16.xpose.msra.mxu0 0
      %2431 = vmatpush.bf16.xpose.msra.mxu0 %v1701
      %2432 = vmatmul.bf16.gmra.mxu0 %v2422
      %v2433 = vpop.f32.mrf.mxu0
      %v2434 = vadd.f32 %v1363, %v2433
      %v2435 = vpop.f32.mrf.mxu0
      %2436 = vdwg.mxu0
      %v2437 = vsel %vm1716, %v2194, -inf
      %2438 = vmax.xlane.f32.xlu0 %v2437
      %v2439 = vpop.xlane.xlu0 %2438
      %v2440 = vsel %vm1716, %v2210, -inf
      %2441 = vmax.xlane.f32.xlu0 %v2440
      %v2442 = vpop.xlane.xlu0 %2441
      %v2443 = vsel %vm1716, %v2226, -inf
      %2444 = vmax.xlane.f32.xlu0 %v2443
      %v2445 = vpop.xlane.xlu0 %2444
      %v2446 = vsel %vm1716, %v2242, -inf
      %2447 = vmax.xlane.f32.xlu0 %v2446
      %v2448 = vpop.xlane.xlu0 %2447
      %v2449 = vsel %vm1716, %v2258, -inf
      %2450 = vmax.xlane.f32.xlu0 %v2449
      %v2451 = vpop.xlane.xlu0 %2450
      %v2452 = vsel %vm1716, %v2274, -inf
      %2453 = vmax.xlane.f32.xlu0 %v2452
      %v2454 = vpop.xlane.xlu0 %2453
      %v2455 = vsel %vm1716, %v2290, -inf
      %2456 = vmax.xlane.f32.xlu0 %v2455
      %v2457 = vpop.xlane.xlu0 %2456
      %v2458 = vsel %vm1716, %v2306, -inf
      %2459 = vmax.xlane.f32.xlu0 %v2458
      %v2460 = vpop.xlane.xlu0 %2459
      %v2461 = vsel %vm1716, %v2322, -inf
      %2462 = vmax.xlane.f32.xlu0 %v2461
      %v2463 = vpop.xlane.xlu0 %2462
      %v2464 = vsel %vm1716, %v2338, -inf
      %2465 = vmax.xlane.f32.xlu0 %v2464
      %v2466 = vpop.xlane.xlu0 %2465
      %v2467 = vsel %vm1716, %v2354, -inf
      %2468 = vmax.xlane.f32.xlu0 %v2467
      %v2469 = vpop.xlane.xlu0 %2468
      %v2470 = vsel %vm1716, %v2370, -inf
      %2471 = vmax.xlane.f32.xlu0 %v2470
      %v2472 = vpop.xlane.xlu0 %2471
      %v2473 = vsel %vm1716, %v2386, -inf
      %2474 = vmax.xlane.f32.xlu0 %v2473
      %v2475 = vpop.xlane.xlu0 %2474
      %v2476 = vsel %vm1716, %v2402, -inf
      %2477 = vmax.xlane.f32.xlu0 %v2476
      %v2478 = vpop.xlane.xlu0 %2477
      %v2479 = vsel %vm1716, %v2418, -inf
      %2480 = vmax.xlane.f32.xlu0 %v2479
      %v2481 = vpop.xlane.xlu0 %2480
      %v2482 = vsel %vm1716, %v2434, -inf
      %2483 = vmax.xlane.f32.xlu0 %v2482
      %v2484 = vpop.xlane.xlu0 %2483
      %v2485 = vsub.f32 %v2194, %v2439
      %v2486 = vsub.f32 %v2210, %v2442
      %v2487 = vsub.f32 %v2226, %v2445
      %v2488 = vsub.f32 %v2242, %v2448
      %v2489 = vsub.f32 %v2258, %v2451
      %v2490 = vsub.f32 %v2274, %v2454
      %v2491 = vsub.f32 %v2290, %v2457
      %v2492 = vsub.f32 %v2306, %v2460
      %v2493 = vsub.f32 %v2322, %v2463
      %v2494 = vsub.f32 %v2338, %v2466
      %v2495 = vsub.f32 %v2354, %v2469
      %v2496 = vsub.f32 %v2370, %v2472
      %v2497 = vsub.f32 %v2386, %v2475
      %v2498 = vsub.f32 %v2402, %v2478
      %v2499 = vsub.f32 %v2418, %v2481
      %v2500 = vsub.f32 %v2434, %v2484
      %v2501 = vmul.f32 %v2485, 1.442695
      %v2502 = vpow.pop %v2501
      %v2503 = vmul.f32 %v2486, 1.442695
      %v2504 = vpow.pop %v2503
      %v2505 = vmul.f32 %v2487, 1.442695
      %v2506 = vpow.pop %v2505
      %v2507 = vmul.f32 %v2488, 1.442695
      %v2508 = vpow.pop %v2507
      %v2509 = vmul.f32 %v2489, 1.442695
      %v2510 = vpow.pop %v2509
      %v2511 = vmul.f32 %v2490, 1.442695
      %v2512 = vpow.pop %v2511
      %v2513 = vmul.f32 %v2491, 1.442695
      %v2514 = vpow.pop %v2513
      %v2515 = vmul.f32 %v2492, 1.442695
      %v2516 = vpow.pop %v2515
      %v2517 = vmul.f32 %v2493, 1.442695
      %v2518 = vpow.pop %v2517
      %v2519 = vmul.f32 %v2494, 1.442695
      %v2520 = vpow.pop %v2519
      %v2521 = vmul.f32 %v2495, 1.442695
      %v2522 = vpow.pop %v2521
      %v2523 = vmul.f32 %v2496, 1.442695
      %v2524 = vpow.pop %v2523
      %v2525 = vmul.f32 %v2497, 1.442695
      %v2526 = vpow.pop %v2525
      %v2527 = vmul.f32 %v2498, 1.442695
      %v2528 = vpow.pop %v2527
      %v2529 = vmul.f32 %v2499, 1.442695
      %v2530 = vpow.pop %v2529
      %v2531 = vmul.f32 %v2500, 1.442695
      %v2532 = vpow.pop %v2531
      %v2533 = vsel %vm1716, %v2502, 0.0
      %2534 = vadd.xlane.f32.xlu0 %v2533
      %v2535 = vpop.xlane.xlu0 %2534
      %v2536 = vsel %vm1716, %v2504, 0.0
      %2537 = vadd.xlane.f32.xlu0 %v2536
      %v2538 = vpop.xlane.xlu0 %2537
      %v2539 = vsel %vm1716, %v2506, 0.0
      %2540 = vadd.xlane.f32.xlu0 %v2539
      %v2541 = vpop.xlane.xlu0 %2540
      %v2542 = vsel %vm1716, %v2508, 0.0
      %2543 = vadd.xlane.f32.xlu0 %v2542
      %v2544 = vpop.xlane.xlu0 %2543
      %v2545 = vsel %vm1716, %v2510, 0.0
      %2546 = vadd.xlane.f32.xlu0 %v2545
      %v2547 = vpop.xlane.xlu0 %2546
      %v2548 = vsel %vm1716, %v2512, 0.0
      %2549 = vadd.xlane.f32.xlu0 %v2548
      %v2550 = vpop.xlane.xlu0 %2549
      %v2551 = vsel %vm1716, %v2514, 0.0
      %2552 = vadd.xlane.f32.xlu0 %v2551
      %v2553 = vpop.xlane.xlu0 %2552
      %v2554 = vsel %vm1716, %v2516, 0.0
      %2555 = vadd.xlane.f32.xlu0 %v2554
      %v2556 = vpop.xlane.xlu0 %2555
      %v2557 = vsel %vm1716, %v2518, 0.0
      %2558 = vadd.xlane.f32.xlu0 %v2557
      %v2559 = vpop.xlane.xlu0 %2558
      %v2560 = vsel %vm1716, %v2520, 0.0
      %2561 = vadd.xlane.f32.xlu0 %v2560
      %v2562 = vpop.xlane.xlu0 %2561
      %v2563 = vsel %vm1716, %v2522, 0.0
      %2564 = vadd.xlane.f32.xlu0 %v2563
      %v2565 = vpop.xlane.xlu0 %2564
      %v2566 = vsel %vm1716, %v2524, 0.0
      %2567 = vadd.xlane.f32.xlu0 %v2566
      %v2568 = vpop.xlane.xlu0 %2567
      %v2569 = vsel %vm1716, %v2526, 0.0
      %2570 = vadd.xlane.f32.xlu0 %v2569
      %v2571 = vpop.xlane.xlu0 %2570
      %v2572 = vsel %vm1716, %v2528, 0.0
      %2573 = vadd.xlane.f32.xlu0 %v2572
      %v2574 = vpop.xlane.xlu0 %2573
      %v2575 = vsel %vm1716, %v2530, 0.0
      %2576 = vadd.xlane.f32.xlu0 %v2575
      %v2577 = vpop.xlane.xlu0 %2576
      %v2578 = vsel %vm1716, %v2532, 0.0
      %2579 = vadd.xlane.f32.xlu0 %v2578
      %v2580 = vpop.xlane.xlu0 %2579
      %v2581 = vrcp.pop %v2535
      %v2582 = vmul.f32 %v2535, %v2581
      %v2583 = vsub.f32 1.0, %v2582
      %v2584 = vmul.f32 %v2581, %v2583
      %v2585 = vadd.f32 %v2581, %v2584
      %vm2586 = vweird.f32 %v2535
      %vm2587 = vweird.f32 %v2581
      %vm2588 = vmor %vm2586, %vm2587
      %v2589 = vsel %vm2588, %v2581, %v2585
      %v2590 = vand.u32 2147483647, %v2535
      %vm2591 = vcmp.eq.f32.partialorder %v2590, 8.507059e+37
      %v2592 = vand.u32 %v2535, 2147483648
      %v2593 = vor.u32 1.1754944e-38, %v2592
      %v2594 = vsel %vm2591, %v2593, %v2589
      %v2595 = vmul.f32 %v2502, %v2594
      %v2596 = vrcp.pop %v2538
      %v2597 = vmul.f32 %v2538, %v2596
      %v2598 = vsub.f32 1.0, %v2597
      %v2599 = vmul.f32 %v2596, %v2598
      %v2600 = vadd.f32 %v2596, %v2599
      %vm2601 = vweird.f32 %v2538
      %vm2602 = vweird.f32 %v2596
      %vm2603 = vmor %vm2601, %vm2602
      %v2604 = vsel %vm2603, %v2596, %v2600
      %v2605 = vand.u32 2147483647, %v2538
      %vm2606 = vcmp.eq.f32.partialorder %v2605, 8.507059e+37
      %v2607 = vand.u32 %v2538, 2147483648
      %v2608 = vor.u32 1.1754944e-38, %v2607
      %v2609 = vsel %vm2606, %v2608, %v2604
      %v2610 = vmul.f32 %v2504, %v2609
      %v2611 = vrcp.pop %v2541
      %v2612 = vmul.f32 %v2541, %v2611
      %v2613 = vsub.f32 1.0, %v2612
      %v2614 = vmul.f32 %v2611, %v2613
      %v2615 = vadd.f32 %v2611, %v2614
      %vm2616 = vweird.f32 %v2541
      %vm2617 = vweird.f32 %v2611
      %vm2618 = vmor %vm2616, %vm2617
      %v2619 = vsel %vm2618, %v2611, %v2615
      %v2620 = vand.u32 2147483647, %v2541
      %vm2621 = vcmp.eq.f32.partialorder %v2620, 8.507059e+37
      %v2622 = vand.u32 %v2541, 2147483648
      %v2623 = vor.u32 1.1754944e-38, %v2622
      %v2624 = vsel %vm2621, %v2623, %v2619
      %v2625 = vmul.f32 %v2506, %v2624
      %v2626 = vrcp.pop %v2544
      %v2627 = vmul.f32 %v2544, %v2626
      %v2628 = vsub.f32 1.0, %v2627
      %v2629 = vmul.f32 %v2626, %v2628
      %v2630 = vadd.f32 %v2626, %v2629
      %vm2631 = vweird.f32 %v2544
      %vm2632 = vweird.f32 %v2626
      %vm2633 = vmor %vm2631, %vm2632
      %v2634 = vsel %vm2633, %v2626, %v2630
      %v2635 = vand.u32 2147483647, %v2544
      %vm2636 = vcmp.eq.f32.partialorder %v2635, 8.507059e+37
      %v2637 = vand.u32 %v2544, 2147483648
      %v2638 = vor.u32 1.1754944e-38, %v2637
      %v2639 = vsel %vm2636, %v2638, %v2634
      %v2640 = vmul.f32 %v2508, %v2639
      %v2641 = vrcp.pop %v2547
      %v2642 = vmul.f32 %v2547, %v2641
      %v2643 = vsub.f32 1.0, %v2642
      %v2644 = vmul.f32 %v2641, %v2643
      %v2645 = vadd.f32 %v2641, %v2644
      %vm2646 = vweird.f32 %v2547
      %vm2647 = vweird.f32 %v2641
      %vm2648 = vmor %vm2646, %vm2647
      %v2649 = vsel %vm2648, %v2641, %v2645
      %v2650 = vand.u32 2147483647, %v2547
      %vm2651 = vcmp.eq.f32.partialorder %v2650, 8.507059e+37
      %v2652 = vand.u32 %v2547, 2147483648
      %v2653 = vor.u32 1.1754944e-38, %v2652
      %v2654 = vsel %vm2651, %v2653, %v2649
      %v2655 = vmul.f32 %v2510, %v2654
      %v2656 = vrcp.pop %v2550
      %v2657 = vmul.f32 %v2550, %v2656
      %v2658 = vsub.f32 1.0, %v2657
      %v2659 = vmul.f32 %v2656, %v2658
      %v2660 = vadd.f32 %v2656, %v2659
      %vm2661 = vweird.f32 %v2550
      %vm2662 = vweird.f32 %v2656
      %vm2663 = vmor %vm2661, %vm2662
      %v2664 = vsel %vm2663, %v2656, %v2660
      %v2665 = vand.u32 2147483647, %v2550
      %vm2666 = vcmp.eq.f32.partialorder %v2665, 8.507059e+37
      %v2667 = vand.u32 %v2550, 2147483648
      %v2668 = vor.u32 1.1754944e-38, %v2667
      %v2669 = vsel %vm2666, %v2668, %v2664
      %v2670 = vmul.f32 %v2512, %v2669
      %v2671 = vrcp.pop %v2553
      %v2672 = vmul.f32 %v2553, %v2671
      %v2673 = vsub.f32 1.0, %v2672
      %v2674 = vmul.f32 %v2671, %v2673
      %v2675 = vadd.f32 %v2671, %v2674
      %vm2676 = vweird.f32 %v2553
      %vm2677 = vweird.f32 %v2671
      %vm2678 = vmor %vm2676, %vm2677
      %v2679 = vsel %vm2678, %v2671, %v2675
      %v2680 = vand.u32 2147483647, %v2553
      %vm2681 = vcmp.eq.f32.partialorder %v2680, 8.507059e+37
      %v2682 = vand.u32 %v2553, 2147483648
      %v2683 = vor.u32 1.1754944e-38, %v2682
      %v2684 = vsel %vm2681, %v2683, %v2679
      %v2685 = vmul.f32 %v2514, %v2684
      %v2686 = vrcp.pop %v2556
      %v2687 = vmul.f32 %v2556, %v2686
      %v2688 = vsub.f32 1.0, %v2687
      %v2689 = vmul.f32 %v2686, %v2688
      %v2690 = vadd.f32 %v2686, %v2689
      %vm2691 = vweird.f32 %v2556
      %vm2692 = vweird.f32 %v2686
      %vm2693 = vmor %vm2691, %vm2692
      %v2694 = vsel %vm2693, %v2686, %v2690
      %v2695 = vand.u32 2147483647, %v2556
      %vm2696 = vcmp.eq.f32.partialorder %v2695, 8.507059e+37
      %v2697 = vand.u32 %v2556, 2147483648
      %v2698 = vor.u32 1.1754944e-38, %v2697
      %v2699 = vsel %vm2696, %v2698, %v2694
      %v2700 = vmul.f32 %v2516, %v2699
      %v2701 = vrcp.pop %v2559
      %v2702 = vmul.f32 %v2559, %v2701
      %v2703 = vsub.f32 1.0, %v2702
      %v2704 = vmul.f32 %v2701, %v2703
      %v2705 = vadd.f32 %v2701, %v2704
      %vm2706 = vweird.f32 %v2559
      %vm2707 = vweird.f32 %v2701
      %vm2708 = vmor %vm2706, %vm2707
      %v2709 = vsel %vm2708, %v2701, %v2705
      %v2710 = vand.u32 2147483647, %v2559
      %vm2711 = vcmp.eq.f32.partialorder %v2710, 8.507059e+37
      %v2712 = vand.u32 %v2559, 2147483648
      %v2713 = vor.u32 1.1754944e-38, %v2712
      %v2714 = vsel %vm2711, %v2713, %v2709
      %v2715 = vmul.f32 %v2518, %v2714
      %v2716 = vrcp.pop %v2562
      %v2717 = vmul.f32 %v2562, %v2716
      %v2718 = vsub.f32 1.0, %v2717
      %v2719 = vmul.f32 %v2716, %v2718
      %v2720 = vadd.f32 %v2716, %v2719
      %vm2721 = vweird.f32 %v2562
      %vm2722 = vweird.f32 %v2716
      %vm2723 = vmor %vm2721, %vm2722
      %v2724 = vsel %vm2723, %v2716, %v2720
      %v2725 = vand.u32 2147483647, %v2562
      %vm2726 = vcmp.eq.f32.partialorder %v2725, 8.507059e+37
      %v2727 = vand.u32 %v2562, 2147483648
      %v2728 = vor.u32 1.1754944e-38, %v2727
      %v2729 = vsel %vm2726, %v2728, %v2724
      %v2730 = vmul.f32 %v2520, %v2729
      %v2731 = vrcp.pop %v2565
      %v2732 = vmul.f32 %v2565, %v2731
      %v2733 = vsub.f32 1.0, %v2732
      %v2734 = vmul.f32 %v2731, %v2733
      %v2735 = vadd.f32 %v2731, %v2734
      %vm2736 = vweird.f32 %v2565
      %vm2737 = vweird.f32 %v2731
      %vm2738 = vmor %vm2736, %vm2737
      %v2739 = vsel %vm2738, %v2731, %v2735
      %v2740 = vand.u32 2147483647, %v2565
      %vm2741 = vcmp.eq.f32.partialorder %v2740, 8.507059e+37
      %v2742 = vand.u32 %v2565, 2147483648
      %v2743 = vor.u32 1.1754944e-38, %v2742
      %v2744 = vsel %vm2741, %v2743, %v2739
      %v2745 = vmul.f32 %v2522, %v2744
      %v2746 = vrcp.pop %v2568
      %v2747 = vmul.f32 %v2568, %v2746
      %v2748 = vsub.f32 1.0, %v2747
      %v2749 = vmul.f32 %v2746, %v2748
      %v2750 = vadd.f32 %v2746, %v2749
      %vm2751 = vweird.f32 %v2568
      %vm2752 = vweird.f32 %v2746
      %vm2753 = vmor %vm2751, %vm2752
      %v2754 = vsel %vm2753, %v2746, %v2750
      %v2755 = vand.u32 2147483647, %v2568
      %vm2756 = vcmp.eq.f32.partialorder %v2755, 8.507059e+37
      %v2757 = vand.u32 %v2568, 2147483648
      %v2758 = vor.u32 1.1754944e-38, %v2757
      %v2759 = vsel %vm2756, %v2758, %v2754
      %v2760 = vmul.f32 %v2524, %v2759
      %v2761 = vrcp.pop %v2571
      %v2762 = vmul.f32 %v2571, %v2761
      %v2763 = vsub.f32 1.0, %v2762
      %v2764 = vmul.f32 %v2761, %v2763
      %v2765 = vadd.f32 %v2761, %v2764
      %vm2766 = vweird.f32 %v2571
      %vm2767 = vweird.f32 %v2761
      %vm2768 = vmor %vm2766, %vm2767
      %v2769 = vsel %vm2768, %v2761, %v2765
      %v2770 = vand.u32 2147483647, %v2571
      %vm2771 = vcmp.eq.f32.partialorder %v2770, 8.507059e+37
      %v2772 = vand.u32 %v2571, 2147483648
      %v2773 = vor.u32 1.1754944e-38, %v2772
      %v2774 = vsel %vm2771, %v2773, %v2769
      %v2775 = vmul.f32 %v2526, %v2774
      %v2776 = vrcp.pop %v2574
      %v2777 = vmul.f32 %v2574, %v2776
      %v2778 = vsub.f32 1.0, %v2777
      %v2779 = vmul.f32 %v2776, %v2778
      %v2780 = vadd.f32 %v2776, %v2779
      %vm2781 = vweird.f32 %v2574
      %vm2782 = vweird.f32 %v2776
      %vm2783 = vmor %vm2781, %vm2782
      %v2784 = vsel %vm2783, %v2776, %v2780
      %v2785 = vand.u32 2147483647, %v2574
      %vm2786 = vcmp.eq.f32.partialorder %v2785, 8.507059e+37
      %v2787 = vand.u32 %v2574, 2147483648
      %v2788 = vor.u32 1.1754944e-38, %v2787
      %v2789 = vsel %vm2786, %v2788, %v2784
      %v2790 = vmul.f32 %v2528, %v2789
      %v2791 = vrcp.pop %v2577
      %v2792 = vmul.f32 %v2577, %v2791
      %v2793 = vsub.f32 1.0, %v2792
      %v2794 = vmul.f32 %v2791, %v2793
      %v2795 = vadd.f32 %v2791, %v2794
      %vm2796 = vweird.f32 %v2577
      %vm2797 = vweird.f32 %v2791
      %vm2798 = vmor %vm2796, %vm2797
      %v2799 = vsel %vm2798, %v2791, %v2795
      %v2800 = vand.u32 2147483647, %v2577
      %vm2801 = vcmp.eq.f32.partialorder %v2800, 8.507059e+37
      %v2802 = vand.u32 %v2577, 2147483648
      %v2803 = vor.u32 1.1754944e-38, %v2802
      %v2804 = vsel %vm2801, %v2803, %v2799
      %v2805 = vmul.f32 %v2530, %v2804
      %v2806 = vrcp.pop %v2580
      %v2807 = vmul.f32 %v2580, %v2806
      %v2808 = vsub.f32 1.0, %v2807
      %v2809 = vmul.f32 %v2806, %v2808
      %v2810 = vadd.f32 %v2806, %v2809
      %vm2811 = vweird.f32 %v2580
      %vm2812 = vweird.f32 %v2806
      %vm2813 = vmor %vm2811, %vm2812
      %v2814 = vsel %vm2813, %v2806, %v2810
      %v2815 = vand.u32 2147483647, %v2580
      %vm2816 = vcmp.eq.f32.partialorder %v2815, 8.507059e+37
      %v2817 = vand.u32 %v2580, 2147483648
      %v2818 = vor.u32 1.1754944e-38, %v2817
      %v2819 = vsel %vm2816, %v2818, %v2814
      %v2820 = vmul.f32 %v2532, %v2819
      %v2821 = vmul.f32 %v1305, %v1371
      %v2822 = vmul.f32 %v1307, %v1371
      %v2823 = vmul.f32 %v1310, %v1371
      %v2824 = vmul.f32 %v1312, %v1371
      %v2825 = vmul.f32 %v1315, %v1371
      %v2826 = vmul.f32 %v1317, %v1371
      %v2827 = vmul.f32 %v1320, %v1371
      %v2828 = vmul.f32 %v1322, %v1371
      %v2829 = vmul.f32 %v1325, %v1371
      %v2830 = vmul.f32 %v1327, %v1371
      %v2831 = vmul.f32 %v1330, %v1371
      %v2832 = vmul.f32 %v1332, %v1371
      %v2833 = vmul.f32 %v1335, %v1371
      %v2834 = vmul.f32 %v1337, %v1371
      %v2835 = vmul.f32 %v1340, %v1371
      %v2836 = vmul.f32 %v1342, %v1371
      %v2837 = vpack.c.bf16 %v2821, %v2821
      %v2838 = vpack.c.bf16 %v2822, %v2822
      %v2839 = vpack.c.bf16 %v2823, %v2823
      %v2840 = vpack.c.bf16 %v2824, %v2824
      %v2841 = vpack.c.bf16 %v2825, %v2825
      %v2842 = vpack.c.bf16 %v2826, %v2826
      %v2843 = vpack.c.bf16 %v2827, %v2827
      %v2844 = vpack.c.bf16 %v2828, %v2828
      %v2845 = vpack.c.bf16 %v2829, %v2829
      %v2846 = vpack.c.bf16 %v2830, %v2830
      %v2847 = vpack.c.bf16 %v2831, %v2831
      %v2848 = vpack.c.bf16 %v2832, %v2832
      %v2849 = vpack.c.bf16 %v2833, %v2833
      %v2850 = vpack.c.bf16 %v2834, %v2834
      %v2851 = vpack.c.bf16 %v2835, %v2835
      %v2852 = vpack.c.bf16 %v2836, %v2836
      %v2853 = vpack.c.bf16 %v2595, %v2595
      %v2854 = vpack.c.bf16 %v2610, %v2610
      %v2855 = vpack.c.bf16 %v2625, %v2625
      %v2856 = vpack.c.bf16 %v2640, %v2640
      %v2857 = vpack.c.bf16 %v2655, %v2655
      %v2858 = vpack.c.bf16 %v2670, %v2670
      %v2859 = vpack.c.bf16 %v2685, %v2685
      %v2860 = vpack.c.bf16 %v2700, %v2700
      %v2861 = vpack.c.bf16 %v2715, %v2715
      %v2862 = vpack.c.bf16 %v2730, %v2730
      %v2863 = vpack.c.bf16 %v2745, %v2745
      %v2864 = vpack.c.bf16 %v2760, %v2760
      %v2865 = vpack.c.bf16 %v2775, %v2775
      %v2866 = vpack.c.bf16 %v2790, %v2790
      %v2867 = vpack.c.bf16 %v2805, %v2805
      %v2868 = vpack.c.bf16 %v2820, %v2820
      %v2870 = vsel %vm1716, %v2853, 0
      %vm2872 = vcmask 1043456
      %v2874 = vsel %vm2872, %v2837, 0
      %2876 = vmatpush.bf16.msra.mxu0 0
      %2877 = vmatpush.bf16.msra.mxu0 0
      %2878 = vmatpush.bf16.msra.mxu0 0
      %2879 = vmatpush.bf16.msra.mxu0 0
      %2880 = vmatpush.bf16.msra.mxu0 0
      %2881 = vmatpush.bf16.msra.mxu0 0
      %2882 = vmatpush.bf16.msra.mxu0 0
      %2883 = vmatpush.bf16.msra.mxu0 %v2874
      %2884 = vmatmul.bf16.gmra.mxu0 %v2870
      %v2885 = vpop.f32.mrf.mxu0
      %v2886 = vadd.f32 0.0, %v2885
      %v2887 = vpop.f32.mrf.mxu0
      %2888 = vdwg.mxu0
      %v2890 = vsel %vm1716, %v2854, 0
      %v2893 = vsel %vm2872, %v2838, 0
      %2895 = vmatpush.bf16.msra.mxu0 0
      %2896 = vmatpush.bf16.msra.mxu0 0
      %2897 = vmatpush.bf16.msra.mxu0 0
      %2898 = vmatpush.bf16.msra.mxu0 0
      %2899 = vmatpush.bf16.msra.mxu0 0
      %2900 = vmatpush.bf16.msra.mxu0 0
      %2901 = vmatpush.bf16.msra.mxu0 0
      %2902 = vmatpush.bf16.msra.mxu0 %v2893
      %2903 = vmatmul.bf16.gmra.mxu0 %v2890
      %v2904 = vpop.f32.mrf.mxu0
      %v2905 = vadd.f32 0.0, %v2904
      %v2906 = vpop.f32.mrf.mxu0
      %2907 = vdwg.mxu0
      %v2909 = vsel %vm1716, %v2855, 0
      %v2912 = vsel %vm2872, %v2839, 0
      %2914 = vmatpush.bf16.msra.mxu0 0
      %2915 = vmatpush.bf16.msra.mxu0 0
      %2916 = vmatpush.bf16.msra.mxu0 0
      %2917 = vmatpush.bf16.msra.mxu0 0
      %2918 = vmatpush.bf16.msra.mxu0 0
      %2919 = vmatpush.bf16.msra.mxu0 0
      %2920 = vmatpush.bf16.msra.mxu0 0
      %2921 = vmatpush.bf16.msra.mxu0 %v2912
      %2922 = vmatmul.bf16.gmra.mxu0 %v2909
      %v2923 = vpop.f32.mrf.mxu0
      %v2924 = vadd.f32 0.0, %v2923
      %v2925 = vpop.f32.mrf.mxu0
      %2926 = vdwg.mxu0
      %v2928 = vsel %vm1716, %v2856, 0
      %v2931 = vsel %vm2872, %v2840, 0
      %2933 = vmatpush.bf16.msra.mxu0 0
      %2934 = vmatpush.bf16.msra.mxu0 0
      %2935 = vmatpush.bf16.msra.mxu0 0
      %2936 = vmatpush.bf16.msra.mxu0 0
      %2937 = vmatpush.bf16.msra.mxu0 0
      %2938 = vmatpush.bf16.msra.mxu0 0
      %2939 = vmatpush.bf16.msra.mxu0 0
      %2940 = vmatpush.bf16.msra.mxu0 %v2931
      %2941 = vmatmul.bf16.gmra.mxu0 %v2928
      %v2942 = vpop.f32.mrf.mxu0
      %v2943 = vadd.f32 0.0, %v2942
      %v2944 = vpop.f32.mrf.mxu0
      %2945 = vdwg.mxu0
      %v2947 = vsel %vm1716, %v2857, 0
      %v2950 = vsel %vm2872, %v2841, 0
      %2952 = vmatpush.bf16.msra.mxu0 0
      %2953 = vmatpush.bf16.msra.mxu0 0
      %2954 = vmatpush.bf16.msra.mxu0 0
      %2955 = vmatpush.bf16.msra.mxu0 0
      %2956 = vmatpush.bf16.msra.mxu0 0
      %2957 = vmatpush.bf16.msra.mxu0 0
      %2958 = vmatpush.bf16.msra.mxu0 0
      %2959 = vmatpush.bf16.msra.mxu0 %v2950
      %2960 = vmatmul.bf16.gmra.mxu0 %v2947
      %v2961 = vpop.f32.mrf.mxu0
      %v2962 = vadd.f32 0.0, %v2961
      %v2963 = vpop.f32.mrf.mxu0
      %2964 = vdwg.mxu0
      %v2966 = vsel %vm1716, %v2858, 0
      %v2969 = vsel %vm2872, %v2842, 0
      %2971 = vmatpush.bf16.msra.mxu0 0
      %2972 = vmatpush.bf16.msra.mxu0 0
      %2973 = vmatpush.bf16.msra.mxu0 0
      %2974 = vmatpush.bf16.msra.mxu0 0
      %2975 = vmatpush.bf16.msra.mxu0 0
      %2976 = vmatpush.bf16.msra.mxu0 0
      %2977 = vmatpush.bf16.msra.mxu0 0
      %2978 = vmatpush.bf16.msra.mxu0 %v2969
      %2979 = vmatmul.bf16.gmra.mxu0 %v2966
      %v2980 = vpop.f32.mrf.mxu0
      %v2981 = vadd.f32 0.0, %v2980
      %v2982 = vpop.f32.mrf.mxu0
      %2983 = vdwg.mxu0
      %v2985 = vsel %vm1716, %v2859, 0
      %v2988 = vsel %vm2872, %v2843, 0
      %2990 = vmatpush.bf16.msra.mxu0 0
      %2991 = vmatpush.bf16.msra.mxu0 0
      %2992 = vmatpush.bf16.msra.mxu0 0
      %2993 = vmatpush.bf16.msra.mxu0 0
      %2994 = vmatpush.bf16.msra.mxu0 0
      %2995 = vmatpush.bf16.msra.mxu0 0
      %2996 = vmatpush.bf16.msra.mxu0 0
      %2997 = vmatpush.bf16.msra.mxu0 %v2988
      %2998 = vmatmul.bf16.gmra.mxu0 %v2985
      %v2999 = vpop.f32.mrf.mxu0
      %v3000 = vadd.f32 0.0, %v2999
      %v3001 = vpop.f32.mrf.mxu0
      %3002 = vdwg.mxu0
      %v3004 = vsel %vm1716, %v2860, 0
      %v3007 = vsel %vm2872, %v2844, 0
      %3009 = vmatpush.bf16.msra.mxu0 0
      %3010 = vmatpush.bf16.msra.mxu0 0
      %3011 = vmatpush.bf16.msra.mxu0 0
      %3012 = vmatpush.bf16.msra.mxu0 0
      %3013 = vmatpush.bf16.msra.mxu0 0
      %3014 = vmatpush.bf16.msra.mxu0 0
      %3015 = vmatpush.bf16.msra.mxu0 0
      %3016 = vmatpush.bf16.msra.mxu0 %v3007
      %3017 = vmatmul.bf16.gmra.mxu0 %v3004
      %v3018 = vpop.f32.mrf.mxu0
      %v3019 = vadd.f32 0.0, %v3018
      %v3020 = vpop.f32.mrf.mxu0
      %3021 = vdwg.mxu0
      %v3023 = vsel %vm1716, %v2861, 0
      %v3026 = vsel %vm2872, %v2845, 0
      %3028 = vmatpush.bf16.msra.mxu0 0
      %3029 = vmatpush.bf16.msra.mxu0 0
      %3030 = vmatpush.bf16.msra.mxu0 0
      %3031 = vmatpush.bf16.msra.mxu0 0
      %3032 = vmatpush.bf16.msra.mxu0 0
      %3033 = vmatpush.bf16.msra.mxu0 0
      %3034 = vmatpush.bf16.msra.mxu0 0
      %3035 = vmatpush.bf16.msra.mxu0 %v3026
      %3036 = vmatmul.bf16.gmra.mxu0 %v3023
      %v3037 = vpop.f32.mrf.mxu0
      %v3038 = vadd.f32 0.0, %v3037
      %v3039 = vpop.f32.mrf.mxu0
      %3040 = vdwg.mxu0
      %v3042 = vsel %vm1716, %v2862, 0
      %v3045 = vsel %vm2872, %v2846, 0
      %3047 = vmatpush.bf16.msra.mxu0 0
      %3048 = vmatpush.bf16.msra.mxu0 0
      %3049 = vmatpush.bf16.msra.mxu0 0
      %3050 = vmatpush.bf16.msra.mxu0 0
      %3051 = vmatpush.bf16.msra.mxu0 0
      %3052 = vmatpush.bf16.msra.mxu0 0
      %3053 = vmatpush.bf16.msra.mxu0 0
      %3054 = vmatpush.bf16.msra.mxu0 %v3045
      %3055 = vmatmul.bf16.gmra.mxu0 %v3042
      %v3056 = vpop.f32.mrf.mxu0
      %v3057 = vadd.f32 0.0, %v3056
      %v3058 = vpop.f32.mrf.mxu0
      %3059 = vdwg.mxu0
      %v3061 = vsel %vm1716, %v2863, 0
      %v3064 = vsel %vm2872, %v2847, 0
      %3066 = vmatpush.bf16.msra.mxu0 0
      %3067 = vmatpush.bf16.msra.mxu0 0
      %3068 = vmatpush.bf16.msra.mxu0 0
      %3069 = vmatpush.bf16.msra.mxu0 0
      %3070 = vmatpush.bf16.msra.mxu0 0
      %3071 = vmatpush.bf16.msra.mxu0 0
      %3072 = vmatpush.bf16.msra.mxu0 0
      %3073 = vmatpush.bf16.msra.mxu0 %v3064
      %3074 = vmatmul.bf16.gmra.mxu0 %v3061
      %v3075 = vpop.f32.mrf.mxu0
      %v3076 = vadd.f32 0.0, %v3075
      %v3077 = vpop.f32.mrf.mxu0
      %3078 = vdwg.mxu0
      %v3080 = vsel %vm1716, %v2864, 0
      %v3083 = vsel %vm2872, %v2848, 0
      %3085 = vmatpush.bf16.msra.mxu0 0
      %3086 = vmatpush.bf16.msra.mxu0 0
      %3087 = vmatpush.bf16.msra.mxu0 0
      %3088 = vmatpush.bf16.msra.mxu0 0
      %3089 = vmatpush.bf16.msra.mxu0 0
      %3090 = vmatpush.bf16.msra.mxu0 0
      %3091 = vmatpush.bf16.msra.mxu0 0
      %3092 = vmatpush.bf16.msra.mxu0 %v3083
      %3093 = vmatmul.bf16.gmra.mxu0 %v3080
      %v3094 = vpop.f32.mrf.mxu0
      %v3095 = vadd.f32 0.0, %v3094
      %v3096 = vpop.f32.mrf.mxu0
      %3097 = vdwg.mxu0
      %v3099 = vsel %vm1716, %v2865, 0
      %v3102 = vsel %vm2872, %v2849, 0
      %3104 = vmatpush.bf16.msra.mxu0 0
      %3105 = vmatpush.bf16.msra.mxu0 0
      %3106 = vmatpush.bf16.msra.mxu0 0
      %3107 = vmatpush.bf16.msra.mxu0 0
      %3108 = vmatpush.bf16.msra.mxu0 0
      %3109 = vmatpush.bf16.msra.mxu0 0
      %3110 = vmatpush.bf16.msra.mxu0 0
      %3111 = vmatpush.bf16.msra.mxu0 %v3102
      %3112 = vmatmul.bf16.gmra.mxu0 %v3099
      %v3113 = vpop.f32.mrf.mxu0
      %v3114 = vadd.f32 0.0, %v3113
      %v3115 = vpop.f32.mrf.mxu0
      %3116 = vdwg.mxu0
      %v3118 = vsel %vm1716, %v2866, 0
      %v3121 = vsel %vm2872, %v2850, 0
      %3123 = vmatpush.bf16.msra.mxu0 0
      %3124 = vmatpush.bf16.msra.mxu0 0
      %3125 = vmatpush.bf16.msra.mxu0 0
      %3126 = vmatpush.bf16.msra.mxu0 0
      %3127 = vmatpush.bf16.msra.mxu0 0
      %3128 = vmatpush.bf16.msra.mxu0 0
      %3129 = vmatpush.bf16.msra.mxu0 0
      %3130 = vmatpush.bf16.msra.mxu0 %v3121
      %3131 = vmatmul.bf16.gmra.mxu0 %v3118
      %v3132 = vpop.f32.mrf.mxu0
      %v3133 = vadd.f32 0.0, %v3132
      %v3134 = vpop.f32.mrf.mxu0
      %3135 = vdwg.mxu0
      %v3137 = vsel %vm1716, %v2867, 0
      %v3140 = vsel %vm2872, %v2851, 0
      %3142 = vmatpush.bf16.msra.mxu0 0
      %3143 = vmatpush.bf16.msra.mxu0 0
      %3144 = vmatpush.bf16.msra.mxu0 0
      %3145 = vmatpush.bf16.msra.mxu0 0
      %3146 = vmatpush.bf16.msra.mxu0 0
      %3147 = vmatpush.bf16.msra.mxu0 0
      %3148 = vmatpush.bf16.msra.mxu0 0
      %3149 = vmatpush.bf16.msra.mxu0 %v3140
      %3150 = vmatmul.bf16.gmra.mxu0 %v3137
      %v3151 = vpop.f32.mrf.mxu0
      %v3152 = vadd.f32 0.0, %v3151
      %v3153 = vpop.f32.mrf.mxu0
      %3154 = vdwg.mxu0
      %v3156 = vsel %vm1716, %v2868, 0
      %v3159 = vsel %vm2872, %v2852, 0
      %3161 = vmatpush.bf16.msra.mxu0 0
      %3162 = vmatpush.bf16.msra.mxu0 0
      %3163 = vmatpush.bf16.msra.mxu0 0
      %3164 = vmatpush.bf16.msra.mxu0 0
      %3165 = vmatpush.bf16.msra.mxu0 0
      %3166 = vmatpush.bf16.msra.mxu0 0
      %3167 = vmatpush.bf16.msra.mxu0 0
      %3168 = vmatpush.bf16.msra.mxu0 %v3159
      %3169 = vmatmul.bf16.gmra.mxu0 %v3156
      %v3170 = vpop.f32.mrf.mxu0
      %v3171 = vadd.f32 0.0, %v3170
      %v3172 = vpop.f32.mrf.mxu0
      %3173 = vdwg.mxu0
      %v3175 = vsel %vm1716, %v2133, 0
      %v3178 = vsel %vm2872, %v2117, 0
      %3180 = vmatpush.bf16.msra.mxu0 0
      %3181 = vmatpush.bf16.msra.mxu0 0
      %3182 = vmatpush.bf16.msra.mxu0 0
      %3183 = vmatpush.bf16.msra.mxu0 0
      %3184 = vmatpush.bf16.msra.mxu0 0
      %3185 = vmatpush.bf16.msra.mxu0 0
      %3186 = vmatpush.bf16.msra.mxu0 0
      %3187 = vmatpush.bf16.msra.mxu0 %v3178
      %3188 = vmatmul.bf16.gmra.mxu0 %v3175
      %v3189 = vpop.f32.mrf.mxu0
      %v3190 = vadd.f32 %v2886, %v3189
      %v3191 = vpop.f32.mrf.mxu0
      %3192 = vdwg.mxu0
      %v3194 = vsel %vm1716, %v2134, 0
      %v3197 = vsel %vm2872, %v2118, 0
      %3199 = vmatpush.bf16.msra.mxu0 0
      %3200 = vmatpush.bf16.msra.mxu0 0
      %3201 = vmatpush.bf16.msra.mxu0 0
      %3202 = vmatpush.bf16.msra.mxu0 0
      %3203 = vmatpush.bf16.msra.mxu0 0
      %3204 = vmatpush.bf16.msra.mxu0 0
      %3205 = vmatpush.bf16.msra.mxu0 0
      %3206 = vmatpush.bf16.msra.mxu0 %v3197
      %3207 = vmatmul.bf16.gmra.mxu0 %v3194
      %v3208 = vpop.f32.mrf.mxu0
      %v3209 = vadd.f32 %v2905, %v3208
      %v3210 = vpop.f32.mrf.mxu0
      %3211 = vdwg.mxu0
      %v3213 = vsel %vm1716, %v2135, 0
      %v3216 = vsel %vm2872, %v2119, 0
      %3218 = vmatpush.bf16.msra.mxu0 0
      %3219 = vmatpush.bf16.msra.mxu0 0
      %3220 = vmatpush.bf16.msra.mxu0 0
      %3221 = vmatpush.bf16.msra.mxu0 0
      %3222 = vmatpush.bf16.msra.mxu0 0
      %3223 = vmatpush.bf16.msra.mxu0 0
      %3224 = vmatpush.bf16.msra.mxu0 0
      %3225 = vmatpush.bf16.msra.mxu0 %v3216
      %3226 = vmatmul.bf16.gmra.mxu0 %v3213
      %v3227 = vpop.f32.mrf.mxu0
      %v3228 = vadd.f32 %v2924, %v3227
      %v3229 = vpop.f32.mrf.mxu0
      %3230 = vdwg.mxu0
      %v3232 = vsel %vm1716, %v2136, 0
      %v3235 = vsel %vm2872, %v2120, 0
      %3237 = vmatpush.bf16.msra.mxu0 0
      %3238 = vmatpush.bf16.msra.mxu0 0
      %3239 = vmatpush.bf16.msra.mxu0 0
      %3240 = vmatpush.bf16.msra.mxu0 0
      %3241 = vmatpush.bf16.msra.mxu0 0
      %3242 = vmatpush.bf16.msra.mxu0 0
      %3243 = vmatpush.bf16.msra.mxu0 0
      %3244 = vmatpush.bf16.msra.mxu0 %v3235
      %3245 = vmatmul.bf16.gmra.mxu0 %v3232
      %v3246 = vpop.f32.mrf.mxu0
      %v3247 = vadd.f32 %v2943, %v3246
      %v3248 = vpop.f32.mrf.mxu0
      %3249 = vdwg.mxu0
      %v3251 = vsel %vm1716, %v2137, 0
      %v3254 = vsel %vm2872, %v2121, 0
      %3256 = vmatpush.bf16.msra.mxu0 0
      %3257 = vmatpush.bf16.msra.mxu0 0
      %3258 = vmatpush.bf16.msra.mxu0 0
      %3259 = vmatpush.bf16.msra.mxu0 0
      %3260 = vmatpush.bf16.msra.mxu0 0
      %3261 = vmatpush.bf16.msra.mxu0 0
      %3262 = vmatpush.bf16.msra.mxu0 0
      %3263 = vmatpush.bf16.msra.mxu0 %v3254
      %3264 = vmatmul.bf16.gmra.mxu0 %v3251
      %v3265 = vpop.f32.mrf.mxu0
      %v3266 = vadd.f32 %v2962, %v3265
      %v3267 = vpop.f32.mrf.mxu0
      %3268 = vdwg.mxu0
      %v3270 = vsel %vm1716, %v2138, 0
      %v3273 = vsel %vm2872, %v2122, 0
      %3275 = vmatpush.bf16.msra.mxu0 0
      %3276 = vmatpush.bf16.msra.mxu0 0
      %3277 = vmatpush.bf16.msra.mxu0 0
      %3278 = vmatpush.bf16.msra.mxu0 0
      %3279 = vmatpush.bf16.msra.mxu0 0
      %3280 = vmatpush.bf16.msra.mxu0 0
      %3281 = vmatpush.bf16.msra.mxu0 0
      %3282 = vmatpush.bf16.msra.mxu0 %v3273
      %3283 = vmatmul.bf16.gmra.mxu0 %v3270
      %v3284 = vpop.f32.mrf.mxu0
      %v3285 = vadd.f32 %v2981, %v3284
      %v3286 = vpop.f32.mrf.mxu0
      %3287 = vdwg.mxu0
      %v3289 = vsel %vm1716, %v2139, 0
      %v3292 = vsel %vm2872, %v2123, 0
      %3294 = vmatpush.bf16.msra.mxu0 0
      %3295 = vmatpush.bf16.msra.mxu0 0
      %3296 = vmatpush.bf16.msra.mxu0 0
      %3297 = vmatpush.bf16.msra.mxu0 0
      %3298 = vmatpush.bf16.msra.mxu0 0
      %3299 = vmatpush.bf16.msra.mxu0 0
      %3300 = vmatpush.bf16.msra.mxu0 0
      %3301 = vmatpush.bf16.msra.mxu0 %v3292
      %3302 = vmatmul.bf16.gmra.mxu0 %v3289
      %v3303 = vpop.f32.mrf.mxu0
      %v3304 = vadd.f32 %v3000, %v3303
      %v3305 = vpop.f32.mrf.mxu0
      %3306 = vdwg.mxu0
      %v3308 = vsel %vm1716, %v2140, 0
      %v3311 = vsel %vm2872, %v2124, 0
      %3313 = vmatpush.bf16.msra.mxu0 0
      %3314 = vmatpush.bf16.msra.mxu0 0
      %3315 = vmatpush.bf16.msra.mxu0 0
      %3316 = vmatpush.bf16.msra.mxu0 0
      %3317 = vmatpush.bf16.msra.mxu0 0
      %3318 = vmatpush.bf16.msra.mxu0 0
      %3319 = vmatpush.bf16.msra.mxu0 0
      %3320 = vmatpush.bf16.msra.mxu0 %v3311
      %3321 = vmatmul.bf16.gmra.mxu0 %v3308
      %v3322 = vpop.f32.mrf.mxu0
      %v3323 = vadd.f32 %v3019, %v3322
      %v3324 = vpop.f32.mrf.mxu0
      %3325 = vdwg.mxu0
      %v3327 = vsel %vm1716, %v2141, 0
      %v3330 = vsel %vm2872, %v2125, 0
      %3332 = vmatpush.bf16.msra.mxu0 0
      %3333 = vmatpush.bf16.msra.mxu0 0
      %3334 = vmatpush.bf16.msra.mxu0 0
      %3335 = vmatpush.bf16.msra.mxu0 0
      %3336 = vmatpush.bf16.msra.mxu0 0
      %3337 = vmatpush.bf16.msra.mxu0 0
      %3338 = vmatpush.bf16.msra.mxu0 0
      %3339 = vmatpush.bf16.msra.mxu0 %v3330
      %3340 = vmatmul.bf16.gmra.mxu0 %v3327
      %v3341 = vpop.f32.mrf.mxu0
      %v3342 = vadd.f32 %v3038, %v3341
      %v3343 = vpop.f32.mrf.mxu0
      %3344 = vdwg.mxu0
      %v3346 = vsel %vm1716, %v2142, 0
      %v3349 = vsel %vm2872, %v2126, 0
      %3351 = vmatpush.bf16.msra.mxu0 0
      %3352 = vmatpush.bf16.msra.mxu0 0
      %3353 = vmatpush.bf16.msra.mxu0 0
      %3354 = vmatpush.bf16.msra.mxu0 0
      %3355 = vmatpush.bf16.msra.mxu0 0
      %3356 = vmatpush.bf16.msra.mxu0 0
      %3357 = vmatpush.bf16.msra.mxu0 0
      %3358 = vmatpush.bf16.msra.mxu0 %v3349
      %3359 = vmatmul.bf16.gmra.mxu0 %v3346
      %v3360 = vpop.f32.mrf.mxu0
      %v3361 = vadd.f32 %v3057, %v3360
      %v3362 = vpop.f32.mrf.mxu0
      %3363 = vdwg.mxu0
      %v3365 = vsel %vm1716, %v2143, 0
      %v3368 = vsel %vm2872, %v2127, 0
      %3370 = vmatpush.bf16.msra.mxu0 0
      %3371 = vmatpush.bf16.msra.mxu0 0
      %3372 = vmatpush.bf16.msra.mxu0 0
      %3373 = vmatpush.bf16.msra.mxu0 0
      %3374 = vmatpush.bf16.msra.mxu0 0
      %3375 = vmatpush.bf16.msra.mxu0 0
      %3376 = vmatpush.bf16.msra.mxu0 0
      %3377 = vmatpush.bf16.msra.mxu0 %v3368
      %3378 = vmatmul.bf16.gmra.mxu0 %v3365
      %v3379 = vpop.f32.mrf.mxu0
      %v3380 = vadd.f32 %v3076, %v3379
      %v3381 = vpop.f32.mrf.mxu0
      %3382 = vdwg.mxu0
      %v3384 = vsel %vm1716, %v2144, 0
      %v3387 = vsel %vm2872, %v2128, 0
      %3389 = vmatpush.bf16.msra.mxu0 0
      %3390 = vmatpush.bf16.msra.mxu0 0
      %3391 = vmatpush.bf16.msra.mxu0 0
      %3392 = vmatpush.bf16.msra.mxu0 0
      %3393 = vmatpush.bf16.msra.mxu0 0
      %3394 = vmatpush.bf16.msra.mxu0 0
      %3395 = vmatpush.bf16.msra.mxu0 0
      %3396 = vmatpush.bf16.msra.mxu0 %v3387
      %3397 = vmatmul.bf16.gmra.mxu0 %v3384
      %v3398 = vpop.f32.mrf.mxu0
      %v3399 = vadd.f32 %v3095, %v3398
      %v3400 = vpop.f32.mrf.mxu0
      %3401 = vdwg.mxu0
      %v3403 = vsel %vm1716, %v2145, 0
      %v3406 = vsel %vm2872, %v2129, 0
      %3408 = vmatpush.bf16.msra.mxu0 0
      %3409 = vmatpush.bf16.msra.mxu0 0
      %3410 = vmatpush.bf16.msra.mxu0 0
      %3411 = vmatpush.bf16.msra.mxu0 0
      %3412 = vmatpush.bf16.msra.mxu0 0
      %3413 = vmatpush.bf16.msra.mxu0 0
      %3414 = vmatpush.bf16.msra.mxu0 0
      %3415 = vmatpush.bf16.msra.mxu0 %v3406
      %3416 = vmatmul.bf16.gmra.mxu0 %v3403
      %v3417 = vpop.f32.mrf.mxu0
      %v3418 = vadd.f32 %v3114, %v3417
      %v3419 = vpop.f32.mrf.mxu0
      %3420 = vdwg.mxu0
      %v3422 = vsel %vm1716, %v2146, 0
      %v3425 = vsel %vm2872, %v2130, 0
      %3427 = vmatpush.bf16.msra.mxu0 0
      %3428 = vmatpush.bf16.msra.mxu0 0
      %3429 = vmatpush.bf16.msra.mxu0 0
      %3430 = vmatpush.bf16.msra.mxu0 0
      %3431 = vmatpush.bf16.msra.mxu0 0
      %3432 = vmatpush.bf16.msra.mxu0 0
      %3433 = vmatpush.bf16.msra.mxu0 0
      %3434 = vmatpush.bf16.msra.mxu0 %v3425
      %3435 = vmatmul.bf16.gmra.mxu0 %v3422
      %v3436 = vpop.f32.mrf.mxu0
      %v3437 = vadd.f32 %v3133, %v3436
      %v3438 = vpop.f32.mrf.mxu0
      %3439 = vdwg.mxu0
      %v3441 = vsel %vm1716, %v2147, 0
      %v3444 = vsel %vm2872, %v2131, 0
      %3446 = vmatpush.bf16.msra.mxu0 0
      %3447 = vmatpush.bf16.msra.mxu0 0
      %3448 = vmatpush.bf16.msra.mxu0 0
      %3449 = vmatpush.bf16.msra.mxu0 0
      %3450 = vmatpush.bf16.msra.mxu0 0
      %3451 = vmatpush.bf16.msra.mxu0 0
      %3452 = vmatpush.bf16.msra.mxu0 0
      %3453 = vmatpush.bf16.msra.mxu0 %v3444
      %3454 = vmatmul.bf16.gmra.mxu0 %v3441
      %v3455 = vpop.f32.mrf.mxu0
      %v3456 = vadd.f32 %v3152, %v3455
      %v3457 = vpop.f32.mrf.mxu0
      %3458 = vdwg.mxu0
      %v3460 = vsel %vm1716, %v2148, 0
      %v3463 = vsel %vm2872, %v2132, 0
      %3465 = vmatpush.bf16.msra.mxu0 0
      %3466 = vmatpush.bf16.msra.mxu0 0
      %3467 = vmatpush.bf16.msra.mxu0 0
      %3468 = vmatpush.bf16.msra.mxu0 0
      %3469 = vmatpush.bf16.msra.mxu0 0
      %3470 = vmatpush.bf16.msra.mxu0 0
      %3471 = vmatpush.bf16.msra.mxu0 0
      %3472 = vmatpush.bf16.msra.mxu0 %v3463
      %3473 = vmatmul.bf16.gmra.mxu0 %v3460
      %v3474 = vpop.f32.mrf.mxu0
      %v3475 = vadd.f32 %v3171, %v3474
      %v3476 = vpop.f32.mrf.mxu0
      %3477 = vdwg.mxu0
      %v3478 = vmul.f32 %v1177, %v1375
      %v3479 = vmul.f32 %v1179, %v1375
      %v3480 = vmul.f32 %v1182, %v1375
      %v3481 = vmul.f32 %v1184, %v1375
      %v3482 = vmul.f32 %v1187, %v1375
      %v3483 = vmul.f32 %v1189, %v1375
      %v3484 = vmul.f32 %v1192, %v1375
      %v3485 = vmul.f32 %v1194, %v1375
      %v3486 = vmul.f32 %v1197, %v1375
      %v3487 = vmul.f32 %v1199, %v1375
      %v3488 = vmul.f32 %v1202, %v1375
      %v3489 = vmul.f32 %v1204, %v1375
      %v3490 = vmul.f32 %v1207, %v1375
      %v3491 = vmul.f32 %v1209, %v1375
      %v3492 = vmul.f32 %v1212, %v1375
      %v3493 = vmul.f32 %v1214, %v1375
      %v3494 = vpack.c.bf16 %v3478, %v3478
      %v3495 = vpack.c.bf16 %v3479, %v3479
      %v3496 = vpack.c.bf16 %v3480, %v3480
      %v3497 = vpack.c.bf16 %v3481, %v3481
      %v3498 = vpack.c.bf16 %v3482, %v3482
      %v3499 = vpack.c.bf16 %v3483, %v3483
      %v3500 = vpack.c.bf16 %v3484, %v3484
      %v3501 = vpack.c.bf16 %v3485, %v3485
      %v3502 = vpack.c.bf16 %v3486, %v3486
      %v3503 = vpack.c.bf16 %v3487, %v3487
      %v3504 = vpack.c.bf16 %v3488, %v3488
      %v3505 = vpack.c.bf16 %v3489, %v3489
      %v3506 = vpack.c.bf16 %v3490, %v3490
      %v3507 = vpack.c.bf16 %v3491, %v3491
      %v3508 = vpack.c.bf16 %v3492, %v3492
      %v3509 = vpack.c.bf16 %v3493, %v3493
      %v3511 = vsel %vm722, %v3494, 0
      %3513 = vmatpush.bf16.xpose.msra.mxu0 0
      %3514 = vmatpush.bf16.xpose.msra.mxu0 0
      %3515 = vmatpush.bf16.xpose.msra.mxu0 0
      %3516 = vmatpush.bf16.xpose.msra.mxu0 0
      %3517 = vmatpush.bf16.xpose.msra.mxu0 0
      %3518 = vmatpush.bf16.xpose.msra.mxu0 0
      %3519 = vmatpush.bf16.xpose.msra.mxu0 0
      %3520 = vmatpush.bf16.xpose.msra.mxu0 %v1416
      %3521 = vmatmul.bf16.gmra.mxu0 %v3511
      %v3522 = vpop.f32.mrf.mxu0
      %v3523 = vadd.f32 %v1363, %v3522
      %v3524 = vpop.f32.mrf.mxu0
      %3525 = vdwg.mxu0
      %v3527 = vsel %vm722, %v3495, 0
      %3529 = vmatpush.bf16.xpose.msra.mxu0 0
      %3530 = vmatpush.bf16.xpose.msra.mxu0 0
      %3531 = vmatpush.bf16.xpose.msra.mxu0 0
      %3532 = vmatpush.bf16.xpose.msra.mxu0 0
      %3533 = vmatpush.bf16.xpose.msra.mxu0 0
      %3534 = vmatpush.bf16.xpose.msra.mxu0 0
      %3535 = vmatpush.bf16.xpose.msra.mxu0 0
      %3536 = vmatpush.bf16.xpose.msra.mxu0 %v1435
      %3537 = vmatmul.bf16.gmra.mxu0 %v3527
      %v3538 = vpop.f32.mrf.mxu0
      %v3539 = vadd.f32 %v1363, %v3538
      %v3540 = vpop.f32.mrf.mxu0
      %3541 = vdwg.mxu0
      %v3543 = vsel %vm722, %v3496, 0
      %3545 = vmatpush.bf16.xpose.msra.mxu0 0
      %3546 = vmatpush.bf16.xpose.msra.mxu0 0
      %3547 = vmatpush.bf16.xpose.msra.mxu0 0
      %3548 = vmatpush.bf16.xpose.msra.mxu0 0
      %3549 = vmatpush.bf16.xpose.msra.mxu0 0
      %3550 = vmatpush.bf16.xpose.msra.mxu0 0
      %3551 = vmatpush.bf16.xpose.msra.mxu0 0
      %3552 = vmatpush.bf16.xpose.msra.mxu0 %v1454
      %3553 = vmatmul.bf16.gmra.mxu0 %v3543
      %v3554 = vpop.f32.mrf.mxu0
      %v3555 = vadd.f32 %v1363, %v3554
      %v3556 = vpop.f32.mrf.mxu0
      %3557 = vdwg.mxu0
      %v3559 = vsel %vm722, %v3497, 0
      %3561 = vmatpush.bf16.xpose.msra.mxu0 0
      %3562 = vmatpush.bf16.xpose.msra.mxu0 0
      %3563 = vmatpush.bf16.xpose.msra.mxu0 0
      %3564 = vmatpush.bf16.xpose.msra.mxu0 0
      %3565 = vmatpush.bf16.xpose.msra.mxu0 0
      %3566 = vmatpush.bf16.xpose.msra.mxu0 0
      %3567 = vmatpush.bf16.xpose.msra.mxu0 0
      %3568 = vmatpush.bf16.xpose.msra.mxu0 %v1473
      %3569 = vmatmul.bf16.gmra.mxu0 %v3559
      %v3570 = vpop.f32.mrf.mxu0
      %v3571 = vadd.f32 %v1363, %v3570
      %v3572 = vpop.f32.mrf.mxu0
      %3573 = vdwg.mxu0
      %v3575 = vsel %vm722, %v3498, 0
      %3577 = vmatpush.bf16.xpose.msra.mxu0 0
      %3578 = vmatpush.bf16.xpose.msra.mxu0 0
      %3579 = vmatpush.bf16.xpose.msra.mxu0 0
      %3580 = vmatpush.bf16.xpose.msra.mxu0 0
      %3581 = vmatpush.bf16.xpose.msra.mxu0 0
      %3582 = vmatpush.bf16.xpose.msra.mxu0 0
      %3583 = vmatpush.bf16.xpose.msra.mxu0 0
      %3584 = vmatpush.bf16.xpose.msra.mxu0 %v1492
      %3585 = vmatmul.bf16.gmra.mxu0 %v3575
      %v3586 = vpop.f32.mrf.mxu0
      %v3587 = vadd.f32 %v1363, %v3586
      %v3588 = vpop.f32.mrf.mxu0
      %3589 = vdwg.mxu0
      %v3591 = vsel %vm722, %v3499, 0
      %3593 = vmatpush.bf16.xpose.msra.mxu0 0
      %3594 = vmatpush.bf16.xpose.msra.mxu0 0
      %3595 = vmatpush.bf16.xpose.msra.mxu0 0
      %3596 = vmatpush.bf16.xpose.msra.mxu0 0
      %3597 = vmatpush.bf16.xpose.msra.mxu0 0
      %3598 = vmatpush.bf16.xpose.msra.mxu0 0
      %3599 = vmatpush.bf16.xpose.msra.mxu0 0
      %3600 = vmatpush.bf16.xpose.msra.mxu0 %v1511
      %3601 = vmatmul.bf16.gmra.mxu0 %v3591
      %v3602 = vpop.f32.mrf.mxu0
      %v3603 = vadd.f32 %v1363, %v3602
      %v3604 = vpop.f32.mrf.mxu0
      %3605 = vdwg.mxu0
      %v3607 = vsel %vm722, %v3500, 0
      %3609 = vmatpush.bf16.xpose.msra.mxu0 0
      %3610 = vmatpush.bf16.xpose.msra.mxu0 0
      %3611 = vmatpush.bf16.xpose.msra.mxu0 0
      %3612 = vmatpush.bf16.xpose.msra.mxu0 0
      %3613 = vmatpush.bf16.xpose.msra.mxu0 0
      %3614 = vmatpush.bf16.xpose.msra.mxu0 0
      %3615 = vmatpush.bf16.xpose.msra.mxu0 0
      %3616 = vmatpush.bf16.xpose.msra.mxu0 %v1530
      %3617 = vmatmul.bf16.gmra.mxu0 %v3607
      %v3618 = vpop.f32.mrf.mxu0
      %v3619 = vadd.f32 %v1363, %v3618
      %v3620 = vpop.f32.mrf.mxu0
      %3621 = vdwg.mxu0
      %v3623 = vsel %vm722, %v3501, 0
      %3625 = vmatpush.bf16.xpose.msra.mxu0 0
      %3626 = vmatpush.bf16.xpose.msra.mxu0 0
      %3627 = vmatpush.bf16.xpose.msra.mxu0 0
      %3628 = vmatpush.bf16.xpose.msra.mxu0 0
      %3629 = vmatpush.bf16.xpose.msra.mxu0 0
      %3630 = vmatpush.bf16.xpose.msra.mxu0 0
      %3631 = vmatpush.bf16.xpose.msra.mxu0 0
      %3632 = vmatpush.bf16.xpose.msra.mxu0 %v1549
      %3633 = vmatmul.bf16.gmra.mxu0 %v3623
      %v3634 = vpop.f32.mrf.mxu0
      %v3635 = vadd.f32 %v1363, %v3634
      %v3636 = vpop.f32.mrf.mxu0
      %3637 = vdwg.mxu0
      %v3639 = vsel %vm722, %v3502, 0
      %3641 = vmatpush.bf16.xpose.msra.mxu0 0
      %3642 = vmatpush.bf16.xpose.msra.mxu0 0
      %3643 = vmatpush.bf16.xpose.msra.mxu0 0
      %3644 = vmatpush.bf16.xpose.msra.mxu0 0
      %3645 = vmatpush.bf16.xpose.msra.mxu0 0
      %3646 = vmatpush.bf16.xpose.msra.mxu0 0
      %3647 = vmatpush.bf16.xpose.msra.mxu0 0
      %3648 = vmatpush.bf16.xpose.msra.mxu0 %v1568
      %3649 = vmatmul.bf16.gmra.mxu0 %v3639
      %v3650 = vpop.f32.mrf.mxu0
      %v3651 = vadd.f32 %v1363, %v3650
      %v3652 = vpop.f32.mrf.mxu0
      %3653 = vdwg.mxu0
      %v3655 = vsel %vm722, %v3503, 0
      %3657 = vmatpush.bf16.xpose.msra.mxu0 0
      %3658 = vmatpush.bf16.xpose.msra.mxu0 0
      %3659 = vmatpush.bf16.xpose.msra.mxu0 0
      %3660 = vmatpush.bf16.xpose.msra.mxu0 0
      %3661 = vmatpush.bf16.xpose.msra.mxu0 0
      %3662 = vmatpush.bf16.xpose.msra.mxu0 0
      %3663 = vmatpush.bf16.xpose.msra.mxu0 0
      %3664 = vmatpush.bf16.xpose.msra.mxu0 %v1587
      %3665 = vmatmul.bf16.gmra.mxu0 %v3655
      %v3666 = vpop.f32.mrf.mxu0
      %v3667 = vadd.f32 %v1363, %v3666
      %v3668 = vpop.f32.mrf.mxu0
      %3669 = vdwg.mxu0
      %v3671 = vsel %vm722, %v3504, 0
      %3673 = vmatpush.bf16.xpose.msra.mxu0 0
      %3674 = vmatpush.bf16.xpose.msra.mxu0 0
      %3675 = vmatpush.bf16.xpose.msra.mxu0 0
      %3676 = vmatpush.bf16.xpose.msra.mxu0 0
      %3677 = vmatpush.bf16.xpose.msra.mxu0 0
      %3678 = vmatpush.bf16.xpose.msra.mxu0 0
      %3679 = vmatpush.bf16.xpose.msra.mxu0 0
      %3680 = vmatpush.bf16.xpose.msra.mxu0 %v1606
      %3681 = vmatmul.bf16.gmra.mxu0 %v3671
      %v3682 = vpop.f32.mrf.mxu0
      %v3683 = vadd.f32 %v1363, %v3682
      %v3684 = vpop.f32.mrf.mxu0
      %3685 = vdwg.mxu0
      %v3687 = vsel %vm722, %v3505, 0
      %3689 = vmatpush.bf16.xpose.msra.mxu0 0
      %3690 = vmatpush.bf16.xpose.msra.mxu0 0
      %3691 = vmatpush.bf16.xpose.msra.mxu0 0
      %3692 = vmatpush.bf16.xpose.msra.mxu0 0
      %3693 = vmatpush.bf16.xpose.msra.mxu0 0
      %3694 = vmatpush.bf16.xpose.msra.mxu0 0
      %3695 = vmatpush.bf16.xpose.msra.mxu0 0
      %3696 = vmatpush.bf16.xpose.msra.mxu0 %v1625
      %3697 = vmatmul.bf16.gmra.mxu0 %v3687
      %v3698 = vpop.f32.mrf.mxu0
      %v3699 = vadd.f32 %v1363, %v3698
      %v3700 = vpop.f32.mrf.mxu0
      %3701 = vdwg.mxu0
      %v3703 = vsel %vm722, %v3506, 0
      %3705 = vmatpush.bf16.xpose.msra.mxu0 0
      %3706 = vmatpush.bf16.xpose.msra.mxu0 0
      %3707 = vmatpush.bf16.xpose.msra.mxu0 0
      %3708 = vmatpush.bf16.xpose.msra.mxu0 0
      %3709 = vmatpush.bf16.xpose.msra.mxu0 0
      %3710 = vmatpush.bf16.xpose.msra.mxu0 0
      %3711 = vmatpush.bf16.xpose.msra.mxu0 0
      %3712 = vmatpush.bf16.xpose.msra.mxu0 %v1644
      %3713 = vmatmul.bf16.gmra.mxu0 %v3703
      %v3714 = vpop.f32.mrf.mxu0
      %v3715 = vadd.f32 %v1363, %v3714
      %v3716 = vpop.f32.mrf.mxu0
      %3717 = vdwg.mxu0
      %v3719 = vsel %vm722, %v3507, 0
      %3721 = vmatpush.bf16.xpose.msra.mxu0 0
      %3722 = vmatpush.bf16.xpose.msra.mxu0 0
      %3723 = vmatpush.bf16.xpose.msra.mxu0 0
      %3724 = vmatpush.bf16.xpose.msra.mxu0 0
      %3725 = vmatpush.bf16.xpose.msra.mxu0 0
      %3726 = vmatpush.bf16.xpose.msra.mxu0 0
      %3727 = vmatpush.bf16.xpose.msra.mxu0 0
      %3728 = vmatpush.bf16.xpose.msra.mxu0 %v1663
      %3729 = vmatmul.bf16.gmra.mxu0 %v3719
      %v3730 = vpop.f32.mrf.mxu0
      %v3731 = vadd.f32 %v1363, %v3730
      %v3732 = vpop.f32.mrf.mxu0
      %3733 = vdwg.mxu0
      %v3735 = vsel %vm722, %v3508, 0
      %3737 = vmatpush.bf16.xpose.msra.mxu0 0
      %3738 = vmatpush.bf16.xpose.msra.mxu0 0
      %3739 = vmatpush.bf16.xpose.msra.mxu0 0
      %3740 = vmatpush.bf16.xpose.msra.mxu0 0
      %3741 = vmatpush.bf16.xpose.msra.mxu0 0
      %3742 = vmatpush.bf16.xpose.msra.mxu0 0
      %3743 = vmatpush.bf16.xpose.msra.mxu0 0
      %3744 = vmatpush.bf16.xpose.msra.mxu0 %v1682
      %3745 = vmatmul.bf16.gmra.mxu0 %v3735
      %v3746 = vpop.f32.mrf.mxu0
      %v3747 = vadd.f32 %v1363, %v3746
      %v3748 = vpop.f32.mrf.mxu0
      %3749 = vdwg.mxu0
      %v3751 = vsel %vm722, %v3509, 0
      %3753 = vmatpush.bf16.xpose.msra.mxu0 0
      %3754 = vmatpush.bf16.xpose.msra.mxu0 0
      %3755 = vmatpush.bf16.xpose.msra.mxu0 0
      %3756 = vmatpush.bf16.xpose.msra.mxu0 0
      %3757 = vmatpush.bf16.xpose.msra.mxu0 0
      %3758 = vmatpush.bf16.xpose.msra.mxu0 0
      %3759 = vmatpush.bf16.xpose.msra.mxu0 0
      %3760 = vmatpush.bf16.xpose.msra.mxu0 %v1701
      %3761 = vmatmul.bf16.gmra.mxu0 %v3751
      %v3762 = vpop.f32.mrf.mxu0
      %v3763 = vadd.f32 %v1363, %v3762
      %v3764 = vpop.f32.mrf.mxu0
      %3765 = vdwg.mxu0
      %v3766 = vsel %vm1716, %v3523, -inf
      %3767 = vmax.xlane.f32.xlu0 %v3766
      %v3768 = vpop.xlane.xlu0 %3767
      %v3769 = vsel %vm1716, %v3539, -inf
      %3770 = vmax.xlane.f32.xlu0 %v3769
      %v3771 = vpop.xlane.xlu0 %3770
      %v3772 = vsel %vm1716, %v3555, -inf
      %3773 = vmax.xlane.f32.xlu0 %v3772
      %v3774 = vpop.xlane.xlu0 %3773
      %v3775 = vsel %vm1716, %v3571, -inf
      %3776 = vmax.xlane.f32.xlu0 %v3775
      %v3777 = vpop.xlane.xlu0 %3776
      %v3778 = vsel %vm1716, %v3587, -inf
      %3779 = vmax.xlane.f32.xlu0 %v3778
      %v3780 = vpop.xlane.xlu0 %3779
      %v3781 = vsel %vm1716, %v3603, -inf
      %3782 = vmax.xlane.f32.xlu0 %v3781
      %v3783 = vpop.xlane.xlu0 %3782
      %v3784 = vsel %vm1716, %v3619, -inf
      %3785 = vmax.xlane.f32.xlu0 %v3784
      %v3786 = vpop.xlane.xlu0 %3785
      %v3787 = vsel %vm1716, %v3635, -inf
      %3788 = vmax.xlane.f32.xlu0 %v3787
      %v3789 = vpop.xlane.xlu0 %3788
      %v3790 = vsel %vm1716, %v3651, -inf
      %3791 = vmax.xlane.f32.xlu0 %v3790
      %v3792 = vpop.xlane.xlu0 %3791
      %v3793 = vsel %vm1716, %v3667, -inf
      %3794 = vmax.xlane.f32.xlu0 %v3793
      %v3795 = vpop.xlane.xlu0 %3794
      %v3796 = vsel %vm1716, %v3683, -inf
      %3797 = vmax.xlane.f32.xlu0 %v3796
      %v3798 = vpop.xlane.xlu0 %3797
      %v3799 = vsel %vm1716, %v3699, -inf
      %3800 = vmax.xlane.f32.xlu0 %v3799
      %v3801 = vpop.xlane.xlu0 %3800
      %v3802 = vsel %vm1716, %v3715, -inf
      %3803 = vmax.xlane.f32.xlu0 %v3802
      %v3804 = vpop.xlane.xlu0 %3803
      %v3805 = vsel %vm1716, %v3731, -inf
      %3806 = vmax.xlane.f32.xlu0 %v3805
      %v3807 = vpop.xlane.xlu0 %3806
      %v3808 = vsel %vm1716, %v3747, -inf
      %3809 = vmax.xlane.f32.xlu0 %v3808
      %v3810 = vpop.xlane.xlu0 %3809
      %v3811 = vsel %vm1716, %v3763, -inf
      %3812 = vmax.xlane.f32.xlu0 %v3811
      %v3813 = vpop.xlane.xlu0 %3812
      %v3814 = vsub.f32 %v3523, %v3768
      %v3815 = vsub.f32 %v3539, %v3771
      %v3816 = vsub.f32 %v3555, %v3774
      %v3817 = vsub.f32 %v3571, %v3777
      %v3818 = vsub.f32 %v3587, %v3780
      %v3819 = vsub.f32 %v3603, %v3783
      %v3820 = vsub.f32 %v3619, %v3786
      %v3821 = vsub.f32 %v3635, %v3789
      %v3822 = vsub.f32 %v3651, %v3792
      %v3823 = vsub.f32 %v3667, %v3795
      %v3824 = vsub.f32 %v3683, %v3798
      %v3825 = vsub.f32 %v3699, %v3801
      %v3826 = vsub.f32 %v3715, %v3804
      %v3827 = vsub.f32 %v3731, %v3807
      %v3828 = vsub.f32 %v3747, %v3810
      %v3829 = vsub.f32 %v3763, %v3813
      %v3830 = vmul.f32 %v3814, 1.442695
      %v3831 = vpow.pop %v3830
      %v3832 = vmul.f32 %v3815, 1.442695
      %v3833 = vpow.pop %v3832
      %v3834 = vmul.f32 %v3816, 1.442695
      %v3835 = vpow.pop %v3834
      %v3836 = vmul.f32 %v3817, 1.442695
      %v3837 = vpow.pop %v3836
      %v3838 = vmul.f32 %v3818, 1.442695
      %v3839 = vpow.pop %v3838
      %v3840 = vmul.f32 %v3819, 1.442695
      %v3841 = vpow.pop %v3840
      %v3842 = vmul.f32 %v3820, 1.442695
      %v3843 = vpow.pop %v3842
      %v3844 = vmul.f32 %v3821, 1.442695
      %v3845 = vpow.pop %v3844
      %v3846 = vmul.f32 %v3822, 1.442695
      %v3847 = vpow.pop %v3846
      %v3848 = vmul.f32 %v3823, 1.442695
      %v3849 = vpow.pop %v3848
      %v3850 = vmul.f32 %v3824, 1.442695
      %v3851 = vpow.pop %v3850
      %v3852 = vmul.f32 %v3825, 1.442695
      %v3853 = vpow.pop %v3852
      %v3854 = vmul.f32 %v3826, 1.442695
      %v3855 = vpow.pop %v3854
      %v3856 = vmul.f32 %v3827, 1.442695
      %v3857 = vpow.pop %v3856
      %v3858 = vmul.f32 %v3828, 1.442695
      %v3859 = vpow.pop %v3858
      %v3860 = vmul.f32 %v3829, 1.442695
      %v3861 = vpow.pop %v3860
      %v3862 = vsel %vm1716, %v3831, 0.0
      %3863 = vadd.xlane.f32.xlu0 %v3862
      %v3864 = vpop.xlane.xlu0 %3863
      %v3865 = vsel %vm1716, %v3833, 0.0
      %3866 = vadd.xlane.f32.xlu0 %v3865
      %v3867 = vpop.xlane.xlu0 %3866
      %v3868 = vsel %vm1716, %v3835, 0.0
      %3869 = vadd.xlane.f32.xlu0 %v3868
      %v3870 = vpop.xlane.xlu0 %3869
      %v3871 = vsel %vm1716, %v3837, 0.0
      %3872 = vadd.xlane.f32.xlu0 %v3871
      %v3873 = vpop.xlane.xlu0 %3872
      %v3874 = vsel %vm1716, %v3839, 0.0
      %3875 = vadd.xlane.f32.xlu0 %v3874
      %v3876 = vpop.xlane.xlu0 %3875
      %v3877 = vsel %vm1716, %v3841, 0.0
      %3878 = vadd.xlane.f32.xlu0 %v3877
      %v3879 = vpop.xlane.xlu0 %3878
      %v3880 = vsel %vm1716, %v3843, 0.0
      %3881 = vadd.xlane.f32.xlu0 %v3880
      %v3882 = vpop.xlane.xlu0 %3881
      %v3883 = vsel %vm1716, %v3845, 0.0
      %3884 = vadd.xlane.f32.xlu0 %v3883
      %v3885 = vpop.xlane.xlu0 %3884
      %v3886 = vsel %vm1716, %v3847, 0.0
      %3887 = vadd.xlane.f32.xlu0 %v3886
      %v3888 = vpop.xlane.xlu0 %3887
      %v3889 = vsel %vm1716, %v3849, 0.0
      %3890 = vadd.xlane.f32.xlu0 %v3889
      %v3891 = vpop.xlane.xlu0 %3890
      %v3892 = vsel %vm1716, %v3851, 0.0
      %3893 = vadd.xlane.f32.xlu0 %v3892
      %v3894 = vpop.xlane.xlu0 %3893
      %v3895 = vsel %vm1716, %v3853, 0.0
      %3896 = vadd.xlane.f32.xlu0 %v3895
      %v3897 = vpop.xlane.xlu0 %3896
      %v3898 = vsel %vm1716, %v3855, 0.0
      %3899 = vadd.xlane.f32.xlu0 %v3898
      %v3900 = vpop.xlane.xlu0 %3899
      %v3901 = vsel %vm1716, %v3857, 0.0
      %3902 = vadd.xlane.f32.xlu0 %v3901
      %v3903 = vpop.xlane.xlu0 %3902
      %v3904 = vsel %vm1716, %v3859, 0.0
      %3905 = vadd.xlane.f32.xlu0 %v3904
      %v3906 = vpop.xlane.xlu0 %3905
      %v3907 = vsel %vm1716, %v3861, 0.0
      %3908 = vadd.xlane.f32.xlu0 %v3907
      %v3909 = vpop.xlane.xlu0 %3908
      %v3910 = vrcp.pop %v3864
      %v3911 = vmul.f32 %v3864, %v3910
      %v3912 = vsub.f32 1.0, %v3911
      %v3913 = vmul.f32 %v3910, %v3912
      %v3914 = vadd.f32 %v3910, %v3913
      %vm3915 = vweird.f32 %v3864
      %vm3916 = vweird.f32 %v3910
      %vm3917 = vmor %vm3915, %vm3916
      %v3918 = vsel %vm3917, %v3910, %v3914
      %v3919 = vand.u32 2147483647, %v3864
      %vm3920 = vcmp.eq.f32.partialorder %v3919, 8.507059e+37
      %v3921 = vand.u32 %v3864, 2147483648
      %v3922 = vor.u32 1.1754944e-38, %v3921
      %v3923 = vsel %vm3920, %v3922, %v3918
      %v3924 = vmul.f32 %v3831, %v3923
      %v3925 = vrcp.pop %v3867
      %v3926 = vmul.f32 %v3867, %v3925
      %v3927 = vsub.f32 1.0, %v3926
      %v3928 = vmul.f32 %v3925, %v3927
      %v3929 = vadd.f32 %v3925, %v3928
      %vm3930 = vweird.f32 %v3867
      %vm3931 = vweird.f32 %v3925
      %vm3932 = vmor %vm3930, %vm3931
      %v3933 = vsel %vm3932, %v3925, %v3929
      %v3934 = vand.u32 2147483647, %v3867
      %vm3935 = vcmp.eq.f32.partialorder %v3934, 8.507059e+37
      %v3936 = vand.u32 %v3867, 2147483648
      %v3937 = vor.u32 1.1754944e-38, %v3936
      %v3938 = vsel %vm3935, %v3937, %v3933
      %v3939 = vmul.f32 %v3833, %v3938
      %v3940 = vrcp.pop %v3870
      %v3941 = vmul.f32 %v3870, %v3940
      %v3942 = vsub.f32 1.0, %v3941
      %v3943 = vmul.f32 %v3940, %v3942
      %v3944 = vadd.f32 %v3940, %v3943
      %vm3945 = vweird.f32 %v3870
      %vm3946 = vweird.f32 %v3940
      %vm3947 = vmor %vm3945, %vm3946
      %v3948 = vsel %vm3947, %v3940, %v3944
      %v3949 = vand.u32 2147483647, %v3870
      %vm3950 = vcmp.eq.f32.partialorder %v3949, 8.507059e+37
      %v3951 = vand.u32 %v3870, 2147483648
      %v3952 = vor.u32 1.1754944e-38, %v3951
      %v3953 = vsel %vm3950, %v3952, %v3948
      %v3954 = vmul.f32 %v3835, %v3953
      %v3955 = vrcp.pop %v3873
      %v3956 = vmul.f32 %v3873, %v3955
      %v3957 = vsub.f32 1.0, %v3956
      %v3958 = vmul.f32 %v3955, %v3957
      %v3959 = vadd.f32 %v3955, %v3958
      %vm3960 = vweird.f32 %v3873
      %vm3961 = vweird.f32 %v3955
      %vm3962 = vmor %vm3960, %vm3961
      %v3963 = vsel %vm3962, %v3955, %v3959
      %v3964 = vand.u32 2147483647, %v3873
      %vm3965 = vcmp.eq.f32.partialorder %v3964, 8.507059e+37
      %v3966 = vand.u32 %v3873, 2147483648
      %v3967 = vor.u32 1.1754944e-38, %v3966
      %v3968 = vsel %vm3965, %v3967, %v3963
      %v3969 = vmul.f32 %v3837, %v3968
      %v3970 = vrcp.pop %v3876
      %v3971 = vmul.f32 %v3876, %v3970
      %v3972 = vsub.f32 1.0, %v3971
      %v3973 = vmul.f32 %v3970, %v3972
      %v3974 = vadd.f32 %v3970, %v3973
      %vm3975 = vweird.f32 %v3876
      %vm3976 = vweird.f32 %v3970
      %vm3977 = vmor %vm3975, %vm3976
      %v3978 = vsel %vm3977, %v3970, %v3974
      %v3979 = vand.u32 2147483647, %v3876
      %vm3980 = vcmp.eq.f32.partialorder %v3979, 8.507059e+37
      %v3981 = vand.u32 %v3876, 2147483648
      %v3982 = vor.u32 1.1754944e-38, %v3981
      %v3983 = vsel %vm3980, %v3982, %v3978
      %v3984 = vmul.f32 %v3839, %v3983
      %v3985 = vrcp.pop %v3879
      %v3986 = vmul.f32 %v3879, %v3985
      %v3987 = vsub.f32 1.0, %v3986
      %v3988 = vmul.f32 %v3985, %v3987
      %v3989 = vadd.f32 %v3985, %v3988
      %vm3990 = vweird.f32 %v3879
      %vm3991 = vweird.f32 %v3985
      %vm3992 = vmor %vm3990, %vm3991
      %v3993 = vsel %vm3992, %v3985, %v3989
      %v3994 = vand.u32 2147483647, %v3879
      %vm3995 = vcmp.eq.f32.partialorder %v3994, 8.507059e+37
      %v3996 = vand.u32 %v3879, 2147483648
      %v3997 = vor.u32 1.1754944e-38, %v3996
      %v3998 = vsel %vm3995, %v3997, %v3993
      %v3999 = vmul.f32 %v3841, %v3998
      %v4000 = vrcp.pop %v3882
      %v4001 = vmul.f32 %v3882, %v4000
      %v4002 = vsub.f32 1.0, %v4001
      %v4003 = vmul.f32 %v4000, %v4002
      %v4004 = vadd.f32 %v4000, %v4003
      %vm4005 = vweird.f32 %v3882
      %vm4006 = vweird.f32 %v4000
      %vm4007 = vmor %vm4005, %vm4006
      %v4008 = vsel %vm4007, %v4000, %v4004
      %v4009 = vand.u32 2147483647, %v3882
      %vm4010 = vcmp.eq.f32.partialorder %v4009, 8.507059e+37
      %v4011 = vand.u32 %v3882, 2147483648
      %v4012 = vor.u32 1.1754944e-38, %v4011
      %v4013 = vsel %vm4010, %v4012, %v4008
      %v4014 = vmul.f32 %v3843, %v4013
      %v4015 = vrcp.pop %v3885
      %v4016 = vmul.f32 %v3885, %v4015
      %v4017 = vsub.f32 1.0, %v4016
      %v4018 = vmul.f32 %v4015, %v4017
      %v4019 = vadd.f32 %v4015, %v4018
      %vm4020 = vweird.f32 %v3885
      %vm4021 = vweird.f32 %v4015
      %vm4022 = vmor %vm4020, %vm4021
      %v4023 = vsel %vm4022, %v4015, %v4019
      %v4024 = vand.u32 2147483647, %v3885
      %vm4025 = vcmp.eq.f32.partialorder %v4024, 8.507059e+37
      %v4026 = vand.u32 %v3885, 2147483648
      %v4027 = vor.u32 1.1754944e-38, %v4026
      %v4028 = vsel %vm4025, %v4027, %v4023
      %v4029 = vmul.f32 %v3845, %v4028
      %v4030 = vrcp.pop %v3888
      %v4031 = vmul.f32 %v3888, %v4030
      %v4032 = vsub.f32 1.0, %v4031
      %v4033 = vmul.f32 %v4030, %v4032
      %v4034 = vadd.f32 %v4030, %v4033
      %vm4035 = vweird.f32 %v3888
      %vm4036 = vweird.f32 %v4030
      %vm4037 = vmor %vm4035, %vm4036
      %v4038 = vsel %vm4037, %v4030, %v4034
      %v4039 = vand.u32 2147483647, %v3888
      %vm4040 = vcmp.eq.f32.partialorder %v4039, 8.507059e+37
      %v4041 = vand.u32 %v3888, 2147483648
      %v4042 = vor.u32 1.1754944e-38, %v4041
      %v4043 = vsel %vm4040, %v4042, %v4038
      %v4044 = vmul.f32 %v3847, %v4043
      %v4045 = vrcp.pop %v3891
      %v4046 = vmul.f32 %v3891, %v4045
      %v4047 = vsub.f32 1.0, %v4046
      %v4048 = vmul.f32 %v4045, %v4047
      %v4049 = vadd.f32 %v4045, %v4048
      %vm4050 = vweird.f32 %v3891
      %vm4051 = vweird.f32 %v4045
      %vm4052 = vmor %vm4050, %vm4051
      %v4053 = vsel %vm4052, %v4045, %v4049
      %v4054 = vand.u32 2147483647, %v3891
      %vm4055 = vcmp.eq.f32.partialorder %v4054, 8.507059e+37
      %v4056 = vand.u32 %v3891, 2147483648
      %v4057 = vor.u32 1.1754944e-38, %v4056
      %v4058 = vsel %vm4055, %v4057, %v4053
      %v4059 = vmul.f32 %v3849, %v4058
      %v4060 = vrcp.pop %v3894
      %v4061 = vmul.f32 %v3894, %v4060
      %v4062 = vsub.f32 1.0, %v4061
      %v4063 = vmul.f32 %v4060, %v4062
      %v4064 = vadd.f32 %v4060, %v4063
      %vm4065 = vweird.f32 %v3894
      %vm4066 = vweird.f32 %v4060
      %vm4067 = vmor %vm4065, %vm4066
      %v4068 = vsel %vm4067, %v4060, %v4064
      %v4069 = vand.u32 2147483647, %v3894
      %vm4070 = vcmp.eq.f32.partialorder %v4069, 8.507059e+37
      %v4071 = vand.u32 %v3894, 2147483648
      %v4072 = vor.u32 1.1754944e-38, %v4071
      %v4073 = vsel %vm4070, %v4072, %v4068
      %v4074 = vmul.f32 %v3851, %v4073
      %v4075 = vrcp.pop %v3897
      %v4076 = vmul.f32 %v3897, %v4075
      %v4077 = vsub.f32 1.0, %v4076
      %v4078 = vmul.f32 %v4075, %v4077
      %v4079 = vadd.f32 %v4075, %v4078
      %vm4080 = vweird.f32 %v3897
      %vm4081 = vweird.f32 %v4075
      %vm4082 = vmor %vm4080, %vm4081
      %v4083 = vsel %vm4082, %v4075, %v4079
      %v4084 = vand.u32 2147483647, %v3897
      %vm4085 = vcmp.eq.f32.partialorder %v4084, 8.507059e+37
      %v4086 = vand.u32 %v3897, 2147483648
      %v4087 = vor.u32 1.1754944e-38, %v4086
      %v4088 = vsel %vm4085, %v4087, %v4083
      %v4089 = vmul.f32 %v3853, %v4088
      %v4090 = vrcp.pop %v3900
      %v4091 = vmul.f32 %v3900, %v4090
      %v4092 = vsub.f32 1.0, %v4091
      %v4093 = vmul.f32 %v4090, %v4092
      %v4094 = vadd.f32 %v4090, %v4093
      %vm4095 = vweird.f32 %v3900
      %vm4096 = vweird.f32 %v4090
      %vm4097 = vmor %vm4095, %vm4096
      %v4098 = vsel %vm4097, %v4090, %v4094
      %v4099 = vand.u32 2147483647, %v3900
      %vm4100 = vcmp.eq.f32.partialorder %v4099, 8.507059e+37
      %v4101 = vand.u32 %v3900, 2147483648
      %v4102 = vor.u32 1.1754944e-38, %v4101
      %v4103 = vsel %vm4100, %v4102, %v4098
      %v4104 = vmul.f32 %v3855, %v4103
      %v4105 = vrcp.pop %v3903
      %v4106 = vmul.f32 %v3903, %v4105
      %v4107 = vsub.f32 1.0, %v4106
      %v4108 = vmul.f32 %v4105, %v4107
      %v4109 = vadd.f32 %v4105, %v4108
      %vm4110 = vweird.f32 %v3903
      %vm4111 = vweird.f32 %v4105
      %vm4112 = vmor %vm4110, %vm4111
      %v4113 = vsel %vm4112, %v4105, %v4109
      %v4114 = vand.u32 2147483647, %v3903
      %vm4115 = vcmp.eq.f32.partialorder %v4114, 8.507059e+37
      %v4116 = vand.u32 %v3903, 2147483648
      %v4117 = vor.u32 1.1754944e-38, %v4116
      %v4118 = vsel %vm4115, %v4117, %v4113
      %v4119 = vmul.f32 %v3857, %v4118
      %v4120 = vrcp.pop %v3906
      %v4121 = vmul.f32 %v3906, %v4120
      %v4122 = vsub.f32 1.0, %v4121
      %v4123 = vmul.f32 %v4120, %v4122
      %v4124 = vadd.f32 %v4120, %v4123
      %vm4125 = vweird.f32 %v3906
      %vm4126 = vweird.f32 %v4120
      %vm4127 = vmor %vm4125, %vm4126
      %v4128 = vsel %vm4127, %v4120, %v4124
      %v4129 = vand.u32 2147483647, %v3906
      %vm4130 = vcmp.eq.f32.partialorder %v4129, 8.507059e+37
      %v4131 = vand.u32 %v3906, 2147483648
      %v4132 = vor.u32 1.1754944e-38, %v4131
      %v4133 = vsel %vm4130, %v4132, %v4128
      %v4134 = vmul.f32 %v3859, %v4133
      %v4135 = vrcp.pop %v3909
      %v4136 = vmul.f32 %v3909, %v4135
      %v4137 = vsub.f32 1.0, %v4136
      %v4138 = vmul.f32 %v4135, %v4137
      %v4139 = vadd.f32 %v4135, %v4138
      %vm4140 = vweird.f32 %v3909
      %vm4141 = vweird.f32 %v4135
      %vm4142 = vmor %vm4140, %vm4141
      %v4143 = vsel %vm4142, %v4135, %v4139
      %v4144 = vand.u32 2147483647, %v3909
      %vm4145 = vcmp.eq.f32.partialorder %v4144, 8.507059e+37
      %v4146 = vand.u32 %v3909, 2147483648
      %v4147 = vor.u32 1.1754944e-38, %v4146
      %v4148 = vsel %vm4145, %v4147, %v4143
      %v4149 = vmul.f32 %v3861, %v4148
      %v4150 = vmul.f32 %v1305, %v1375
      %v4151 = vmul.f32 %v1307, %v1375
      %v4152 = vmul.f32 %v1310, %v1375
      %v4153 = vmul.f32 %v1312, %v1375
      %v4154 = vmul.f32 %v1315, %v1375
      %v4155 = vmul.f32 %v1317, %v1375
      %v4156 = vmul.f32 %v1320, %v1375
      %v4157 = vmul.f32 %v1322, %v1375
      %v4158 = vmul.f32 %v1325, %v1375
      %v4159 = vmul.f32 %v1327, %v1375
      %v4160 = vmul.f32 %v1330, %v1375
      %v4161 = vmul.f32 %v1332, %v1375
      %v4162 = vmul.f32 %v1335, %v1375
      %v4163 = vmul.f32 %v1337, %v1375
      %v4164 = vmul.f32 %v1340, %v1375
      %v4165 = vmul.f32 %v1342, %v1375
      %v4166 = vpack.c.bf16 %v4150, %v4150
      %v4167 = vpack.c.bf16 %v4151, %v4151
      %v4168 = vpack.c.bf16 %v4152, %v4152
      %v4169 = vpack.c.bf16 %v4153, %v4153
      %v4170 = vpack.c.bf16 %v4154, %v4154
      %v4171 = vpack.c.bf16 %v4155, %v4155
      %v4172 = vpack.c.bf16 %v4156, %v4156
      %v4173 = vpack.c.bf16 %v4157, %v4157
      %v4174 = vpack.c.bf16 %v4158, %v4158
      %v4175 = vpack.c.bf16 %v4159, %v4159
      %v4176 = vpack.c.bf16 %v4160, %v4160
      %v4177 = vpack.c.bf16 %v4161, %v4161
      %v4178 = vpack.c.bf16 %v4162, %v4162
      %v4179 = vpack.c.bf16 %v4163, %v4163
      %v4180 = vpack.c.bf16 %v4164, %v4164
      %v4181 = vpack.c.bf16 %v4165, %v4165
      %v4182 = vpack.c.bf16 %v3924, %v3924
      %v4183 = vpack.c.bf16 %v3939, %v3939
      %v4184 = vpack.c.bf16 %v3954, %v3954
      %v4185 = vpack.c.bf16 %v3969, %v3969
      %v4186 = vpack.c.bf16 %v3984, %v3984
      %v4187 = vpack.c.bf16 %v3999, %v3999
      %v4188 = vpack.c.bf16 %v4014, %v4014
      %v4189 = vpack.c.bf16 %v4029, %v4029
      %v4190 = vpack.c.bf16 %v4044, %v4044
      %v4191 = vpack.c.bf16 %v4059, %v4059
      %v4192 = vpack.c.bf16 %v4074, %v4074
      %v4193 = vpack.c.bf16 %v4089, %v4089
      %v4194 = vpack.c.bf16 %v4104, %v4104
      %v4195 = vpack.c.bf16 %v4119, %v4119
      %v4196 = vpack.c.bf16 %v4134, %v4134
      %v4197 = vpack.c.bf16 %v4149, %v4149
      %v4199 = vsel %vm1716, %v4182, 0
      %v4202 = vsel %vm2872, %v4166, 0
      %4204 = vmatpush.bf16.msra.mxu0 0
      %4205 = vmatpush.bf16.msra.mxu0 0
      %4206 = vmatpush.bf16.msra.mxu0 0
      %4207 = vmatpush.bf16.msra.mxu0 0
      %4208 = vmatpush.bf16.msra.mxu0 0
      %4209 = vmatpush.bf16.msra.mxu0 0
      %4210 = vmatpush.bf16.msra.mxu0 0
      %4211 = vmatpush.bf16.msra.mxu0 %v4202
      %4212 = vmatmul.bf16.gmra.mxu0 %v4199
      %v4213 = vpop.f32.mrf.mxu0
      %v4214 = vadd.f32 0.0, %v4213
      %v4215 = vpop.f32.mrf.mxu0
      %4216 = vdwg.mxu0
      %v4218 = vsel %vm1716, %v4183, 0
      %v4221 = vsel %vm2872, %v4167, 0
      %4223 = vmatpush.bf16.msra.mxu0 0
      %4224 = vmatpush.bf16.msra.mxu0 0
      %4225 = vmatpush.bf16.msra.mxu0 0
      %4226 = vmatpush.bf16.msra.mxu0 0
      %4227 = vmatpush.bf16.msra.mxu0 0
      %4228 = vmatpush.bf16.msra.mxu0 0
      %4229 = vmatpush.bf16.msra.mxu0 0
      %4230 = vmatpush.bf16.msra.mxu0 %v4221
      %4231 = vmatmul.bf16.gmra.mxu0 %v4218
      %v4232 = vpop.f32.mrf.mxu0
      %v4233 = vadd.f32 0.0, %v4232
      %v4234 = vpop.f32.mrf.mxu0
      %4235 = vdwg.mxu0
      %v4237 = vsel %vm1716, %v4184, 0
      %v4240 = vsel %vm2872, %v4168, 0
      %4242 = vmatpush.bf16.msra.mxu0 0
      %4243 = vmatpush.bf16.msra.mxu0 0
      %4244 = vmatpush.bf16.msra.mxu0 0
      %4245 = vmatpush.bf16.msra.mxu0 0
      %4246 = vmatpush.bf16.msra.mxu0 0
      %4247 = vmatpush.bf16.msra.mxu0 0
      %4248 = vmatpush.bf16.msra.mxu0 0
      %4249 = vmatpush.bf16.msra.mxu0 %v4240
      %4250 = vmatmul.bf16.gmra.mxu0 %v4237
      %v4251 = vpop.f32.mrf.mxu0
      %v4252 = vadd.f32 0.0, %v4251
      %v4253 = vpop.f32.mrf.mxu0
      %4254 = vdwg.mxu0
      %v4256 = vsel %vm1716, %v4185, 0
      %v4259 = vsel %vm2872, %v4169, 0
      %4261 = vmatpush.bf16.msra.mxu0 0
      %4262 = vmatpush.bf16.msra.mxu0 0
      %4263 = vmatpush.bf16.msra.mxu0 0
      %4264 = vmatpush.bf16.msra.mxu0 0
      %4265 = vmatpush.bf16.msra.mxu0 0
      %4266 = vmatpush.bf16.msra.mxu0 0
      %4267 = vmatpush.bf16.msra.mxu0 0
      %4268 = vmatpush.bf16.msra.mxu0 %v4259
      %4269 = vmatmul.bf16.gmra.mxu0 %v4256
      %v4270 = vpop.f32.mrf.mxu0
      %v4271 = vadd.f32 0.0, %v4270
      %v4272 = vpop.f32.mrf.mxu0
      %4273 = vdwg.mxu0
      %v4275 = vsel %vm1716, %v4186, 0
      %v4278 = vsel %vm2872, %v4170, 0
      %4280 = vmatpush.bf16.msra.mxu0 0
      %4281 = vmatpush.bf16.msra.mxu0 0
      %4282 = vmatpush.bf16.msra.mxu0 0
      %4283 = vmatpush.bf16.msra.mxu0 0
      %4284 = vmatpush.bf16.msra.mxu0 0
      %4285 = vmatpush.bf16.msra.mxu0 0
      %4286 = vmatpush.bf16.msra.mxu0 0
      %4287 = vmatpush.bf16.msra.mxu0 %v4278
      %4288 = vmatmul.bf16.gmra.mxu0 %v4275
      %v4289 = vpop.f32.mrf.mxu0
      %v4290 = vadd.f32 0.0, %v4289
      %v4291 = vpop.f32.mrf.mxu0
      %4292 = vdwg.mxu0
      %v4294 = vsel %vm1716, %v4187, 0
      %v4297 = vsel %vm2872, %v4171, 0
      %4299 = vmatpush.bf16.msra.mxu0 0
      %4300 = vmatpush.bf16.msra.mxu0 0
      %4301 = vmatpush.bf16.msra.mxu0 0
      %4302 = vmatpush.bf16.msra.mxu0 0
      %4303 = vmatpush.bf16.msra.mxu0 0
      %4304 = vmatpush.bf16.msra.mxu0 0
      %4305 = vmatpush.bf16.msra.mxu0 0
      %4306 = vmatpush.bf16.msra.mxu0 %v4297
      %4307 = vmatmul.bf16.gmra.mxu0 %v4294
      %v4308 = vpop.f32.mrf.mxu0
      %v4309 = vadd.f32 0.0, %v4308
      %v4310 = vpop.f32.mrf.mxu0
      %4311 = vdwg.mxu0
      %v4313 = vsel %vm1716, %v4188, 0
      %v4316 = vsel %vm2872, %v4172, 0
      %4318 = vmatpush.bf16.msra.mxu0 0
      %4319 = vmatpush.bf16.msra.mxu0 0
      %4320 = vmatpush.bf16.msra.mxu0 0
      %4321 = vmatpush.bf16.msra.mxu0 0
      %4322 = vmatpush.bf16.msra.mxu0 0
      %4323 = vmatpush.bf16.msra.mxu0 0
      %4324 = vmatpush.bf16.msra.mxu0 0
      %4325 = vmatpush.bf16.msra.mxu0 %v4316
      %4326 = vmatmul.bf16.gmra.mxu0 %v4313
      %v4327 = vpop.f32.mrf.mxu0
      %v4328 = vadd.f32 0.0, %v4327
      %v4329 = vpop.f32.mrf.mxu0
      %4330 = vdwg.mxu0
      %v4332 = vsel %vm1716, %v4189, 0
      %v4335 = vsel %vm2872, %v4173, 0
      %4337 = vmatpush.bf16.msra.mxu0 0
      %4338 = vmatpush.bf16.msra.mxu0 0
      %4339 = vmatpush.bf16.msra.mxu0 0
      %4340 = vmatpush.bf16.msra.mxu0 0
      %4341 = vmatpush.bf16.msra.mxu0 0
      %4342 = vmatpush.bf16.msra.mxu0 0
      %4343 = vmatpush.bf16.msra.mxu0 0
      %4344 = vmatpush.bf16.msra.mxu0 %v4335
      %4345 = vmatmul.bf16.gmra.mxu0 %v4332
      %v4346 = vpop.f32.mrf.mxu0
      %v4347 = vadd.f32 0.0, %v4346
      %v4348 = vpop.f32.mrf.mxu0
      %4349 = vdwg.mxu0
      %v4351 = vsel %vm1716, %v4190, 0
      %v4354 = vsel %vm2872, %v4174, 0
      %4356 = vmatpush.bf16.msra.mxu0 0
      %4357 = vmatpush.bf16.msra.mxu0 0
      %4358 = vmatpush.bf16.msra.mxu0 0
      %4359 = vmatpush.bf16.msra.mxu0 0
      %4360 = vmatpush.bf16.msra.mxu0 0
      %4361 = vmatpush.bf16.msra.mxu0 0
      %4362 = vmatpush.bf16.msra.mxu0 0
      %4363 = vmatpush.bf16.msra.mxu0 %v4354
      %4364 = vmatmul.bf16.gmra.mxu0 %v4351
      %v4365 = vpop.f32.mrf.mxu0
      %v4366 = vadd.f32 0.0, %v4365
      %v4367 = vpop.f32.mrf.mxu0
      %4368 = vdwg.mxu0
      %v4370 = vsel %vm1716, %v4191, 0
      %v4373 = vsel %vm2872, %v4175, 0
      %4375 = vmatpush.bf16.msra.mxu0 0
      %4376 = vmatpush.bf16.msra.mxu0 0
      %4377 = vmatpush.bf16.msra.mxu0 0
      %4378 = vmatpush.bf16.msra.mxu0 0
      %4379 = vmatpush.bf16.msra.mxu0 0
      %4380 = vmatpush.bf16.msra.mxu0 0
      %4381 = vmatpush.bf16.msra.mxu0 0
      %4382 = vmatpush.bf16.msra.mxu0 %v4373
      %4383 = vmatmul.bf16.gmra.mxu0 %v4370
      %v4384 = vpop.f32.mrf.mxu0
      %v4385 = vadd.f32 0.0, %v4384
      %v4386 = vpop.f32.mrf.mxu0
      %4387 = vdwg.mxu0
      %v4389 = vsel %vm1716, %v4192, 0
      %v4392 = vsel %vm2872, %v4176, 0
      %4394 = vmatpush.bf16.msra.mxu0 0
      %4395 = vmatpush.bf16.msra.mxu0 0
      %4396 = vmatpush.bf16.msra.mxu0 0
      %4397 = vmatpush.bf16.msra.mxu0 0
      %4398 = vmatpush.bf16.msra.mxu0 0
      %4399 = vmatpush.bf16.msra.mxu0 0
      %4400 = vmatpush.bf16.msra.mxu0 0
      %4401 = vmatpush.bf16.msra.mxu0 %v4392
      %4402 = vmatmul.bf16.gmra.mxu0 %v4389
      %v4403 = vpop.f32.mrf.mxu0
      %v4404 = vadd.f32 0.0, %v4403
      %v4405 = vpop.f32.mrf.mxu0
      %4406 = vdwg.mxu0
      %v4408 = vsel %vm1716, %v4193, 0
      %v4411 = vsel %vm2872, %v4177, 0
      %4413 = vmatpush.bf16.msra.mxu0 0
      %4414 = vmatpush.bf16.msra.mxu0 0
      %4415 = vmatpush.bf16.msra.mxu0 0
      %4416 = vmatpush.bf16.msra.mxu0 0
      %4417 = vmatpush.bf16.msra.mxu0 0
      %4418 = vmatpush.bf16.msra.mxu0 0
      %4419 = vmatpush.bf16.msra.mxu0 0
      %4420 = vmatpush.bf16.msra.mxu0 %v4411
      %4421 = vmatmul.bf16.gmra.mxu0 %v4408
      %v4422 = vpop.f32.mrf.mxu0
      %v4423 = vadd.f32 0.0, %v4422
      %v4424 = vpop.f32.mrf.mxu0
      %4425 = vdwg.mxu0
      %v4427 = vsel %vm1716, %v4194, 0
      %v4430 = vsel %vm2872, %v4178, 0
      %4432 = vmatpush.bf16.msra.mxu0 0
      %4433 = vmatpush.bf16.msra.mxu0 0
      %4434 = vmatpush.bf16.msra.mxu0 0
      %4435 = vmatpush.bf16.msra.mxu0 0
      %4436 = vmatpush.bf16.msra.mxu0 0
      %4437 = vmatpush.bf16.msra.mxu0 0
      %4438 = vmatpush.bf16.msra.mxu0 0
      %4439 = vmatpush.bf16.msra.mxu0 %v4430
      %4440 = vmatmul.bf16.gmra.mxu0 %v4427
      %v4441 = vpop.f32.mrf.mxu0
      %v4442 = vadd.f32 0.0, %v4441
      %v4443 = vpop.f32.mrf.mxu0
      %4444 = vdwg.mxu0
      %v4446 = vsel %vm1716, %v4195, 0
      %v4449 = vsel %vm2872, %v4179, 0
      %4451 = vmatpush.bf16.msra.mxu0 0
      %4452 = vmatpush.bf16.msra.mxu0 0
      %4453 = vmatpush.bf16.msra.mxu0 0
      %4454 = vmatpush.bf16.msra.mxu0 0
      %4455 = vmatpush.bf16.msra.mxu0 0
      %4456 = vmatpush.bf16.msra.mxu0 0
      %4457 = vmatpush.bf16.msra.mxu0 0
      %4458 = vmatpush.bf16.msra.mxu0 %v4449
      %4459 = vmatmul.bf16.gmra.mxu0 %v4446
      %v4460 = vpop.f32.mrf.mxu0
      %v4461 = vadd.f32 0.0, %v4460
      %v4462 = vpop.f32.mrf.mxu0
      %4463 = vdwg.mxu0
      %v4465 = vsel %vm1716, %v4196, 0
      %v4468 = vsel %vm2872, %v4180, 0
      %4470 = vmatpush.bf16.msra.mxu0 0
      %4471 = vmatpush.bf16.msra.mxu0 0
      %4472 = vmatpush.bf16.msra.mxu0 0
      %4473 = vmatpush.bf16.msra.mxu0 0
      %4474 = vmatpush.bf16.msra.mxu0 0
      %4475 = vmatpush.bf16.msra.mxu0 0
      %4476 = vmatpush.bf16.msra.mxu0 0
      %4477 = vmatpush.bf16.msra.mxu0 %v4468
      %4478 = vmatmul.bf16.gmra.mxu0 %v4465
      %v4479 = vpop.f32.mrf.mxu0
      %v4480 = vadd.f32 0.0, %v4479
      %v4481 = vpop.f32.mrf.mxu0
      %4482 = vdwg.mxu0
      %v4484 = vsel %vm1716, %v4197, 0
      %v4487 = vsel %vm2872, %v4181, 0
      %4489 = vmatpush.bf16.msra.mxu0 0
      %4490 = vmatpush.bf16.msra.mxu0 0
      %4491 = vmatpush.bf16.msra.mxu0 0
      %4492 = vmatpush.bf16.msra.mxu0 0
      %4493 = vmatpush.bf16.msra.mxu0 0
      %4494 = vmatpush.bf16.msra.mxu0 0
      %4495 = vmatpush.bf16.msra.mxu0 0
      %4496 = vmatpush.bf16.msra.mxu0 %v4487
      %4497 = vmatmul.bf16.gmra.mxu0 %v4484
      %v4498 = vpop.f32.mrf.mxu0
      %v4499 = vadd.f32 0.0, %v4498
      %v4500 = vpop.f32.mrf.mxu0
      %4501 = vdwg.mxu0
      %v4502 = vadd.f32 %v3190, %v4214
      %v4503 = vadd.f32 %v3209, %v4233
      %v4504 = vadd.f32 %v3228, %v4252
      %v4505 = vadd.f32 %v3247, %v4271
      %v4506 = vadd.f32 %v3266, %v4290
      %v4507 = vadd.f32 %v3285, %v4309
      %v4508 = vadd.f32 %v3304, %v4328
      %v4509 = vadd.f32 %v3323, %v4347
      %v4510 = vadd.f32 %v3342, %v4366
      %v4511 = vadd.f32 %v3361, %v4385
      %v4512 = vadd.f32 %v3380, %v4404
      %v4513 = vadd.f32 %v3399, %v4423
      %v4514 = vadd.f32 %v3418, %v4442
      %v4515 = vadd.f32 %v3437, %v4461
      %v4516 = vadd.f32 %v3456, %v4480
      %v4517 = vadd.f32 %v3475, %v4499
      %v4518 = vmul.f32 %v1177, %v1379
      %v4519 = vmul.f32 %v1179, %v1379
      %v4520 = vmul.f32 %v1182, %v1379
      %v4521 = vmul.f32 %v1184, %v1379
      %v4522 = vmul.f32 %v1187, %v1379
      %v4523 = vmul.f32 %v1189, %v1379
      %v4524 = vmul.f32 %v1192, %v1379
      %v4525 = vmul.f32 %v1194, %v1379
      %v4526 = vmul.f32 %v1197, %v1379
      %v4527 = vmul.f32 %v1199, %v1379
      %v4528 = vmul.f32 %v1202, %v1379
      %v4529 = vmul.f32 %v1204, %v1379
      %v4530 = vmul.f32 %v1207, %v1379
      %v4531 = vmul.f32 %v1209, %v1379
      %v4532 = vmul.f32 %v1212, %v1379
      %v4533 = vmul.f32 %v1214, %v1379
      %v4534 = vpack.c.bf16 %v4518, %v4518
      %v4535 = vpack.c.bf16 %v4519, %v4519
      %v4536 = vpack.c.bf16 %v4520, %v4520
      %v4537 = vpack.c.bf16 %v4521, %v4521
      %v4538 = vpack.c.bf16 %v4522, %v4522
      %v4539 = vpack.c.bf16 %v4523, %v4523
      %v4540 = vpack.c.bf16 %v4524, %v4524
      %v4541 = vpack.c.bf16 %v4525, %v4525
      %v4542 = vpack.c.bf16 %v4526, %v4526
      %v4543 = vpack.c.bf16 %v4527, %v4527
      %v4544 = vpack.c.bf16 %v4528, %v4528
      %v4545 = vpack.c.bf16 %v4529, %v4529
      %v4546 = vpack.c.bf16 %v4530, %v4530
      %v4547 = vpack.c.bf16 %v4531, %v4531
      %v4548 = vpack.c.bf16 %v4532, %v4532
      %v4549 = vpack.c.bf16 %v4533, %v4533
      %v4551 = vsel %vm722, %v4534, 0
      %4553 = vmatpush.bf16.xpose.msra.mxu0 0
      %4554 = vmatpush.bf16.xpose.msra.mxu0 0
      %4555 = vmatpush.bf16.xpose.msra.mxu0 0
      %4556 = vmatpush.bf16.xpose.msra.mxu0 0
      %4557 = vmatpush.bf16.xpose.msra.mxu0 0
      %4558 = vmatpush.bf16.xpose.msra.mxu0 0
      %4559 = vmatpush.bf16.xpose.msra.mxu0 0
      %4560 = vmatpush.bf16.xpose.msra.mxu0 %v1416
      %4561 = vmatmul.bf16.gmra.mxu0 %v4551
      %v4562 = vpop.f32.mrf.mxu0
      %v4563 = vadd.f32 %v1363, %v4562
      %v4564 = vpop.f32.mrf.mxu0
      %4565 = vdwg.mxu0
      %v4567 = vsel %vm722, %v4535, 0
      %4569 = vmatpush.bf16.xpose.msra.mxu0 0
      %4570 = vmatpush.bf16.xpose.msra.mxu0 0
      %4571 = vmatpush.bf16.xpose.msra.mxu0 0
      %4572 = vmatpush.bf16.xpose.msra.mxu0 0
      %4573 = vmatpush.bf16.xpose.msra.mxu0 0
      %4574 = vmatpush.bf16.xpose.msra.mxu0 0
      %4575 = vmatpush.bf16.xpose.msra.mxu0 0
      %4576 = vmatpush.bf16.xpose.msra.mxu0 %v1435
      %4577 = vmatmul.bf16.gmra.mxu0 %v4567
      %v4578 = vpop.f32.mrf.mxu0
      %v4579 = vadd.f32 %v1363, %v4578
      %v4580 = vpop.f32.mrf.mxu0
      %4581 = vdwg.mxu0
      %v4583 = vsel %vm722, %v4536, 0
      %4585 = vmatpush.bf16.xpose.msra.mxu0 0
      %4586 = vmatpush.bf16.xpose.msra.mxu0 0
      %4587 = vmatpush.bf16.xpose.msra.mxu0 0
      %4588 = vmatpush.bf16.xpose.msra.mxu0 0
      %4589 = vmatpush.bf16.xpose.msra.mxu0 0
      %4590 = vmatpush.bf16.xpose.msra.mxu0 0
      %4591 = vmatpush.bf16.xpose.msra.mxu0 0
      %4592 = vmatpush.bf16.xpose.msra.mxu0 %v1454
      %4593 = vmatmul.bf16.gmra.mxu0 %v4583
      %v4594 = vpop.f32.mrf.mxu0
      %v4595 = vadd.f32 %v1363, %v4594
      %v4596 = vpop.f32.mrf.mxu0
      %4597 = vdwg.mxu0
      %v4599 = vsel %vm722, %v4537, 0
      %4601 = vmatpush.bf16.xpose.msra.mxu0 0
      %4602 = vmatpush.bf16.xpose.msra.mxu0 0
      %4603 = vmatpush.bf16.xpose.msra.mxu0 0
      %4604 = vmatpush.bf16.xpose.msra.mxu0 0
      %4605 = vmatpush.bf16.xpose.msra.mxu0 0
      %4606 = vmatpush.bf16.xpose.msra.mxu0 0
      %4607 = vmatpush.bf16.xpose.msra.mxu0 0
      %4608 = vmatpush.bf16.xpose.msra.mxu0 %v1473
      %4609 = vmatmul.bf16.gmra.mxu0 %v4599
      %v4610 = vpop.f32.mrf.mxu0
      %v4611 = vadd.f32 %v1363, %v4610
      %v4612 = vpop.f32.mrf.mxu0
      %4613 = vdwg.mxu0
      %v4615 = vsel %vm722, %v4538, 0
      %4617 = vmatpush.bf16.xpose.msra.mxu0 0
      %4618 = vmatpush.bf16.xpose.msra.mxu0 0
      %4619 = vmatpush.bf16.xpose.msra.mxu0 0
      %4620 = vmatpush.bf16.xpose.msra.mxu0 0
      %4621 = vmatpush.bf16.xpose.msra.mxu0 0
      %4622 = vmatpush.bf16.xpose.msra.mxu0 0
      %4623 = vmatpush.bf16.xpose.msra.mxu0 0
      %4624 = vmatpush.bf16.xpose.msra.mxu0 %v1492
      %4625 = vmatmul.bf16.gmra.mxu0 %v4615
      %v4626 = vpop.f32.mrf.mxu0
      %v4627 = vadd.f32 %v1363, %v4626
      %v4628 = vpop.f32.mrf.mxu0
      %4629 = vdwg.mxu0
      %v4631 = vsel %vm722, %v4539, 0
      %4633 = vmatpush.bf16.xpose.msra.mxu0 0
      %4634 = vmatpush.bf16.xpose.msra.mxu0 0
      %4635 = vmatpush.bf16.xpose.msra.mxu0 0
      %4636 = vmatpush.bf16.xpose.msra.mxu0 0
      %4637 = vmatpush.bf16.xpose.msra.mxu0 0
      %4638 = vmatpush.bf16.xpose.msra.mxu0 0
      %4639 = vmatpush.bf16.xpose.msra.mxu0 0
      %4640 = vmatpush.bf16.xpose.msra.mxu0 %v1511
      %4641 = vmatmul.bf16.gmra.mxu0 %v4631
      %v4642 = vpop.f32.mrf.mxu0
      %v4643 = vadd.f32 %v1363, %v4642
      %v4644 = vpop.f32.mrf.mxu0
      %4645 = vdwg.mxu0
      %v4647 = vsel %vm722, %v4540, 0
      %4649 = vmatpush.bf16.xpose.msra.mxu0 0
      %4650 = vmatpush.bf16.xpose.msra.mxu0 0
      %4651 = vmatpush.bf16.xpose.msra.mxu0 0
      %4652 = vmatpush.bf16.xpose.msra.mxu0 0
      %4653 = vmatpush.bf16.xpose.msra.mxu0 0
      %4654 = vmatpush.bf16.xpose.msra.mxu0 0
      %4655 = vmatpush.bf16.xpose.msra.mxu0 0
      %4656 = vmatpush.bf16.xpose.msra.mxu0 %v1530
      %4657 = vmatmul.bf16.gmra.mxu0 %v4647
      %v4658 = vpop.f32.mrf.mxu0
      %v4659 = vadd.f32 %v1363, %v4658
      %v4660 = vpop.f32.mrf.mxu0
      %4661 = vdwg.mxu0
      %v4663 = vsel %vm722, %v4541, 0
      %4665 = vmatpush.bf16.xpose.msra.mxu0 0
      %4666 = vmatpush.bf16.xpose.msra.mxu0 0
      %4667 = vmatpush.bf16.xpose.msra.mxu0 0
      %4668 = vmatpush.bf16.xpose.msra.mxu0 0
      %4669 = vmatpush.bf16.xpose.msra.mxu0 0
      %4670 = vmatpush.bf16.xpose.msra.mxu0 0
      %4671 = vmatpush.bf16.xpose.msra.mxu0 0
      %4672 = vmatpush.bf16.xpose.msra.mxu0 %v1549
      %4673 = vmatmul.bf16.gmra.mxu0 %v4663
      %v4674 = vpop.f32.mrf.mxu0
      %v4675 = vadd.f32 %v1363, %v4674
      %v4676 = vpop.f32.mrf.mxu0
      %4677 = vdwg.mxu0
      %v4679 = vsel %vm722, %v4542, 0
      %4681 = vmatpush.bf16.xpose.msra.mxu0 0
      %4682 = vmatpush.bf16.xpose.msra.mxu0 0
      %4683 = vmatpush.bf16.xpose.msra.mxu0 0
      %4684 = vmatpush.bf16.xpose.msra.mxu0 0
      %4685 = vmatpush.bf16.xpose.msra.mxu0 0
      %4686 = vmatpush.bf16.xpose.msra.mxu0 0
      %4687 = vmatpush.bf16.xpose.msra.mxu0 0
      %4688 = vmatpush.bf16.xpose.msra.mxu0 %v1568
      %4689 = vmatmul.bf16.gmra.mxu0 %v4679
      %v4690 = vpop.f32.mrf.mxu0
      %v4691 = vadd.f32 %v1363, %v4690
      %v4692 = vpop.f32.mrf.mxu0
      %4693 = vdwg.mxu0
      %v4695 = vsel %vm722, %v4543, 0
      %4697 = vmatpush.bf16.xpose.msra.mxu0 0
      %4698 = vmatpush.bf16.xpose.msra.mxu0 0
      %4699 = vmatpush.bf16.xpose.msra.mxu0 0
      %4700 = vmatpush.bf16.xpose.msra.mxu0 0
      %4701 = vmatpush.bf16.xpose.msra.mxu0 0
      %4702 = vmatpush.bf16.xpose.msra.mxu0 0
      %4703 = vmatpush.bf16.xpose.msra.mxu0 0
      %4704 = vmatpush.bf16.xpose.msra.mxu0 %v1587
      %4705 = vmatmul.bf16.gmra.mxu0 %v4695
      %v4706 = vpop.f32.mrf.mxu0
      %v4707 = vadd.f32 %v1363, %v4706
      %v4708 = vpop.f32.mrf.mxu0
      %4709 = vdwg.mxu0
      %v4711 = vsel %vm722, %v4544, 0
      %4713 = vmatpush.bf16.xpose.msra.mxu0 0
      %4714 = vmatpush.bf16.xpose.msra.mxu0 0
      %4715 = vmatpush.bf16.xpose.msra.mxu0 0
      %4716 = vmatpush.bf16.xpose.msra.mxu0 0
      %4717 = vmatpush.bf16.xpose.msra.mxu0 0
      %4718 = vmatpush.bf16.xpose.msra.mxu0 0
      %4719 = vmatpush.bf16.xpose.msra.mxu0 0
      %4720 = vmatpush.bf16.xpose.msra.mxu0 %v1606
      %4721 = vmatmul.bf16.gmra.mxu0 %v4711
      %v4722 = vpop.f32.mrf.mxu0
      %v4723 = vadd.f32 %v1363, %v4722
      %v4724 = vpop.f32.mrf.mxu0
      %4725 = vdwg.mxu0
      %v4727 = vsel %vm722, %v4545, 0
      %4729 = vmatpush.bf16.xpose.msra.mxu0 0
      %4730 = vmatpush.bf16.xpose.msra.mxu0 0
      %4731 = vmatpush.bf16.xpose.msra.mxu0 0
      %4732 = vmatpush.bf16.xpose.msra.mxu0 0
      %4733 = vmatpush.bf16.xpose.msra.mxu0 0
      %4734 = vmatpush.bf16.xpose.msra.mxu0 0
      %4735 = vmatpush.bf16.xpose.msra.mxu0 0
      %4736 = vmatpush.bf16.xpose.msra.mxu0 %v1625
      %4737 = vmatmul.bf16.gmra.mxu0 %v4727
      %v4738 = vpop.f32.mrf.mxu0
      %v4739 = vadd.f32 %v1363, %v4738
      %v4740 = vpop.f32.mrf.mxu0
      %4741 = vdwg.mxu0
      %v4743 = vsel %vm722, %v4546, 0
      %4745 = vmatpush.bf16.xpose.msra.mxu0 0
      %4746 = vmatpush.bf16.xpose.msra.mxu0 0
      %4747 = vmatpush.bf16.xpose.msra.mxu0 0
      %4748 = vmatpush.bf16.xpose.msra.mxu0 0
      %4749 = vmatpush.bf16.xpose.msra.mxu0 0
      %4750 = vmatpush.bf16.xpose.msra.mxu0 0
      %4751 = vmatpush.bf16.xpose.msra.mxu0 0
      %4752 = vmatpush.bf16.xpose.msra.mxu0 %v1644
      %4753 = vmatmul.bf16.gmra.mxu0 %v4743
      %v4754 = vpop.f32.mrf.mxu0
      %v4755 = vadd.f32 %v1363, %v4754
      %v4756 = vpop.f32.mrf.mxu0
      %4757 = vdwg.mxu0
      %v4759 = vsel %vm722, %v4547, 0
      %4761 = vmatpush.bf16.xpose.msra.mxu0 0
      %4762 = vmatpush.bf16.xpose.msra.mxu0 0
      %4763 = vmatpush.bf16.xpose.msra.mxu0 0
      %4764 = vmatpush.bf16.xpose.msra.mxu0 0
      %4765 = vmatpush.bf16.xpose.msra.mxu0 0
      %4766 = vmatpush.bf16.xpose.msra.mxu0 0
      %4767 = vmatpush.bf16.xpose.msra.mxu0 0
      %4768 = vmatpush.bf16.xpose.msra.mxu0 %v1663
      %4769 = vmatmul.bf16.gmra.mxu0 %v4759
      %v4770 = vpop.f32.mrf.mxu0
      %v4771 = vadd.f32 %v1363, %v4770
      %v4772 = vpop.f32.mrf.mxu0
      %4773 = vdwg.mxu0
      %v4775 = vsel %vm722, %v4548, 0
      %4777 = vmatpush.bf16.xpose.msra.mxu0 0
      %4778 = vmatpush.bf16.xpose.msra.mxu0 0
      %4779 = vmatpush.bf16.xpose.msra.mxu0 0
      %4780 = vmatpush.bf16.xpose.msra.mxu0 0
      %4781 = vmatpush.bf16.xpose.msra.mxu0 0
      %4782 = vmatpush.bf16.xpose.msra.mxu0 0
      %4783 = vmatpush.bf16.xpose.msra.mxu0 0
      %4784 = vmatpush.bf16.xpose.msra.mxu0 %v1682
      %4785 = vmatmul.bf16.gmra.mxu0 %v4775
      %v4786 = vpop.f32.mrf.mxu0
      %v4787 = vadd.f32 %v1363, %v4786
      %v4788 = vpop.f32.mrf.mxu0
      %4789 = vdwg.mxu0
      %v4791 = vsel %vm722, %v4549, 0
      %4793 = vmatpush.bf16.xpose.msra.mxu0 0
      %4794 = vmatpush.bf16.xpose.msra.mxu0 0
      %4795 = vmatpush.bf16.xpose.msra.mxu0 0
      %4796 = vmatpush.bf16.xpose.msra.mxu0 0
      %4797 = vmatpush.bf16.xpose.msra.mxu0 0
      %4798 = vmatpush.bf16.xpose.msra.mxu0 0
      %4799 = vmatpush.bf16.xpose.msra.mxu0 0
      %4800 = vmatpush.bf16.xpose.msra.mxu0 %v1701
      %4801 = vmatmul.bf16.gmra.mxu0 %v4791
      %v4802 = vpop.f32.mrf.mxu0
      %v4803 = vadd.f32 %v1363, %v4802
      %v4804 = vpop.f32.mrf.mxu0
      %4805 = vdwg.mxu0
      %v4806 = vsel %vm1716, %v4563, -inf
      %4807 = vmax.xlane.f32.xlu0 %v4806
      %v4808 = vpop.xlane.xlu0 %4807
      %v4809 = vsel %vm1716, %v4579, -inf
      %4810 = vmax.xlane.f32.xlu0 %v4809
      %v4811 = vpop.xlane.xlu0 %4810
      %v4812 = vsel %vm1716, %v4595, -inf
      %4813 = vmax.xlane.f32.xlu0 %v4812
      %v4814 = vpop.xlane.xlu0 %4813
      %v4815 = vsel %vm1716, %v4611, -inf
      %4816 = vmax.xlane.f32.xlu0 %v4815
      %v4817 = vpop.xlane.xlu0 %4816
      %v4818 = vsel %vm1716, %v4627, -inf
      %4819 = vmax.xlane.f32.xlu0 %v4818
      %v4820 = vpop.xlane.xlu0 %4819
      %v4821 = vsel %vm1716, %v4643, -inf
      %4822 = vmax.xlane.f32.xlu0 %v4821
      %v4823 = vpop.xlane.xlu0 %4822
      %v4824 = vsel %vm1716, %v4659, -inf
      %4825 = vmax.xlane.f32.xlu0 %v4824
      %v4826 = vpop.xlane.xlu0 %4825
      %v4827 = vsel %vm1716, %v4675, -inf
      %4828 = vmax.xlane.f32.xlu0 %v4827
      %v4829 = vpop.xlane.xlu0 %4828
      %v4830 = vsel %vm1716, %v4691, -inf
      %4831 = vmax.xlane.f32.xlu0 %v4830
      %v4832 = vpop.xlane.xlu0 %4831
      %v4833 = vsel %vm1716, %v4707, -inf
      %4834 = vmax.xlane.f32.xlu0 %v4833
      %v4835 = vpop.xlane.xlu0 %4834
      %v4836 = vsel %vm1716, %v4723, -inf
      %4837 = vmax.xlane.f32.xlu0 %v4836
      %v4838 = vpop.xlane.xlu0 %4837
      %v4839 = vsel %vm1716, %v4739, -inf
      %4840 = vmax.xlane.f32.xlu0 %v4839
      %v4841 = vpop.xlane.xlu0 %4840
      %v4842 = vsel %vm1716, %v4755, -inf
      %4843 = vmax.xlane.f32.xlu0 %v4842
      %v4844 = vpop.xlane.xlu0 %4843
      %v4845 = vsel %vm1716, %v4771, -inf
      %4846 = vmax.xlane.f32.xlu0 %v4845
      %v4847 = vpop.xlane.xlu0 %4846
      %v4848 = vsel %vm1716, %v4787, -inf
      %4849 = vmax.xlane.f32.xlu0 %v4848
      %v4850 = vpop.xlane.xlu0 %4849
      %v4851 = vsel %vm1716, %v4803, -inf
      %4852 = vmax.xlane.f32.xlu0 %v4851
      %v4853 = vpop.xlane.xlu0 %4852
      %v4854 = vsub.f32 %v4563, %v4808
      %v4855 = vsub.f32 %v4579, %v4811
      %v4856 = vsub.f32 %v4595, %v4814
      %v4857 = vsub.f32 %v4611, %v4817
      %v4858 = vsub.f32 %v4627, %v4820
      %v4859 = vsub.f32 %v4643, %v4823
      %v4860 = vsub.f32 %v4659, %v4826
      %v4861 = vsub.f32 %v4675, %v4829
      %v4862 = vsub.f32 %v4691, %v4832
      %v4863 = vsub.f32 %v4707, %v4835
      %v4864 = vsub.f32 %v4723, %v4838
      %v4865 = vsub.f32 %v4739, %v4841
      %v4866 = vsub.f32 %v4755, %v4844
      %v4867 = vsub.f32 %v4771, %v4847
      %v4868 = vsub.f32 %v4787, %v4850
      %v4869 = vsub.f32 %v4803, %v4853
      %v4870 = vmul.f32 %v4854, 1.442695
      %v4871 = vpow.pop %v4870
      %v4872 = vmul.f32 %v4855, 1.442695
      %v4873 = vpow.pop %v4872
      %v4874 = vmul.f32 %v4856, 1.442695
      %v4875 = vpow.pop %v4874
      %v4876 = vmul.f32 %v4857, 1.442695
      %v4877 = vpow.pop %v4876
      %v4878 = vmul.f32 %v4858, 1.442695
      %v4879 = vpow.pop %v4878
      %v4880 = vmul.f32 %v4859, 1.442695
      %v4881 = vpow.pop %v4880
      %v4882 = vmul.f32 %v4860, 1.442695
      %v4883 = vpow.pop %v4882
      %v4884 = vmul.f32 %v4861, 1.442695
      %v4885 = vpow.pop %v4884
      %v4886 = vmul.f32 %v4862, 1.442695
      %v4887 = vpow.pop %v4886
      %v4888 = vmul.f32 %v4863, 1.442695
      %v4889 = vpow.pop %v4888
      %v4890 = vmul.f32 %v4864, 1.442695
      %v4891 = vpow.pop %v4890
      %v4892 = vmul.f32 %v4865, 1.442695
      %v4893 = vpow.pop %v4892
      %v4894 = vmul.f32 %v4866, 1.442695
      %v4895 = vpow.pop %v4894
      %v4896 = vmul.f32 %v4867, 1.442695
      %v4897 = vpow.pop %v4896
      %v4898 = vmul.f32 %v4868, 1.442695
      %v4899 = vpow.pop %v4898
      %v4900 = vmul.f32 %v4869, 1.442695
      %v4901 = vpow.pop %v4900
      %v4902 = vsel %vm1716, %v4871, 0.0
      %4903 = vadd.xlane.f32.xlu0 %v4902
      %v4904 = vpop.xlane.xlu0 %4903
      %v4905 = vsel %vm1716, %v4873, 0.0
      %4906 = vadd.xlane.f32.xlu0 %v4905
      %v4907 = vpop.xlane.xlu0 %4906
      %v4908 = vsel %vm1716, %v4875, 0.0
      %4909 = vadd.xlane.f32.xlu0 %v4908
      %v4910 = vpop.xlane.xlu0 %4909
      %v4911 = vsel %vm1716, %v4877, 0.0
      %4912 = vadd.xlane.f32.xlu0 %v4911
      %v4913 = vpop.xlane.xlu0 %4912
      %v4914 = vsel %vm1716, %v4879, 0.0
      %4915 = vadd.xlane.f32.xlu0 %v4914
      %v4916 = vpop.xlane.xlu0 %4915
      %v4917 = vsel %vm1716, %v4881, 0.0
      %4918 = vadd.xlane.f32.xlu0 %v4917
      %v4919 = vpop.xlane.xlu0 %4918
      %v4920 = vsel %vm1716, %v4883, 0.0
      %4921 = vadd.xlane.f32.xlu0 %v4920
      %v4922 = vpop.xlane.xlu0 %4921
      %v4923 = vsel %vm1716, %v4885, 0.0
      %4924 = vadd.xlane.f32.xlu0 %v4923
      %v4925 = vpop.xlane.xlu0 %4924
      %v4926 = vsel %vm1716, %v4887, 0.0
      %4927 = vadd.xlane.f32.xlu0 %v4926
      %v4928 = vpop.xlane.xlu0 %4927
      %v4929 = vsel %vm1716, %v4889, 0.0
      %4930 = vadd.xlane.f32.xlu0 %v4929
      %v4931 = vpop.xlane.xlu0 %4930
      %v4932 = vsel %vm1716, %v4891, 0.0
      %4933 = vadd.xlane.f32.xlu0 %v4932
      %v4934 = vpop.xlane.xlu0 %4933
      %v4935 = vsel %vm1716, %v4893, 0.0
      %4936 = vadd.xlane.f32.xlu0 %v4935
      %v4937 = vpop.xlane.xlu0 %4936
      %v4938 = vsel %vm1716, %v4895, 0.0
      %4939 = vadd.xlane.f32.xlu0 %v4938
      %v4940 = vpop.xlane.xlu0 %4939
      %v4941 = vsel %vm1716, %v4897, 0.0
      %4942 = vadd.xlane.f32.xlu0 %v4941
      %v4943 = vpop.xlane.xlu0 %4942
      %v4944 = vsel %vm1716, %v4899, 0.0
      %4945 = vadd.xlane.f32.xlu0 %v4944
      %v4946 = vpop.xlane.xlu0 %4945
      %v4947 = vsel %vm1716, %v4901, 0.0
      %4948 = vadd.xlane.f32.xlu0 %v4947
      %v4949 = vpop.xlane.xlu0 %4948
      %v4950 = vrcp.pop %v4904
      %v4951 = vmul.f32 %v4904, %v4950
      %v4952 = vsub.f32 1.0, %v4951
      %v4953 = vmul.f32 %v4950, %v4952
      %v4954 = vadd.f32 %v4950, %v4953
      %vm4955 = vweird.f32 %v4904
      %vm4956 = vweird.f32 %v4950
      %vm4957 = vmor %vm4955, %vm4956
      %v4958 = vsel %vm4957, %v4950, %v4954
      %v4959 = vand.u32 2147483647, %v4904
      %vm4960 = vcmp.eq.f32.partialorder %v4959, 8.507059e+37
      %v4961 = vand.u32 %v4904, 2147483648
      %v4962 = vor.u32 1.1754944e-38, %v4961
      %v4963 = vsel %vm4960, %v4962, %v4958
      %v4964 = vmul.f32 %v4871, %v4963
      %v4965 = vrcp.pop %v4907
      %v4966 = vmul.f32 %v4907, %v4965
      %v4967 = vsub.f32 1.0, %v4966
      %v4968 = vmul.f32 %v4965, %v4967
      %v4969 = vadd.f32 %v4965, %v4968
      %vm4970 = vweird.f32 %v4907
      %vm4971 = vweird.f32 %v4965
      %vm4972 = vmor %vm4970, %vm4971
      %v4973 = vsel %vm4972, %v4965, %v4969
      %v4974 = vand.u32 2147483647, %v4907
      %vm4975 = vcmp.eq.f32.partialorder %v4974, 8.507059e+37
      %v4976 = vand.u32 %v4907, 2147483648
      %v4977 = vor.u32 1.1754944e-38, %v4976
      %v4978 = vsel %vm4975, %v4977, %v4973
      %v4979 = vmul.f32 %v4873, %v4978
      %v4980 = vrcp.pop %v4910
      %v4981 = vmul.f32 %v4910, %v4980
      %v4982 = vsub.f32 1.0, %v4981
      %v4983 = vmul.f32 %v4980, %v4982
      %v4984 = vadd.f32 %v4980, %v4983
      %vm4985 = vweird.f32 %v4910
      %vm4986 = vweird.f32 %v4980
      %vm4987 = vmor %vm4985, %vm4986
      %v4988 = vsel %vm4987, %v4980, %v4984
      %v4989 = vand.u32 2147483647, %v4910
      %vm4990 = vcmp.eq.f32.partialorder %v4989, 8.507059e+37
      %v4991 = vand.u32 %v4910, 2147483648
      %v4992 = vor.u32 1.1754944e-38, %v4991
      %v4993 = vsel %vm4990, %v4992, %v4988
      %v4994 = vmul.f32 %v4875, %v4993
      %v4995 = vrcp.pop %v4913
      %v4996 = vmul.f32 %v4913, %v4995
      %v4997 = vsub.f32 1.0, %v4996
      %v4998 = vmul.f32 %v4995, %v4997
      %v4999 = vadd.f32 %v4995, %v4998
      %vm5000 = vweird.f32 %v4913
      %vm5001 = vweird.f32 %v4995
      %vm5002 = vmor %vm5000, %vm5001
      %v5003 = vsel %vm5002, %v4995, %v4999
      %v5004 = vand.u32 2147483647, %v4913
      %vm5005 = vcmp.eq.f32.partialorder %v5004, 8.507059e+37
      %v5006 = vand.u32 %v4913, 2147483648
      %v5007 = vor.u32 1.1754944e-38, %v5006
      %v5008 = vsel %vm5005, %v5007, %v5003
      %v5009 = vmul.f32 %v4877, %v5008
      %v5010 = vrcp.pop %v4916
      %v5011 = vmul.f32 %v4916, %v5010
      %v5012 = vsub.f32 1.0, %v5011
      %v5013 = vmul.f32 %v5010, %v5012
      %v5014 = vadd.f32 %v5010, %v5013
      %vm5015 = vweird.f32 %v4916
      %vm5016 = vweird.f32 %v5010
      %vm5017 = vmor %vm5015, %vm5016
      %v5018 = vsel %vm5017, %v5010, %v5014
      %v5019 = vand.u32 2147483647, %v4916
      %vm5020 = vcmp.eq.f32.partialorder %v5019, 8.507059e+37
      %v5021 = vand.u32 %v4916, 2147483648
      %v5022 = vor.u32 1.1754944e-38, %v5021
      %v5023 = vsel %vm5020, %v5022, %v5018
      %v5024 = vmul.f32 %v4879, %v5023
      %v5025 = vrcp.pop %v4919
      %v5026 = vmul.f32 %v4919, %v5025
      %v5027 = vsub.f32 1.0, %v5026
      %v5028 = vmul.f32 %v5025, %v5027
      %v5029 = vadd.f32 %v5025, %v5028
      %vm5030 = vweird.f32 %v4919
      %vm5031 = vweird.f32 %v5025
      %vm5032 = vmor %vm5030, %vm5031
      %v5033 = vsel %vm5032, %v5025, %v5029
      %v5034 = vand.u32 2147483647, %v4919
      %vm5035 = vcmp.eq.f32.partialorder %v5034, 8.507059e+37
      %v5036 = vand.u32 %v4919, 2147483648
      %v5037 = vor.u32 1.1754944e-38, %v5036
      %v5038 = vsel %vm5035, %v5037, %v5033
      %v5039 = vmul.f32 %v4881, %v5038
      %v5040 = vrcp.pop %v4922
      %v5041 = vmul.f32 %v4922, %v5040
      %v5042 = vsub.f32 1.0, %v5041
      %v5043 = vmul.f32 %v5040, %v5042
      %v5044 = vadd.f32 %v5040, %v5043
      %vm5045 = vweird.f32 %v4922
      %vm5046 = vweird.f32 %v5040
      %vm5047 = vmor %vm5045, %vm5046
      %v5048 = vsel %vm5047, %v5040, %v5044
      %v5049 = vand.u32 2147483647, %v4922
      %vm5050 = vcmp.eq.f32.partialorder %v5049, 8.507059e+37
      %v5051 = vand.u32 %v4922, 2147483648
      %v5052 = vor.u32 1.1754944e-38, %v5051
      %v5053 = vsel %vm5050, %v5052, %v5048
      %v5054 = vmul.f32 %v4883, %v5053
      %v5055 = vrcp.pop %v4925
      %v5056 = vmul.f32 %v4925, %v5055
      %v5057 = vsub.f32 1.0, %v5056
      %v5058 = vmul.f32 %v5055, %v5057
      %v5059 = vadd.f32 %v5055, %v5058
      %vm5060 = vweird.f32 %v4925
      %vm5061 = vweird.f32 %v5055
      %vm5062 = vmor %vm5060, %vm5061
      %v5063 = vsel %vm5062, %v5055, %v5059
      %v5064 = vand.u32 2147483647, %v4925
      %vm5065 = vcmp.eq.f32.partialorder %v5064, 8.507059e+37
      %v5066 = vand.u32 %v4925, 2147483648
      %v5067 = vor.u32 1.1754944e-38, %v5066
      %v5068 = vsel %vm5065, %v5067, %v5063
      %v5069 = vmul.f32 %v4885, %v5068
      %v5070 = vrcp.pop %v4928
      %v5071 = vmul.f32 %v4928, %v5070
      %v5072 = vsub.f32 1.0, %v5071
      %v5073 = vmul.f32 %v5070, %v5072
      %v5074 = vadd.f32 %v5070, %v5073
      %vm5075 = vweird.f32 %v4928
      %vm5076 = vweird.f32 %v5070
      %vm5077 = vmor %vm5075, %vm5076
      %v5078 = vsel %vm5077, %v5070, %v5074
      %v5079 = vand.u32 2147483647, %v4928
      %vm5080 = vcmp.eq.f32.partialorder %v5079, 8.507059e+37
      %v5081 = vand.u32 %v4928, 2147483648
      %v5082 = vor.u32 1.1754944e-38, %v5081
      %v5083 = vsel %vm5080, %v5082, %v5078
      %v5084 = vmul.f32 %v4887, %v5083
      %v5085 = vrcp.pop %v4931
      %v5086 = vmul.f32 %v4931, %v5085
      %v5087 = vsub.f32 1.0, %v5086
      %v5088 = vmul.f32 %v5085, %v5087
      %v5089 = vadd.f32 %v5085, %v5088
      %vm5090 = vweird.f32 %v4931
      %vm5091 = vweird.f32 %v5085
      %vm5092 = vmor %vm5090, %vm5091
      %v5093 = vsel %vm5092, %v5085, %v5089
      %v5094 = vand.u32 2147483647, %v4931
      %vm5095 = vcmp.eq.f32.partialorder %v5094, 8.507059e+37
      %v5096 = vand.u32 %v4931, 2147483648
      %v5097 = vor.u32 1.1754944e-38, %v5096
      %v5098 = vsel %vm5095, %v5097, %v5093
      %v5099 = vmul.f32 %v4889, %v5098
      %v5100 = vrcp.pop %v4934
      %v5101 = vmul.f32 %v4934, %v5100
      %v5102 = vsub.f32 1.0, %v5101
      %v5103 = vmul.f32 %v5100, %v5102
      %v5104 = vadd.f32 %v5100, %v5103
      %vm5105 = vweird.f32 %v4934
      %vm5106 = vweird.f32 %v5100
      %vm5107 = vmor %vm5105, %vm5106
      %v5108 = vsel %vm5107, %v5100, %v5104
      %v5109 = vand.u32 2147483647, %v4934
      %vm5110 = vcmp.eq.f32.partialorder %v5109, 8.507059e+37
      %v5111 = vand.u32 %v4934, 2147483648
      %v5112 = vor.u32 1.1754944e-38, %v5111
      %v5113 = vsel %vm5110, %v5112, %v5108
      %v5114 = vmul.f32 %v4891, %v5113
      %v5115 = vrcp.pop %v4937
      %v5116 = vmul.f32 %v4937, %v5115
      %v5117 = vsub.f32 1.0, %v5116
      %v5118 = vmul.f32 %v5115, %v5117
      %v5119 = vadd.f32 %v5115, %v5118
      %vm5120 = vweird.f32 %v4937
      %vm5121 = vweird.f32 %v5115
      %vm5122 = vmor %vm5120, %vm5121
      %v5123 = vsel %vm5122, %v5115, %v5119
      %v5124 = vand.u32 2147483647, %v4937
      %vm5125 = vcmp.eq.f32.partialorder %v5124, 8.507059e+37
      %v5126 = vand.u32 %v4937, 2147483648
      %v5127 = vor.u32 1.1754944e-38, %v5126
      %v5128 = vsel %vm5125, %v5127, %v5123
      %v5129 = vmul.f32 %v4893, %v5128
      %v5130 = vrcp.pop %v4940
      %v5131 = vmul.f32 %v4940, %v5130
      %v5132 = vsub.f32 1.0, %v5131
      %v5133 = vmul.f32 %v5130, %v5132
      %v5134 = vadd.f32 %v5130, %v5133
      %vm5135 = vweird.f32 %v4940
      %vm5136 = vweird.f32 %v5130
      %vm5137 = vmor %vm5135, %vm5136
      %v5138 = vsel %vm5137, %v5130, %v5134
      %v5139 = vand.u32 2147483647, %v4940
      %vm5140 = vcmp.eq.f32.partialorder %v5139, 8.507059e+37
      %v5141 = vand.u32 %v4940, 2147483648
      %v5142 = vor.u32 1.1754944e-38, %v5141
      %v5143 = vsel %vm5140, %v5142, %v5138
      %v5144 = vmul.f32 %v4895, %v5143
      %v5145 = vrcp.pop %v4943
      %v5146 = vmul.f32 %v4943, %v5145
      %v5147 = vsub.f32 1.0, %v5146
      %v5148 = vmul.f32 %v5145, %v5147
      %v5149 = vadd.f32 %v5145, %v5148
      %vm5150 = vweird.f32 %v4943
      %vm5151 = vweird.f32 %v5145
      %vm5152 = vmor %vm5150, %vm5151
      %v5153 = vsel %vm5152, %v5145, %v5149
      %v5154 = vand.u32 2147483647, %v4943
      %vm5155 = vcmp.eq.f32.partialorder %v5154, 8.507059e+37
      %v5156 = vand.u32 %v4943, 2147483648
      %v5157 = vor.u32 1.1754944e-38, %v5156
      %v5158 = vsel %vm5155, %v5157, %v5153
      %v5159 = vmul.f32 %v4897, %v5158
      %v5160 = vrcp.pop %v4946
      %v5161 = vmul.f32 %v4946, %v5160
      %v5162 = vsub.f32 1.0, %v5161
      %v5163 = vmul.f32 %v5160, %v5162
      %v5164 = vadd.f32 %v5160, %v5163
      %vm5165 = vweird.f32 %v4946
      %vm5166 = vweird.f32 %v5160
      %vm5167 = vmor %vm5165, %vm5166
      %v5168 = vsel %vm5167, %v5160, %v5164
      %v5169 = vand.u32 2147483647, %v4946
      %vm5170 = vcmp.eq.f32.partialorder %v5169, 8.507059e+37
      %v5171 = vand.u32 %v4946, 2147483648
      %v5172 = vor.u32 1.1754944e-38, %v5171
      %v5173 = vsel %vm5170, %v5172, %v5168
      %v5174 = vmul.f32 %v4899, %v5173
      %v5175 = vrcp.pop %v4949
      %v5176 = vmul.f32 %v4949, %v5175
      %v5177 = vsub.f32 1.0, %v5176
      %v5178 = vmul.f32 %v5175, %v5177
      %v5179 = vadd.f32 %v5175, %v5178
      %vm5180 = vweird.f32 %v4949
      %vm5181 = vweird.f32 %v5175
      %vm5182 = vmor %vm5180, %vm5181
      %v5183 = vsel %vm5182, %v5175, %v5179
      %v5184 = vand.u32 2147483647, %v4949
      %vm5185 = vcmp.eq.f32.partialorder %v5184, 8.507059e+37
      %v5186 = vand.u32 %v4949, 2147483648
      %v5187 = vor.u32 1.1754944e-38, %v5186
      %v5188 = vsel %vm5185, %v5187, %v5183
      %v5189 = vmul.f32 %v4901, %v5188
      %v5190 = vmul.f32 %v1305, %v1379
      %v5191 = vmul.f32 %v1307, %v1379
      %v5192 = vmul.f32 %v1310, %v1379
      %v5193 = vmul.f32 %v1312, %v1379
      %v5194 = vmul.f32 %v1315, %v1379
      %v5195 = vmul.f32 %v1317, %v1379
      %v5196 = vmul.f32 %v1320, %v1379
      %v5197 = vmul.f32 %v1322, %v1379
      %v5198 = vmul.f32 %v1325, %v1379
      %v5199 = vmul.f32 %v1327, %v1379
      %v5200 = vmul.f32 %v1330, %v1379
      %v5201 = vmul.f32 %v1332, %v1379
      %v5202 = vmul.f32 %v1335, %v1379
      %v5203 = vmul.f32 %v1337, %v1379
      %v5204 = vmul.f32 %v1340, %v1379
      %v5205 = vmul.f32 %v1342, %v1379
      %v5206 = vpack.c.bf16 %v5190, %v5190
      %v5207 = vpack.c.bf16 %v5191, %v5191
      %v5208 = vpack.c.bf16 %v5192, %v5192
      %v5209 = vpack.c.bf16 %v5193, %v5193
      %v5210 = vpack.c.bf16 %v5194, %v5194
      %v5211 = vpack.c.bf16 %v5195, %v5195
      %v5212 = vpack.c.bf16 %v5196, %v5196
      %v5213 = vpack.c.bf16 %v5197, %v5197
      %v5214 = vpack.c.bf16 %v5198, %v5198
      %v5215 = vpack.c.bf16 %v5199, %v5199
      %v5216 = vpack.c.bf16 %v5200, %v5200
      %v5217 = vpack.c.bf16 %v5201, %v5201
      %v5218 = vpack.c.bf16 %v5202, %v5202
      %v5219 = vpack.c.bf16 %v5203, %v5203
      %v5220 = vpack.c.bf16 %v5204, %v5204
      %v5221 = vpack.c.bf16 %v5205, %v5205
      %v5222 = vpack.c.bf16 %v4964, %v4964
      %v5223 = vpack.c.bf16 %v4979, %v4979
      %v5224 = vpack.c.bf16 %v4994, %v4994
      %v5225 = vpack.c.bf16 %v5009, %v5009
      %v5226 = vpack.c.bf16 %v5024, %v5024
      %v5227 = vpack.c.bf16 %v5039, %v5039
      %v5228 = vpack.c.bf16 %v5054, %v5054
      %v5229 = vpack.c.bf16 %v5069, %v5069
      %v5230 = vpack.c.bf16 %v5084, %v5084
      %v5231 = vpack.c.bf16 %v5099, %v5099
      %v5232 = vpack.c.bf16 %v5114, %v5114
      %v5233 = vpack.c.bf16 %v5129, %v5129
      %v5234 = vpack.c.bf16 %v5144, %v5144
      %v5235 = vpack.c.bf16 %v5159, %v5159
      %v5236 = vpack.c.bf16 %v5174, %v5174
      %v5237 = vpack.c.bf16 %v5189, %v5189
      %v5239 = vsel %vm1716, %v5222, 0
      %v5242 = vsel %vm2872, %v5206, 0
      %5244 = vmatpush.bf16.msra.mxu0 0
      %5245 = vmatpush.bf16.msra.mxu0 0
      %5246 = vmatpush.bf16.msra.mxu0 0
      %5247 = vmatpush.bf16.msra.mxu0 0
      %5248 = vmatpush.bf16.msra.mxu0 0
      %5249 = vmatpush.bf16.msra.mxu0 0
      %5250 = vmatpush.bf16.msra.mxu0 0
      %5251 = vmatpush.bf16.msra.mxu0 %v5242
      %5252 = vmatmul.bf16.gmra.mxu0 %v5239
      %v5253 = vpop.f32.mrf.mxu0
      %v5254 = vadd.f32 0.0, %v5253
      %v5255 = vpop.f32.mrf.mxu0
      %5256 = vdwg.mxu0
      %v5258 = vsel %vm1716, %v5223, 0
      %v5261 = vsel %vm2872, %v5207, 0
      %5263 = vmatpush.bf16.msra.mxu0 0
      %5264 = vmatpush.bf16.msra.mxu0 0
      %5265 = vmatpush.bf16.msra.mxu0 0
      %5266 = vmatpush.bf16.msra.mxu0 0
      %5267 = vmatpush.bf16.msra.mxu0 0
      %5268 = vmatpush.bf16.msra.mxu0 0
      %5269 = vmatpush.bf16.msra.mxu0 0
      %5270 = vmatpush.bf16.msra.mxu0 %v5261
      %5271 = vmatmul.bf16.gmra.mxu0 %v5258
      %v5272 = vpop.f32.mrf.mxu0
      %v5273 = vadd.f32 0.0, %v5272
      %v5274 = vpop.f32.mrf.mxu0
      %5275 = vdwg.mxu0
      %v5277 = vsel %vm1716, %v5224, 0
      %v5280 = vsel %vm2872, %v5208, 0
      %5282 = vmatpush.bf16.msra.mxu0 0
      %5283 = vmatpush.bf16.msra.mxu0 0
      %5284 = vmatpush.bf16.msra.mxu0 0
      %5285 = vmatpush.bf16.msra.mxu0 0
      %5286 = vmatpush.bf16.msra.mxu0 0
      %5287 = vmatpush.bf16.msra.mxu0 0
      %5288 = vmatpush.bf16.msra.mxu0 0
      %5289 = vmatpush.bf16.msra.mxu0 %v5280
      %5290 = vmatmul.bf16.gmra.mxu0 %v5277
      %v5291 = vpop.f32.mrf.mxu0
      %v5292 = vadd.f32 0.0, %v5291
      %v5293 = vpop.f32.mrf.mxu0
      %5294 = vdwg.mxu0
      %v5296 = vsel %vm1716, %v5225, 0
      %v5299 = vsel %vm2872, %v5209, 0
      %5301 = vmatpush.bf16.msra.mxu0 0
      %5302 = vmatpush.bf16.msra.mxu0 0
      %5303 = vmatpush.bf16.msra.mxu0 0
      %5304 = vmatpush.bf16.msra.mxu0 0
      %5305 = vmatpush.bf16.msra.mxu0 0
      %5306 = vmatpush.bf16.msra.mxu0 0
      %5307 = vmatpush.bf16.msra.mxu0 0
      %5308 = vmatpush.bf16.msra.mxu0 %v5299
      %5309 = vmatmul.bf16.gmra.mxu0 %v5296
      %v5310 = vpop.f32.mrf.mxu0
      %v5311 = vadd.f32 0.0, %v5310
      %v5312 = vpop.f32.mrf.mxu0
      %5313 = vdwg.mxu0
      %v5315 = vsel %vm1716, %v5226, 0
      %v5318 = vsel %vm2872, %v5210, 0
      %5320 = vmatpush.bf16.msra.mxu0 0
      %5321 = vmatpush.bf16.msra.mxu0 0
      %5322 = vmatpush.bf16.msra.mxu0 0
      %5323 = vmatpush.bf16.msra.mxu0 0
      %5324 = vmatpush.bf16.msra.mxu0 0
      %5325 = vmatpush.bf16.msra.mxu0 0
      %5326 = vmatpush.bf16.msra.mxu0 0
      %5327 = vmatpush.bf16.msra.mxu0 %v5318
      %5328 = vmatmul.bf16.gmra.mxu0 %v5315
      %v5329 = vpop.f32.mrf.mxu0
      %v5330 = vadd.f32 0.0, %v5329
      %v5331 = vpop.f32.mrf.mxu0
      %5332 = vdwg.mxu0
      %v5334 = vsel %vm1716, %v5227, 0
      %v5337 = vsel %vm2872, %v5211, 0
      %5339 = vmatpush.bf16.msra.mxu0 0
      %5340 = vmatpush.bf16.msra.mxu0 0
      %5341 = vmatpush.bf16.msra.mxu0 0
      %5342 = vmatpush.bf16.msra.mxu0 0
      %5343 = vmatpush.bf16.msra.mxu0 0
      %5344 = vmatpush.bf16.msra.mxu0 0
      %5345 = vmatpush.bf16.msra.mxu0 0
      %5346 = vmatpush.bf16.msra.mxu0 %v5337
      %5347 = vmatmul.bf16.gmra.mxu0 %v5334
      %v5348 = vpop.f32.mrf.mxu0
      %v5349 = vadd.f32 0.0, %v5348
      %v5350 = vpop.f32.mrf.mxu0
      %5351 = vdwg.mxu0
      %v5353 = vsel %vm1716, %v5228, 0
      %v5356 = vsel %vm2872, %v5212, 0
      %5358 = vmatpush.bf16.msra.mxu0 0
      %5359 = vmatpush.bf16.msra.mxu0 0
      %5360 = vmatpush.bf16.msra.mxu0 0
      %5361 = vmatpush.bf16.msra.mxu0 0
      %5362 = vmatpush.bf16.msra.mxu0 0
      %5363 = vmatpush.bf16.msra.mxu0 0
      %5364 = vmatpush.bf16.msra.mxu0 0
      %5365 = vmatpush.bf16.msra.mxu0 %v5356
      %5366 = vmatmul.bf16.gmra.mxu0 %v5353
      %v5367 = vpop.f32.mrf.mxu0
      %v5368 = vadd.f32 0.0, %v5367
      %v5369 = vpop.f32.mrf.mxu0
      %5370 = vdwg.mxu0
      %v5372 = vsel %vm1716, %v5229, 0
      %v5375 = vsel %vm2872, %v5213, 0
      %5377 = vmatpush.bf16.msra.mxu0 0
      %5378 = vmatpush.bf16.msra.mxu0 0
      %5379 = vmatpush.bf16.msra.mxu0 0
      %5380 = vmatpush.bf16.msra.mxu0 0
      %5381 = vmatpush.bf16.msra.mxu0 0
      %5382 = vmatpush.bf16.msra.mxu0 0
      %5383 = vmatpush.bf16.msra.mxu0 0
      %5384 = vmatpush.bf16.msra.mxu0 %v5375
      %5385 = vmatmul.bf16.gmra.mxu0 %v5372
      %v5386 = vpop.f32.mrf.mxu0
      %v5387 = vadd.f32 0.0, %v5386
      %v5388 = vpop.f32.mrf.mxu0
      %5389 = vdwg.mxu0
      %v5391 = vsel %vm1716, %v5230, 0
      %v5394 = vsel %vm2872, %v5214, 0
      %5396 = vmatpush.bf16.msra.mxu0 0
      %5397 = vmatpush.bf16.msra.mxu0 0
      %5398 = vmatpush.bf16.msra.mxu0 0
      %5399 = vmatpush.bf16.msra.mxu0 0
      %5400 = vmatpush.bf16.msra.mxu0 0
      %5401 = vmatpush.bf16.msra.mxu0 0
      %5402 = vmatpush.bf16.msra.mxu0 0
      %5403 = vmatpush.bf16.msra.mxu0 %v5394
      %5404 = vmatmul.bf16.gmra.mxu0 %v5391
      %v5405 = vpop.f32.mrf.mxu0
      %v5406 = vadd.f32 0.0, %v5405
      %v5407 = vpop.f32.mrf.mxu0
      %5408 = vdwg.mxu0
      %v5410 = vsel %vm1716, %v5231, 0
      %v5413 = vsel %vm2872, %v5215, 0
      %5415 = vmatpush.bf16.msra.mxu0 0
      %5416 = vmatpush.bf16.msra.mxu0 0
      %5417 = vmatpush.bf16.msra.mxu0 0
      %5418 = vmatpush.bf16.msra.mxu0 0
      %5419 = vmatpush.bf16.msra.mxu0 0
      %5420 = vmatpush.bf16.msra.mxu0 0
      %5421 = vmatpush.bf16.msra.mxu0 0
      %5422 = vmatpush.bf16.msra.mxu0 %v5413
      %5423 = vmatmul.bf16.gmra.mxu0 %v5410
      %v5424 = vpop.f32.mrf.mxu0
      %v5425 = vadd.f32 0.0, %v5424
      %v5426 = vpop.f32.mrf.mxu0
      %5427 = vdwg.mxu0
      %v5429 = vsel %vm1716, %v5232, 0
      %v5432 = vsel %vm2872, %v5216, 0
      %5434 = vmatpush.bf16.msra.mxu0 0
      %5435 = vmatpush.bf16.msra.mxu0 0
      %5436 = vmatpush.bf16.msra.mxu0 0
      %5437 = vmatpush.bf16.msra.mxu0 0
      %5438 = vmatpush.bf16.msra.mxu0 0
      %5439 = vmatpush.bf16.msra.mxu0 0
      %5440 = vmatpush.bf16.msra.mxu0 0
      %5441 = vmatpush.bf16.msra.mxu0 %v5432
      %5442 = vmatmul.bf16.gmra.mxu0 %v5429
      %v5443 = vpop.f32.mrf.mxu0
      %v5444 = vadd.f32 0.0, %v5443
      %v5445 = vpop.f32.mrf.mxu0
      %5446 = vdwg.mxu0
      %v5448 = vsel %vm1716, %v5233, 0
      %v5451 = vsel %vm2872, %v5217, 0
      %5453 = vmatpush.bf16.msra.mxu0 0
      %5454 = vmatpush.bf16.msra.mxu0 0
      %5455 = vmatpush.bf16.msra.mxu0 0
      %5456 = vmatpush.bf16.msra.mxu0 0
      %5457 = vmatpush.bf16.msra.mxu0 0
      %5458 = vmatpush.bf16.msra.mxu0 0
      %5459 = vmatpush.bf16.msra.mxu0 0
      %5460 = vmatpush.bf16.msra.mxu0 %v5451
      %5461 = vmatmul.bf16.gmra.mxu0 %v5448
      %v5462 = vpop.f32.mrf.mxu0
      %v5463 = vadd.f32 0.0, %v5462
      %v5464 = vpop.f32.mrf.mxu0
      %5465 = vdwg.mxu0
      %v5467 = vsel %vm1716, %v5234, 0
      %v5470 = vsel %vm2872, %v5218, 0
      %5472 = vmatpush.bf16.msra.mxu0 0
      %5473 = vmatpush.bf16.msra.mxu0 0
      %5474 = vmatpush.bf16.msra.mxu0 0
      %5475 = vmatpush.bf16.msra.mxu0 0
      %5476 = vmatpush.bf16.msra.mxu0 0
      %5477 = vmatpush.bf16.msra.mxu0 0
      %5478 = vmatpush.bf16.msra.mxu0 0
      %5479 = vmatpush.bf16.msra.mxu0 %v5470
      %5480 = vmatmul.bf16.gmra.mxu0 %v5467
      %v5481 = vpop.f32.mrf.mxu0
      %v5482 = vadd.f32 0.0, %v5481
      %v5483 = vpop.f32.mrf.mxu0
      %5484 = vdwg.mxu0
      %v5486 = vsel %vm1716, %v5235, 0
      %v5489 = vsel %vm2872, %v5219, 0
      %5491 = vmatpush.bf16.msra.mxu0 0
      %5492 = vmatpush.bf16.msra.mxu0 0
      %5493 = vmatpush.bf16.msra.mxu0 0
      %5494 = vmatpush.bf16.msra.mxu0 0
      %5495 = vmatpush.bf16.msra.mxu0 0
      %5496 = vmatpush.bf16.msra.mxu0 0
      %5497 = vmatpush.bf16.msra.mxu0 0
      %5498 = vmatpush.bf16.msra.mxu0 %v5489
      %5499 = vmatmul.bf16.gmra.mxu0 %v5486
      %v5500 = vpop.f32.mrf.mxu0
      %v5501 = vadd.f32 0.0, %v5500
      %v5502 = vpop.f32.mrf.mxu0
      %5503 = vdwg.mxu0
      %v5505 = vsel %vm1716, %v5236, 0
      %v5508 = vsel %vm2872, %v5220, 0
      %5510 = vmatpush.bf16.msra.mxu0 0
      %5511 = vmatpush.bf16.msra.mxu0 0
      %5512 = vmatpush.bf16.msra.mxu0 0
      %5513 = vmatpush.bf16.msra.mxu0 0
      %5514 = vmatpush.bf16.msra.mxu0 0
      %5515 = vmatpush.bf16.msra.mxu0 0
      %5516 = vmatpush.bf16.msra.mxu0 0
      %5517 = vmatpush.bf16.msra.mxu0 %v5508
      %5518 = vmatmul.bf16.gmra.mxu0 %v5505
      %v5519 = vpop.f32.mrf.mxu0
      %v5520 = vadd.f32 0.0, %v5519
      %v5521 = vpop.f32.mrf.mxu0
      %5522 = vdwg.mxu0
      %v5524 = vsel %vm1716, %v5237, 0
      %v5527 = vsel %vm2872, %v5221, 0
      %5529 = vmatpush.bf16.msra.mxu0 0
      %5530 = vmatpush.bf16.msra.mxu0 0
      %5531 = vmatpush.bf16.msra.mxu0 0
      %5532 = vmatpush.bf16.msra.mxu0 0
      %5533 = vmatpush.bf16.msra.mxu0 0
      %5534 = vmatpush.bf16.msra.mxu0 0
      %5535 = vmatpush.bf16.msra.mxu0 0
      %5536 = vmatpush.bf16.msra.mxu0 %v5527
      %5537 = vmatmul.bf16.gmra.mxu0 %v5524
      %v5538 = vpop.f32.mrf.mxu0
      %v5539 = vadd.f32 0.0, %v5538
      %v5540 = vpop.f32.mrf.mxu0
      %5541 = vdwg.mxu0
      %v5542 = vadd.f32 %v4502, %v5254
      %v5543 = vadd.f32 %v4503, %v5273
      %v5544 = vadd.f32 %v4504, %v5292
      %v5545 = vadd.f32 %v4505, %v5311
      %v5546 = vadd.f32 %v4506, %v5330
      %v5547 = vadd.f32 %v4507, %v5349
      %v5548 = vadd.f32 %v4508, %v5368
      %v5549 = vadd.f32 %v4509, %v5387
      %v5550 = vadd.f32 %v4510, %v5406
      %v5551 = vadd.f32 %v4511, %v5425
      %v5552 = vadd.f32 %v4512, %v5444
      %v5553 = vadd.f32 %v4513, %v5463
      %v5554 = vadd.f32 %v4514, %v5482
      %v5555 = vadd.f32 %v4515, %v5501
      %v5556 = vadd.f32 %v4516, %v5520
      %v5557 = vadd.f32 %v4517, %v5539
      %v5558 = vpack.c.bf16 %v5543, %v5542
      %v5559 = vpack.c.bf16 %v5545, %v5544
      %v5560 = vpack.c.bf16 %v5547, %v5546
      %v5561 = vpack.c.bf16 %v5549, %v5548
      %v5562 = vpack.c.bf16 %v5551, %v5550
      %v5563 = vpack.c.bf16 %v5553, %v5552
      %v5564 = vpack.c.bf16 %v5555, %v5554
      %v5565 = vpack.c.bf16 %v5557, %v5556
      %v5566 = vld [vmem:[%s619] sm:$0xf]
      %v5567 = vld [vmem:[%s619 + $0x4] sm:$0xf]
      %v5568 = vld [vmem:[%s619 + $0x8] sm:$0xf]
      %v5569 = vld [vmem:[%s619 + $0xc] sm:$0xf]
      %v5574 = vunpack.c.l.b16 %v5566
      %v5575 = vunpack.c.l.b16 %v5567
      %v5576 = vunpack.c.l.b16 %v5568
      %v5577 = vunpack.c.l.b16 %v5569
      %v5578 = vpack.c.b16 %v5575, %v5574
      %v5579 = vpack.c.b16 %v5577, %v5576
      %v5583 = vsel %vm722, %v5558, 0
      %v5586 = vsel %vm722, %v5559, 0
      %v5589 = vsel %vm722, %v5560, 0
      %v5592 = vsel %vm722, %v5561, 0
      %v5595 = vsel %vm722, %v5562, 0
      %v5598 = vsel %vm722, %v5563, 0
      %v5601 = vsel %vm722, %v5564, 0
      %v5604 = vsel %vm722, %v5565, 0
      %5606 = vmatpush.bf16.msra.mxu0 0
      %5607 = vmatpush.bf16.msra.mxu0 0
      %5608 = vmatpush.bf16.msra.mxu0 0
      %5609 = vmatpush.bf16.msra.mxu0 0
      %5610 = vmatpush.bf16.msra.mxu0 0
      %5611 = vmatpush.bf16.msra.mxu0 0
      %5612 = vmatpush.bf16.msra.mxu0 %v5579
      %5613 = vmatpush.bf16.msra.mxu0 %v5578
      %5614 = vmatmul.bf16.gmra.mxu0 %v5583
      %v5615 = vpop.f32.mrf.mxu0
      %v5616 = vadd.f32 0.0, %v5615
      %v5617 = vpop.f32.mrf.mxu0
      %v5618 = vadd.f32 0.0, %v5617
      %5619 = vmatmul.bf16.gmra.mxu0 %v5586
      %v5620 = vpop.f32.mrf.mxu0
      %v5621 = vadd.f32 0.0, %v5620
      %v5622 = vpop.f32.mrf.mxu0
      %v5623 = vadd.f32 0.0, %v5622
      %5624 = vmatmul.bf16.gmra.mxu0 %v5589
      %v5625 = vpop.f32.mrf.mxu0
      %v5626 = vadd.f32 0.0, %v5625
      %v5627 = vpop.f32.mrf.mxu0
      %v5628 = vadd.f32 0.0, %v5627
      %5629 = vmatmul.bf16.gmra.mxu0 %v5592
      %v5630 = vpop.f32.mrf.mxu0
      %v5631 = vadd.f32 0.0, %v5630
      %v5632 = vpop.f32.mrf.mxu0
      %v5633 = vadd.f32 0.0, %v5632
      %5634 = vmatmul.bf16.gmra.mxu0 %v5595
      %v5635 = vpop.f32.mrf.mxu0
      %v5636 = vadd.f32 0.0, %v5635
      %v5637 = vpop.f32.mrf.mxu0
      %v5638 = vadd.f32 0.0, %v5637
      %5639 = vmatmul.bf16.gmra.mxu0 %v5598
      %v5640 = vpop.f32.mrf.mxu0
      %v5641 = vadd.f32 0.0, %v5640
      %v5642 = vpop.f32.mrf.mxu0
      %v5643 = vadd.f32 0.0, %v5642
      %5644 = vmatmul.bf16.gmra.mxu0 %v5601
      %v5645 = vpop.f32.mrf.mxu0
      %v5646 = vadd.f32 0.0, %v5645
      %v5647 = vpop.f32.mrf.mxu0
      %v5648 = vadd.f32 0.0, %v5647
      %5649 = vmatmul.bf16.gmra.mxu0 %v5604
      %v5650 = vpop.f32.mrf.mxu0
      %v5651 = vadd.f32 0.0, %v5650
      %v5652 = vpop.f32.mrf.mxu0
      %v5653 = vadd.f32 0.0, %v5652
      %5654 = vdwg.mxu0
      %v5655 = vadd.f32 %v689, %v5616
      %v5656 = vadd.f32 %v690, %v5618
      %v5657 = vadd.f32 %v691, %v5621
      %v5658 = vadd.f32 %v692, %v5623
      %v5659 = vadd.f32 %v693, %v5626
      %v5660 = vadd.f32 %v694, %v5628
      %v5661 = vadd.f32 %v695, %v5631
      %v5662 = vadd.f32 %v696, %v5633
      %v5663 = vadd.f32 %v697, %v5636
      %v5664 = vadd.f32 %v698, %v5638
      %v5665 = vadd.f32 %v699, %v5641
      %v5666 = vadd.f32 %v700, %v5643
      %v5667 = vadd.f32 %v701, %v5646
      %v5668 = vadd.f32 %v702, %v5648
      %v5669 = vadd.f32 %v703, %v5651
      %v5670 = vadd.f32 %v704, %v5653
      %v5671 = vld [vmem:[%s622] sm:$0x1]
      %v5673 = vperm.slane %v5671, 0
      %v5675 = vadd.f32 %v5655, %v5673
      %v5676 = vadd.f32 %v5656, %v5673
      %v5677 = vadd.f32 %v5657, %v5673
      %v5678 = vadd.f32 %v5658, %v5673
      %v5679 = vadd.f32 %v5659, %v5673
      %v5680 = vadd.f32 %v5660, %v5673
      %v5681 = vadd.f32 %v5661, %v5673
      %v5682 = vadd.f32 %v5662, %v5673
      %v5683 = vadd.f32 %v5663, %v5673
      %v5684 = vadd.f32 %v5664, %v5673
      %v5685 = vadd.f32 %v5665, %v5673
      %v5686 = vadd.f32 %v5666, %v5673
      %v5687 = vadd.f32 %v5667, %v5673
      %v5688 = vadd.f32 %v5668, %v5673
      %v5689 = vadd.f32 %v5669, %v5673
      %v5690 = vadd.f32 %v5670, %v5673
      %v5691 = vld [vmem:[%s625] sm:$0x1]
      %v5692 = vld [vmem:[%s628] sm:$0x1]
      %v5693 = vsel %vm722, %v5675, 0.0
      %5694 = vadd.xlane.f32.xlu0 %v5693
      %v5695 = vpop.xlane.xlu0 %5694
      %v5696 = vsel %vm722, %v5676, 0.0
      %5697 = vadd.xlane.f32.xlu0 %v5696
      %v5698 = vpop.xlane.xlu0 %5697
      %v5699 = vsel %vm722, %v5677, 0.0
      %5700 = vadd.xlane.f32.xlu0 %v5699
      %v5701 = vpop.xlane.xlu0 %5700
      %v5702 = vsel %vm722, %v5678, 0.0
      %5703 = vadd.xlane.f32.xlu0 %v5702
      %v5704 = vpop.xlane.xlu0 %5703
      %v5705 = vsel %vm722, %v5679, 0.0
      %5706 = vadd.xlane.f32.xlu0 %v5705
      %v5707 = vpop.xlane.xlu0 %5706
      %v5708 = vsel %vm722, %v5680, 0.0
      %5709 = vadd.xlane.f32.xlu0 %v5708
      %v5710 = vpop.xlane.xlu0 %5709
      %v5711 = vsel %vm722, %v5681, 0.0
      %5712 = vadd.xlane.f32.xlu0 %v5711
      %v5713 = vpop.xlane.xlu0 %5712
      %v5714 = vsel %vm722, %v5682, 0.0
      %5715 = vadd.xlane.f32.xlu0 %v5714
      %v5716 = vpop.xlane.xlu0 %5715
      %v5717 = vsel %vm722, %v5683, 0.0
      %5718 = vadd.xlane.f32.xlu0 %v5717
      %v5719 = vpop.xlane.xlu0 %5718
      %v5720 = vsel %vm722, %v5684, 0.0
      %5721 = vadd.xlane.f32.xlu0 %v5720
      %v5722 = vpop.xlane.xlu0 %5721
      %v5723 = vsel %vm722, %v5685, 0.0
      %5724 = vadd.xlane.f32.xlu0 %v5723
      %v5725 = vpop.xlane.xlu0 %5724
      %v5726 = vsel %vm722, %v5686, 0.0
      %5727 = vadd.xlane.f32.xlu0 %v5726
      %v5728 = vpop.xlane.xlu0 %5727
      %v5729 = vsel %vm722, %v5687, 0.0
      %5730 = vadd.xlane.f32.xlu0 %v5729
      %v5731 = vpop.xlane.xlu0 %5730
      %v5732 = vsel %vm722, %v5688, 0.0
      %5733 = vadd.xlane.f32.xlu0 %v5732
      %v5734 = vpop.xlane.xlu0 %5733
      %v5735 = vsel %vm722, %v5689, 0.0
      %5736 = vadd.xlane.f32.xlu0 %v5735
      %v5737 = vpop.xlane.xlu0 %5736
      %v5738 = vsel %vm722, %v5690, 0.0
      %5739 = vadd.xlane.f32.xlu0 %v5738
      %v5740 = vpop.xlane.xlu0 %5739
      %v5741 = vmul.f32 %v5695, %v777
      %v5742 = vmul.f32 %v5698, %v777
      %v5743 = vmul.f32 %v5701, %v777
      %v5744 = vmul.f32 %v5704, %v777
      %v5745 = vmul.f32 %v5707, %v777
      %v5746 = vmul.f32 %v5710, %v777
      %v5747 = vmul.f32 %v5713, %v777
      %v5748 = vmul.f32 %v5716, %v777
      %v5749 = vmul.f32 %v5719, %v777
      %v5750 = vmul.f32 %v5722, %v777
      %v5751 = vmul.f32 %v5725, %v777
      %v5752 = vmul.f32 %v5728, %v777
      %v5753 = vmul.f32 %v5731, %v777
      %v5754 = vmul.f32 %v5734, %v777
      %v5755 = vmul.f32 %v5737, %v777
      %v5756 = vmul.f32 %v5740, %v777
      %v5757 = vsub.f32 %v5675, %v5741
      %v5758 = vsub.f32 %v5676, %v5742
      %v5759 = vsub.f32 %v5677, %v5743
      %v5760 = vsub.f32 %v5678, %v5744
      %v5761 = vsub.f32 %v5679, %v5745
      %v5762 = vsub.f32 %v5680, %v5746
      %v5763 = vsub.f32 %v5681, %v5747
      %v5764 = vsub.f32 %v5682, %v5748
      %v5765 = vsub.f32 %v5683, %v5749
      %v5766 = vsub.f32 %v5684, %v5750
      %v5767 = vsub.f32 %v5685, %v5751
      %v5768 = vsub.f32 %v5686, %v5752
      %v5769 = vsub.f32 %v5687, %v5753
      %v5770 = vsub.f32 %v5688, %v5754
      %v5771 = vsub.f32 %v5689, %v5755
      %v5772 = vsub.f32 %v5690, %v5756
      %v5773 = vmul.f32 %v5757, %v5757
      %v5774 = vmul.f32 %v5758, %v5758
      %v5775 = vmul.f32 %v5759, %v5759
      %v5776 = vmul.f32 %v5760, %v5760
      %v5777 = vmul.f32 %v5761, %v5761
      %v5778 = vmul.f32 %v5762, %v5762
      %v5779 = vmul.f32 %v5763, %v5763
      %v5780 = vmul.f32 %v5764, %v5764
      %v5781 = vmul.f32 %v5765, %v5765
      %v5782 = vmul.f32 %v5766, %v5766
      %v5783 = vmul.f32 %v5767, %v5767
      %v5784 = vmul.f32 %v5768, %v5768
      %v5785 = vmul.f32 %v5769, %v5769
      %v5786 = vmul.f32 %v5770, %v5770
      %v5787 = vmul.f32 %v5771, %v5771
      %v5788 = vmul.f32 %v5772, %v5772
      %v5789 = vsel %vm722, %v5773, 0.0
      %5790 = vadd.xlane.f32.xlu0 %v5789
      %v5791 = vpop.xlane.xlu0 %5790
      %v5792 = vsel %vm722, %v5774, 0.0
      %5793 = vadd.xlane.f32.xlu0 %v5792
      %v5794 = vpop.xlane.xlu0 %5793
      %v5795 = vsel %vm722, %v5775, 0.0
      %5796 = vadd.xlane.f32.xlu0 %v5795
      %v5797 = vpop.xlane.xlu0 %5796
      %v5798 = vsel %vm722, %v5776, 0.0
      %5799 = vadd.xlane.f32.xlu0 %v5798
      %v5800 = vpop.xlane.xlu0 %5799
      %v5801 = vsel %vm722, %v5777, 0.0
      %5802 = vadd.xlane.f32.xlu0 %v5801
      %v5803 = vpop.xlane.xlu0 %5802
      %v5804 = vsel %vm722, %v5778, 0.0
      %5805 = vadd.xlane.f32.xlu0 %v5804
      %v5806 = vpop.xlane.xlu0 %5805
      %v5807 = vsel %vm722, %v5779, 0.0
      %5808 = vadd.xlane.f32.xlu0 %v5807
      %v5809 = vpop.xlane.xlu0 %5808
      %v5810 = vsel %vm722, %v5780, 0.0
      %5811 = vadd.xlane.f32.xlu0 %v5810
      %v5812 = vpop.xlane.xlu0 %5811
      %v5813 = vsel %vm722, %v5781, 0.0
      %5814 = vadd.xlane.f32.xlu0 %v5813
      %v5815 = vpop.xlane.xlu0 %5814
      %v5816 = vsel %vm722, %v5782, 0.0
      %5817 = vadd.xlane.f32.xlu0 %v5816
      %v5818 = vpop.xlane.xlu0 %5817
      %v5819 = vsel %vm722, %v5783, 0.0
      %5820 = vadd.xlane.f32.xlu0 %v5819
      %v5821 = vpop.xlane.xlu0 %5820
      %v5822 = vsel %vm722, %v5784, 0.0
      %5823 = vadd.xlane.f32.xlu0 %v5822
      %v5824 = vpop.xlane.xlu0 %5823
      %v5825 = vsel %vm722, %v5785, 0.0
      %5826 = vadd.xlane.f32.xlu0 %v5825
      %v5827 = vpop.xlane.xlu0 %5826
      %v5828 = vsel %vm722, %v5786, 0.0
      %5829 = vadd.xlane.f32.xlu0 %v5828
      %v5830 = vpop.xlane.xlu0 %5829
      %v5831 = vsel %vm722, %v5787, 0.0
      %5832 = vadd.xlane.f32.xlu0 %v5831
      %v5833 = vpop.xlane.xlu0 %5832
      %v5834 = vsel %vm722, %v5788, 0.0
      %5835 = vadd.xlane.f32.xlu0 %v5834
      %v5836 = vpop.xlane.xlu0 %5835
      %v5837 = vmul.f32 %v5791, %v777
      %v5838 = vmul.f32 %v5794, %v777
      %v5839 = vmul.f32 %v5797, %v777
      %v5840 = vmul.f32 %v5800, %v777
      %v5841 = vmul.f32 %v5803, %v777
      %v5842 = vmul.f32 %v5806, %v777
      %v5843 = vmul.f32 %v5809, %v777
      %v5844 = vmul.f32 %v5812, %v777
      %v5845 = vmul.f32 %v5815, %v777
      %v5846 = vmul.f32 %v5818, %v777
      %v5847 = vmul.f32 %v5821, %v777
      %v5848 = vmul.f32 %v5824, %v777
      %v5849 = vmul.f32 %v5827, %v777
      %v5850 = vmul.f32 %v5830, %v777
      %v5851 = vmul.f32 %v5833, %v777
      %v5852 = vmul.f32 %v5836, %v777
      %v5853 = vadd.f32 %v5837, 1e-05
      %v5854 = vadd.f32 %v5838, 1e-05
      %v5855 = vadd.f32 %v5839, 1e-05
      %v5856 = vadd.f32 %v5840, 1e-05
      %v5857 = vadd.f32 %v5841, 1e-05
      %v5858 = vadd.f32 %v5842, 1e-05
      %v5859 = vadd.f32 %v5843, 1e-05
      %v5860 = vadd.f32 %v5844, 1e-05
      %v5861 = vadd.f32 %v5845, 1e-05
      %v5862 = vadd.f32 %v5846, 1e-05
      %v5863 = vadd.f32 %v5847, 1e-05
      %v5864 = vadd.f32 %v5848, 1e-05
      %v5865 = vadd.f32 %v5849, 1e-05
      %v5866 = vadd.f32 %v5850, 1e-05
      %v5867 = vadd.f32 %v5851, 1e-05
      %v5868 = vadd.f32 %v5852, 1e-05
      %v5869 = vrsqrt.pop %v5853
      %v5870 = vmul.f32 %v5869, %v5853
      %v5871 = vmul.f32 %v5870, %v5869
      %v5872 = vmul.f32 0.5, %v5871
      %v5873 = vsub.f32 1.5, %v5872
      %v5874 = vmul.f32 %v5869, %v5873
      %vm5875 = vweird.f32 %v5853
      %vm5876 = vweird.f32 %v5869
      %vm5877 = vmor %vm5875, %vm5876
      %v5878 = vsel %vm5877, %v5869, %v5874
      %v5879 = vrsqrt.pop %v5854
      %v5880 = vmul.f32 %v5879, %v5854
      %v5881 = vmul.f32 %v5880, %v5879
      %v5882 = vmul.f32 0.5, %v5881
      %v5883 = vsub.f32 1.5, %v5882
      %v5884 = vmul.f32 %v5879, %v5883
      %vm5885 = vweird.f32 %v5854
      %vm5886 = vweird.f32 %v5879
      %vm5887 = vmor %vm5885, %vm5886
      %v5888 = vsel %vm5887, %v5879, %v5884
      %v5889 = vrsqrt.pop %v5855
      %v5890 = vmul.f32 %v5889, %v5855
      %v5891 = vmul.f32 %v5890, %v5889
      %v5892 = vmul.f32 0.5, %v5891
      %v5893 = vsub.f32 1.5, %v5892
      %v5894 = vmul.f32 %v5889, %v5893
      %vm5895 = vweird.f32 %v5855
      %vm5896 = vweird.f32 %v5889
      %vm5897 = vmor %vm5895, %vm5896
      %v5898 = vsel %vm5897, %v5889, %v5894
      %v5899 = vrsqrt.pop %v5856
      %v5900 = vmul.f32 %v5899, %v5856
      %v5901 = vmul.f32 %v5900, %v5899
      %v5902 = vmul.f32 0.5, %v5901
      %v5903 = vsub.f32 1.5, %v5902
      %v5904 = vmul.f32 %v5899, %v5903
      %vm5905 = vweird.f32 %v5856
      %vm5906 = vweird.f32 %v5899
      %vm5907 = vmor %vm5905, %vm5906
      %v5908 = vsel %vm5907, %v5899, %v5904
      %v5909 = vrsqrt.pop %v5857
      %v5910 = vmul.f32 %v5909, %v5857
      %v5911 = vmul.f32 %v5910, %v5909
      %v5912 = vmul.f32 0.5, %v5911
      %v5913 = vsub.f32 1.5, %v5912
      %v5914 = vmul.f32 %v5909, %v5913
      %vm5915 = vweird.f32 %v5857
      %vm5916 = vweird.f32 %v5909
      %vm5917 = vmor %vm5915, %vm5916
      %v5918 = vsel %vm5917, %v5909, %v5914
      %v5919 = vrsqrt.pop %v5858
      %v5920 = vmul.f32 %v5919, %v5858
      %v5921 = vmul.f32 %v5920, %v5919
      %v5922 = vmul.f32 0.5, %v5921
      %v5923 = vsub.f32 1.5, %v5922
      %v5924 = vmul.f32 %v5919, %v5923
      %vm5925 = vweird.f32 %v5858
      %vm5926 = vweird.f32 %v5919
      %vm5927 = vmor %vm5925, %vm5926
      %v5928 = vsel %vm5927, %v5919, %v5924
      %v5929 = vrsqrt.pop %v5859
      %v5930 = vmul.f32 %v5929, %v5859
      %v5931 = vmul.f32 %v5930, %v5929
      %v5932 = vmul.f32 0.5, %v5931
      %v5933 = vsub.f32 1.5, %v5932
      %v5934 = vmul.f32 %v5929, %v5933
      %vm5935 = vweird.f32 %v5859
      %vm5936 = vweird.f32 %v5929
      %vm5937 = vmor %vm5935, %vm5936
      %v5938 = vsel %vm5937, %v5929, %v5934
      %v5939 = vrsqrt.pop %v5860
      %v5940 = vmul.f32 %v5939, %v5860
      %v5941 = vmul.f32 %v5940, %v5939
      %v5942 = vmul.f32 0.5, %v5941
      %v5943 = vsub.f32 1.5, %v5942
      %v5944 = vmul.f32 %v5939, %v5943
      %vm5945 = vweird.f32 %v5860
      %vm5946 = vweird.f32 %v5939
      %vm5947 = vmor %vm5945, %vm5946
      %v5948 = vsel %vm5947, %v5939, %v5944
      %v5949 = vrsqrt.pop %v5861
      %v5950 = vmul.f32 %v5949, %v5861
      %v5951 = vmul.f32 %v5950, %v5949
      %v5952 = vmul.f32 0.5, %v5951
      %v5953 = vsub.f32 1.5, %v5952
      %v5954 = vmul.f32 %v5949, %v5953
      %vm5955 = vweird.f32 %v5861
      %vm5956 = vweird.f32 %v5949
      %vm5957 = vmor %vm5955, %vm5956
      %v5958 = vsel %vm5957, %v5949, %v5954
      %v5959 = vrsqrt.pop %v5862
      %v5960 = vmul.f32 %v5959, %v5862
      %v5961 = vmul.f32 %v5960, %v5959
      %v5962 = vmul.f32 0.5, %v5961
      %v5963 = vsub.f32 1.5, %v5962
      %v5964 = vmul.f32 %v5959, %v5963
      %vm5965 = vweird.f32 %v5862
      %vm5966 = vweird.f32 %v5959
      %vm5967 = vmor %vm5965, %vm5966
      %v5968 = vsel %vm5967, %v5959, %v5964
      %v5969 = vrsqrt.pop %v5863
      %v5970 = vmul.f32 %v5969, %v5863
      %v5971 = vmul.f32 %v5970, %v5969
      %v5972 = vmul.f32 0.5, %v5971
      %v5973 = vsub.f32 1.5, %v5972
      %v5974 = vmul.f32 %v5969, %v5973
      %vm5975 = vweird.f32 %v5863
      %vm5976 = vweird.f32 %v5969
      %vm5977 = vmor %vm5975, %vm5976
      %v5978 = vsel %vm5977, %v5969, %v5974
      %v5979 = vrsqrt.pop %v5864
      %v5980 = vmul.f32 %v5979, %v5864
      %v5981 = vmul.f32 %v5980, %v5979
      %v5982 = vmul.f32 0.5, %v5981
      %v5983 = vsub.f32 1.5, %v5982
      %v5984 = vmul.f32 %v5979, %v5983
      %vm5985 = vweird.f32 %v5864
      %vm5986 = vweird.f32 %v5979
      %vm5987 = vmor %vm5985, %vm5986
      %v5988 = vsel %vm5987, %v5979, %v5984
      %v5989 = vrsqrt.pop %v5865
      %v5990 = vmul.f32 %v5989, %v5865
      %v5991 = vmul.f32 %v5990, %v5989
      %v5992 = vmul.f32 0.5, %v5991
      %v5993 = vsub.f32 1.5, %v5992
      %v5994 = vmul.f32 %v5989, %v5993
      %vm5995 = vweird.f32 %v5865
      %vm5996 = vweird.f32 %v5989
      %vm5997 = vmor %vm5995, %vm5996
      %v5998 = vsel %vm5997, %v5989, %v5994
      %v5999 = vrsqrt.pop %v5866
      %v6000 = vmul.f32 %v5999, %v5866
      %v6001 = vmul.f32 %v6000, %v5999
      %v6002 = vmul.f32 0.5, %v6001
      %v6003 = vsub.f32 1.5, %v6002
      %v6004 = vmul.f32 %v5999, %v6003
      %vm6005 = vweird.f32 %v5866
      %vm6006 = vweird.f32 %v5999
      %vm6007 = vmor %vm6005, %vm6006
      %v6008 = vsel %vm6007, %v5999, %v6004
      %v6009 = vrsqrt.pop %v5867
      %v6010 = vmul.f32 %v6009, %v5867
      %v6011 = vmul.f32 %v6010, %v6009
      %v6012 = vmul.f32 0.5, %v6011
      %v6013 = vsub.f32 1.5, %v6012
      %v6014 = vmul.f32 %v6009, %v6013
      %vm6015 = vweird.f32 %v5867
      %vm6016 = vweird.f32 %v6009
      %vm6017 = vmor %vm6015, %vm6016
      %v6018 = vsel %vm6017, %v6009, %v6014
      %v6019 = vrsqrt.pop %v5868
      %v6020 = vmul.f32 %v6019, %v5868
      %v6021 = vmul.f32 %v6020, %v6019
      %v6022 = vmul.f32 0.5, %v6021
      %v6023 = vsub.f32 1.5, %v6022
      %v6024 = vmul.f32 %v6019, %v6023
      %vm6025 = vweird.f32 %v5868
      %vm6026 = vweird.f32 %v6019
      %vm6027 = vmor %vm6025, %vm6026
      %v6028 = vsel %vm6027, %v6019, %v6024
      %v6029 = vmul.f32 %v5757, %v5878
      %v6030 = vmul.f32 %v5758, %v5888
      %v6031 = vmul.f32 %v5759, %v5898
      %v6032 = vmul.f32 %v5760, %v5908
      %v6033 = vmul.f32 %v5761, %v5918
      %v6034 = vmul.f32 %v5762, %v5928
      %v6035 = vmul.f32 %v5763, %v5938
      %v6036 = vmul.f32 %v5764, %v5948
      %v6037 = vmul.f32 %v5765, %v5958
      %v6038 = vmul.f32 %v5766, %v5968
      %v6039 = vmul.f32 %v5767, %v5978
      %v6040 = vmul.f32 %v5768, %v5988
      %v6041 = vmul.f32 %v5769, %v5998
      %v6042 = vmul.f32 %v5770, %v6008
      %v6043 = vmul.f32 %v5771, %v6018
      %v6044 = vmul.f32 %v5772, %v6028
      %v6046 = vperm.slane %v5691, 0
      %v6048 = vmul.f32 %v6029, %v6046
      %v6049 = vmul.f32 %v6030, %v6046
      %v6050 = vmul.f32 %v6031, %v6046
      %v6051 = vmul.f32 %v6032, %v6046
      %v6052 = vmul.f32 %v6033, %v6046
      %v6053 = vmul.f32 %v6034, %v6046
      %v6054 = vmul.f32 %v6035, %v6046
      %v6055 = vmul.f32 %v6036, %v6046
      %v6056 = vmul.f32 %v6037, %v6046
      %v6057 = vmul.f32 %v6038, %v6046
      %v6058 = vmul.f32 %v6039, %v6046
      %v6059 = vmul.f32 %v6040, %v6046
      %v6060 = vmul.f32 %v6041, %v6046
      %v6061 = vmul.f32 %v6042, %v6046
      %v6062 = vmul.f32 %v6043, %v6046
      %v6063 = vmul.f32 %v6044, %v6046
      %v6065 = vperm.slane %v5692, 0
      %v6067 = vadd.f32 %v6048, %v6065
      %v6068 = vadd.f32 %v6049, %v6065
      %v6069 = vadd.f32 %v6050, %v6065
      %v6070 = vadd.f32 %v6051, %v6065
      %v6071 = vadd.f32 %v6052, %v6065
      %v6072 = vadd.f32 %v6053, %v6065
      %v6073 = vadd.f32 %v6054, %v6065
      %v6074 = vadd.f32 %v6055, %v6065
      %v6075 = vadd.f32 %v6056, %v6065
      %v6076 = vadd.f32 %v6057, %v6065
      %v6077 = vadd.f32 %v6058, %v6065
      %v6078 = vadd.f32 %v6059, %v6065
      %v6079 = vadd.f32 %v6060, %v6065
      %v6080 = vadd.f32 %v6061, %v6065
      %v6081 = vadd.f32 %v6062, %v6065
      %v6082 = vadd.f32 %v6063, %v6065
      %v6083 = vpack.c.bf16 %v6068, %v6067
      %v6084 = vpack.c.bf16 %v6070, %v6069
      %v6085 = vpack.c.bf16 %v6072, %v6071
      %v6086 = vpack.c.bf16 %v6074, %v6073
      %v6087 = vpack.c.bf16 %v6076, %v6075
      %v6088 = vpack.c.bf16 %v6078, %v6077
      %v6089 = vpack.c.bf16 %v6080, %v6079
      %v6090 = vpack.c.bf16 %v6082, %v6081
      %v6091 = vld [vmem:[%s633] sm:$0xf]
      %v6092 = vld [vmem:[%s633 + $0x4] sm:$0xf]
      %v6093 = vld [vmem:[%s633 + $0x8] sm:$0xf]
      %v6094 = vld [vmem:[%s633 + $0xc] sm:$0xf]
      %v6095 = vld [vmem:[%s636] sm:$0x1]
      %v6097 = vperm.slane %v6095, 0
      %v6103 = vunpack.c.l.b16 %v6091
      %v6104 = vunpack.c.l.b16 %v6092
      %v6105 = vunpack.c.l.b16 %v6093
      %v6106 = vunpack.c.l.b16 %v6094
      %v6107 = vpack.c.b16 %v6104, %v6103
      %v6108 = vpack.c.b16 %v6106, %v6105
      %v6112 = vsel %vm722, %v6083, 0
      %v6115 = vsel %vm722, %v6084, 0
      %v6118 = vsel %vm722, %v6085, 0
      %v6121 = vsel %vm722, %v6086, 0
      %v6124 = vsel %vm722, %v6087, 0
      %v6127 = vsel %vm722, %v6088, 0
      %v6130 = vsel %vm722, %v6089, 0
      %v6133 = vsel %vm722, %v6090, 0
      %6135 = vmatpush.bf16.msra.mxu0 0
      %6136 = vmatpush.bf16.msra.mxu0 0
      %6137 = vmatpush.bf16.msra.mxu0 0
      %6138 = vmatpush.bf16.msra.mxu0 0
      %6139 = vmatpush.bf16.msra.mxu0 0
      %6140 = vmatpush.bf16.msra.mxu0 0
      %6141 = vmatpush.bf16.msra.mxu0 %v6108
      %6142 = vmatpush.bf16.msra.mxu0 %v6107
      %6143 = vmatmul.bf16.gmra.mxu0 %v6112
      %v6144 = vpop.f32.mrf.mxu0
      %v6145 = vadd.f32 %v6097, %v6144
      %v6146 = vpop.f32.mrf.mxu0
      %v6147 = vadd.f32 %v6097, %v6146
      %6148 = vmatmul.bf16.gmra.mxu0 %v6115
      %v6149 = vpop.f32.mrf.mxu0
      %v6150 = vadd.f32 %v6097, %v6149
      %v6151 = vpop.f32.mrf.mxu0
      %v6152 = vadd.f32 %v6097, %v6151
      %6153 = vmatmul.bf16.gmra.mxu0 %v6118
      %v6154 = vpop.f32.mrf.mxu0
      %v6155 = vadd.f32 %v6097, %v6154
      %v6156 = vpop.f32.mrf.mxu0
      %v6157 = vadd.f32 %v6097, %v6156
      %6158 = vmatmul.bf16.gmra.mxu0 %v6121
      %v6159 = vpop.f32.mrf.mxu0
      %v6160 = vadd.f32 %v6097, %v6159
      %v6161 = vpop.f32.mrf.mxu0
      %v6162 = vadd.f32 %v6097, %v6161
      %6163 = vmatmul.bf16.gmra.mxu0 %v6124
      %v6164 = vpop.f32.mrf.mxu0
      %v6165 = vadd.f32 %v6097, %v6164
      %v6166 = vpop.f32.mrf.mxu0
      %v6167 = vadd.f32 %v6097, %v6166
      %6168 = vmatmul.bf16.gmra.mxu0 %v6127
      %v6169 = vpop.f32.mrf.mxu0
      %v6170 = vadd.f32 %v6097, %v6169
      %v6171 = vpop.f32.mrf.mxu0
      %v6172 = vadd.f32 %v6097, %v6171
      %6173 = vmatmul.bf16.gmra.mxu0 %v6130
      %v6174 = vpop.f32.mrf.mxu0
      %v6175 = vadd.f32 %v6097, %v6174
      %v6176 = vpop.f32.mrf.mxu0
      %v6177 = vadd.f32 %v6097, %v6176
      %6178 = vmatmul.bf16.gmra.mxu0 %v6133
      %v6179 = vpop.f32.mrf.mxu0
      %v6180 = vadd.f32 %v6097, %v6179
      %v6181 = vpop.f32.mrf.mxu0
      %v6182 = vadd.f32 %v6097, %v6181
      %6183 = vdwg.mxu0
      %v6184 = vmul.f32 %v6145, 0.5
      %v6185 = vmul.f32 %v6147, 0.5
      %v6186 = vmul.f32 %v6150, 0.5
      %v6187 = vmul.f32 %v6152, 0.5
      %v6188 = vmul.f32 %v6155, 0.5
      %v6189 = vmul.f32 %v6157, 0.5
      %v6190 = vmul.f32 %v6160, 0.5
      %v6191 = vmul.f32 %v6162, 0.5
      %v6192 = vmul.f32 %v6165, 0.5
      %v6193 = vmul.f32 %v6167, 0.5
      %v6194 = vmul.f32 %v6170, 0.5
      %v6195 = vmul.f32 %v6172, 0.5
      %v6196 = vmul.f32 %v6175, 0.5
      %v6197 = vmul.f32 %v6177, 0.5
      %v6198 = vmul.f32 %v6180, 0.5
      %v6199 = vmul.f32 %v6182, 0.5
      %v6200 = vmul.f32 %v6145, 0.70710677
      %v6201 = vmul.f32 %v6147, 0.70710677
      %v6202 = vmul.f32 %v6150, 0.70710677
      %v6203 = vmul.f32 %v6152, 0.70710677
      %v6204 = vmul.f32 %v6155, 0.70710677
      %v6205 = vmul.f32 %v6157, 0.70710677
      %v6206 = vmul.f32 %v6160, 0.70710677
      %v6207 = vmul.f32 %v6162, 0.70710677
      %v6208 = vmul.f32 %v6165, 0.70710677
      %v6209 = vmul.f32 %v6167, 0.70710677
      %v6210 = vmul.f32 %v6170, 0.70710677
      %v6211 = vmul.f32 %v6172, 0.70710677
      %v6212 = vmul.f32 %v6175, 0.70710677
      %v6213 = vmul.f32 %v6177, 0.70710677
      %v6214 = vmul.f32 %v6180, 0.70710677
      %v6215 = vmul.f32 %v6182, 0.70710677
      %vm6216 = vcmp.ge.f32.partialorder %v6200, 0.0
      %vm6217 = vcmp.ge.f32.partialorder %v6201, 0.0
      %vm6218 = vcmp.ge.f32.partialorder %v6202, 0.0
      %vm6219 = vcmp.ge.f32.partialorder %v6203, 0.0
      %vm6220 = vcmp.ge.f32.partialorder %v6204, 0.0
      %vm6221 = vcmp.ge.f32.partialorder %v6205, 0.0
      %vm6222 = vcmp.ge.f32.partialorder %v6206, 0.0
      %vm6223 = vcmp.ge.f32.partialorder %v6207, 0.0
      %vm6224 = vcmp.ge.f32.partialorder %v6208, 0.0
      %vm6225 = vcmp.ge.f32.partialorder %v6209, 0.0
      %vm6226 = vcmp.ge.f32.partialorder %v6210, 0.0
      %vm6227 = vcmp.ge.f32.partialorder %v6211, 0.0
      %vm6228 = vcmp.ge.f32.partialorder %v6212, 0.0
      %vm6229 = vcmp.ge.f32.partialorder %v6213, 0.0
      %vm6230 = vcmp.ge.f32.partialorder %v6214, 0.0
      %vm6231 = vcmp.ge.f32.partialorder %v6215, 0.0
      %v6232 = vsel %vm6216, 1.0, -1.0
      %v6233 = vsel %vm6217, 1.0, -1.0
      %v6234 = vsel %vm6218, 1.0, -1.0
      %v6235 = vsel %vm6219, 1.0, -1.0
      %v6236 = vsel %vm6220, 1.0, -1.0
      %v6237 = vsel %vm6221, 1.0, -1.0
      %v6238 = vsel %vm6222, 1.0, -1.0
      %v6239 = vsel %vm6223, 1.0, -1.0
      %v6240 = vsel %vm6224, 1.0, -1.0
      %v6241 = vsel %vm6225, 1.0, -1.0
      %v6242 = vsel %vm6226, 1.0, -1.0
      %v6243 = vsel %vm6227, 1.0, -1.0
      %v6244 = vsel %vm6228, 1.0, -1.0
      %v6245 = vsel %vm6229, 1.0, -1.0
      %v6246 = vsel %vm6230, 1.0, -1.0
      %v6247 = vsel %vm6231, 1.0, -1.0
      %v6248 = vand.u32 2147483647, %v6200
      %v6249 = vand.u32 2147483647, %v6201
      %v6250 = vand.u32 2147483647, %v6202
      %v6251 = vand.u32 2147483647, %v6203
      %v6252 = vand.u32 2147483647, %v6204
      %v6253 = vand.u32 2147483647, %v6205
      %v6254 = vand.u32 2147483647, %v6206
      %v6255 = vand.u32 2147483647, %v6207
      %v6256 = vand.u32 2147483647, %v6208
      %v6257 = vand.u32 2147483647, %v6209
      %v6258 = vand.u32 2147483647, %v6210
      %v6259 = vand.u32 2147483647, %v6211
      %v6260 = vand.u32 2147483647, %v6212
      %v6261 = vand.u32 2147483647, %v6213
      %v6262 = vand.u32 2147483647, %v6214
      %v6263 = vand.u32 2147483647, %v6215
      %v6264 = vmul.f32 %v6248, 0.3275911
      %v6265 = vmul.f32 %v6249, 0.3275911
      %v6266 = vmul.f32 %v6250, 0.3275911
      %v6267 = vmul.f32 %v6251, 0.3275911
      %v6268 = vmul.f32 %v6252, 0.3275911
      %v6269 = vmul.f32 %v6253, 0.3275911
      %v6270 = vmul.f32 %v6254, 0.3275911
      %v6271 = vmul.f32 %v6255, 0.3275911
      %v6272 = vmul.f32 %v6256, 0.3275911
      %v6273 = vmul.f32 %v6257, 0.3275911
      %v6274 = vmul.f32 %v6258, 0.3275911
      %v6275 = vmul.f32 %v6259, 0.3275911
      %v6276 = vmul.f32 %v6260, 0.3275911
      %v6277 = vmul.f32 %v6261, 0.3275911
      %v6278 = vmul.f32 %v6262, 0.3275911
      %v6279 = vmul.f32 %v6263, 0.3275911
      %v6280 = vadd.f32 %v6264, 1.0
      %v6281 = vadd.f32 %v6265, 1.0
      %v6282 = vadd.f32 %v6266, 1.0
      %v6283 = vadd.f32 %v6267, 1.0
      %v6284 = vadd.f32 %v6268, 1.0
      %v6285 = vadd.f32 %v6269, 1.0
      %v6286 = vadd.f32 %v6270, 1.0
      %v6287 = vadd.f32 %v6271, 1.0
      %v6288 = vadd.f32 %v6272, 1.0
      %v6289 = vadd.f32 %v6273, 1.0
      %v6290 = vadd.f32 %v6274, 1.0
      %v6291 = vadd.f32 %v6275, 1.0
      %v6292 = vadd.f32 %v6276, 1.0
      %v6293 = vadd.f32 %v6277, 1.0
      %v6294 = vadd.f32 %v6278, 1.0
      %v6295 = vadd.f32 %v6279, 1.0
      %v6296 = vrcp.pop %v6280
      %v6297 = vmul.f32 %v6280, %v6296
      %v6298 = vsub.f32 1.0, %v6297
      %v6299 = vmul.f32 %v6296, %v6298
      %v6300 = vadd.f32 %v6296, %v6299
      %vm6301 = vweird.f32 %v6280
      %vm6302 = vweird.f32 %v6296
      %vm6303 = vmor %vm6301, %vm6302
      %v6304 = vsel %vm6303, %v6296, %v6300
      %v6305 = vand.u32 2147483647, %v6280
      %vm6306 = vcmp.eq.f32.partialorder %v6305, 8.507059e+37
      %v6307 = vand.u32 %v6280, 2147483648
      %v6308 = vor.u32 1.1754944e-38, %v6307
      %v6309 = vsel %vm6306, %v6308, %v6304
      %v6310 = vmul.f32 1.0, %v6309
      %v6311 = vrcp.pop %v6281
      %v6312 = vmul.f32 %v6281, %v6311
      %v6313 = vsub.f32 1.0, %v6312
      %v6314 = vmul.f32 %v6311, %v6313
      %v6315 = vadd.f32 %v6311, %v6314
      %vm6316 = vweird.f32 %v6281
      %vm6317 = vweird.f32 %v6311
      %vm6318 = vmor %vm6316, %vm6317
      %v6319 = vsel %vm6318, %v6311, %v6315
      %v6320 = vand.u32 2147483647, %v6281
      %vm6321 = vcmp.eq.f32.partialorder %v6320, 8.507059e+37
      %v6322 = vand.u32 %v6281, 2147483648
      %v6323 = vor.u32 1.1754944e-38, %v6322
      %v6324 = vsel %vm6321, %v6323, %v6319
      %v6325 = vmul.f32 1.0, %v6324
      %v6326 = vrcp.pop %v6282
      %v6327 = vmul.f32 %v6282, %v6326
      %v6328 = vsub.f32 1.0, %v6327
      %v6329 = vmul.f32 %v6326, %v6328
      %v6330 = vadd.f32 %v6326, %v6329
      %vm6331 = vweird.f32 %v6282
      %vm6332 = vweird.f32 %v6326
      %vm6333 = vmor %vm6331, %vm6332
      %v6334 = vsel %vm6333, %v6326, %v6330
      %v6335 = vand.u32 2147483647, %v6282
      %vm6336 = vcmp.eq.f32.partialorder %v6335, 8.507059e+37
      %v6337 = vand.u32 %v6282, 2147483648
      %v6338 = vor.u32 1.1754944e-38, %v6337
      %v6339 = vsel %vm6336, %v6338, %v6334
      %v6340 = vmul.f32 1.0, %v6339
      %v6341 = vrcp.pop %v6283
      %v6342 = vmul.f32 %v6283, %v6341
      %v6343 = vsub.f32 1.0, %v6342
      %v6344 = vmul.f32 %v6341, %v6343
      %v6345 = vadd.f32 %v6341, %v6344
      %vm6346 = vweird.f32 %v6283
      %vm6347 = vweird.f32 %v6341
      %vm6348 = vmor %vm6346, %vm6347
      %v6349 = vsel %vm6348, %v6341, %v6345
      %v6350 = vand.u32 2147483647, %v6283
      %vm6351 = vcmp.eq.f32.partialorder %v6350, 8.507059e+37
      %v6352 = vand.u32 %v6283, 2147483648
      %v6353 = vor.u32 1.1754944e-38, %v6352
      %v6354 = vsel %vm6351, %v6353, %v6349
      %v6355 = vmul.f32 1.0, %v6354
      %v6356 = vrcp.pop %v6284
      %v6357 = vmul.f32 %v6284, %v6356
      %v6358 = vsub.f32 1.0, %v6357
      %v6359 = vmul.f32 %v6356, %v6358
      %v6360 = vadd.f32 %v6356, %v6359
      %vm6361 = vweird.f32 %v6284
      %vm6362 = vweird.f32 %v6356
      %vm6363 = vmor %vm6361, %vm6362
      %v6364 = vsel %vm6363, %v6356, %v6360
      %v6365 = vand.u32 2147483647, %v6284
      %vm6366 = vcmp.eq.f32.partialorder %v6365, 8.507059e+37
      %v6367 = vand.u32 %v6284, 2147483648
      %v6368 = vor.u32 1.1754944e-38, %v6367
      %v6369 = vsel %vm6366, %v6368, %v6364
      %v6370 = vmul.f32 1.0, %v6369
      %v6371 = vrcp.pop %v6285
      %v6372 = vmul.f32 %v6285, %v6371
      %v6373 = vsub.f32 1.0, %v6372
      %v6374 = vmul.f32 %v6371, %v6373
      %v6375 = vadd.f32 %v6371, %v6374
      %vm6376 = vweird.f32 %v6285
      %vm6377 = vweird.f32 %v6371
      %vm6378 = vmor %vm6376, %vm6377
      %v6379 = vsel %vm6378, %v6371, %v6375
      %v6380 = vand.u32 2147483647, %v6285
      %vm6381 = vcmp.eq.f32.partialorder %v6380, 8.507059e+37
      %v6382 = vand.u32 %v6285, 2147483648
      %v6383 = vor.u32 1.1754944e-38, %v6382
      %v6384 = vsel %vm6381, %v6383, %v6379
      %v6385 = vmul.f32 1.0, %v6384
      %v6386 = vrcp.pop %v6286
      %v6387 = vmul.f32 %v6286, %v6386
      %v6388 = vsub.f32 1.0, %v6387
      %v6389 = vmul.f32 %v6386, %v6388
      %v6390 = vadd.f32 %v6386, %v6389
      %vm6391 = vweird.f32 %v6286
      %vm6392 = vweird.f32 %v6386
      %vm6393 = vmor %vm6391, %vm6392
      %v6394 = vsel %vm6393, %v6386, %v6390
      %v6395 = vand.u32 2147483647, %v6286
      %vm6396 = vcmp.eq.f32.partialorder %v6395, 8.507059e+37
      %v6397 = vand.u32 %v6286, 2147483648
      %v6398 = vor.u32 1.1754944e-38, %v6397
      %v6399 = vsel %vm6396, %v6398, %v6394
      %v6400 = vmul.f32 1.0, %v6399
      %v6401 = vrcp.pop %v6287
      %v6402 = vmul.f32 %v6287, %v6401
      %v6403 = vsub.f32 1.0, %v6402
      %v6404 = vmul.f32 %v6401, %v6403
      %v6405 = vadd.f32 %v6401, %v6404
      %vm6406 = vweird.f32 %v6287
      %vm6407 = vweird.f32 %v6401
      %vm6408 = vmor %vm6406, %vm6407
      %v6409 = vsel %vm6408, %v6401, %v6405
      %v6410 = vand.u32 2147483647, %v6287
      %vm6411 = vcmp.eq.f32.partialorder %v6410, 8.507059e+37
      %v6412 = vand.u32 %v6287, 2147483648
      %v6413 = vor.u32 1.1754944e-38, %v6412
      %v6414 = vsel %vm6411, %v6413, %v6409
      %v6415 = vmul.f32 1.0, %v6414
      %v6416 = vrcp.pop %v6288
      %v6417 = vmul.f32 %v6288, %v6416
      %v6418 = vsub.f32 1.0, %v6417
      %v6419 = vmul.f32 %v6416, %v6418
      %v6420 = vadd.f32 %v6416, %v6419
      %vm6421 = vweird.f32 %v6288
      %vm6422 = vweird.f32 %v6416
      %vm6423 = vmor %vm6421, %vm6422
      %v6424 = vsel %vm6423, %v6416, %v6420
      %v6425 = vand.u32 2147483647, %v6288
      %vm6426 = vcmp.eq.f32.partialorder %v6425, 8.507059e+37
      %v6427 = vand.u32 %v6288, 2147483648
      %v6428 = vor.u32 1.1754944e-38, %v6427
      %v6429 = vsel %vm6426, %v6428, %v6424
      %v6430 = vmul.f32 1.0, %v6429
      %v6431 = vrcp.pop %v6289
      %v6432 = vmul.f32 %v6289, %v6431
      %v6433 = vsub.f32 1.0, %v6432
      %v6434 = vmul.f32 %v6431, %v6433
      %v6435 = vadd.f32 %v6431, %v6434
      %vm6436 = vweird.f32 %v6289
      %vm6437 = vweird.f32 %v6431
      %vm6438 = vmor %vm6436, %vm6437
      %v6439 = vsel %vm6438, %v6431, %v6435
      %v6440 = vand.u32 2147483647, %v6289
      %vm6441 = vcmp.eq.f32.partialorder %v6440, 8.507059e+37
      %v6442 = vand.u32 %v6289, 2147483648
      %v6443 = vor.u32 1.1754944e-38, %v6442
      %v6444 = vsel %vm6441, %v6443, %v6439
      %v6445 = vmul.f32 1.0, %v6444
      %v6446 = vrcp.pop %v6290
      %v6447 = vmul.f32 %v6290, %v6446
      %v6448 = vsub.f32 1.0, %v6447
      %v6449 = vmul.f32 %v6446, %v6448
      %v6450 = vadd.f32 %v6446, %v6449
      %vm6451 = vweird.f32 %v6290
      %vm6452 = vweird.f32 %v6446
      %vm6453 = vmor %vm6451, %vm6452
      %v6454 = vsel %vm6453, %v6446, %v6450
      %v6455 = vand.u32 2147483647, %v6290
      %vm6456 = vcmp.eq.f32.partialorder %v6455, 8.507059e+37
      %v6457 = vand.u32 %v6290, 2147483648
      %v6458 = vor.u32 1.1754944e-38, %v6457
      %v6459 = vsel %vm6456, %v6458, %v6454
      %v6460 = vmul.f32 1.0, %v6459
      %v6461 = vrcp.pop %v6291
      %v6462 = vmul.f32 %v6291, %v6461
      %v6463 = vsub.f32 1.0, %v6462
      %v6464 = vmul.f32 %v6461, %v6463
      %v6465 = vadd.f32 %v6461, %v6464
      %vm6466 = vweird.f32 %v6291
      %vm6467 = vweird.f32 %v6461
      %vm6468 = vmor %vm6466, %vm6467
      %v6469 = vsel %vm6468, %v6461, %v6465
      %v6470 = vand.u32 2147483647, %v6291
      %vm6471 = vcmp.eq.f32.partialorder %v6470, 8.507059e+37
      %v6472 = vand.u32 %v6291, 2147483648
      %v6473 = vor.u32 1.1754944e-38, %v6472
      %v6474 = vsel %vm6471, %v6473, %v6469
      %v6475 = vmul.f32 1.0, %v6474
      %v6476 = vrcp.pop %v6292
      %v6477 = vmul.f32 %v6292, %v6476
      %v6478 = vsub.f32 1.0, %v6477
      %v6479 = vmul.f32 %v6476, %v6478
      %v6480 = vadd.f32 %v6476, %v6479
      %vm6481 = vweird.f32 %v6292
      %vm6482 = vweird.f32 %v6476
      %vm6483 = vmor %vm6481, %vm6482
      %v6484 = vsel %vm6483, %v6476, %v6480
      %v6485 = vand.u32 2147483647, %v6292
      %vm6486 = vcmp.eq.f32.partialorder %v6485, 8.507059e+37
      %v6487 = vand.u32 %v6292, 2147483648
      %v6488 = vor.u32 1.1754944e-38, %v6487
      %v6489 = vsel %vm6486, %v6488, %v6484
      %v6490 = vmul.f32 1.0, %v6489
      %v6491 = vrcp.pop %v6293
      %v6492 = vmul.f32 %v6293, %v6491
      %v6493 = vsub.f32 1.0, %v6492
      %v6494 = vmul.f32 %v6491, %v6493
      %v6495 = vadd.f32 %v6491, %v6494
      %vm6496 = vweird.f32 %v6293
      %vm6497 = vweird.f32 %v6491
      %vm6498 = vmor %vm6496, %vm6497
      %v6499 = vsel %vm6498, %v6491, %v6495
      %v6500 = vand.u32 2147483647, %v6293
      %vm6501 = vcmp.eq.f32.partialorder %v6500, 8.507059e+37
      %v6502 = vand.u32 %v6293, 2147483648
      %v6503 = vor.u32 1.1754944e-38, %v6502
      %v6504 = vsel %vm6501, %v6503, %v6499
      %v6505 = vmul.f32 1.0, %v6504
      %v6506 = vrcp.pop %v6294
      %v6507 = vmul.f32 %v6294, %v6506
      %v6508 = vsub.f32 1.0, %v6507
      %v6509 = vmul.f32 %v6506, %v6508
      %v6510 = vadd.f32 %v6506, %v6509
      %vm6511 = vweird.f32 %v6294
      %vm6512 = vweird.f32 %v6506
      %vm6513 = vmor %vm6511, %vm6512
      %v6514 = vsel %vm6513, %v6506, %v6510
      %v6515 = vand.u32 2147483647, %v6294
      %vm6516 = vcmp.eq.f32.partialorder %v6515, 8.507059e+37
      %v6517 = vand.u32 %v6294, 2147483648
      %v6518 = vor.u32 1.1754944e-38, %v6517
      %v6519 = vsel %vm6516, %v6518, %v6514
      %v6520 = vmul.f32 1.0, %v6519
      %v6521 = vrcp.pop %v6295
      %v6522 = vmul.f32 %v6295, %v6521
      %v6523 = vsub.f32 1.0, %v6522
      %v6524 = vmul.f32 %v6521, %v6523
      %v6525 = vadd.f32 %v6521, %v6524
      %vm6526 = vweird.f32 %v6295
      %vm6527 = vweird.f32 %v6521
      %vm6528 = vmor %vm6526, %vm6527
      %v6529 = vsel %vm6528, %v6521, %v6525
      %v6530 = vand.u32 2147483647, %v6295
      %vm6531 = vcmp.eq.f32.partialorder %v6530, 8.507059e+37
      %v6532 = vand.u32 %v6295, 2147483648
      %v6533 = vor.u32 1.1754944e-38, %v6532
      %v6534 = vsel %vm6531, %v6533, %v6529
      %v6535 = vmul.f32 1.0, %v6534
      %v6536 = vmul.f32 %v6310, 1.0614054
      %v6537 = vmul.f32 %v6325, 1.0614054
      %v6538 = vmul.f32 %v6340, 1.0614054
      %v6539 = vmul.f32 %v6355, 1.0614054
      %v6540 = vmul.f32 %v6370, 1.0614054
      %v6541 = vmul.f32 %v6385, 1.0614054
      %v6542 = vmul.f32 %v6400, 1.0614054
      %v6543 = vmul.f32 %v6415, 1.0614054
      %v6544 = vmul.f32 %v6430, 1.0614054
      %v6545 = vmul.f32 %v6445, 1.0614054
      %v6546 = vmul.f32 %v6460, 1.0614054
      %v6547 = vmul.f32 %v6475, 1.0614054
      %v6548 = vmul.f32 %v6490, 1.0614054
      %v6549 = vmul.f32 %v6505, 1.0614054
      %v6550 = vmul.f32 %v6520, 1.0614054
      %v6551 = vmul.f32 %v6535, 1.0614054
      %v6552 = vadd.f32 %v6536, -1.4531521
      %v6553 = vadd.f32 %v6537, -1.4531521
      %v6554 = vadd.f32 %v6538, -1.4531521
      %v6555 = vadd.f32 %v6539, -1.4531521
      %v6556 = vadd.f32 %v6540, -1.4531521
      %v6557 = vadd.f32 %v6541, -1.4531521
      %v6558 = vadd.f32 %v6542, -1.4531521
      %v6559 = vadd.f32 %v6543, -1.4531521
      %v6560 = vadd.f32 %v6544, -1.4531521
      %v6561 = vadd.f32 %v6545, -1.4531521
      %v6562 = vadd.f32 %v6546, -1.4531521
      %v6563 = vadd.f32 %v6547, -1.4531521
      %v6564 = vadd.f32 %v6548, -1.4531521
      %v6565 = vadd.f32 %v6549, -1.4531521
      %v6566 = vadd.f32 %v6550, -1.4531521
      %v6567 = vadd.f32 %v6551, -1.4531521
      %v6568 = vmul.f32 %v6552, %v6310
      %v6569 = vmul.f32 %v6553, %v6325
      %v6570 = vmul.f32 %v6554, %v6340
      %v6571 = vmul.f32 %v6555, %v6355
      %v6572 = vmul.f32 %v6556, %v6370
      %v6573 = vmul.f32 %v6557, %v6385
      %v6574 = vmul.f32 %v6558, %v6400
      %v6575 = vmul.f32 %v6559, %v6415
      %v6576 = vmul.f32 %v6560, %v6430
      %v6577 = vmul.f32 %v6561, %v6445
      %v6578 = vmul.f32 %v6562, %v6460
      %v6579 = vmul.f32 %v6563, %v6475
      %v6580 = vmul.f32 %v6564, %v6490
      %v6581 = vmul.f32 %v6565, %v6505
      %v6582 = vmul.f32 %v6566, %v6520
      %v6583 = vmul.f32 %v6567, %v6535
      %v6584 = vadd.f32 %v6568, 1.4214138
      %v6585 = vadd.f32 %v6569, 1.4214138
      %v6586 = vadd.f32 %v6570, 1.4214138
      %v6587 = vadd.f32 %v6571, 1.4214138
      %v6588 = vadd.f32 %v6572, 1.4214138
      %v6589 = vadd.f32 %v6573, 1.4214138
      %v6590 = vadd.f32 %v6574, 1.4214138
      %v6591 = vadd.f32 %v6575, 1.4214138
      %v6592 = vadd.f32 %v6576, 1.4214138
      %v6593 = vadd.f32 %v6577, 1.4214138
      %v6594 = vadd.f32 %v6578, 1.4214138
      %v6595 = vadd.f32 %v6579, 1.4214138
      %v6596 = vadd.f32 %v6580, 1.4214138
      %v6597 = vadd.f32 %v6581, 1.4214138
      %v6598 = vadd.f32 %v6582, 1.4214138
      %v6599 = vadd.f32 %v6583, 1.4214138
      %v6600 = vmul.f32 %v6584, %v6310
      %v6601 = vmul.f32 %v6585, %v6325
      %v6602 = vmul.f32 %v6586, %v6340
      %v6603 = vmul.f32 %v6587, %v6355
      %v6604 = vmul.f32 %v6588, %v6370
      %v6605 = vmul.f32 %v6589, %v6385
      %v6606 = vmul.f32 %v6590, %v6400
      %v6607 = vmul.f32 %v6591, %v6415
      %v6608 = vmul.f32 %v6592, %v6430
      %v6609 = vmul.f32 %v6593, %v6445
      %v6610 = vmul.f32 %v6594, %v6460
      %v6611 = vmul.f32 %v6595, %v6475
      %v6612 = vmul.f32 %v6596, %v6490
      %v6613 = vmul.f32 %v6597, %v6505
      %v6614 = vmul.f32 %v6598, %v6520
      %v6615 = vmul.f32 %v6599, %v6535
      %v6616 = vadd.f32 %v6600, -0.28449672
      %v6617 = vadd.f32 %v6601, -0.28449672
      %v6618 = vadd.f32 %v6602, -0.28449672
      %v6619 = vadd.f32 %v6603, -0.28449672
      %v6620 = vadd.f32 %v6604, -0.28449672
      %v6621 = vadd.f32 %v6605, -0.28449672
      %v6622 = vadd.f32 %v6606, -0.28449672
      %v6623 = vadd.f32 %v6607, -0.28449672
      %v6624 = vadd.f32 %v6608, -0.28449672
      %v6625 = vadd.f32 %v6609, -0.28449672
      %v6626 = vadd.f32 %v6610, -0.28449672
      %v6627 = vadd.f32 %v6611, -0.28449672
      %v6628 = vadd.f32 %v6612, -0.28449672
      %v6629 = vadd.f32 %v6613, -0.28449672
      %v6630 = vadd.f32 %v6614, -0.28449672
      %v6631 = vadd.f32 %v6615, -0.28449672
      %v6632 = vmul.f32 %v6616, %v6310
      %v6633 = vmul.f32 %v6617, %v6325
      %v6634 = vmul.f32 %v6618, %v6340
      %v6635 = vmul.f32 %v6619, %v6355
      %v6636 = vmul.f32 %v6620, %v6370
      %v6637 = vmul.f32 %v6621, %v6385
      %v6638 = vmul.f32 %v6622, %v6400
      %v6639 = vmul.f32 %v6623, %v6415
      %v6640 = vmul.f32 %v6624, %v6430
      %v6641 = vmul.f32 %v6625, %v6445
      %v6642 = vmul.f32 %v6626, %v6460
      %v6643 = vmul.f32 %v6627, %v6475
      %v6644 = vmul.f32 %v6628, %v6490
      %v6645 = vmul.f32 %v6629, %v6505
      %v6646 = vmul.f32 %v6630, %v6520
      %v6647 = vmul.f32 %v6631, %v6535
      %v6648 = vadd.f32 %v6632, 0.2548296
      %v6649 = vadd.f32 %v6633, 0.2548296
      %v6650 = vadd.f32 %v6634, 0.2548296
      %v6651 = vadd.f32 %v6635, 0.2548296
      %v6652 = vadd.f32 %v6636, 0.2548296
      %v6653 = vadd.f32 %v6637, 0.2548296
      %v6654 = vadd.f32 %v6638, 0.2548296
      %v6655 = vadd.f32 %v6639, 0.2548296
      %v6656 = vadd.f32 %v6640, 0.2548296
      %v6657 = vadd.f32 %v6641, 0.2548296
      %v6658 = vadd.f32 %v6642, 0.2548296
      %v6659 = vadd.f32 %v6643, 0.2548296
      %v6660 = vadd.f32 %v6644, 0.2548296
      %v6661 = vadd.f32 %v6645, 0.2548296
      %v6662 = vadd.f32 %v6646, 0.2548296
      %v6663 = vadd.f32 %v6647, 0.2548296
      %v6664 = vmul.f32 %v6648, %v6310
      %v6665 = vmul.f32 %v6649, %v6325
      %v6666 = vmul.f32 %v6650, %v6340
      %v6667 = vmul.f32 %v6651, %v6355
      %v6668 = vmul.f32 %v6652, %v6370
      %v6669 = vmul.f32 %v6653, %v6385
      %v6670 = vmul.f32 %v6654, %v6400
      %v6671 = vmul.f32 %v6655, %v6415
      %v6672 = vmul.f32 %v6656, %v6430
      %v6673 = vmul.f32 %v6657, %v6445
      %v6674 = vmul.f32 %v6658, %v6460
      %v6675 = vmul.f32 %v6659, %v6475
      %v6676 = vmul.f32 %v6660, %v6490
      %v6677 = vmul.f32 %v6661, %v6505
      %v6678 = vmul.f32 %v6662, %v6520
      %v6679 = vmul.f32 %v6663, %v6535
      %v6680 = vsub.f32 0.0, %v6248
      %v6681 = vsub.f32 0.0, %v6249
      %v6682 = vsub.f32 0.0, %v6250
      %v6683 = vsub.f32 0.0, %v6251
      %v6684 = vsub.f32 0.0, %v6252
      %v6685 = vsub.f32 0.0, %v6253
      %v6686 = vsub.f32 0.0, %v6254
      %v6687 = vsub.f32 0.0, %v6255
      %v6688 = vsub.f32 0.0, %v6256
      %v6689 = vsub.f32 0.0, %v6257
      %v6690 = vsub.f32 0.0, %v6258
      %v6691 = vsub.f32 0.0, %v6259
      %v6692 = vsub.f32 0.0, %v6260
      %v6693 = vsub.f32 0.0, %v6261
      %v6694 = vsub.f32 0.0, %v6262
      %v6695 = vsub.f32 0.0, %v6263
      %v6696 = vmul.f32 %v6680, %v6248
      %v6697 = vmul.f32 %v6681, %v6249
      %v6698 = vmul.f32 %v6682, %v6250
      %v6699 = vmul.f32 %v6683, %v6251
      %v6700 = vmul.f32 %v6684, %v6252
      %v6701 = vmul.f32 %v6685, %v6253
      %v6702 = vmul.f32 %v6686, %v6254
      %v6703 = vmul.f32 %v6687, %v6255
      %v6704 = vmul.f32 %v6688, %v6256
      %v6705 = vmul.f32 %v6689, %v6257
      %v6706 = vmul.f32 %v6690, %v6258
      %v6707 = vmul.f32 %v6691, %v6259
      %v6708 = vmul.f32 %v6692, %v6260
      %v6709 = vmul.f32 %v6693, %v6261
      %v6710 = vmul.f32 %v6694, %v6262
      %v6711 = vmul.f32 %v6695, %v6263
      %v6712 = vmul.f32 %v6696, 1.442695
      %v6713 = vpow.pop %v6712
      %v6714 = vmul.f32 %v6697, 1.442695
      %v6715 = vpow.pop %v6714
      %v6716 = vmul.f32 %v6698, 1.442695
      %v6717 = vpow.pop %v6716
      %v6718 = vmul.f32 %v6699, 1.442695
      %v6719 = vpow.pop %v6718
      %v6720 = vmul.f32 %v6700, 1.442695
      %v6721 = vpow.pop %v6720
      %v6722 = vmul.f32 %v6701, 1.442695
      %v6723 = vpow.pop %v6722
      %v6724 = vmul.f32 %v6702, 1.442695
      %v6725 = vpow.pop %v6724
      %v6726 = vmul.f32 %v6703, 1.442695
      %v6727 = vpow.pop %v6726
      %v6728 = vmul.f32 %v6704, 1.442695
      %v6729 = vpow.pop %v6728
      %v6730 = vmul.f32 %v6705, 1.442695
      %v6731 = vpow.pop %v6730
      %v6732 = vmul.f32 %v6706, 1.442695
      %v6733 = vpow.pop %v6732
      %v6734 = vmul.f32 %v6707, 1.442695
      %v6735 = vpow.pop %v6734
      %v6736 = vmul.f32 %v6708, 1.442695
      %v6737 = vpow.pop %v6736
      %v6738 = vmul.f32 %v6709, 1.442695
      %v6739 = vpow.pop %v6738
      %v6740 = vmul.f32 %v6710, 1.442695
      %v6741 = vpow.pop %v6740
      %v6742 = vmul.f32 %v6711, 1.442695
      %v6743 = vpow.pop %v6742
      %v6744 = vmul.f32 %v6664, %v6713
      %v6745 = vmul.f32 %v6665, %v6715
      %v6746 = vmul.f32 %v6666, %v6717
      %v6747 = vmul.f32 %v6667, %v6719
      %v6748 = vmul.f32 %v6668, %v6721
      %v6749 = vmul.f32 %v6669, %v6723
      %v6750 = vmul.f32 %v6670, %v6725
      %v6751 = vmul.f32 %v6671, %v6727
      %v6752 = vmul.f32 %v6672, %v6729
      %v6753 = vmul.f32 %v6673, %v6731
      %v6754 = vmul.f32 %v6674, %v6733
      %v6755 = vmul.f32 %v6675, %v6735
      %v6756 = vmul.f32 %v6676, %v6737
      %v6757 = vmul.f32 %v6677, %v6739
      %v6758 = vmul.f32 %v6678, %v6741
      %v6759 = vmul.f32 %v6679, %v6743
      %v6760 = vsub.f32 1.0, %v6744
      %v6761 = vsub.f32 1.0, %v6745
      %v6762 = vsub.f32 1.0, %v6746
      %v6763 = vsub.f32 1.0, %v6747
      %v6764 = vsub.f32 1.0, %v6748
      %v6765 = vsub.f32 1.0, %v6749
      %v6766 = vsub.f32 1.0, %v6750
      %v6767 = vsub.f32 1.0, %v6751
      %v6768 = vsub.f32 1.0, %v6752
      %v6769 = vsub.f32 1.0, %v6753
      %v6770 = vsub.f32 1.0, %v6754
      %v6771 = vsub.f32 1.0, %v6755
      %v6772 = vsub.f32 1.0, %v6756
      %v6773 = vsub.f32 1.0, %v6757
      %v6774 = vsub.f32 1.0, %v6758
      %v6775 = vsub.f32 1.0, %v6759
      %v6776 = vmul.f32 %v6232, %v6760
      %v6777 = vmul.f32 %v6233, %v6761
      %v6778 = vmul.f32 %v6234, %v6762
      %v6779 = vmul.f32 %v6235, %v6763
      %v6780 = vmul.f32 %v6236, %v6764
      %v6781 = vmul.f32 %v6237, %v6765
      %v6782 = vmul.f32 %v6238, %v6766
      %v6783 = vmul.f32 %v6239, %v6767
      %v6784 = vmul.f32 %v6240, %v6768
      %v6785 = vmul.f32 %v6241, %v6769
      %v6786 = vmul.f32 %v6242, %v6770
      %v6787 = vmul.f32 %v6243, %v6771
      %v6788 = vmul.f32 %v6244, %v6772
      %v6789 = vmul.f32 %v6245, %v6773
      %v6790 = vmul.f32 %v6246, %v6774
      %v6791 = vmul.f32 %v6247, %v6775
      %v6792 = vadd.f32 %v6776, 1.0
      %v6793 = vadd.f32 %v6777, 1.0
      %v6794 = vadd.f32 %v6778, 1.0
      %v6795 = vadd.f32 %v6779, 1.0
      %v6796 = vadd.f32 %v6780, 1.0
      %v6797 = vadd.f32 %v6781, 1.0
      %v6798 = vadd.f32 %v6782, 1.0
      %v6799 = vadd.f32 %v6783, 1.0
      %v6800 = vadd.f32 %v6784, 1.0
      %v6801 = vadd.f32 %v6785, 1.0
      %v6802 = vadd.f32 %v6786, 1.0
      %v6803 = vadd.f32 %v6787, 1.0
      %v6804 = vadd.f32 %v6788, 1.0
      %v6805 = vadd.f32 %v6789, 1.0
      %v6806 = vadd.f32 %v6790, 1.0
      %v6807 = vadd.f32 %v6791, 1.0
      %v6808 = vmul.f32 %v6184, %v6792
      %v6809 = vmul.f32 %v6185, %v6793
      %v6810 = vmul.f32 %v6186, %v6794
      %v6811 = vmul.f32 %v6187, %v6795
      %v6812 = vmul.f32 %v6188, %v6796
      %v6813 = vmul.f32 %v6189, %v6797
      %v6814 = vmul.f32 %v6190, %v6798
      %v6815 = vmul.f32 %v6191, %v6799
      %v6816 = vmul.f32 %v6192, %v6800
      %v6817 = vmul.f32 %v6193, %v6801
      %v6818 = vmul.f32 %v6194, %v6802
      %v6819 = vmul.f32 %v6195, %v6803
      %v6820 = vmul.f32 %v6196, %v6804
      %v6821 = vmul.f32 %v6197, %v6805
      %v6822 = vmul.f32 %v6198, %v6806
      %v6823 = vmul.f32 %v6199, %v6807
      %v6824 = vpack.c.bf16 %v6809, %v6808
      %v6825 = vpack.c.bf16 %v6811, %v6810
      %v6826 = vpack.c.bf16 %v6813, %v6812
      %v6827 = vpack.c.bf16 %v6815, %v6814
      %v6828 = vpack.c.bf16 %v6817, %v6816
      %v6829 = vpack.c.bf16 %v6819, %v6818
      %v6830 = vpack.c.bf16 %v6821, %v6820
      %v6831 = vpack.c.bf16 %v6823, %v6822
      %v6832 = vld [vmem:[%s641] sm:$0xf]
      %v6833 = vld [vmem:[%s641 + $0x4] sm:$0xf]
      %v6834 = vld [vmem:[%s641 + $0x8] sm:$0xf]
      %v6835 = vld [vmem:[%s641 + $0xc] sm:$0xf]
      %v6836 = vld [vmem:[%s641 + $0x10] sm:$0xf]
      %v6837 = vld [vmem:[%s641 + $0x14] sm:$0xf]
      %v6838 = vld [vmem:[%s641 + $0x18] sm:$0xf]
      %v6839 = vld [vmem:[%s641 + $0x1c] sm:$0xf]
      %v6840 = vld [vmem:[%s641 + $0x20] sm:$0xf]
      %v6841 = vld [vmem:[%s641 + $0x24] sm:$0xf]
      %v6842 = vld [vmem:[%s641 + $0x28] sm:$0xf]
      %v6843 = vld [vmem:[%s641 + $0x2c] sm:$0xf]
      %v6844 = vld [vmem:[%s641 + $0x30] sm:$0xf]
      %v6845 = vld [vmem:[%s641 + $0x34] sm:$0xf]
      %v6846 = vld [vmem:[%s641 + $0x38] sm:$0xf]
      %v6847 = vld [vmem:[%s641 + $0x3c] sm:$0xf]
      %v6864 = vunpack.c.l.b16 %v6832
      %v6865 = vunpack.c.l.b16 %v6833
      %v6866 = vunpack.c.l.b16 %v6834
      %v6867 = vunpack.c.l.b16 %v6835
      %v6868 = vunpack.c.l.b16 %v6836
      %v6869 = vunpack.c.l.b16 %v6837
      %v6870 = vunpack.c.l.b16 %v6838
      %v6871 = vunpack.c.l.b16 %v6839
      %v6872 = vunpack.c.l.b16 %v6840
      %v6873 = vunpack.c.l.b16 %v6841
      %v6874 = vunpack.c.l.b16 %v6842
      %v6875 = vunpack.c.l.b16 %v6843
      %v6876 = vunpack.c.l.b16 %v6844
      %v6877 = vunpack.c.l.b16 %v6845
      %v6878 = vunpack.c.l.b16 %v6846
      %v6879 = vunpack.c.l.b16 %v6847
      %v6880 = vpack.c.b16 %v6865, %v6864
      %v6881 = vpack.c.b16 %v6867, %v6866
      %v6882 = vpack.c.b16 %v6869, %v6868
      %v6883 = vpack.c.b16 %v6871, %v6870
      %v6884 = vpack.c.b16 %v6873, %v6872
      %v6885 = vpack.c.b16 %v6875, %v6874
      %v6886 = vpack.c.b16 %v6877, %v6876
      %v6887 = vpack.c.b16 %v6879, %v6878
      %6896 = vmatpush.bf16.msra.mxu0 %v6887
      %6897 = vmatpush.bf16.msra.mxu0 %v6886
      %6898 = vmatpush.bf16.msra.mxu0 %v6885
      %6899 = vmatpush.bf16.msra.mxu0 %v6884
      %6900 = vmatpush.bf16.msra.mxu0 %v6883
      %6901 = vmatpush.bf16.msra.mxu0 %v6882
      %6902 = vmatpush.bf16.msra.mxu0 %v6881
      %6903 = vmatpush.bf16.msra.mxu0 %v6880
      %6904 = vmatmul.bf16.gmra.mxu0 %v6824
      %v6905 = vpop.f32.mrf.mxu0
      %v6906 = vadd.f32 0.0, %v6905
      %v6907 = vpop.f32.mrf.mxu0
      %v6908 = vadd.f32 0.0, %v6907
      %6909 = vmatmul.bf16.gmra.mxu0 %v6825
      %v6910 = vpop.f32.mrf.mxu0
      %v6911 = vadd.f32 0.0, %v6910
      %v6912 = vpop.f32.mrf.mxu0
      %v6913 = vadd.f32 0.0, %v6912
      %6914 = vmatmul.bf16.gmra.mxu0 %v6826
      %v6915 = vpop.f32.mrf.mxu0
      %v6916 = vadd.f32 0.0, %v6915
      %v6917 = vpop.f32.mrf.mxu0
      %v6918 = vadd.f32 0.0, %v6917
      %6919 = vmatmul.bf16.gmra.mxu0 %v6827
      %v6920 = vpop.f32.mrf.mxu0
      %v6921 = vadd.f32 0.0, %v6920
      %v6922 = vpop.f32.mrf.mxu0
      %v6923 = vadd.f32 0.0, %v6922
      %6924 = vmatmul.bf16.gmra.mxu0 %v6828
      %v6925 = vpop.f32.mrf.mxu0
      %v6926 = vadd.f32 0.0, %v6925
      %v6927 = vpop.f32.mrf.mxu0
      %v6928 = vadd.f32 0.0, %v6927
      %6929 = vmatmul.bf16.gmra.mxu0 %v6829
      %v6930 = vpop.f32.mrf.mxu0
      %v6931 = vadd.f32 0.0, %v6930
      %v6932 = vpop.f32.mrf.mxu0
      %v6933 = vadd.f32 0.0, %v6932
      %6934 = vmatmul.bf16.gmra.mxu0 %v6830
      %v6935 = vpop.f32.mrf.mxu0
      %v6936 = vadd.f32 0.0, %v6935
      %v6937 = vpop.f32.mrf.mxu0
      %v6938 = vadd.f32 0.0, %v6937
      %6939 = vmatmul.bf16.gmra.mxu0 %v6831
      %v6940 = vpop.f32.mrf.mxu0
      %v6941 = vadd.f32 0.0, %v6940
      %v6942 = vpop.f32.mrf.mxu0
      %v6943 = vadd.f32 0.0, %v6942
      %6944 = vdwg.mxu0
      %v6945 = vadd.f32 %v5675, %v6906
      %v6946 = vadd.f32 %v5676, %v6908
      %v6947 = vadd.f32 %v5677, %v6911
      %v6948 = vadd.f32 %v5678, %v6913
      %v6949 = vadd.f32 %v5679, %v6916
      %v6950 = vadd.f32 %v5680, %v6918
      %v6951 = vadd.f32 %v5681, %v6921
      %v6952 = vadd.f32 %v5682, %v6923
      %v6953 = vadd.f32 %v5683, %v6926
      %v6954 = vadd.f32 %v5684, %v6928
      %v6955 = vadd.f32 %v5685, %v6931
      %v6956 = vadd.f32 %v5686, %v6933
      %v6957 = vadd.f32 %v5687, %v6936
      %v6958 = vadd.f32 %v5688, %v6938
      %v6959 = vadd.f32 %v5689, %v6941
      %v6960 = vadd.f32 %v5690, %v6943
      %v6961 = vld [vmem:[%s644] sm:$0x1]
      %v6963 = vperm.slane %v6961, 0
      %v6965 = vadd.f32 %v6945, %v6963
      %v6966 = vadd.f32 %v6946, %v6963
      %v6967 = vadd.f32 %v6947, %v6963
      %v6968 = vadd.f32 %v6948, %v6963
      %v6969 = vadd.f32 %v6949, %v6963
      %v6970 = vadd.f32 %v6950, %v6963
      %v6971 = vadd.f32 %v6951, %v6963
      %v6972 = vadd.f32 %v6952, %v6963
      %v6973 = vadd.f32 %v6953, %v6963
      %v6974 = vadd.f32 %v6954, %v6963
      %v6975 = vadd.f32 %v6955, %v6963
      %v6976 = vadd.f32 %v6956, %v6963
      %v6977 = vadd.f32 %v6957, %v6963
      %v6978 = vadd.f32 %v6958, %v6963
      %v6979 = vadd.f32 %v6959, %v6963
      %v6980 = vadd.f32 %v6960, %v6963
      %6981 = vst.msk [vmem:[%s649] sm:$0xff] %vm722, %v6965
      %6982 = vst.msk [vmem:[%s649 + $0x8] sm:$0xff] %vm722, %v6966
      %6983 = vst.msk [vmem:[%s649 + $0x10] sm:$0xff] %vm722, %v6967
      %6984 = vst.msk [vmem:[%s649 + $0x18] sm:$0xff] %vm722, %v6968
      %6985 = vst.msk [vmem:[%s649 + $0x20] sm:$0xff] %vm722, %v6969
      %6986 = vst.msk [vmem:[%s649 + $0x28] sm:$0xff] %vm722, %v6970
      %6987 = vst.msk [vmem:[%s649 + $0x30] sm:$0xff] %vm722, %v6971
      %6988 = vst.msk [vmem:[%s649 + $0x38] sm:$0xff] %vm722, %v6972
      %6989 = vst.msk [vmem:[%s649 + $0x40] sm:$0xff] %vm722, %v6973
      %6990 = vst.msk [vmem:[%s649 + $0x48] sm:$0xff] %vm722, %v6974
      %6991 = vst.msk [vmem:[%s649 + $0x50] sm:$0xff] %vm722, %v6975
      %6992 = vst.msk [vmem:[%s649 + $0x58] sm:$0xff] %vm722, %v6976
      %6993 = vst.msk [vmem:[%s649 + $0x60] sm:$0xff] %vm722, %v6977
      %6994 = vst.msk [vmem:[%s649 + $0x68] sm:$0xff] %vm722, %v6978
      %6995 = vst.msk [vmem:[%s649 + $0x70] sm:$0xff] %vm722, %v6979
      %6996 = vst.msk [vmem:[%s649 + $0x78] sm:$0xff] %vm722, %v6980
      %s6997 = smul.u32 16, %s28
      %p6998 = scmp.lt.s32.totalorder %s6997, 31
      %s6999 = scalar_select %p6998, %s6997, 31
      %s7000 = smul.addr %s6999, 8
      %s7001 = scalar_lea.vmem %s13, %s7000
      // Predicated region
      $region77: #{vit_forward.4} parent=71 // pred_check
        %p7002 = pneg %p392
      $region78: #{vit_forward.4} parent=71 // pred_check_branch
        %7004 = sbr.rel (%p7002) target = $region80
      $region79: #{vit_forward.4} parent=71 // pred_region
        %s7005 = smul.u32 16, %s28
      $region80: #{vit_forward.4} parent=71 // pred_fallthru
        _
    $region72: #{vit_forward.4} parent=5 // pred_fallthru
      _
    %p7006 = scmp.le.s32.totalorder 2, %s19
    // Predicated region
    $region81: #{vit_forward.4} parent=5 // pred_check
      %p7007 = pneg %p7006
    $region82: #{vit_forward.4} parent=5 // pred_check_branch
      %7009 = sbr.rel (%p7007) target = $region84
    $region83: #{vit_forward.4} parent=5 // pred_region
      %s7010 = ssub.s32 %s19, 2
      // Predicated region
      $region85: #{vit_forward.4} parent=83 // pred_check
        %p7011 = pneg %p398
      $region86: #{vit_forward.4} parent=83 // pred_check_branch
        %7013 = sbr.rel (%p7011) target = $region88
      $region87: #{vit_forward.4} parent=83 // pred_region
        %s7014 = smul.u32 16, %s30
        %p7015 = scmp.lt.s32.totalorder %s7014, 31
        %s7016 = scalar_select %p7015, %s7014, 31
        %s7017 = smul.addr %s7016, 8
        %s7018 = scalar_lea.vmem %s13, %s7017
      $region88: #{vit_forward.4} parent=83 // pred_fallthru
        _
    $region84: #{vit_forward.4} parent=5 // pred_fallthru
      _
  $region6: #{vit_forward.4} parent=0 // loop_footer
    %s23 = sadd.s32 1, %s19
  $region7: #{vit_forward.4} parent=0 // loop_footer_branch
    %18 = sbr.rel target = $region3
  $region8: #{vit_forward.4} parent=0 // loop_exit
    _

</llo_original>
